<compile_context>
chip_gen: v7x
topology: tpu7x:2x2x1
jax: 0.10.0
libtpu: 0.0.40
codegen_flags: <defaults>
</compile_context>

<pallas_src>
import math
import jax
import jax.numpy as jnp
from jax import lax
from jax.experimental import pallas as pl
from jax.experimental.pallas import tpu as pltpu

D_MODEL = 8        # forced by nn.Linear(1, 8)
N_HEAD = 2
FFN_HIDDEN = 32
N_LAYERS = 2
EPS = 1e-12        # custom LayerNorm eps in the reference codebase


def encoder_kernel(x_ref, w1_ref, w2_ref, vec_ref, out_ref):
    d, f, h = D_MODEL, FFN_HIDDEN, N_HEAD
    dh = d // h
    tb, s, _ = x_ref.shape
    n = tb * s
    pw = (2 + h) * d                     # packed projection width: q | k | v@Wo per head

    # ---- row-indexed, lane-0-aligned resident parameters ----
    w_in = vec_ref[0:1, :d]              # Linear(1,d) weight row
    b_in = vec_ref[1:2, :d]              # Linear(1,d) bias row
    w_xp = vec_ref[2:3, :pw]             # w_in @ [Wq*s | Wk | Wv0@Wo0 | Wv1@Wo1]
    b_xp = vec_ref[3:4, :pw]             # b_in @ Wproj + [bq*s | bk | bv0@Wo0 | bv1@Wo1]
    b_o  = vec_ref[4:5, :d]
    g1   = vec_ref[5:6, :d]
    be1  = vec_ref[6:7, :d]
    b_1  = vec_ref[7:8, :f]
    b_2  = vec_ref[8:9, :d]
    g2   = vec_ref[9:10, :d]
    be2  = vec_ref[10:11, :d]

    def layernorm(y, gamma, beta):
        mean = jnp.mean(y, axis=-1, keepdims=True)
        var = jnp.mean((y - mean) ** 2, axis=-1, keepdims=True)   # unbiased=False
        return (y - mean) * lax.rsqrt(var + EPS) * gamma + beta

    # ---- value2vector + fused Q/K/(V@Wo) projection: two broadcast FMAs, no MXU ----
    x3 = x_ref[...]                      # [tb, s, 1]
    v2v = x3 * w_in + b_in               # [tb, s, d]
    proj = x3 * w_xp + b_xp              # [tb, s, (2+h)d] == v2v @ Wproj + bproj (exact algebra)

    # ---- multi-head attention: heads statically unrolled, no stack/concat ----
    attn = None
    for i in range(h):
        q_i = proj[:, :, i * dh:(i + 1) * dh]              # [tb, s, dh] (1/sqrt(dh) pre-folded)
        k_i = proj[:, :, d + i * dh:d + (i + 1) * dh]      # [tb, s, dh]
        vo_i = proj[:, :, 2 * d + i * d:2 * d + (i + 1) * d]  # [tb, s, d] (W_o pre-folded)
        sc = jnp.einsum('bqc,bkc->bqk', q_i, k_i,
                        preferred_element_type=jnp.float32)   # [tb, s, s]
        sc = sc - jnp.max(sc, axis=-1, keepdims=True)
        p = jnp.exp(sc)
        p = p / jnp.sum(p, axis=-1, keepdims=True)            # exact divide
        o_i = jnp.einsum('bqk,bkv->bqv', p, vo_i,
                         preferred_element_type=jnp.float32)  # [tb, s, d]
        attn = o_i if attn is None else attn + o_i
    attn = attn + b_o

    # dropout1 identity (eval); residual + norm1
    x1 = layernorm(attn + v2v, g1, be1)                       # [tb, s, d]

    # ---- position-wise FFN on flattened [tb*s, .] rows (fills MXU M dim) ----
    x1f = x1.reshape(n, d)
    hdn = jnp.maximum(
        jnp.dot(x1f, w1_ref[...], preferred_element_type=jnp.float32) + b_1, 0.0)
    ffn = jnp.dot(hdn, w2_ref[...], preferred_element_type=jnp.float32) + b_2

    # dropout2 identity; residual + norm2
    x2 = layernorm(ffn + x1f, g2, be2)                        # [n, d]
    out_ref[...] = x2.reshape(tb, s, d).astype(out_ref.dtype)


def _pack_params(params):
    """Fold scale / W_o / Linear(1,d) into the projection and pack row-indexed params."""
    (w_in, b_in, wq, bq, wk, bk, wv, bv, wo, bo,
     g1, be1, w1, b1, w2, b2, g2, be2) = params
    d, f, h = D_MODEL, FFN_HIDDEN, N_HEAD
    dh = d // h
    l = N_LAYERS - 1   # only the last layer's output is ever returned (module quirk)
    scale = 1.0 / math.sqrt(dh)

    wq_s, bq_s = wq[l] * scale, bq[l] * scale
    wvo = [wv[l][:, i * dh:(i + 1) * dh] @ wo[l][i * dh:(i + 1) * dh, :] for i in range(h)]
    bvo = [bv[l][:, i * dh:(i + 1) * dh] @ wo[l][i * dh:(i + 1) * dh, :] for i in range(h)]
    w_proj = jnp.concatenate([wq_s, wk[l]] + wvo, axis=1)      # [d, (2+h)d]
    b_proj = jnp.concatenate([bq_s, bk[l]] + bvo, axis=1)      # [1, (2+h)d]

    w_xp = w_in @ w_proj                                       # [1, (2+h)d]
    b_xp = b_in @ w_proj + b_proj                              # [1, (2+h)d]

    width = max(w_proj.shape[1], f)
    def row(v):
        return jnp.pad(v, ((0, 0), (0, width - v.shape[1])))
    vec = jnp.concatenate(
        [row(w_in), row(b_in), row(w_xp), row(b_xp), row(bo[l]),
         row(g1[l]), row(be1[l]), row(b1[l]), row(b2[l]), row(g2[l]), row(be2[l])],
        axis=0)                                                # [11, width]
    return w1[l], w2[l], vec


def encoder_forward(x, params):
    B, S, _ = x.shape
    d, f = D_MODEL, FFN_HIDDEN
    w1l, w2l, vec = _pack_params(params)
    n_rows, width = vec.shape

    # Batch tile: multiple of 8, capped at 256, sized near ceil(B/2) so the
    # parallel grid axis has >=2 blocks (keeps both v7x TensorCores busy).
    # VMEM never binds for this kernel, so no vmem_limit override is needed.
    half = -(-B // 2)
    tb = max(8, min(256, -(-half // 8) * 8))
    b_pad = -(-B // tb) * tb
    xp = x if b_pad == B else jnp.pad(x, ((0, b_pad - B), (0, 0), (0, 0)))
    grid = (b_pad // tb,)

    out = pl.pallas_call(
        encoder_kernel,
        out_shape=jax.ShapeDtypeStruct((b_pad, S, d), jnp.float32),
        grid=grid,
        in_specs=[
            pl.BlockSpec((tb, S, 1), lambda i: (i, 0, 0)),          # x, TB elems per step
            pl.BlockSpec((d, f), lambda i: (0, 0)),                 # W1 (resident)
            pl.BlockSpec((f, d), lambda i: (0, 0)),                 # W2 (resident)
            pl.BlockSpec((n_rows, width), lambda i: (0, 0)),        # packed rows (resident)
        ],
        out_specs=pl.BlockSpec((tb, S, d), lambda i: (i, 0, 0)),
        compiler_params=pltpu.CompilerParams(
            dimension_semantics=("parallel",)),
    )(xp, w1l, w2l, vec)
    return out[:B]


def init_params(key):
    d, f, L = D_MODEL, FFN_HIDDEN, N_LAYERS
    ks = jax.random.split(key, 14)
    n = lambda k, shp: jax.random.normal(k, shp, jnp.float32) * 0.1
    w_in = n(ks[0], (1, d));  b_in = n(ks[1], (1, d))
    wq = n(ks[2], (L, d, d)); bq = n(ks[3], (L, 1, d))
    wk = n(ks[4], (L, d, d)); bk = n(ks[5], (L, 1, d))
    wv = n(ks[6], (L, d, d)); bv = n(ks[7], (L, 1, d))
    wo = n(ks[8], (L, d, d)); bo = n(ks[9], (L, 1, d))
    g1 = jnp.ones((L, 1, d), jnp.float32); be1 = jnp.zeros((L, 1, d), jnp.float32)
    w1 = n(ks[10], (L, d, f)); b1 = n(ks[11], (L, 1, f))
    w2 = n(ks[12], (L, f, d)); b2 = n(ks[13], (L, 1, d))
    g2 = jnp.ones((L, 1, d), jnp.float32); be2 = jnp.zeros((L, 1, d), jnp.float32)
    return [w_in, b_in, wq, bq, wk, bk, wv, bv, wo, bo,
            g1, be1, w1, b1, w2, b2, g2, be2]


def encoder_ref(x, params):
    """Pure-JAX reference mirroring the PyTorch forward (eval mode, all layers)."""
    (w_in, b_in, wq, bq, wk, bk, wv, bv, wo, bo,
     g1, be1, w1, b1, w2, b2, g2, be2) = params
    v2v = x @ w_in + b_in                      # [B, S, d]
    B, S, d = v2v.shape
    h, dh = N_HEAD, d // N_HEAD

    def ln(y, g, b):
        m = y.mean(-1, keepdims=True)
        var = ((y - m) ** 2).mean(-1, keepdims=True)
        return (y - m) / jnp.sqrt(var + EPS) * g + b

    out = None
    for l in range(N_LAYERS):
        xin = v2v
        q = xin @ wq[l] + bq[l]
        k = xin @ wk[l] + bk[l]
        v = xin @ wv[l] + bv[l]
        qh = q.reshape(B, S, h, dh).transpose(0, 2, 1, 3)
        kh = k.reshape(B, S, h, dh).transpose(0, 2, 1, 3)
        vh = v.reshape(B, S, h, dh).transpose(0, 2, 1, 3)
        score = (qh @ kh.transpose(0, 1, 3, 2)) / math.sqrt(dh)
        p = jax.nn.softmax(score, axis=-1)
        o = (p @ vh).transpose(0, 2, 1, 3).reshape(B, S, d)
        attn = o @ wo[l] + bo[l]
        x1 = ln(attn + xin, g1[l], be1[l])
        hdn = jax.nn.relu(x1 @ w1[l] + b1[l])
        ffn = hdn @ w2[l] + b2[l]
        out = ln(ffn + x1, g2[l], be2[l])
    return out


if __name__ == "__main__":
    key = jax.random.PRNGKey(0)
    kx, kp = jax.random.split(key)
    B, S = 20, 8                       # B=20 exercises the pad-to-tile path (TB=16, grid=(2,))
    x = jax.random.normal(kx, (B, S, 1), jnp.float32)
    params = init_params(kp)

    out = jax.block_until_ready(encoder_forward(x, params))
    ref = encoder_ref(x, params)
    assert out.shape == (B, S, D_MODEL)
    err = jnp.max(jnp.abs(out - ref))
    assert jnp.allclose(out, ref, rtol=1e-4, atol=1e-5), f"max abs err {err}"
    print("KERNEL_OK")
</pallas_src>

<mosaic_0001>
module attributes {stable_mosaic.version = 11 : i64} {
  func.func @encoder_kernel(%arg0: i32, %arg1: memref<16x8x1xf32, #tpu.memory_space<vmem>>, %arg2: memref<8x32xf32, #tpu.memory_space<vmem>>, %arg3: memref<32x8xf32, #tpu.memory_space<vmem>>, %arg4: memref<11x32xf32, #tpu.memory_space<vmem>>, %arg5: memref<16x8x8xf32, #tpu.memory_space<vmem>>) attributes {dimension_semantics = [#tpu.dimension_semantics<parallel>], iteration_bounds = array<i64: 2>, scalar_prefetch = 0 : i64, scratch_operands = 0 : i64, tpu.core_type = #tpu.core_type<tc>, window_params = [{transform_indices = @transform_0, window_bounds = array<i64: 16, 8, 1>}, {pipeline_mode = #tpu.pipeline_mode<synchronous>, transform_indices = @transform_1, window_bounds = array<i64: 8, 32>}, {pipeline_mode = #tpu.pipeline_mode<synchronous>, transform_indices = @transform_2, window_bounds = array<i64: 32, 8>}, {pipeline_mode = #tpu.pipeline_mode<synchronous>, transform_indices = @transform_3, window_bounds = array<i64: 11, 32>}, {transform_indices = @transform_4, window_bounds = array<i64: 16, 8, 8>}]} {
    %c0 = arith.constant 0 : index
    %c0_0 = arith.constant 0 : index
    %0 = vector.load %arg4[%c0, %c0_0] : memref<11x32xf32, #tpu.memory_space<vmem>>, vector<1x8xf32>
    %c1 = arith.constant 1 : index
    %c0_1 = arith.constant 0 : index
    %1 = vector.load %arg4[%c1, %c0_1] : memref<11x32xf32, #tpu.memory_space<vmem>>, vector<1x8xf32>
    %c2 = arith.constant 2 : index
    %c0_2 = arith.constant 0 : index
    %2 = vector.load %arg4[%c2, %c0_2] : memref<11x32xf32, #tpu.memory_space<vmem>>, vector<1x32xf32>
    %c3 = arith.constant 3 : index
    %c0_3 = arith.constant 0 : index
    %3 = vector.load %arg4[%c3, %c0_3] : memref<11x32xf32, #tpu.memory_space<vmem>>, vector<1x32xf32>
    %c4 = arith.constant 4 : index
    %c0_4 = arith.constant 0 : index
    %4 = vector.load %arg4[%c4, %c0_4] : memref<11x32xf32, #tpu.memory_space<vmem>>, vector<1x8xf32>
    %c5 = arith.constant 5 : index
    %c0_5 = arith.constant 0 : index
    %5 = vector.load %arg4[%c5, %c0_5] : memref<11x32xf32, #tpu.memory_space<vmem>>, vector<1x8xf32>
    %c6 = arith.constant 6 : index
    %c0_6 = arith.constant 0 : index
    %6 = vector.load %arg4[%c6, %c0_6] : memref<11x32xf32, #tpu.memory_space<vmem>>, vector<1x8xf32>
    %c7 = arith.constant 7 : index
    %c0_7 = arith.constant 0 : index
    %7 = vector.load %arg4[%c7, %c0_7] : memref<11x32xf32, #tpu.memory_space<vmem>>, vector<1x32xf32>
    %c8 = arith.constant 8 : index
    %c0_8 = arith.constant 0 : index
    %8 = vector.load %arg4[%c8, %c0_8] : memref<11x32xf32, #tpu.memory_space<vmem>>, vector<1x8xf32>
    %c9 = arith.constant 9 : index
    %c0_9 = arith.constant 0 : index
    %9 = vector.load %arg4[%c9, %c0_9] : memref<11x32xf32, #tpu.memory_space<vmem>>, vector<1x8xf32>
    %c10 = arith.constant 10 : index
    %c0_10 = arith.constant 0 : index
    %10 = vector.load %arg4[%c10, %c0_10] : memref<11x32xf32, #tpu.memory_space<vmem>>, vector<1x8xf32>
    %c0_11 = arith.constant 0 : index
    %c0_12 = arith.constant 0 : index
    %c0_13 = arith.constant 0 : index
    %11 = vector.load %arg1[%c0_11, %c0_12, %c0_13] : memref<16x8x1xf32, #tpu.memory_space<vmem>>, vector<16x8x1xf32>
    %12 = vector.shape_cast %0 : vector<1x8xf32> to vector<1x1x8xf32>
    %13 = vector.broadcast %11 : vector<16x8x1xf32> to vector<16x8x8xf32>
    %14 = vector.broadcast %12 : vector<1x1x8xf32> to vector<16x8x8xf32>
    %15 = arith.mulf %13, %14 : vector<16x8x8xf32>
    %16 = vector.shape_cast %1 : vector<1x8xf32> to vector<1x1x8xf32>
    %17 = vector.broadcast %16 : vector<1x1x8xf32> to vector<16x8x8xf32>
    %18 = arith.addf %15, %17 : vector<16x8x8xf32>
    %19 = vector.shape_cast %2 : vector<1x32xf32> to vector<1x1x32xf32>
    %20 = vector.broadcast %11 : vector<16x8x1xf32> to vector<16x8x32xf32>
    %21 = vector.broadcast %19 : vector<1x1x32xf32> to vector<16x8x32xf32>
    %22 = arith.mulf %20, %21 : vector<16x8x32xf32>
    %23 = vector.shape_cast %3 : vector<1x32xf32> to vector<1x1x32xf32>
    %24 = vector.broadcast %23 : vector<1x1x32xf32> to vector<16x8x32xf32>
    %25 = arith.addf %22, %24 : vector<16x8x32xf32>
    %26 = vector.extract_strided_slice %25 {offsets = [0, 0, 0], sizes = [16, 8, 4], strides = [1, 1, 1]} : vector<16x8x32xf32> to vector<16x8x4xf32>
    %27 = vector.extract_strided_slice %25 {offsets = [0, 0, 8], sizes = [16, 8, 4], strides = [1, 1, 1]} : vector<16x8x32xf32> to vector<16x8x4xf32>
    %28 = vector.extract_strided_slice %25 {offsets = [0, 0, 16], sizes = [16, 8, 8], strides = [1, 1, 1]} : vector<16x8x32xf32> to vector<16x8x8xf32>
    "tpu.trace_start"() <{level = 10 : i32, message = "bqc,bkc->bqk"}> : () -> ()
    %cst = arith.constant dense<0.000000e+00> : vector<16x8x8xf32>
    %29 = tpu.matmul %26, %27, %cst {dimension_numbers = #tpu.dot_dimension_numbers<[2], [2], [1], [1], [0, 0, 0, 1, 1, 1], [0], [0]>} : vector<16x8x4xf32>, vector<16x8x4xf32>, vector<16x8x8xf32> -> vector<16x8x8xf32>
    "tpu.trace_stop"() : () -> ()
    %cst_14 = arith.constant dense<0xFF800000> : vector<16x8xf32>
    %30 = vector.multi_reduction <maximumf>, %29, %cst_14 [2] : vector<16x8x8xf32> to vector<16x8xf32>
    %31 = vector.shape_cast %30 : vector<16x8xf32> to vector<16x8x1xf32>
    %32 = vector.broadcast %31 : vector<16x8x1xf32> to vector<16x8x8xf32>
    %33 = arith.subf %29, %32 : vector<16x8x8xf32>
    %34 = math.exp %33 : vector<16x8x8xf32>
    %cst_15 = arith.constant dense<0.000000e+00> : vector<16x8xf32>
    %35 = vector.multi_reduction <add>, %34, %cst_15 [2] : vector<16x8x8xf32> to vector<16x8xf32>
    %36 = vector.shape_cast %35 : vector<16x8xf32> to vector<16x8x1xf32>
    %37 = vector.broadcast %36 : vector<16x8x1xf32> to vector<16x8x8xf32>
    %38 = arith.divf %34, %37 : vector<16x8x8xf32>
    "tpu.trace_start"() <{level = 10 : i32, message = "bqk,bkv->bqv"}> : () -> ()
    %cst_16 = arith.constant dense<0.000000e+00> : vector<16x8x8xf32>
    %39 = tpu.matmul %38, %28, %cst_16 {dimension_numbers = #tpu.dot_dimension_numbers<[2], [1], [1], [2], [0, 0, 0, 1, 1, 2], [0], [0]>} : vector<16x8x8xf32>, vector<16x8x8xf32>, vector<16x8x8xf32> -> vector<16x8x8xf32>
    "tpu.trace_stop"() : () -> ()
    %40 = vector.extract_strided_slice %25 {offsets = [0, 0, 4], sizes = [16, 8, 4], strides = [1, 1, 1]} : vector<16x8x32xf32> to vector<16x8x4xf32>
    %41 = vector.extract_strided_slice %25 {offsets = [0, 0, 12], sizes = [16, 8, 4], strides = [1, 1, 1]} : vector<16x8x32xf32> to vector<16x8x4xf32>
    %42 = vector.extract_strided_slice %25 {offsets = [0, 0, 24], sizes = [16, 8, 8], strides = [1, 1, 1]} : vector<16x8x32xf32> to vector<16x8x8xf32>
    "tpu.trace_start"() <{level = 10 : i32, message = "bqc,bkc->bqk"}> : () -> ()
    %cst_17 = arith.constant dense<0.000000e+00> : vector<16x8x8xf32>
    %43 = tpu.matmul %40, %41, %cst_17 {dimension_numbers = #tpu.dot_dimension_numbers<[2], [2], [1], [1], [0, 0, 0, 1, 1, 1], [0], [0]>} : vector<16x8x4xf32>, vector<16x8x4xf32>, vector<16x8x8xf32> -> vector<16x8x8xf32>
    "tpu.trace_stop"() : () -> ()
    %cst_18 = arith.constant dense<0xFF800000> : vector<16x8xf32>
    %44 = vector.multi_reduction <maximumf>, %43, %cst_18 [2] : vector<16x8x8xf32> to vector<16x8xf32>
    %45 = vector.shape_cast %44 : vector<16x8xf32> to vector<16x8x1xf32>
    %46 = vector.broadcast %45 : vector<16x8x1xf32> to vector<16x8x8xf32>
    %47 = arith.subf %43, %46 : vector<16x8x8xf32>
    %48 = math.exp %47 : vector<16x8x8xf32>
    %cst_19 = arith.constant dense<0.000000e+00> : vector<16x8xf32>
    %49 = vector.multi_reduction <add>, %48, %cst_19 [2] : vector<16x8x8xf32> to vector<16x8xf32>
    %50 = vector.shape_cast %49 : vector<16x8xf32> to vector<16x8x1xf32>
    %51 = vector.broadcast %50 : vector<16x8x1xf32> to vector<16x8x8xf32>
    %52 = arith.divf %48, %51 : vector<16x8x8xf32>
    "tpu.trace_start"() <{level = 10 : i32, message = "bqk,bkv->bqv"}> : () -> ()
    %cst_20 = arith.constant dense<0.000000e+00> : vector<16x8x8xf32>
    %53 = tpu.matmul %52, %42, %cst_20 {dimension_numbers = #tpu.dot_dimension_numbers<[2], [1], [1], [2], [0, 0, 0, 1, 1, 2], [0], [0]>} : vector<16x8x8xf32>, vector<16x8x8xf32>, vector<16x8x8xf32> -> vector<16x8x8xf32>
    "tpu.trace_stop"() : () -> ()
    %54 = arith.addf %39, %53 : vector<16x8x8xf32>
    %55 = vector.shape_cast %4 : vector<1x8xf32> to vector<1x1x8xf32>
    %56 = vector.broadcast %55 : vector<1x1x8xf32> to vector<16x8x8xf32>
    %57 = arith.addf %54, %56 : vector<16x8x8xf32>
    %58 = arith.addf %57, %18 : vector<16x8x8xf32>
    %cst_21 = arith.constant dense<0.000000e+00> : vector<16x8xf32>
    %59 = vector.multi_reduction <add>, %58, %cst_21 [2] : vector<16x8x8xf32> to vector<16x8xf32>
    %60 = vector.shape_cast %59 : vector<16x8xf32> to vector<16x8x1xf32>
    %cst_22 = arith.constant 8.000000e+00 : f32
    %61 = vector.broadcast %cst_22 : f32 to vector<16x8x1xf32>
    %62 = arith.divf %60, %61 : vector<16x8x1xf32>
    %63 = vector.broadcast %62 : vector<16x8x1xf32> to vector<16x8x8xf32>
    %64 = arith.subf %58, %63 : vector<16x8x8xf32>
    %65 = arith.mulf %64, %64 : vector<16x8x8xf32>
    %cst_23 = arith.constant dense<0.000000e+00> : vector<16x8xf32>
    %66 = vector.multi_reduction <add>, %65, %cst_23 [2] : vector<16x8x8xf32> to vector<16x8xf32>
    %67 = vector.shape_cast %66 : vector<16x8xf32> to vector<16x8x1xf32>
    %cst_24 = arith.constant 8.000000e+00 : f32
    %68 = vector.broadcast %cst_24 : f32 to vector<16x8x1xf32>
    %69 = arith.divf %67, %68 : vector<16x8x1xf32>
    %70 = vector.broadcast %62 : vector<16x8x1xf32> to vector<16x8x8xf32>
    %71 = arith.subf %58, %70 : vector<16x8x8xf32>
    %cst_25 = arith.constant 9.99999996E-13 : f32
    %72 = vector.broadcast %cst_25 : f32 to vector<16x8x1xf32>
    %73 = arith.addf %69, %72 : vector<16x8x1xf32>
    %74 = math.rsqrt %73 : vector<16x8x1xf32>
    %75 = vector.broadcast %74 : vector<16x8x1xf32> to vector<16x8x8xf32>
    %76 = arith.mulf %71, %75 : vector<16x8x8xf32>
    %77 = vector.shape_cast %5 : vector<1x8xf32> to vector<1x1x8xf32>
    %78 = vector.broadcast %77 : vector<1x1x8xf32> to vector<16x8x8xf32>
    %79 = arith.mulf %76, %78 : vector<16x8x8xf32>
    %80 = vector.shape_cast %6 : vector<1x8xf32> to vector<1x1x8xf32>
    %81 = vector.broadcast %80 : vector<1x1x8xf32> to vector<16x8x8xf32>
    %82 = arith.addf %79, %81 : vector<16x8x8xf32>
    %83 = vector.shape_cast %82 : vector<16x8x8xf32> to vector<128x8xf32>
    %c0_26 = arith.constant 0 : index
    %c0_27 = arith.constant 0 : index
    %84 = vector.load %arg2[%c0_26, %c0_27] : memref<8x32xf32, #tpu.memory_space<vmem>>, vector<8x32xf32>
    %cst_28 = arith.constant dense<0.000000e+00> : vector<128x32xf32>
    %85 = tpu.matmul %83, %84, %cst_28 {dimension_numbers = #tpu.dot_dimension_numbers<[1], [0], [0], [1], [0, 0, 1, 1], [], []>} : vector<128x8xf32>, vector<8x32xf32>, vector<128x32xf32> -> vector<128x32xf32>
    %86 = vector.broadcast %7 : vector<1x32xf32> to vector<128x32xf32>
    %87 = arith.addf %85, %86 : vector<128x32xf32>
    %cst_29 = arith.constant 0.000000e+00 : f32
    %88 = vector.broadcast %cst_29 : f32 to vector<128x32xf32>
    %89 = arith.maximumf %87, %88 : vector<128x32xf32>
    %c0_30 = arith.constant 0 : index
    %c0_31 = arith.constant 0 : index
    %90 = vector.load %arg3[%c0_30, %c0_31] : memref<32x8xf32, #tpu.memory_space<vmem>>, vector<32x8xf32>
    %cst_32 = arith.constant dense<0.000000e+00> : vector<128x8xf32>
    %91 = tpu.matmul %89, %90, %cst_32 {dimension_numbers = #tpu.dot_dimension_numbers<[1], [0], [0], [1], [0, 0, 1, 1], [], []>} : vector<128x32xf32>, vector<32x8xf32>, vector<128x8xf32> -> vector<128x8xf32>
    %92 = vector.broadcast %8 : vector<1x8xf32> to vector<128x8xf32>
    %93 = arith.addf %91, %92 : vector<128x8xf32>
    %94 = arith.addf %93, %83 : vector<128x8xf32>
    %cst_33 = arith.constant dense<0.000000e+00> : vector<128xf32>
    %95 = vector.multi_reduction <add>, %94, %cst_33 [1] : vector<128x8xf32> to vector<128xf32>
    %96 = vector.shape_cast %95 : vector<128xf32> to vector<128x1xf32>
    %cst_34 = arith.constant 8.000000e+00 : f32
    %97 = vector.broadcast %cst_34 : f32 to vector<128x1xf32>
    %98 = arith.divf %96, %97 : vector<128x1xf32>
    %99 = vector.broadcast %98 : vector<128x1xf32> to vector<128x8xf32>
    %100 = arith.subf %94, %99 : vector<128x8xf32>
    %101 = arith.mulf %100, %100 : vector<128x8xf32>
    %cst_35 = arith.constant dense<0.000000e+00> : vector<128xf32>
    %102 = vector.multi_reduction <add>, %101, %cst_35 [1] : vector<128x8xf32> to vector<128xf32>
    %103 = vector.shape_cast %102 : vector<128xf32> to vector<128x1xf32>
    %cst_36 = arith.constant 8.000000e+00 : f32
    %104 = vector.broadcast %cst_36 : f32 to vector<128x1xf32>
    %105 = arith.divf %103, %104 : vector<128x1xf32>
    %106 = vector.broadcast %98 : vector<128x1xf32> to vector<128x8xf32>
    %107 = arith.subf %94, %106 : vector<128x8xf32>
    %cst_37 = arith.constant 9.99999996E-13 : f32
    %108 = vector.broadcast %cst_37 : f32 to vector<128x1xf32>
    %109 = arith.addf %105, %108 : vector<128x1xf32>
    %110 = math.rsqrt %109 : vector<128x1xf32>
    %111 = vector.broadcast %110 : vector<128x1xf32> to vector<128x8xf32>
    %112 = arith.mulf %107, %111 : vector<128x8xf32>
    %113 = vector.broadcast %9 : vector<1x8xf32> to vector<128x8xf32>
    %114 = arith.mulf %112, %113 : vector<128x8xf32>
    %115 = vector.broadcast %10 : vector<1x8xf32> to vector<128x8xf32>
    %116 = arith.addf %114, %115 : vector<128x8xf32>
    %117 = vector.shape_cast %116 : vector<128x8xf32> to vector<16x8x8xf32>
    %c0_38 = arith.constant 0 : index
    %c0_39 = arith.constant 0 : index
    %c0_40 = arith.constant 0 : index
    %118 = vector.load %arg5[%c0_38, %c0_39, %c0_40] : memref<16x8x8xf32, #tpu.memory_space<vmem>>, vector<16x8x8xf32>
    tpu.vector_store %arg5[%c0_38, %c0_39, %c0_40], %117 {strides = array<i32>} : memref<16x8x8xf32, #tpu.memory_space<vmem>>, vector<16x8x8xf32>,
    return
  }
  func.func @transform_0(%arg0: i32) -> (i32, i32, i32) {
    %c0_i32 = arith.constant 0 : i32
    %c0_i32_0 = arith.constant 0 : i32
    %c0_i32_1 = arith.constant 0 : i32
    return %arg0, %c0_i32, %c0_i32_0 : i32, i32, i32
  }
  func.func @transform_1(%arg0: i32) -> (i32, i32) {
    %c0_i32 = arith.constant 0 : i32
    %c0_i32_0 = arith.constant 0 : i32
    %c0_i32_1 = arith.constant 0 : i32
    return %c0_i32, %c0_i32_0 : i32, i32
  }
  func.func @transform_2(%arg0: i32) -> (i32, i32) {
    %c0_i32 = arith.constant 0 : i32
    %c0_i32_0 = arith.constant 0 : i32
    %c0_i32_1 = arith.constant 0 : i32
    return %c0_i32, %c0_i32_0 : i32, i32
  }
  func.func @transform_3(%arg0: i32) -> (i32, i32) {
    %c0_i32 = arith.constant 0 : i32
    %c0_i32_0 = arith.constant 0 : i32
    %c0_i32_1 = arith.constant 0 : i32
    return %c0_i32, %c0_i32_0 : i32, i32
  }
  func.func @transform_4(%arg0: i32) -> (i32, i32, i32) {
    %c0_i32 = arith.constant 0 : i32
    %c0_i32_0 = arith.constant 0 : i32
    %c0_i32_1 = arith.constant 0 : i32
    return %arg0, %c0_i32, %c0_i32_0 : i32, i32, i32
  }
}

</mosaic_0001>

<llo_original>
// kernel: tpu_custom_call.1
$region0: #{tpu_custom_call.1}
  #allocation0 [shape = 'u32[]', space=smem, size = 0x4, offset = 0x4, fixed_abs, tag = 'smem constant byte address 0x4 - core index']
  #allocation1 [shape = 'u32[144,128]{1,0:T(1,128)}', space=vmem, size = 0x12000, scoped, tag = 'internal scratch']
  %s0 = inlined_call_operand.vmem [shape: f32[32,8,1], index: 0, kind: input, shape index: {}]
  %s1 = inlined_call_operand.vmem [shape: f32[8,32], index: 1, kind: input, shape index: {}]
  %s2 = inlined_call_operand.vmem [shape: f32[32,8], index: 2, kind: input, shape index: {}]
  %s3 = inlined_call_operand.vmem [shape: f32[11,32], index: 3, kind: input, shape index: {}]
  %s4 = inlined_call_operand.vmem [shape: f32[32,8,8], index: 4, kind: output, shape index: {}]
  %s5 = sld [smem:[#allocation0]]
  $region49: #{tpu_custom_call.1} parent=0
    _
  %s7 = ssub.s32 1, %s5
  %s8 = scalar_select 0, %s7, %s5
  loop: start=0, step=1, limit=4
  $region2: #{tpu_custom_call.1} parent=0 // loop_pre_header
    _
  $region3: #{tpu_custom_call.1} parent=0 // loop_header
    %s10 = sphi 0, %s14
    %p11 = scmp.ge.s32.totalorder %s10, 4
    %s20 = sphi 0, %s22
    %s23 = sphi 0, %s20
    %s24 = sphi 0, %s23
    %s40 = sphi 0, %s24
    %s44 = sphi 0, %s44
    %s46 = sphi 0, %s44
    %s47 = sphi 0, %s46
    %s61 = sphi 0, %s47
    %s65 = sphi 0, %s65
    %s67 = sphi 0, %s65
    %s68 = sphi 0, %s67
    %s82 = sphi 0, %s68
    %s86 = sphi 0, %s86
    %s88 = sphi 0, %s86
    %s89 = sphi 0, %s88
    %s103 = sphi 0, %s89
    %s109 = sphi 0, %s111
    %s112 = sphi 0, %s109
    %s113 = sphi 0, %s112
    %s129 = sphi 0, %s113
  $region4: #{tpu_custom_call.1} parent=0 // loop_header_branch
    %13 = sbr.rel (%p11) target = $region8
  $region5: #{tpu_custom_call.1} parent=0 // loop_body
    %s15 = ssub.s32 %s10, 1
    %s16 = ssub.s32 %s10, 2
    %s17 = sadd.s32 %s10, 1
    %s18 = ssub.s32 %s10, %s17
    %p19 = scmp.eq.s32.totalorder %s18, 0
    %s21 = sadd.s32 %s20, 1
    %s22 = scalar_select %p19, %s20, %s21
    %p25 = pneg %p19
    %p26 = scmp.eq.s32.totalorder %s10, 1
    %p27 = por %p25, %p26
    %p28 = scmp.ne.s32.totalorder %s20, %s23
    %p29 = scmp.eq.s32.totalorder %s10, 0
    %p30 = por %p28, %p29
    %p31 = scmp.ne.s32.totalorder %s20, %s23
    %p32 = scmp.eq.s32.totalorder %s15, 1
    %p33 = por %p31, %p32
    %p34 = scmp.ne.s32.totalorder %s23, %s24
    %p35 = scmp.eq.s32.totalorder %s15, 0
    %p36 = por %p34, %p35
    %p37 = scmp.ne.s32.totalorder %s23, %s24
    %p38 = scmp.eq.s32.totalorder %s16, 1
    %p39 = por %p37, %p38
    %p41 = scmp.ne.s32.totalorder %s24, %s40
    %p42 = scmp.eq.s32.totalorder %s16, 0
    %p43 = por %p41, %p42
    %s45 = sadd.s32 %s44, 1
    %p48 = scmp.eq.s32.totalorder %s10, 1
    %p49 = scmp.ne.s32.totalorder %s44, %s46
    %p50 = scmp.eq.s32.totalorder %s10, 0
    %p51 = por %p49, %p50
    %p52 = scmp.ne.s32.totalorder %s44, %s46
    %p53 = scmp.eq.s32.totalorder %s15, 1
    %p54 = por %p52, %p53
    %p55 = scmp.ne.s32.totalorder %s46, %s47
    %p56 = scmp.eq.s32.totalorder %s15, 0
    %p57 = por %p55, %p56
    %p58 = scmp.ne.s32.totalorder %s46, %s47
    %p59 = scmp.eq.s32.totalorder %s16, 1
    %p60 = por %p58, %p59
    %p62 = scmp.ne.s32.totalorder %s47, %s61
    %p63 = scmp.eq.s32.totalorder %s16, 0
    %p64 = por %p62, %p63
    %s66 = sadd.s32 %s65, 1
    %p69 = scmp.eq.s32.totalorder %s10, 1
    %p70 = scmp.ne.s32.totalorder %s65, %s67
    %p71 = scmp.eq.s32.totalorder %s10, 0
    %p72 = por %p70, %p71
    %p73 = scmp.ne.s32.totalorder %s65, %s67
    %p74 = scmp.eq.s32.totalorder %s15, 1
    %p75 = por %p73, %p74
    %p76 = scmp.ne.s32.totalorder %s67, %s68
    %p77 = scmp.eq.s32.totalorder %s15, 0
    %p78 = por %p76, %p77
    %p79 = scmp.ne.s32.totalorder %s67, %s68
    %p80 = scmp.eq.s32.totalorder %s16, 1
    %p81 = por %p79, %p80
    %p83 = scmp.ne.s32.totalorder %s68, %s82
    %p84 = scmp.eq.s32.totalorder %s16, 0
    %p85 = por %p83, %p84
    %s87 = sadd.s32 %s86, 1
    %p90 = scmp.eq.s32.totalorder %s10, 1
    %p91 = scmp.ne.s32.totalorder %s86, %s88
    %p92 = scmp.eq.s32.totalorder %s10, 0
    %p93 = por %p91, %p92
    %p94 = scmp.ne.s32.totalorder %s86, %s88
    %p95 = scmp.eq.s32.totalorder %s15, 1
    %p96 = por %p94, %p95
    %p97 = scmp.ne.s32.totalorder %s88, %s89
    %p98 = scmp.eq.s32.totalorder %s15, 0
    %p99 = por %p97, %p98
    %p100 = scmp.ne.s32.totalorder %s88, %s89
    %p101 = scmp.eq.s32.totalorder %s16, 1
    %p102 = por %p100, %p101
    %p104 = scmp.ne.s32.totalorder %s89, %s103
    %p105 = scmp.eq.s32.totalorder %s16, 0
    %p106 = por %p104, %p105
    %s107 = ssub.s32 %s10, %s17
    %p108 = scmp.eq.s32.totalorder %s107, 0
    %s110 = sadd.s32 %s109, 1
    %s111 = scalar_select %p108, %s109, %s110
    %p114 = pneg %p108
    %p115 = scmp.eq.s32.totalorder %s10, 1
    %p116 = por %p114, %p115
    %p117 = scmp.ne.s32.totalorder %s109, %s112
    %p118 = scmp.eq.s32.totalorder %s10, 0
    %p119 = por %p117, %p118
    %p120 = scmp.ne.s32.totalorder %s109, %s112
    %p121 = scmp.eq.s32.totalorder %s15, 1
    %p122 = por %p120, %p121
    %p123 = scmp.ne.s32.totalorder %s112, %s113
    %p124 = scmp.eq.s32.totalorder %s15, 0
    %p125 = por %p123, %p124
    %p126 = scmp.ne.s32.totalorder %s112, %s113
    %p127 = scmp.eq.s32.totalorder %s16, 1
    %p128 = por %p126, %p127
    %p130 = scmp.ne.s32.totalorder %s113, %s129
    %p131 = scmp.eq.s32.totalorder %s16, 0
    %p132 = por %p130, %p131
    %p133 = scmp.le.s32.totalorder 1, %s10
    %p134 = scmp.lt.s32.totalorder %s10, 3
    %p135 = pnand %p133, %p134
    %p136 = pneg %p135
    // Predicated region
    $region9: #{tpu_custom_call.1} parent=5 // pred_check
      _
    $region10: #{tpu_custom_call.1} parent=5 // pred_check_branch
      %138 = sbr.rel (%p135) target = $region12
    $region11: #{tpu_custom_call.1} parent=5 // pred_region
      %s139 = ssub.s32 %s10, 1
      // Predicated region
      $region13: #{tpu_custom_call.1} parent=11 // pred_check
        %p140 = pneg %p57
      $region14: #{tpu_custom_call.1} parent=11 // pred_check_branch
        %142 = sbr.rel (%p140) target = $region16
      $region15: #{tpu_custom_call.1} parent=11 // pred_region
        _
      $region16: #{tpu_custom_call.1} parent=11 // pred_fallthru
        _
      // Predicated region
      $region17: #{tpu_custom_call.1} parent=11 // pred_check
        %p143 = pneg %p78
      $region18: #{tpu_custom_call.1} parent=11 // pred_check_branch
        %145 = sbr.rel (%p143) target = $region20
      $region19: #{tpu_custom_call.1} parent=11 // pred_region
        _
      $region20: #{tpu_custom_call.1} parent=11 // pred_fallthru
        _
      // Predicated region
      $region21: #{tpu_custom_call.1} parent=11 // pred_check
        %p146 = pneg %p99
      $region22: #{tpu_custom_call.1} parent=11 // pred_check_branch
        %148 = sbr.rel (%p146) target = $region24
      $region23: #{tpu_custom_call.1} parent=11 // pred_region
        _
      $region24: #{tpu_custom_call.1} parent=11 // pred_fallthru
        _
    $region12: #{tpu_custom_call.1} parent=5 // pred_fallthru
      _
    %p149 = scmp.lt.s32.totalorder %s10, 2
    // Predicated region
    $region25: #{tpu_custom_call.1} parent=5 // pred_check
      %p150 = pneg %p149
    $region26: #{tpu_custom_call.1} parent=5 // pred_check_branch
      %152 = sbr.rel (%p150) target = $region28
    $region27: #{tpu_custom_call.1} parent=5 // pred_region
      // Predicated region
      $region29: #{tpu_custom_call.1} parent=27 // pred_check
        %p153 = pneg %p30
      $region30: #{tpu_custom_call.1} parent=27 // pred_check_branch
        %155 = sbr.rel (%p153) target = $region32
      $region31: #{tpu_custom_call.1} parent=27 // pred_region
        %s156 = smul.u32 16, %s10
        %p157 = scmp.lt.s32.totalorder %s156, 31
        %s158 = scalar_select %p157, %s156, 31
        %s159 = smul.addr %s158, 8
        %s160 = scalar_lea.vmem %s0, %s159
        %s161 = smul.u32 16, %s10
      $region32: #{tpu_custom_call.1} parent=27 // pred_fallthru
        _
    $region28: #{tpu_custom_call.1} parent=5 // pred_fallthru
      _
    %p162 = scmp.le.s32.totalorder 1, %s10
    %p163 = scmp.lt.s32.totalorder %s10, 3
    %p164 = pnand %p162, %p163
    %p165 = pneg %p164
    // Predicated region
    $region33: #{tpu_custom_call.1} parent=5 // pred_check
      _
    $region34: #{tpu_custom_call.1} parent=5 // pred_check_branch
      %167 = sbr.rel (%p164) target = $region36
    $region35: #{tpu_custom_call.1} parent=5 // pred_region
      %s168 = ssub.s32 %s10, 1
      %s169 = smul.u32 16, %s15
      %p170 = scmp.lt.s32.totalorder %s169, 31
      %s171 = scalar_select %p170, %s169, 31
      %s172 = smul.addr %s171, 8
      %s173 = scalar_lea.vmem %s0, %s172
      %p174 = pneg %p36
      %p175 = pneg %p33
      %p176 = pneg %p57
      %p177 = pneg %p54
      %p178 = pneg %p78
      %p179 = pneg %p75
      %p180 = pneg %p99
      %p181 = pneg %p96
      %p182 = pneg %p125
      %p183 = pneg %p122
      %s184 = smul.u32 16, %s15
      %p185 = scmp.lt.s32.totalorder %s184, 31
      %s186 = scalar_select %p185, %s184, 31
      %s187 = smul.addr %s186, 8
      %s188 = scalar_lea.vmem %s4, %s187
      %s189 = smul.u32 16, %s15
      %p190 = scmp.lt.s32.totalorder %s189, 31
      %s191 = scalar_select %p190, %s189, 31
      %s192 = smul.addr %s191, 8
      %s193 = scalar_lea.vmem %s0, %s192
      %s194 = smul.u32 16, %s15
      %s195 = smul.u32 16, %s15
      %p196 = scmp.lt.s32.totalorder %s195, 31
      %s197 = scalar_select %p196, %s195, 31
      %s198 = smul.addr %s197, 8
      %s199 = scalar_lea.vmem %s4, %s198
      %s200 = smul.u32 16, %s15
      %v201 = vld [vmem:[%s3] sm:$0x1]
      %v202 = vld [vmem:[%s3 + $0x1] sm:$0x1]
      %v203 = vld [vmem:[%s3 + $0x2] sm:$0x1]
      %v204 = vld [vmem:[%s3 + $0x3] sm:$0x1]
      %v205 = vld [vmem:[%s3 + $0x4] sm:$0x1]
      %v206 = vld [vmem:[%s3 + $0x5] sm:$0x1]
      %v207 = vld [vmem:[%s3 + $0x6] sm:$0x1]
      %v208 = vld [vmem:[%s3 + $0x7] sm:$0x1]
      %v209 = vld [vmem:[%s3 + $0x8] sm:$0x1]
      %v210 = vld [vmem:[%s3 + $0x9] sm:$0x1]
      %v211 = vld [vmem:[%s3 + $0xa] sm:$0x1]
      %v212 = vld [vmem:[%s193] sm:$0xff]
      %v213 = vld [vmem:[%s193 + $0x8] sm:$0xff]
      %v214 = vld [vmem:[%s193 + $0x10] sm:$0xff]
      %v215 = vld [vmem:[%s193 + $0x18] sm:$0xff]
      %v216 = vld [vmem:[%s193 + $0x20] sm:$0xff]
      %v217 = vld [vmem:[%s193 + $0x28] sm:$0xff]
      %v218 = vld [vmem:[%s193 + $0x30] sm:$0xff]
      %v219 = vld [vmem:[%s193 + $0x38] sm:$0xff]
      %v220 = vld [vmem:[%s193 + $0x40] sm:$0xff]
      %v221 = vld [vmem:[%s193 + $0x48] sm:$0xff]
      %v222 = vld [vmem:[%s193 + $0x50] sm:$0xff]
      %v223 = vld [vmem:[%s193 + $0x58] sm:$0xff]
      %v224 = vld [vmem:[%s193 + $0x60] sm:$0xff]
      %v225 = vld [vmem:[%s193 + $0x68] sm:$0xff]
      %v226 = vld [vmem:[%s193 + $0x70] sm:$0xff]
      %v227 = vld [vmem:[%s193 + $0x78] sm:$0xff]
      %229 = vset.pattern.permute.xlu0 0
      %230 = vperm.xlu0 %229, %v212
      %v231 = vpop.permute.xlu0 %230
      %234 = vset.pattern.permute.xlu0 0
      %235 = vperm.xlu0 %234, %v213
      %v236 = vpop.permute.xlu0 %235
      %239 = vset.pattern.permute.xlu0 0
      %240 = vperm.xlu0 %239, %v214
      %v241 = vpop.permute.xlu0 %240
      %244 = vset.pattern.permute.xlu0 0
      %245 = vperm.xlu0 %244, %v215
      %v246 = vpop.permute.xlu0 %245
      %249 = vset.pattern.permute.xlu0 0
      %250 = vperm.xlu0 %249, %v216
      %v251 = vpop.permute.xlu0 %250
      %254 = vset.pattern.permute.xlu0 0
      %255 = vperm.xlu0 %254, %v217
      %v256 = vpop.permute.xlu0 %255
      %259 = vset.pattern.permute.xlu0 0
      %260 = vperm.xlu0 %259, %v218
      %v261 = vpop.permute.xlu0 %260
      %264 = vset.pattern.permute.xlu0 0
      %265 = vperm.xlu0 %264, %v219
      %v266 = vpop.permute.xlu0 %265
      %269 = vset.pattern.permute.xlu0 0
      %270 = vperm.xlu0 %269, %v220
      %v271 = vpop.permute.xlu0 %270
      %274 = vset.pattern.permute.xlu0 0
      %275 = vperm.xlu0 %274, %v221
      %v276 = vpop.permute.xlu0 %275
      %279 = vset.pattern.permute.xlu0 0
      %280 = vperm.xlu0 %279, %v222
      %v281 = vpop.permute.xlu0 %280
      %284 = vset.pattern.permute.xlu0 0
      %285 = vperm.xlu0 %284, %v223
      %v286 = vpop.permute.xlu0 %285
      %289 = vset.pattern.permute.xlu0 0
      %290 = vperm.xlu0 %289, %v224
      %v291 = vpop.permute.xlu0 %290
      %294 = vset.pattern.permute.xlu0 0
      %295 = vperm.xlu0 %294, %v225
      %v296 = vpop.permute.xlu0 %295
      %299 = vset.pattern.permute.xlu0 0
      %300 = vperm.xlu0 %299, %v226
      %v301 = vpop.permute.xlu0 %300
      %304 = vset.pattern.permute.xlu0 0
      %305 = vperm.xlu0 %304, %v227
      %v306 = vpop.permute.xlu0 %305
      %v308 = vlaneseq
      %v309 = vshrl.u32 %v308, 7
      %v310 = vsub.s32 0, %v309
      %v311 = vrot.slane %v201, %v310
      %v312 = vmul.f32 %v231, %v311
      %v313 = vmul.f32 %v236, %v311
      %v314 = vmul.f32 %v241, %v311
      %v315 = vmul.f32 %v246, %v311
      %v316 = vmul.f32 %v251, %v311
      %v317 = vmul.f32 %v256, %v311
      %v318 = vmul.f32 %v261, %v311
      %v319 = vmul.f32 %v266, %v311
      %v320 = vmul.f32 %v271, %v311
      %v321 = vmul.f32 %v276, %v311
      %v322 = vmul.f32 %v281, %v311
      %v323 = vmul.f32 %v286, %v311
      %v324 = vmul.f32 %v291, %v311
      %v325 = vmul.f32 %v296, %v311
      %v326 = vmul.f32 %v301, %v311
      %v327 = vmul.f32 %v306, %v311
      %v328 = vlaneseq
      %v329 = vshrl.u32 %v328, 7
      %v330 = vsub.s32 0, %v329
      %v331 = vrot.slane %v202, %v330
      %v332 = vadd.f32 %v312, %v331
      %v333 = vadd.f32 %v313, %v331
      %v334 = vadd.f32 %v314, %v331
      %v335 = vadd.f32 %v315, %v331
      %v336 = vadd.f32 %v316, %v331
      %v337 = vadd.f32 %v317, %v331
      %v338 = vadd.f32 %v318, %v331
      %v339 = vadd.f32 %v319, %v331
      %v340 = vadd.f32 %v320, %v331
      %v341 = vadd.f32 %v321, %v331
      %v342 = vadd.f32 %v322, %v331
      %v343 = vadd.f32 %v323, %v331
      %v344 = vadd.f32 %v324, %v331
      %v345 = vadd.f32 %v325, %v331
      %v346 = vadd.f32 %v326, %v331
      %v347 = vadd.f32 %v327, %v331
      %v348 = vlaneseq
      %v349 = vshrl.u32 %v348, 7
      %v350 = vsub.s32 0, %v349
      %v351 = vrot.slane %v203, %v350
      %v352 = vmul.f32 %v231, %v351
      %v353 = vmul.f32 %v236, %v351
      %v354 = vmul.f32 %v241, %v351
      %v355 = vmul.f32 %v246, %v351
      %v356 = vmul.f32 %v251, %v351
      %v357 = vmul.f32 %v256, %v351
      %v358 = vmul.f32 %v261, %v351
      %v359 = vmul.f32 %v266, %v351
      %v360 = vmul.f32 %v271, %v351
      %v361 = vmul.f32 %v276, %v351
      %v362 = vmul.f32 %v281, %v351
      %v363 = vmul.f32 %v286, %v351
      %v364 = vmul.f32 %v291, %v351
      %v365 = vmul.f32 %v296, %v351
      %v366 = vmul.f32 %v301, %v351
      %v367 = vmul.f32 %v306, %v351
      %v368 = vlaneseq
      %v369 = vshrl.u32 %v368, 7
      %v370 = vsub.s32 0, %v369
      %v371 = vrot.slane %v204, %v370
      %v372 = vadd.f32 %v352, %v371
      %v373 = vadd.f32 %v353, %v371
      %v374 = vadd.f32 %v354, %v371
      %v375 = vadd.f32 %v355, %v371
      %v376 = vadd.f32 %v356, %v371
      %v377 = vadd.f32 %v357, %v371
      %v378 = vadd.f32 %v358, %v371
      %v379 = vadd.f32 %v359, %v371
      %v380 = vadd.f32 %v360, %v371
      %v381 = vadd.f32 %v361, %v371
      %v382 = vadd.f32 %v362, %v371
      %v383 = vadd.f32 %v363, %v371
      %v384 = vadd.f32 %v364, %v371
      %v385 = vadd.f32 %v365, %v371
      %v386 = vadd.f32 %v366, %v371
      %v387 = vadd.f32 %v367, %v371
      %389 = vrot.lane.b32.xlu0 %v372, 120
      %v390 = vpop.permute.xlu0 %389
      %vm391 = vcmask 31744
      %v392 = vsel %vm391, %v372, 0
      %v394 = vsel %vm391, %v390, 0
      %396 = vmatprep.subr.mxu0 0.0
      %397 = vmatpush1.xpose.msra.mxu0 %v394
      %398 = vmatprep.subr.mxu0 0.0
      %399 = vmatpush1.xpose.msra.mxu0 0.0
      %400 = vmatprep.subr.mxu0 0.0
      %401 = vmatpush1.xpose.msra.mxu0 0.0
      %402 = vmatprep.subr.mxu0 0.0
      %403 = vmatpush1.xpose.msra.mxu0 0.0
      %404 = vmatprep.subr.mxu0 0.0
      %405 = vmatpush1.xpose.msra.mxu0 0.0
      %406 = vmatprep.subr.mxu0 0.0
      %407 = vmatpush1.xpose.msra.mxu0 0.0
      %408 = vmatprep.subr.mxu0 0.0
      %409 = vmatpush1.xpose.msra.mxu0 0.0
      %410 = vmatprep.subr.mxu0 0.0
      %411 = vmatpush1.xpose.msra.mxu0 0.0
      %412 = vmatprep.subr.mxu0 0.0
      %413 = vmatpush1.xpose.msra.mxu0 0.0
      %414 = vmatprep.subr.mxu0 0.0
      %415 = vmatpush1.xpose.msra.mxu0 0.0
      %416 = vmatprep.subr.mxu0 0.0
      %417 = vmatpush1.xpose.msra.mxu0 0.0
      %418 = vmatprep.subr.mxu0 0.0
      %419 = vmatpush1.xpose.msra.mxu0 0.0
      %420 = vmatprep.subr.mxu0 0.0
      %421 = vmatpush1.xpose.msra.mxu0 0.0
      %422 = vmatprep.subr.mxu0 0.0
      %423 = vmatpush1.xpose.msra.mxu0 0.0
      %424 = vmatprep.subr.mxu0 0.0
      %425 = vmatpush1.xpose.msra.mxu0 0.0
      %426 = vmatprep.subr.mxu0 0.0
      %427 = vmatpush1.xpose.msra.mxu0 0.0
      %428 = vmatprep.subr.mxu0 0.0
      %429 = vmatpush1.xpose.msra.mxu0 0.0
      %430 = vmatprep.subr.mxu0 0.0
      %431 = vmatpush1.xpose.msra.mxu0 0.0
      %432 = vmatprep.subr.mxu0 0.0
      %433 = vmatpush1.xpose.msra.mxu0 0.0
      %434 = vmatprep.subr.mxu0 0.0
      %435 = vmatpush1.xpose.msra.mxu0 0.0
      %436 = vmatprep.subr.mxu0 0.0
      %437 = vmatpush1.xpose.msra.mxu0 0.0
      %438 = vmatprep.subr.mxu0 0.0
      %439 = vmatpush1.xpose.msra.mxu0 0.0
      %440 = vmatprep.subr.mxu0 0.0
      %441 = vmatpush1.xpose.msra.mxu0 0.0
      %442 = vmatprep.subr.mxu0 0.0
      %443 = vmatpush1.xpose.msra.mxu0 0.0
      %444 = vmatprep.subr.mxu0 0.0
      %445 = vmatpush1.xpose.msra.mxu0 0.0
      %446 = vmatprep.subr.mxu0 0.0
      %447 = vmatpush1.xpose.msra.mxu0 0.0
      %448 = vmatprep.subr.mxu0 0.0
      %449 = vmatpush1.xpose.msra.mxu0 0.0
      %450 = vmatprep.subr.mxu0 0.0
      %451 = vmatpush1.xpose.msra.mxu0 0.0
      %452 = vmatprep.subr.mxu0 0.0
      %453 = vmatpush1.xpose.msra.mxu0 0.0
      %454 = vmatprep.subr.mxu0 0.0
      %455 = vmatpush1.xpose.msra.mxu0 0.0
      %456 = vmatprep.subr.mxu0 0.0
      %457 = vmatpush1.xpose.msra.mxu0 0.0
      %458 = vmatprep.subr.mxu0 0.0
      %459 = vmatpush1.xpose.msra.mxu0 0.0
      %460 = vmatprep.mubr.f32.mxu0 0.0
      %461 = vmatmul.mubr.f32.gmra.mrb[0].mxu0 %v392
      %v462 = vpop.f32.mrb[0].mxu0
      %v463 = vadd.f32 0.0, %v462
      %v464 = vpop.f32.mrb[0].mxu0
      %465 = vdwg.mxu0
      %467 = vrot.lane.b32.xlu0 %v373, 120
      %v468 = vpop.permute.xlu0 %467
      %v469 = vsel %vm391, %v373, 0
      %v471 = vsel %vm391, %v468, 0
      %473 = vmatprep.subr.mxu0 0.0
      %474 = vmatpush1.xpose.msra.mxu0 %v471
      %475 = vmatprep.subr.mxu0 0.0
      %476 = vmatpush1.xpose.msra.mxu0 0.0
      %477 = vmatprep.subr.mxu0 0.0
      %478 = vmatpush1.xpose.msra.mxu0 0.0
      %479 = vmatprep.subr.mxu0 0.0
      %480 = vmatpush1.xpose.msra.mxu0 0.0
      %481 = vmatprep.subr.mxu0 0.0
      %482 = vmatpush1.xpose.msra.mxu0 0.0
      %483 = vmatprep.subr.mxu0 0.0
      %484 = vmatpush1.xpose.msra.mxu0 0.0
      %485 = vmatprep.subr.mxu0 0.0
      %486 = vmatpush1.xpose.msra.mxu0 0.0
      %487 = vmatprep.subr.mxu0 0.0
      %488 = vmatpush1.xpose.msra.mxu0 0.0
      %489 = vmatprep.subr.mxu0 0.0
      %490 = vmatpush1.xpose.msra.mxu0 0.0
      %491 = vmatprep.subr.mxu0 0.0
      %492 = vmatpush1.xpose.msra.mxu0 0.0
      %493 = vmatprep.subr.mxu0 0.0
      %494 = vmatpush1.xpose.msra.mxu0 0.0
      %495 = vmatprep.subr.mxu0 0.0
      %496 = vmatpush1.xpose.msra.mxu0 0.0
      %497 = vmatprep.subr.mxu0 0.0
      %498 = vmatpush1.xpose.msra.mxu0 0.0
      %499 = vmatprep.subr.mxu0 0.0
      %500 = vmatpush1.xpose.msra.mxu0 0.0
      %501 = vmatprep.subr.mxu0 0.0
      %502 = vmatpush1.xpose.msra.mxu0 0.0
      %503 = vmatprep.subr.mxu0 0.0
      %504 = vmatpush1.xpose.msra.mxu0 0.0
      %505 = vmatprep.subr.mxu0 0.0
      %506 = vmatpush1.xpose.msra.mxu0 0.0
      %507 = vmatprep.subr.mxu0 0.0
      %508 = vmatpush1.xpose.msra.mxu0 0.0
      %509 = vmatprep.subr.mxu0 0.0
      %510 = vmatpush1.xpose.msra.mxu0 0.0
      %511 = vmatprep.subr.mxu0 0.0
      %512 = vmatpush1.xpose.msra.mxu0 0.0
      %513 = vmatprep.subr.mxu0 0.0
      %514 = vmatpush1.xpose.msra.mxu0 0.0
      %515 = vmatprep.subr.mxu0 0.0
      %516 = vmatpush1.xpose.msra.mxu0 0.0
      %517 = vmatprep.subr.mxu0 0.0
      %518 = vmatpush1.xpose.msra.mxu0 0.0
      %519 = vmatprep.subr.mxu0 0.0
      %520 = vmatpush1.xpose.msra.mxu0 0.0
      %521 = vmatprep.subr.mxu0 0.0
      %522 = vmatpush1.xpose.msra.mxu0 0.0
      %523 = vmatprep.subr.mxu0 0.0
      %524 = vmatpush1.xpose.msra.mxu0 0.0
      %525 = vmatprep.subr.mxu0 0.0
      %526 = vmatpush1.xpose.msra.mxu0 0.0
      %527 = vmatprep.subr.mxu0 0.0
      %528 = vmatpush1.xpose.msra.mxu0 0.0
      %529 = vmatprep.subr.mxu0 0.0
      %530 = vmatpush1.xpose.msra.mxu0 0.0
      %531 = vmatprep.subr.mxu0 0.0
      %532 = vmatpush1.xpose.msra.mxu0 0.0
      %533 = vmatprep.subr.mxu0 0.0
      %534 = vmatpush1.xpose.msra.mxu0 0.0
      %535 = vmatprep.subr.mxu0 0.0
      %536 = vmatpush1.xpose.msra.mxu0 0.0
      %537 = vmatprep.mubr.f32.mxu0 0.0
      %538 = vmatmul.mubr.f32.gmra.mrb[0].mxu0 %v469
      %v539 = vpop.f32.mrb[0].mxu0
      %v540 = vadd.f32 0.0, %v539
      %v541 = vpop.f32.mrb[0].mxu0
      %542 = vdwg.mxu0
      %544 = vrot.lane.b32.xlu0 %v374, 120
      %v545 = vpop.permute.xlu0 %544
      %v546 = vsel %vm391, %v374, 0
      %v548 = vsel %vm391, %v545, 0
      %550 = vmatprep.subr.mxu0 0.0
      %551 = vmatpush1.xpose.msra.mxu0 %v548
      %552 = vmatprep.subr.mxu0 0.0
      %553 = vmatpush1.xpose.msra.mxu0 0.0
      %554 = vmatprep.subr.mxu0 0.0
      %555 = vmatpush1.xpose.msra.mxu0 0.0
      %556 = vmatprep.subr.mxu0 0.0
      %557 = vmatpush1.xpose.msra.mxu0 0.0
      %558 = vmatprep.subr.mxu0 0.0
      %559 = vmatpush1.xpose.msra.mxu0 0.0
      %560 = vmatprep.subr.mxu0 0.0
      %561 = vmatpush1.xpose.msra.mxu0 0.0
      %562 = vmatprep.subr.mxu0 0.0
      %563 = vmatpush1.xpose.msra.mxu0 0.0
      %564 = vmatprep.subr.mxu0 0.0
      %565 = vmatpush1.xpose.msra.mxu0 0.0
      %566 = vmatprep.subr.mxu0 0.0
      %567 = vmatpush1.xpose.msra.mxu0 0.0
      %568 = vmatprep.subr.mxu0 0.0
      %569 = vmatpush1.xpose.msra.mxu0 0.0
      %570 = vmatprep.subr.mxu0 0.0
      %571 = vmatpush1.xpose.msra.mxu0 0.0
      %572 = vmatprep.subr.mxu0 0.0
      %573 = vmatpush1.xpose.msra.mxu0 0.0
      %574 = vmatprep.subr.mxu0 0.0
      %575 = vmatpush1.xpose.msra.mxu0 0.0
      %576 = vmatprep.subr.mxu0 0.0
      %577 = vmatpush1.xpose.msra.mxu0 0.0
      %578 = vmatprep.subr.mxu0 0.0
      %579 = vmatpush1.xpose.msra.mxu0 0.0
      %580 = vmatprep.subr.mxu0 0.0
      %581 = vmatpush1.xpose.msra.mxu0 0.0
      %582 = vmatprep.subr.mxu0 0.0
      %583 = vmatpush1.xpose.msra.mxu0 0.0
      %584 = vmatprep.subr.mxu0 0.0
      %585 = vmatpush1.xpose.msra.mxu0 0.0
      %586 = vmatprep.subr.mxu0 0.0
      %587 = vmatpush1.xpose.msra.mxu0 0.0
      %588 = vmatprep.subr.mxu0 0.0
      %589 = vmatpush1.xpose.msra.mxu0 0.0
      %590 = vmatprep.subr.mxu0 0.0
      %591 = vmatpush1.xpose.msra.mxu0 0.0
      %592 = vmatprep.subr.mxu0 0.0
      %593 = vmatpush1.xpose.msra.mxu0 0.0
      %594 = vmatprep.subr.mxu0 0.0
      %595 = vmatpush1.xpose.msra.mxu0 0.0
      %596 = vmatprep.subr.mxu0 0.0
      %597 = vmatpush1.xpose.msra.mxu0 0.0
      %598 = vmatprep.subr.mxu0 0.0
      %599 = vmatpush1.xpose.msra.mxu0 0.0
      %600 = vmatprep.subr.mxu0 0.0
      %601 = vmatpush1.xpose.msra.mxu0 0.0
      %602 = vmatprep.subr.mxu0 0.0
      %603 = vmatpush1.xpose.msra.mxu0 0.0
      %604 = vmatprep.subr.mxu0 0.0
      %605 = vmatpush1.xpose.msra.mxu0 0.0
      %606 = vmatprep.subr.mxu0 0.0
      %607 = vmatpush1.xpose.msra.mxu0 0.0
      %608 = vmatprep.subr.mxu0 0.0
      %609 = vmatpush1.xpose.msra.mxu0 0.0
      %610 = vmatprep.subr.mxu0 0.0
      %611 = vmatpush1.xpose.msra.mxu0 0.0
      %612 = vmatprep.subr.mxu0 0.0
      %613 = vmatpush1.xpose.msra.mxu0 0.0
      %614 = vmatprep.mubr.f32.mxu0 0.0
      %615 = vmatmul.mubr.f32.gmra.mrb[0].mxu0 %v546
      %v616 = vpop.f32.mrb[0].mxu0
      %v617 = vadd.f32 0.0, %v616
      %v618 = vpop.f32.mrb[0].mxu0
      %619 = vdwg.mxu0
      %621 = vrot.lane.b32.xlu0 %v375, 120
      %v622 = vpop.permute.xlu0 %621
      %v623 = vsel %vm391, %v375, 0
      %v625 = vsel %vm391, %v622, 0
      %627 = vmatprep.subr.mxu0 0.0
      %628 = vmatpush1.xpose.msra.mxu0 %v625
      %629 = vmatprep.subr.mxu0 0.0
      %630 = vmatpush1.xpose.msra.mxu0 0.0
      %631 = vmatprep.subr.mxu0 0.0
      %632 = vmatpush1.xpose.msra.mxu0 0.0
      %633 = vmatprep.subr.mxu0 0.0
      %634 = vmatpush1.xpose.msra.mxu0 0.0
      %635 = vmatprep.subr.mxu0 0.0
      %636 = vmatpush1.xpose.msra.mxu0 0.0
      %637 = vmatprep.subr.mxu0 0.0
      %638 = vmatpush1.xpose.msra.mxu0 0.0
      %639 = vmatprep.subr.mxu0 0.0
      %640 = vmatpush1.xpose.msra.mxu0 0.0
      %641 = vmatprep.subr.mxu0 0.0
      %642 = vmatpush1.xpose.msra.mxu0 0.0
      %643 = vmatprep.subr.mxu0 0.0
      %644 = vmatpush1.xpose.msra.mxu0 0.0
      %645 = vmatprep.subr.mxu0 0.0
      %646 = vmatpush1.xpose.msra.mxu0 0.0
      %647 = vmatprep.subr.mxu0 0.0
      %648 = vmatpush1.xpose.msra.mxu0 0.0
      %649 = vmatprep.subr.mxu0 0.0
      %650 = vmatpush1.xpose.msra.mxu0 0.0
      %651 = vmatprep.subr.mxu0 0.0
      %652 = vmatpush1.xpose.msra.mxu0 0.0
      %653 = vmatprep.subr.mxu0 0.0
      %654 = vmatpush1.xpose.msra.mxu0 0.0
      %655 = vmatprep.subr.mxu0 0.0
      %656 = vmatpush1.xpose.msra.mxu0 0.0
      %657 = vmatprep.subr.mxu0 0.0
      %658 = vmatpush1.xpose.msra.mxu0 0.0
      %659 = vmatprep.subr.mxu0 0.0
      %660 = vmatpush1.xpose.msra.mxu0 0.0
      %661 = vmatprep.subr.mxu0 0.0
      %662 = vmatpush1.xpose.msra.mxu0 0.0
      %663 = vmatprep.subr.mxu0 0.0
      %664 = vmatpush1.xpose.msra.mxu0 0.0
      %665 = vmatprep.subr.mxu0 0.0
      %666 = vmatpush1.xpose.msra.mxu0 0.0
      %667 = vmatprep.subr.mxu0 0.0
      %668 = vmatpush1.xpose.msra.mxu0 0.0
      %669 = vmatprep.subr.mxu0 0.0
      %670 = vmatpush1.xpose.msra.mxu0 0.0
      %671 = vmatprep.subr.mxu0 0.0
      %672 = vmatpush1.xpose.msra.mxu0 0.0
      %673 = vmatprep.subr.mxu0 0.0
      %674 = vmatpush1.xpose.msra.mxu0 0.0
      %675 = vmatprep.subr.mxu0 0.0
      %676 = vmatpush1.xpose.msra.mxu0 0.0
      %677 = vmatprep.subr.mxu0 0.0
      %678 = vmatpush1.xpose.msra.mxu0 0.0
      %679 = vmatprep.subr.mxu0 0.0
      %680 = vmatpush1.xpose.msra.mxu0 0.0
      %681 = vmatprep.subr.mxu0 0.0
      %682 = vmatpush1.xpose.msra.mxu0 0.0
      %683 = vmatprep.subr.mxu0 0.0
      %684 = vmatpush1.xpose.msra.mxu0 0.0
      %685 = vmatprep.subr.mxu0 0.0
      %686 = vmatpush1.xpose.msra.mxu0 0.0
      %687 = vmatprep.subr.mxu0 0.0
      %688 = vmatpush1.xpose.msra.mxu0 0.0
      %689 = vmatprep.subr.mxu0 0.0
      %690 = vmatpush1.xpose.msra.mxu0 0.0
      %691 = vmatprep.mubr.f32.mxu0 0.0
      %692 = vmatmul.mubr.f32.gmra.mrb[0].mxu0 %v623
      %v693 = vpop.f32.mrb[0].mxu0
      %v694 = vadd.f32 0.0, %v693
      %v695 = vpop.f32.mrb[0].mxu0
      %696 = vdwg.mxu0
      %698 = vrot.lane.b32.xlu0 %v376, 120
      %v699 = vpop.permute.xlu0 %698
      %v700 = vsel %vm391, %v376, 0
      %v702 = vsel %vm391, %v699, 0
      %704 = vmatprep.subr.mxu0 0.0
      %705 = vmatpush1.xpose.msra.mxu0 %v702
      %706 = vmatprep.subr.mxu0 0.0
      %707 = vmatpush1.xpose.msra.mxu0 0.0
      %708 = vmatprep.subr.mxu0 0.0
      %709 = vmatpush1.xpose.msra.mxu0 0.0
      %710 = vmatprep.subr.mxu0 0.0
      %711 = vmatpush1.xpose.msra.mxu0 0.0
      %712 = vmatprep.subr.mxu0 0.0
      %713 = vmatpush1.xpose.msra.mxu0 0.0
      %714 = vmatprep.subr.mxu0 0.0
      %715 = vmatpush1.xpose.msra.mxu0 0.0
      %716 = vmatprep.subr.mxu0 0.0
      %717 = vmatpush1.xpose.msra.mxu0 0.0
      %718 = vmatprep.subr.mxu0 0.0
      %719 = vmatpush1.xpose.msra.mxu0 0.0
      %720 = vmatprep.subr.mxu0 0.0
      %721 = vmatpush1.xpose.msra.mxu0 0.0
      %722 = vmatprep.subr.mxu0 0.0
      %723 = vmatpush1.xpose.msra.mxu0 0.0
      %724 = vmatprep.subr.mxu0 0.0
      %725 = vmatpush1.xpose.msra.mxu0 0.0
      %726 = vmatprep.subr.mxu0 0.0
      %727 = vmatpush1.xpose.msra.mxu0 0.0
      %728 = vmatprep.subr.mxu0 0.0
      %729 = vmatpush1.xpose.msra.mxu0 0.0
      %730 = vmatprep.subr.mxu0 0.0
      %731 = vmatpush1.xpose.msra.mxu0 0.0
      %732 = vmatprep.subr.mxu0 0.0
      %733 = vmatpush1.xpose.msra.mxu0 0.0
      %734 = vmatprep.subr.mxu0 0.0
      %735 = vmatpush1.xpose.msra.mxu0 0.0
      %736 = vmatprep.subr.mxu0 0.0
      %737 = vmatpush1.xpose.msra.mxu0 0.0
      %738 = vmatprep.subr.mxu0 0.0
      %739 = vmatpush1.xpose.msra.mxu0 0.0
      %740 = vmatprep.subr.mxu0 0.0
      %741 = vmatpush1.xpose.msra.mxu0 0.0
      %742 = vmatprep.subr.mxu0 0.0
      %743 = vmatpush1.xpose.msra.mxu0 0.0
      %744 = vmatprep.subr.mxu0 0.0
      %745 = vmatpush1.xpose.msra.mxu0 0.0
      %746 = vmatprep.subr.mxu0 0.0
      %747 = vmatpush1.xpose.msra.mxu0 0.0
      %748 = vmatprep.subr.mxu0 0.0
      %749 = vmatpush1.xpose.msra.mxu0 0.0
      %750 = vmatprep.subr.mxu0 0.0
      %751 = vmatpush1.xpose.msra.mxu0 0.0
      %752 = vmatprep.subr.mxu0 0.0
      %753 = vmatpush1.xpose.msra.mxu0 0.0
      %754 = vmatprep.subr.mxu0 0.0
      %755 = vmatpush1.xpose.msra.mxu0 0.0
      %756 = vmatprep.subr.mxu0 0.0
      %757 = vmatpush1.xpose.msra.mxu0 0.0
      %758 = vmatprep.subr.mxu0 0.0
      %759 = vmatpush1.xpose.msra.mxu0 0.0
      %760 = vmatprep.subr.mxu0 0.0
      %761 = vmatpush1.xpose.msra.mxu0 0.0
      %762 = vmatprep.subr.mxu0 0.0
      %763 = vmatpush1.xpose.msra.mxu0 0.0
      %764 = vmatprep.subr.mxu0 0.0
      %765 = vmatpush1.xpose.msra.mxu0 0.0
      %766 = vmatprep.subr.mxu0 0.0
      %767 = vmatpush1.xpose.msra.mxu0 0.0
      %768 = vmatprep.mubr.f32.mxu0 0.0
      %769 = vmatmul.mubr.f32.gmra.mrb[0].mxu0 %v700
      %v770 = vpop.f32.mrb[0].mxu0
      %v771 = vadd.f32 0.0, %v770
      %v772 = vpop.f32.mrb[0].mxu0
      %773 = vdwg.mxu0
      %775 = vrot.lane.b32.xlu0 %v377, 120
      %v776 = vpop.permute.xlu0 %775
      %v777 = vsel %vm391, %v377, 0
      %v779 = vsel %vm391, %v776, 0
      %781 = vmatprep.subr.mxu0 0.0
      %782 = vmatpush1.xpose.msra.mxu0 %v779
      %783 = vmatprep.subr.mxu0 0.0
      %784 = vmatpush1.xpose.msra.mxu0 0.0
      %785 = vmatprep.subr.mxu0 0.0
      %786 = vmatpush1.xpose.msra.mxu0 0.0
      %787 = vmatprep.subr.mxu0 0.0
      %788 = vmatpush1.xpose.msra.mxu0 0.0
      %789 = vmatprep.subr.mxu0 0.0
      %790 = vmatpush1.xpose.msra.mxu0 0.0
      %791 = vmatprep.subr.mxu0 0.0
      %792 = vmatpush1.xpose.msra.mxu0 0.0
      %793 = vmatprep.subr.mxu0 0.0
      %794 = vmatpush1.xpose.msra.mxu0 0.0
      %795 = vmatprep.subr.mxu0 0.0
      %796 = vmatpush1.xpose.msra.mxu0 0.0
      %797 = vmatprep.subr.mxu0 0.0
      %798 = vmatpush1.xpose.msra.mxu0 0.0
      %799 = vmatprep.subr.mxu0 0.0
      %800 = vmatpush1.xpose.msra.mxu0 0.0
      %801 = vmatprep.subr.mxu0 0.0
      %802 = vmatpush1.xpose.msra.mxu0 0.0
      %803 = vmatprep.subr.mxu0 0.0
      %804 = vmatpush1.xpose.msra.mxu0 0.0
      %805 = vmatprep.subr.mxu0 0.0
      %806 = vmatpush1.xpose.msra.mxu0 0.0
      %807 = vmatprep.subr.mxu0 0.0
      %808 = vmatpush1.xpose.msra.mxu0 0.0
      %809 = vmatprep.subr.mxu0 0.0
      %810 = vmatpush1.xpose.msra.mxu0 0.0
      %811 = vmatprep.subr.mxu0 0.0
      %812 = vmatpush1.xpose.msra.mxu0 0.0
      %813 = vmatprep.subr.mxu0 0.0
      %814 = vmatpush1.xpose.msra.mxu0 0.0
      %815 = vmatprep.subr.mxu0 0.0
      %816 = vmatpush1.xpose.msra.mxu0 0.0
      %817 = vmatprep.subr.mxu0 0.0
      %818 = vmatpush1.xpose.msra.mxu0 0.0
      %819 = vmatprep.subr.mxu0 0.0
      %820 = vmatpush1.xpose.msra.mxu0 0.0
      %821 = vmatprep.subr.mxu0 0.0
      %822 = vmatpush1.xpose.msra.mxu0 0.0
      %823 = vmatprep.subr.mxu0 0.0
      %824 = vmatpush1.xpose.msra.mxu0 0.0
      %825 = vmatprep.subr.mxu0 0.0
      %826 = vmatpush1.xpose.msra.mxu0 0.0
      %827 = vmatprep.subr.mxu0 0.0
      %828 = vmatpush1.xpose.msra.mxu0 0.0
      %829 = vmatprep.subr.mxu0 0.0
      %830 = vmatpush1.xpose.msra.mxu0 0.0
      %831 = vmatprep.subr.mxu0 0.0
      %832 = vmatpush1.xpose.msra.mxu0 0.0
      %833 = vmatprep.subr.mxu0 0.0
      %834 = vmatpush1.xpose.msra.mxu0 0.0
      %835 = vmatprep.subr.mxu0 0.0
      %836 = vmatpush1.xpose.msra.mxu0 0.0
      %837 = vmatprep.subr.mxu0 0.0
      %838 = vmatpush1.xpose.msra.mxu0 0.0
      %839 = vmatprep.subr.mxu0 0.0
      %840 = vmatpush1.xpose.msra.mxu0 0.0
      %841 = vmatprep.subr.mxu0 0.0
      %842 = vmatpush1.xpose.msra.mxu0 0.0
      %843 = vmatprep.subr.mxu0 0.0
      %844 = vmatpush1.xpose.msra.mxu0 0.0
      %845 = vmatprep.mubr.f32.mxu0 0.0
      %846 = vmatmul.mubr.f32.gmra.mrb[0].mxu0 %v777
      %v847 = vpop.f32.mrb[0].mxu0
      %v848 = vadd.f32 0.0, %v847
      %v849 = vpop.f32.mrb[0].mxu0
      %850 = vdwg.mxu0
      %852 = vrot.lane.b32.xlu0 %v378, 120
      %v853 = vpop.permute.xlu0 %852
      %v854 = vsel %vm391, %v378, 0
      %v856 = vsel %vm391, %v853, 0
      %858 = vmatprep.subr.mxu0 0.0
      %859 = vmatpush1.xpose.msra.mxu0 %v856
      %860 = vmatprep.subr.mxu0 0.0
      %861 = vmatpush1.xpose.msra.mxu0 0.0
      %862 = vmatprep.subr.mxu0 0.0
      %863 = vmatpush1.xpose.msra.mxu0 0.0
      %864 = vmatprep.subr.mxu0 0.0
      %865 = vmatpush1.xpose.msra.mxu0 0.0
      %866 = vmatprep.subr.mxu0 0.0
      %867 = vmatpush1.xpose.msra.mxu0 0.0
      %868 = vmatprep.subr.mxu0 0.0
      %869 = vmatpush1.xpose.msra.mxu0 0.0
      %870 = vmatprep.subr.mxu0 0.0
      %871 = vmatpush1.xpose.msra.mxu0 0.0
      %872 = vmatprep.subr.mxu0 0.0
      %873 = vmatpush1.xpose.msra.mxu0 0.0
      %874 = vmatprep.subr.mxu0 0.0
      %875 = vmatpush1.xpose.msra.mxu0 0.0
      %876 = vmatprep.subr.mxu0 0.0
      %877 = vmatpush1.xpose.msra.mxu0 0.0
      %878 = vmatprep.subr.mxu0 0.0
      %879 = vmatpush1.xpose.msra.mxu0 0.0
      %880 = vmatprep.subr.mxu0 0.0
      %881 = vmatpush1.xpose.msra.mxu0 0.0
      %882 = vmatprep.subr.mxu0 0.0
      %883 = vmatpush1.xpose.msra.mxu0 0.0
      %884 = vmatprep.subr.mxu0 0.0
      %885 = vmatpush1.xpose.msra.mxu0 0.0
      %886 = vmatprep.subr.mxu0 0.0
      %887 = vmatpush1.xpose.msra.mxu0 0.0
      %888 = vmatprep.subr.mxu0 0.0
      %889 = vmatpush1.xpose.msra.mxu0 0.0
      %890 = vmatprep.subr.mxu0 0.0
      %891 = vmatpush1.xpose.msra.mxu0 0.0
      %892 = vmatprep.subr.mxu0 0.0
      %893 = vmatpush1.xpose.msra.mxu0 0.0
      %894 = vmatprep.subr.mxu0 0.0
      %895 = vmatpush1.xpose.msra.mxu0 0.0
      %896 = vmatprep.subr.mxu0 0.0
      %897 = vmatpush1.xpose.msra.mxu0 0.0
      %898 = vmatprep.subr.mxu0 0.0
      %899 = vmatpush1.xpose.msra.mxu0 0.0
      %900 = vmatprep.subr.mxu0 0.0
      %901 = vmatpush1.xpose.msra.mxu0 0.0
      %902 = vmatprep.subr.mxu0 0.0
      %903 = vmatpush1.xpose.msra.mxu0 0.0
      %904 = vmatprep.subr.mxu0 0.0
      %905 = vmatpush1.xpose.msra.mxu0 0.0
      %906 = vmatprep.subr.mxu0 0.0
      %907 = vmatpush1.xpose.msra.mxu0 0.0
      %908 = vmatprep.subr.mxu0 0.0
      %909 = vmatpush1.xpose.msra.mxu0 0.0
      %910 = vmatprep.subr.mxu0 0.0
      %911 = vmatpush1.xpose.msra.mxu0 0.0
      %912 = vmatprep.subr.mxu0 0.0
      %913 = vmatpush1.xpose.msra.mxu0 0.0
      %914 = vmatprep.subr.mxu0 0.0
      %915 = vmatpush1.xpose.msra.mxu0 0.0
      %916 = vmatprep.subr.mxu0 0.0
      %917 = vmatpush1.xpose.msra.mxu0 0.0
      %918 = vmatprep.subr.mxu0 0.0
      %919 = vmatpush1.xpose.msra.mxu0 0.0
      %920 = vmatprep.subr.mxu0 0.0
      %921 = vmatpush1.xpose.msra.mxu0 0.0
      %922 = vmatprep.mubr.f32.mxu0 0.0
      %923 = vmatmul.mubr.f32.gmra.mrb[0].mxu0 %v854
      %v924 = vpop.f32.mrb[0].mxu0
      %v925 = vadd.f32 0.0, %v924
      %v926 = vpop.f32.mrb[0].mxu0
      %927 = vdwg.mxu0
      %929 = vrot.lane.b32.xlu0 %v379, 120
      %v930 = vpop.permute.xlu0 %929
      %v931 = vsel %vm391, %v379, 0
      %v933 = vsel %vm391, %v930, 0
      %935 = vmatprep.subr.mxu0 0.0
      %936 = vmatpush1.xpose.msra.mxu0 %v933
      %937 = vmatprep.subr.mxu0 0.0
      %938 = vmatpush1.xpose.msra.mxu0 0.0
      %939 = vmatprep.subr.mxu0 0.0
      %940 = vmatpush1.xpose.msra.mxu0 0.0
      %941 = vmatprep.subr.mxu0 0.0
      %942 = vmatpush1.xpose.msra.mxu0 0.0
      %943 = vmatprep.subr.mxu0 0.0
      %944 = vmatpush1.xpose.msra.mxu0 0.0
      %945 = vmatprep.subr.mxu0 0.0
      %946 = vmatpush1.xpose.msra.mxu0 0.0
      %947 = vmatprep.subr.mxu0 0.0
      %948 = vmatpush1.xpose.msra.mxu0 0.0
      %949 = vmatprep.subr.mxu0 0.0
      %950 = vmatpush1.xpose.msra.mxu0 0.0
      %951 = vmatprep.subr.mxu0 0.0
      %952 = vmatpush1.xpose.msra.mxu0 0.0
      %953 = vmatprep.subr.mxu0 0.0
      %954 = vmatpush1.xpose.msra.mxu0 0.0
      %955 = vmatprep.subr.mxu0 0.0
      %956 = vmatpush1.xpose.msra.mxu0 0.0
      %957 = vmatprep.subr.mxu0 0.0
      %958 = vmatpush1.xpose.msra.mxu0 0.0
      %959 = vmatprep.subr.mxu0 0.0
      %960 = vmatpush1.xpose.msra.mxu0 0.0
      %961 = vmatprep.subr.mxu0 0.0
      %962 = vmatpush1.xpose.msra.mxu0 0.0
      %963 = vmatprep.subr.mxu0 0.0
      %964 = vmatpush1.xpose.msra.mxu0 0.0
      %965 = vmatprep.subr.mxu0 0.0
      %966 = vmatpush1.xpose.msra.mxu0 0.0
      %967 = vmatprep.subr.mxu0 0.0
      %968 = vmatpush1.xpose.msra.mxu0 0.0
      %969 = vmatprep.subr.mxu0 0.0
      %970 = vmatpush1.xpose.msra.mxu0 0.0
      %971 = vmatprep.subr.mxu0 0.0
      %972 = vmatpush1.xpose.msra.mxu0 0.0
      %973 = vmatprep.subr.mxu0 0.0
      %974 = vmatpush1.xpose.msra.mxu0 0.0
      %975 = vmatprep.subr.mxu0 0.0
      %976 = vmatpush1.xpose.msra.mxu0 0.0
      %977 = vmatprep.subr.mxu0 0.0
      %978 = vmatpush1.xpose.msra.mxu0 0.0
      %979 = vmatprep.subr.mxu0 0.0
      %980 = vmatpush1.xpose.msra.mxu0 0.0
      %981 = vmatprep.subr.mxu0 0.0
      %982 = vmatpush1.xpose.msra.mxu0 0.0
      %983 = vmatprep.subr.mxu0 0.0
      %984 = vmatpush1.xpose.msra.mxu0 0.0
      %985 = vmatprep.subr.mxu0 0.0
      %986 = vmatpush1.xpose.msra.mxu0 0.0
      %987 = vmatprep.subr.mxu0 0.0
      %988 = vmatpush1.xpose.msra.mxu0 0.0
      %989 = vmatprep.subr.mxu0 0.0
      %990 = vmatpush1.xpose.msra.mxu0 0.0
      %991 = vmatprep.subr.mxu0 0.0
      %992 = vmatpush1.xpose.msra.mxu0 0.0
      %993 = vmatprep.subr.mxu0 0.0
      %994 = vmatpush1.xpose.msra.mxu0 0.0
      %995 = vmatprep.subr.mxu0 0.0
      %996 = vmatpush1.xpose.msra.mxu0 0.0
      %997 = vmatprep.subr.mxu0 0.0
      %998 = vmatpush1.xpose.msra.mxu0 0.0
      %999 = vmatprep.mubr.f32.mxu0 0.0
      %1000 = vmatmul.mubr.f32.gmra.mrb[0].mxu0 %v931
      %v1001 = vpop.f32.mrb[0].mxu0
      %v1002 = vadd.f32 0.0, %v1001
      %v1003 = vpop.f32.mrb[0].mxu0
      %1004 = vdwg.mxu0
      %1006 = vrot.lane.b32.xlu0 %v380, 120
      %v1007 = vpop.permute.xlu0 %1006
      %v1008 = vsel %vm391, %v380, 0
      %v1010 = vsel %vm391, %v1007, 0
      %1012 = vmatprep.subr.mxu0 0.0
      %1013 = vmatpush1.xpose.msra.mxu0 %v1010
      %1014 = vmatprep.subr.mxu0 0.0
      %1015 = vmatpush1.xpose.msra.mxu0 0.0
      %1016 = vmatprep.subr.mxu0 0.0
      %1017 = vmatpush1.xpose.msra.mxu0 0.0
      %1018 = vmatprep.subr.mxu0 0.0
      %1019 = vmatpush1.xpose.msra.mxu0 0.0
      %1020 = vmatprep.subr.mxu0 0.0
      %1021 = vmatpush1.xpose.msra.mxu0 0.0
      %1022 = vmatprep.subr.mxu0 0.0
      %1023 = vmatpush1.xpose.msra.mxu0 0.0
      %1024 = vmatprep.subr.mxu0 0.0
      %1025 = vmatpush1.xpose.msra.mxu0 0.0
      %1026 = vmatprep.subr.mxu0 0.0
      %1027 = vmatpush1.xpose.msra.mxu0 0.0
      %1028 = vmatprep.subr.mxu0 0.0
      %1029 = vmatpush1.xpose.msra.mxu0 0.0
      %1030 = vmatprep.subr.mxu0 0.0
      %1031 = vmatpush1.xpose.msra.mxu0 0.0
      %1032 = vmatprep.subr.mxu0 0.0
      %1033 = vmatpush1.xpose.msra.mxu0 0.0
      %1034 = vmatprep.subr.mxu0 0.0
      %1035 = vmatpush1.xpose.msra.mxu0 0.0
      %1036 = vmatprep.subr.mxu0 0.0
      %1037 = vmatpush1.xpose.msra.mxu0 0.0
      %1038 = vmatprep.subr.mxu0 0.0
      %1039 = vmatpush1.xpose.msra.mxu0 0.0
      %1040 = vmatprep.subr.mxu0 0.0
      %1041 = vmatpush1.xpose.msra.mxu0 0.0
      %1042 = vmatprep.subr.mxu0 0.0
      %1043 = vmatpush1.xpose.msra.mxu0 0.0
      %1044 = vmatprep.subr.mxu0 0.0
      %1045 = vmatpush1.xpose.msra.mxu0 0.0
      %1046 = vmatprep.subr.mxu0 0.0
      %1047 = vmatpush1.xpose.msra.mxu0 0.0
      %1048 = vmatprep.subr.mxu0 0.0
      %1049 = vmatpush1.xpose.msra.mxu0 0.0
      %1050 = vmatprep.subr.mxu0 0.0
      %1051 = vmatpush1.xpose.msra.mxu0 0.0
      %1052 = vmatprep.subr.mxu0 0.0
      %1053 = vmatpush1.xpose.msra.mxu0 0.0
      %1054 = vmatprep.subr.mxu0 0.0
      %1055 = vmatpush1.xpose.msra.mxu0 0.0
      %1056 = vmatprep.subr.mxu0 0.0
      %1057 = vmatpush1.xpose.msra.mxu0 0.0
      %1058 = vmatprep.subr.mxu0 0.0
      %1059 = vmatpush1.xpose.msra.mxu0 0.0
      %1060 = vmatprep.subr.mxu0 0.0
      %1061 = vmatpush1.xpose.msra.mxu0 0.0
      %1062 = vmatprep.subr.mxu0 0.0
      %1063 = vmatpush1.xpose.msra.mxu0 0.0
      %1064 = vmatprep.subr.mxu0 0.0
      %1065 = vmatpush1.xpose.msra.mxu0 0.0
      %1066 = vmatprep.subr.mxu0 0.0
      %1067 = vmatpush1.xpose.msra.mxu0 0.0
      %1068 = vmatprep.subr.mxu0 0.0
      %1069 = vmatpush1.xpose.msra.mxu0 0.0
      %1070 = vmatprep.subr.mxu0 0.0
      %1071 = vmatpush1.xpose.msra.mxu0 0.0
      %1072 = vmatprep.subr.mxu0 0.0
      %1073 = vmatpush1.xpose.msra.mxu0 0.0
      %1074 = vmatprep.subr.mxu0 0.0
      %1075 = vmatpush1.xpose.msra.mxu0 0.0
      %1076 = vmatprep.mubr.f32.mxu0 0.0
      %1077 = vmatmul.mubr.f32.gmra.mrb[0].mxu0 %v1008
      %v1078 = vpop.f32.mrb[0].mxu0
      %v1079 = vadd.f32 0.0, %v1078
      %v1080 = vpop.f32.mrb[0].mxu0
      %1081 = vdwg.mxu0
      %1083 = vrot.lane.b32.xlu0 %v381, 120
      %v1084 = vpop.permute.xlu0 %1083
      %v1085 = vsel %vm391, %v381, 0
      %v1087 = vsel %vm391, %v1084, 0
      %1089 = vmatprep.subr.mxu0 0.0
      %1090 = vmatpush1.xpose.msra.mxu0 %v1087
      %1091 = vmatprep.subr.mxu0 0.0
      %1092 = vmatpush1.xpose.msra.mxu0 0.0
      %1093 = vmatprep.subr.mxu0 0.0
      %1094 = vmatpush1.xpose.msra.mxu0 0.0
      %1095 = vmatprep.subr.mxu0 0.0
      %1096 = vmatpush1.xpose.msra.mxu0 0.0
      %1097 = vmatprep.subr.mxu0 0.0
      %1098 = vmatpush1.xpose.msra.mxu0 0.0
      %1099 = vmatprep.subr.mxu0 0.0
      %1100 = vmatpush1.xpose.msra.mxu0 0.0
      %1101 = vmatprep.subr.mxu0 0.0
      %1102 = vmatpush1.xpose.msra.mxu0 0.0
      %1103 = vmatprep.subr.mxu0 0.0
      %1104 = vmatpush1.xpose.msra.mxu0 0.0
      %1105 = vmatprep.subr.mxu0 0.0
      %1106 = vmatpush1.xpose.msra.mxu0 0.0
      %1107 = vmatprep.subr.mxu0 0.0
      %1108 = vmatpush1.xpose.msra.mxu0 0.0
      %1109 = vmatprep.subr.mxu0 0.0
      %1110 = vmatpush1.xpose.msra.mxu0 0.0
      %1111 = vmatprep.subr.mxu0 0.0
      %1112 = vmatpush1.xpose.msra.mxu0 0.0
      %1113 = vmatprep.subr.mxu0 0.0
      %1114 = vmatpush1.xpose.msra.mxu0 0.0
      %1115 = vmatprep.subr.mxu0 0.0
      %1116 = vmatpush1.xpose.msra.mxu0 0.0
      %1117 = vmatprep.subr.mxu0 0.0
      %1118 = vmatpush1.xpose.msra.mxu0 0.0
      %1119 = vmatprep.subr.mxu0 0.0
      %1120 = vmatpush1.xpose.msra.mxu0 0.0
      %1121 = vmatprep.subr.mxu0 0.0
      %1122 = vmatpush1.xpose.msra.mxu0 0.0
      %1123 = vmatprep.subr.mxu0 0.0
      %1124 = vmatpush1.xpose.msra.mxu0 0.0
      %1125 = vmatprep.subr.mxu0 0.0
      %1126 = vmatpush1.xpose.msra.mxu0 0.0
      %1127 = vmatprep.subr.mxu0 0.0
      %1128 = vmatpush1.xpose.msra.mxu0 0.0
      %1129 = vmatprep.subr.mxu0 0.0
      %1130 = vmatpush1.xpose.msra.mxu0 0.0
      %1131 = vmatprep.subr.mxu0 0.0
      %1132 = vmatpush1.xpose.msra.mxu0 0.0
      %1133 = vmatprep.subr.mxu0 0.0
      %1134 = vmatpush1.xpose.msra.mxu0 0.0
      %1135 = vmatprep.subr.mxu0 0.0
      %1136 = vmatpush1.xpose.msra.mxu0 0.0
      %1137 = vmatprep.subr.mxu0 0.0
      %1138 = vmatpush1.xpose.msra.mxu0 0.0
      %1139 = vmatprep.subr.mxu0 0.0
      %1140 = vmatpush1.xpose.msra.mxu0 0.0
      %1141 = vmatprep.subr.mxu0 0.0
      %1142 = vmatpush1.xpose.msra.mxu0 0.0
      %1143 = vmatprep.subr.mxu0 0.0
      %1144 = vmatpush1.xpose.msra.mxu0 0.0
      %1145 = vmatprep.subr.mxu0 0.0
      %1146 = vmatpush1.xpose.msra.mxu0 0.0
      %1147 = vmatprep.subr.mxu0 0.0
      %1148 = vmatpush1.xpose.msra.mxu0 0.0
      %1149 = vmatprep.subr.mxu0 0.0
      %1150 = vmatpush1.xpose.msra.mxu0 0.0
      %1151 = vmatprep.subr.mxu0 0.0
      %1152 = vmatpush1.xpose.msra.mxu0 0.0
      %1153 = vmatprep.mubr.f32.mxu0 0.0
      %1154 = vmatmul.mubr.f32.gmra.mrb[0].mxu0 %v1085
      %v1155 = vpop.f32.mrb[0].mxu0
      %v1156 = vadd.f32 0.0, %v1155
      %v1157 = vpop.f32.mrb[0].mxu0
      %1158 = vdwg.mxu0
      %1160 = vrot.lane.b32.xlu0 %v382, 120
      %v1161 = vpop.permute.xlu0 %1160
      %v1162 = vsel %vm391, %v382, 0
      %v1164 = vsel %vm391, %v1161, 0
      %1166 = vmatprep.subr.mxu0 0.0
      %1167 = vmatpush1.xpose.msra.mxu0 %v1164
      %1168 = vmatprep.subr.mxu0 0.0
      %1169 = vmatpush1.xpose.msra.mxu0 0.0
      %1170 = vmatprep.subr.mxu0 0.0
      %1171 = vmatpush1.xpose.msra.mxu0 0.0
      %1172 = vmatprep.subr.mxu0 0.0
      %1173 = vmatpush1.xpose.msra.mxu0 0.0
      %1174 = vmatprep.subr.mxu0 0.0
      %1175 = vmatpush1.xpose.msra.mxu0 0.0
      %1176 = vmatprep.subr.mxu0 0.0
      %1177 = vmatpush1.xpose.msra.mxu0 0.0
      %1178 = vmatprep.subr.mxu0 0.0
      %1179 = vmatpush1.xpose.msra.mxu0 0.0
      %1180 = vmatprep.subr.mxu0 0.0
      %1181 = vmatpush1.xpose.msra.mxu0 0.0
      %1182 = vmatprep.subr.mxu0 0.0
      %1183 = vmatpush1.xpose.msra.mxu0 0.0
      %1184 = vmatprep.subr.mxu0 0.0
      %1185 = vmatpush1.xpose.msra.mxu0 0.0
      %1186 = vmatprep.subr.mxu0 0.0
      %1187 = vmatpush1.xpose.msra.mxu0 0.0
      %1188 = vmatprep.subr.mxu0 0.0
      %1189 = vmatpush1.xpose.msra.mxu0 0.0
      %1190 = vmatprep.subr.mxu0 0.0
      %1191 = vmatpush1.xpose.msra.mxu0 0.0
      %1192 = vmatprep.subr.mxu0 0.0
      %1193 = vmatpush1.xpose.msra.mxu0 0.0
      %1194 = vmatprep.subr.mxu0 0.0
      %1195 = vmatpush1.xpose.msra.mxu0 0.0
      %1196 = vmatprep.subr.mxu0 0.0
      %1197 = vmatpush1.xpose.msra.mxu0 0.0
      %1198 = vmatprep.subr.mxu0 0.0
      %1199 = vmatpush1.xpose.msra.mxu0 0.0
      %1200 = vmatprep.subr.mxu0 0.0
      %1201 = vmatpush1.xpose.msra.mxu0 0.0
      %1202 = vmatprep.subr.mxu0 0.0
      %1203 = vmatpush1.xpose.msra.mxu0 0.0
      %1204 = vmatprep.subr.mxu0 0.0
      %1205 = vmatpush1.xpose.msra.mxu0 0.0
      %1206 = vmatprep.subr.mxu0 0.0
      %1207 = vmatpush1.xpose.msra.mxu0 0.0
      %1208 = vmatprep.subr.mxu0 0.0
      %1209 = vmatpush1.xpose.msra.mxu0 0.0
      %1210 = vmatprep.subr.mxu0 0.0
      %1211 = vmatpush1.xpose.msra.mxu0 0.0
      %1212 = vmatprep.subr.mxu0 0.0
      %1213 = vmatpush1.xpose.msra.mxu0 0.0
      %1214 = vmatprep.subr.mxu0 0.0
      %1215 = vmatpush1.xpose.msra.mxu0 0.0
      %1216 = vmatprep.subr.mxu0 0.0
      %1217 = vmatpush1.xpose.msra.mxu0 0.0
      %1218 = vmatprep.subr.mxu0 0.0
      %1219 = vmatpush1.xpose.msra.mxu0 0.0
      %1220 = vmatprep.subr.mxu0 0.0
      %1221 = vmatpush1.xpose.msra.mxu0 0.0
      %1222 = vmatprep.subr.mxu0 0.0
      %1223 = vmatpush1.xpose.msra.mxu0 0.0
      %1224 = vmatprep.subr.mxu0 0.0
      %1225 = vmatpush1.xpose.msra.mxu0 0.0
      %1226 = vmatprep.subr.mxu0 0.0
      %1227 = vmatpush1.xpose.msra.mxu0 0.0
      %1228 = vmatprep.subr.mxu0 0.0
      %1229 = vmatpush1.xpose.msra.mxu0 0.0
      %1230 = vmatprep.mubr.f32.mxu0 0.0
      %1231 = vmatmul.mubr.f32.gmra.mrb[0].mxu0 %v1162
      %v1232 = vpop.f32.mrb[0].mxu0
      %v1233 = vadd.f32 0.0, %v1232
      %v1234 = vpop.f32.mrb[0].mxu0
      %1235 = vdwg.mxu0
      %1237 = vrot.lane.b32.xlu0 %v383, 120
      %v1238 = vpop.permute.xlu0 %1237
      %v1239 = vsel %vm391, %v383, 0
      %v1241 = vsel %vm391, %v1238, 0
      %1243 = vmatprep.subr.mxu0 0.0
      %1244 = vmatpush1.xpose.msra.mxu0 %v1241
      %1245 = vmatprep.subr.mxu0 0.0
      %1246 = vmatpush1.xpose.msra.mxu0 0.0
      %1247 = vmatprep.subr.mxu0 0.0
      %1248 = vmatpush1.xpose.msra.mxu0 0.0
      %1249 = vmatprep.subr.mxu0 0.0
      %1250 = vmatpush1.xpose.msra.mxu0 0.0
      %1251 = vmatprep.subr.mxu0 0.0
      %1252 = vmatpush1.xpose.msra.mxu0 0.0
      %1253 = vmatprep.subr.mxu0 0.0
      %1254 = vmatpush1.xpose.msra.mxu0 0.0
      %1255 = vmatprep.subr.mxu0 0.0
      %1256 = vmatpush1.xpose.msra.mxu0 0.0
      %1257 = vmatprep.subr.mxu0 0.0
      %1258 = vmatpush1.xpose.msra.mxu0 0.0
      %1259 = vmatprep.subr.mxu0 0.0
      %1260 = vmatpush1.xpose.msra.mxu0 0.0
      %1261 = vmatprep.subr.mxu0 0.0
      %1262 = vmatpush1.xpose.msra.mxu0 0.0
      %1263 = vmatprep.subr.mxu0 0.0
      %1264 = vmatpush1.xpose.msra.mxu0 0.0
      %1265 = vmatprep.subr.mxu0 0.0
      %1266 = vmatpush1.xpose.msra.mxu0 0.0
      %1267 = vmatprep.subr.mxu0 0.0
      %1268 = vmatpush1.xpose.msra.mxu0 0.0
      %1269 = vmatprep.subr.mxu0 0.0
      %1270 = vmatpush1.xpose.msra.mxu0 0.0
      %1271 = vmatprep.subr.mxu0 0.0
      %1272 = vmatpush1.xpose.msra.mxu0 0.0
      %1273 = vmatprep.subr.mxu0 0.0
      %1274 = vmatpush1.xpose.msra.mxu0 0.0
      %1275 = vmatprep.subr.mxu0 0.0
      %1276 = vmatpush1.xpose.msra.mxu0 0.0
      %1277 = vmatprep.subr.mxu0 0.0
      %1278 = vmatpush1.xpose.msra.mxu0 0.0
      %1279 = vmatprep.subr.mxu0 0.0
      %1280 = vmatpush1.xpose.msra.mxu0 0.0
      %1281 = vmatprep.subr.mxu0 0.0
      %1282 = vmatpush1.xpose.msra.mxu0 0.0
      %1283 = vmatprep.subr.mxu0 0.0
      %1284 = vmatpush1.xpose.msra.mxu0 0.0
      %1285 = vmatprep.subr.mxu0 0.0
      %1286 = vmatpush1.xpose.msra.mxu0 0.0
      %1287 = vmatprep.subr.mxu0 0.0
      %1288 = vmatpush1.xpose.msra.mxu0 0.0
      %1289 = vmatprep.subr.mxu0 0.0
      %1290 = vmatpush1.xpose.msra.mxu0 0.0
      %1291 = vmatprep.subr.mxu0 0.0
      %1292 = vmatpush1.xpose.msra.mxu0 0.0
      %1293 = vmatprep.subr.mxu0 0.0
      %1294 = vmatpush1.xpose.msra.mxu0 0.0
      %1295 = vmatprep.subr.mxu0 0.0
      %1296 = vmatpush1.xpose.msra.mxu0 0.0
      %1297 = vmatprep.subr.mxu0 0.0
      %1298 = vmatpush1.xpose.msra.mxu0 0.0
      %1299 = vmatprep.subr.mxu0 0.0
      %1300 = vmatpush1.xpose.msra.mxu0 0.0
      %1301 = vmatprep.subr.mxu0 0.0
      %1302 = vmatpush1.xpose.msra.mxu0 0.0
      %1303 = vmatprep.subr.mxu0 0.0
      %1304 = vmatpush1.xpose.msra.mxu0 0.0
      %1305 = vmatprep.subr.mxu0 0.0
      %1306 = vmatpush1.xpose.msra.mxu0 0.0
      %1307 = vmatprep.mubr.f32.mxu0 0.0
      %1308 = vmatmul.mubr.f32.gmra.mrb[0].mxu0 %v1239
      %v1309 = vpop.f32.mrb[0].mxu0
      %v1310 = vadd.f32 0.0, %v1309
      %v1311 = vpop.f32.mrb[0].mxu0
      %1312 = vdwg.mxu0
      %1314 = vrot.lane.b32.xlu0 %v384, 120
      %v1315 = vpop.permute.xlu0 %1314
      %v1316 = vsel %vm391, %v384, 0
      %v1318 = vsel %vm391, %v1315, 0
      %1320 = vmatprep.subr.mxu0 0.0
      %1321 = vmatpush1.xpose.msra.mxu0 %v1318
      %1322 = vmatprep.subr.mxu0 0.0
      %1323 = vmatpush1.xpose.msra.mxu0 0.0
      %1324 = vmatprep.subr.mxu0 0.0
      %1325 = vmatpush1.xpose.msra.mxu0 0.0
      %1326 = vmatprep.subr.mxu0 0.0
      %1327 = vmatpush1.xpose.msra.mxu0 0.0
      %1328 = vmatprep.subr.mxu0 0.0
      %1329 = vmatpush1.xpose.msra.mxu0 0.0
      %1330 = vmatprep.subr.mxu0 0.0
      %1331 = vmatpush1.xpose.msra.mxu0 0.0
      %1332 = vmatprep.subr.mxu0 0.0
      %1333 = vmatpush1.xpose.msra.mxu0 0.0
      %1334 = vmatprep.subr.mxu0 0.0
      %1335 = vmatpush1.xpose.msra.mxu0 0.0
      %1336 = vmatprep.subr.mxu0 0.0
      %1337 = vmatpush1.xpose.msra.mxu0 0.0
      %1338 = vmatprep.subr.mxu0 0.0
      %1339 = vmatpush1.xpose.msra.mxu0 0.0
      %1340 = vmatprep.subr.mxu0 0.0
      %1341 = vmatpush1.xpose.msra.mxu0 0.0
      %1342 = vmatprep.subr.mxu0 0.0
      %1343 = vmatpush1.xpose.msra.mxu0 0.0
      %1344 = vmatprep.subr.mxu0 0.0
      %1345 = vmatpush1.xpose.msra.mxu0 0.0
      %1346 = vmatprep.subr.mxu0 0.0
      %1347 = vmatpush1.xpose.msra.mxu0 0.0
      %1348 = vmatprep.subr.mxu0 0.0
      %1349 = vmatpush1.xpose.msra.mxu0 0.0
      %1350 = vmatprep.subr.mxu0 0.0
      %1351 = vmatpush1.xpose.msra.mxu0 0.0
      %1352 = vmatprep.subr.mxu0 0.0
      %1353 = vmatpush1.xpose.msra.mxu0 0.0
      %1354 = vmatprep.subr.mxu0 0.0
      %1355 = vmatpush1.xpose.msra.mxu0 0.0
      %1356 = vmatprep.subr.mxu0 0.0
      %1357 = vmatpush1.xpose.msra.mxu0 0.0
      %1358 = vmatprep.subr.mxu0 0.0
      %1359 = vmatpush1.xpose.msra.mxu0 0.0
      %1360 = vmatprep.subr.mxu0 0.0
      %1361 = vmatpush1.xpose.msra.mxu0 0.0
      %1362 = vmatprep.subr.mxu0 0.0
      %1363 = vmatpush1.xpose.msra.mxu0 0.0
      %1364 = vmatprep.subr.mxu0 0.0
      %1365 = vmatpush1.xpose.msra.mxu0 0.0
      %1366 = vmatprep.subr.mxu0 0.0
      %1367 = vmatpush1.xpose.msra.mxu0 0.0
      %1368 = vmatprep.subr.mxu0 0.0
      %1369 = vmatpush1.xpose.msra.mxu0 0.0
      %1370 = vmatprep.subr.mxu0 0.0
      %1371 = vmatpush1.xpose.msra.mxu0 0.0
      %1372 = vmatprep.subr.mxu0 0.0
      %1373 = vmatpush1.xpose.msra.mxu0 0.0
      %1374 = vmatprep.subr.mxu0 0.0
      %1375 = vmatpush1.xpose.msra.mxu0 0.0
      %1376 = vmatprep.subr.mxu0 0.0
      %1377 = vmatpush1.xpose.msra.mxu0 0.0
      %1378 = vmatprep.subr.mxu0 0.0
      %1379 = vmatpush1.xpose.msra.mxu0 0.0
      %1380 = vmatprep.subr.mxu0 0.0
      %1381 = vmatpush1.xpose.msra.mxu0 0.0
      %1382 = vmatprep.subr.mxu0 0.0
      %1383 = vmatpush1.xpose.msra.mxu0 0.0
      %1384 = vmatprep.mubr.f32.mxu0 0.0
      %1385 = vmatmul.mubr.f32.gmra.mrb[0].mxu0 %v1316
      %v1386 = vpop.f32.mrb[0].mxu0
      %v1387 = vadd.f32 0.0, %v1386
      %v1388 = vpop.f32.mrb[0].mxu0
      %1389 = vdwg.mxu0
      %1391 = vrot.lane.b32.xlu0 %v385, 120
      %v1392 = vpop.permute.xlu0 %1391
      %v1393 = vsel %vm391, %v385, 0
      %v1395 = vsel %vm391, %v1392, 0
      %1397 = vmatprep.subr.mxu0 0.0
      %1398 = vmatpush1.xpose.msra.mxu0 %v1395
      %1399 = vmatprep.subr.mxu0 0.0
      %1400 = vmatpush1.xpose.msra.mxu0 0.0
      %1401 = vmatprep.subr.mxu0 0.0
      %1402 = vmatpush1.xpose.msra.mxu0 0.0
      %1403 = vmatprep.subr.mxu0 0.0
      %1404 = vmatpush1.xpose.msra.mxu0 0.0
      %1405 = vmatprep.subr.mxu0 0.0
      %1406 = vmatpush1.xpose.msra.mxu0 0.0
      %1407 = vmatprep.subr.mxu0 0.0
      %1408 = vmatpush1.xpose.msra.mxu0 0.0
      %1409 = vmatprep.subr.mxu0 0.0
      %1410 = vmatpush1.xpose.msra.mxu0 0.0
      %1411 = vmatprep.subr.mxu0 0.0
      %1412 = vmatpush1.xpose.msra.mxu0 0.0
      %1413 = vmatprep.subr.mxu0 0.0
      %1414 = vmatpush1.xpose.msra.mxu0 0.0
      %1415 = vmatprep.subr.mxu0 0.0
      %1416 = vmatpush1.xpose.msra.mxu0 0.0
      %1417 = vmatprep.subr.mxu0 0.0
      %1418 = vmatpush1.xpose.msra.mxu0 0.0
      %1419 = vmatprep.subr.mxu0 0.0
      %1420 = vmatpush1.xpose.msra.mxu0 0.0
      %1421 = vmatprep.subr.mxu0 0.0
      %1422 = vmatpush1.xpose.msra.mxu0 0.0
      %1423 = vmatprep.subr.mxu0 0.0
      %1424 = vmatpush1.xpose.msra.mxu0 0.0
      %1425 = vmatprep.subr.mxu0 0.0
      %1426 = vmatpush1.xpose.msra.mxu0 0.0
      %1427 = vmatprep.subr.mxu0 0.0
      %1428 = vmatpush1.xpose.msra.mxu0 0.0
      %1429 = vmatprep.subr.mxu0 0.0
      %1430 = vmatpush1.xpose.msra.mxu0 0.0
      %1431 = vmatprep.subr.mxu0 0.0
      %1432 = vmatpush1.xpose.msra.mxu0 0.0
      %1433 = vmatprep.subr.mxu0 0.0
      %1434 = vmatpush1.xpose.msra.mxu0 0.0
      %1435 = vmatprep.subr.mxu0 0.0
      %1436 = vmatpush1.xpose.msra.mxu0 0.0
      %1437 = vmatprep.subr.mxu0 0.0
      %1438 = vmatpush1.xpose.msra.mxu0 0.0
      %1439 = vmatprep.subr.mxu0 0.0
      %1440 = vmatpush1.xpose.msra.mxu0 0.0
      %1441 = vmatprep.subr.mxu0 0.0
      %1442 = vmatpush1.xpose.msra.mxu0 0.0
      %1443 = vmatprep.subr.mxu0 0.0
      %1444 = vmatpush1.xpose.msra.mxu0 0.0
      %1445 = vmatprep.subr.mxu0 0.0
      %1446 = vmatpush1.xpose.msra.mxu0 0.0
      %1447 = vmatprep.subr.mxu0 0.0
      %1448 = vmatpush1.xpose.msra.mxu0 0.0
      %1449 = vmatprep.subr.mxu0 0.0
      %1450 = vmatpush1.xpose.msra.mxu0 0.0
      %1451 = vmatprep.subr.mxu0 0.0
      %1452 = vmatpush1.xpose.msra.mxu0 0.0
      %1453 = vmatprep.subr.mxu0 0.0
      %1454 = vmatpush1.xpose.msra.mxu0 0.0
      %1455 = vmatprep.subr.mxu0 0.0
      %1456 = vmatpush1.xpose.msra.mxu0 0.0
      %1457 = vmatprep.subr.mxu0 0.0
      %1458 = vmatpush1.xpose.msra.mxu0 0.0
      %1459 = vmatprep.subr.mxu0 0.0
      %1460 = vmatpush1.xpose.msra.mxu0 0.0
      %1461 = vmatprep.mubr.f32.mxu0 0.0
      %1462 = vmatmul.mubr.f32.gmra.mrb[0].mxu0 %v1393
      %v1463 = vpop.f32.mrb[0].mxu0
      %v1464 = vadd.f32 0.0, %v1463
      %v1465 = vpop.f32.mrb[0].mxu0
      %1466 = vdwg.mxu0
      %1468 = vrot.lane.b32.xlu0 %v386, 120
      %v1469 = vpop.permute.xlu0 %1468
      %v1470 = vsel %vm391, %v386, 0
      %v1472 = vsel %vm391, %v1469, 0
      %1474 = vmatprep.subr.mxu0 0.0
      %1475 = vmatpush1.xpose.msra.mxu0 %v1472
      %1476 = vmatprep.subr.mxu0 0.0
      %1477 = vmatpush1.xpose.msra.mxu0 0.0
      %1478 = vmatprep.subr.mxu0 0.0
      %1479 = vmatpush1.xpose.msra.mxu0 0.0
      %1480 = vmatprep.subr.mxu0 0.0
      %1481 = vmatpush1.xpose.msra.mxu0 0.0
      %1482 = vmatprep.subr.mxu0 0.0
      %1483 = vmatpush1.xpose.msra.mxu0 0.0
      %1484 = vmatprep.subr.mxu0 0.0
      %1485 = vmatpush1.xpose.msra.mxu0 0.0
      %1486 = vmatprep.subr.mxu0 0.0
      %1487 = vmatpush1.xpose.msra.mxu0 0.0
      %1488 = vmatprep.subr.mxu0 0.0
      %1489 = vmatpush1.xpose.msra.mxu0 0.0
      %1490 = vmatprep.subr.mxu0 0.0
      %1491 = vmatpush1.xpose.msra.mxu0 0.0
      %1492 = vmatprep.subr.mxu0 0.0
      %1493 = vmatpush1.xpose.msra.mxu0 0.0
      %1494 = vmatprep.subr.mxu0 0.0
      %1495 = vmatpush1.xpose.msra.mxu0 0.0
      %1496 = vmatprep.subr.mxu0 0.0
      %1497 = vmatpush1.xpose.msra.mxu0 0.0
      %1498 = vmatprep.subr.mxu0 0.0
      %1499 = vmatpush1.xpose.msra.mxu0 0.0
      %1500 = vmatprep.subr.mxu0 0.0
      %1501 = vmatpush1.xpose.msra.mxu0 0.0
      %1502 = vmatprep.subr.mxu0 0.0
      %1503 = vmatpush1.xpose.msra.mxu0 0.0
      %1504 = vmatprep.subr.mxu0 0.0
      %1505 = vmatpush1.xpose.msra.mxu0 0.0
      %1506 = vmatprep.subr.mxu0 0.0
      %1507 = vmatpush1.xpose.msra.mxu0 0.0
      %1508 = vmatprep.subr.mxu0 0.0
      %1509 = vmatpush1.xpose.msra.mxu0 0.0
      %1510 = vmatprep.subr.mxu0 0.0
      %1511 = vmatpush1.xpose.msra.mxu0 0.0
      %1512 = vmatprep.subr.mxu0 0.0
      %1513 = vmatpush1.xpose.msra.mxu0 0.0
      %1514 = vmatprep.subr.mxu0 0.0
      %1515 = vmatpush1.xpose.msra.mxu0 0.0
      %1516 = vmatprep.subr.mxu0 0.0
      %1517 = vmatpush1.xpose.msra.mxu0 0.0
      %1518 = vmatprep.subr.mxu0 0.0
      %1519 = vmatpush1.xpose.msra.mxu0 0.0
      %1520 = vmatprep.subr.mxu0 0.0
      %1521 = vmatpush1.xpose.msra.mxu0 0.0
      %1522 = vmatprep.subr.mxu0 0.0
      %1523 = vmatpush1.xpose.msra.mxu0 0.0
      %1524 = vmatprep.subr.mxu0 0.0
      %1525 = vmatpush1.xpose.msra.mxu0 0.0
      %1526 = vmatprep.subr.mxu0 0.0
      %1527 = vmatpush1.xpose.msra.mxu0 0.0
      %1528 = vmatprep.subr.mxu0 0.0
      %1529 = vmatpush1.xpose.msra.mxu0 0.0
      %1530 = vmatprep.subr.mxu0 0.0
      %1531 = vmatpush1.xpose.msra.mxu0 0.0
      %1532 = vmatprep.subr.mxu0 0.0
      %1533 = vmatpush1.xpose.msra.mxu0 0.0
      %1534 = vmatprep.subr.mxu0 0.0
      %1535 = vmatpush1.xpose.msra.mxu0 0.0
      %1536 = vmatprep.subr.mxu0 0.0
      %1537 = vmatpush1.xpose.msra.mxu0 0.0
      %1538 = vmatprep.mubr.f32.mxu0 0.0
      %1539 = vmatmul.mubr.f32.gmra.mrb[0].mxu0 %v1470
      %v1540 = vpop.f32.mrb[0].mxu0
      %v1541 = vadd.f32 0.0, %v1540
      %v1542 = vpop.f32.mrb[0].mxu0
      %1543 = vdwg.mxu0
      %1545 = vrot.lane.b32.xlu0 %v387, 120
      %v1546 = vpop.permute.xlu0 %1545
      %v1547 = vsel %vm391, %v387, 0
      %v1549 = vsel %vm391, %v1546, 0
      %1551 = vmatprep.subr.mxu0 0.0
      %1552 = vmatpush1.xpose.msra.mxu0 %v1549
      %1553 = vmatprep.subr.mxu0 0.0
      %1554 = vmatpush1.xpose.msra.mxu0 0.0
      %1555 = vmatprep.subr.mxu0 0.0
      %1556 = vmatpush1.xpose.msra.mxu0 0.0
      %1557 = vmatprep.subr.mxu0 0.0
      %1558 = vmatpush1.xpose.msra.mxu0 0.0
      %1559 = vmatprep.subr.mxu0 0.0
      %1560 = vmatpush1.xpose.msra.mxu0 0.0
      %1561 = vmatprep.subr.mxu0 0.0
      %1562 = vmatpush1.xpose.msra.mxu0 0.0
      %1563 = vmatprep.subr.mxu0 0.0
      %1564 = vmatpush1.xpose.msra.mxu0 0.0
      %1565 = vmatprep.subr.mxu0 0.0
      %1566 = vmatpush1.xpose.msra.mxu0 0.0
      %1567 = vmatprep.subr.mxu0 0.0
      %1568 = vmatpush1.xpose.msra.mxu0 0.0
      %1569 = vmatprep.subr.mxu0 0.0
      %1570 = vmatpush1.xpose.msra.mxu0 0.0
      %1571 = vmatprep.subr.mxu0 0.0
      %1572 = vmatpush1.xpose.msra.mxu0 0.0
      %1573 = vmatprep.subr.mxu0 0.0
      %1574 = vmatpush1.xpose.msra.mxu0 0.0
      %1575 = vmatprep.subr.mxu0 0.0
      %1576 = vmatpush1.xpose.msra.mxu0 0.0
      %1577 = vmatprep.subr.mxu0 0.0
      %1578 = vmatpush1.xpose.msra.mxu0 0.0
      %1579 = vmatprep.subr.mxu0 0.0
      %1580 = vmatpush1.xpose.msra.mxu0 0.0
      %1581 = vmatprep.subr.mxu0 0.0
      %1582 = vmatpush1.xpose.msra.mxu0 0.0
      %1583 = vmatprep.subr.mxu0 0.0
      %1584 = vmatpush1.xpose.msra.mxu0 0.0
      %1585 = vmatprep.subr.mxu0 0.0
      %1586 = vmatpush1.xpose.msra.mxu0 0.0
      %1587 = vmatprep.subr.mxu0 0.0
      %1588 = vmatpush1.xpose.msra.mxu0 0.0
      %1589 = vmatprep.subr.mxu0 0.0
      %1590 = vmatpush1.xpose.msra.mxu0 0.0
      %1591 = vmatprep.subr.mxu0 0.0
      %1592 = vmatpush1.xpose.msra.mxu0 0.0
      %1593 = vmatprep.subr.mxu0 0.0
      %1594 = vmatpush1.xpose.msra.mxu0 0.0
      %1595 = vmatprep.subr.mxu0 0.0
      %1596 = vmatpush1.xpose.msra.mxu0 0.0
      %1597 = vmatprep.subr.mxu0 0.0
      %1598 = vmatpush1.xpose.msra.mxu0 0.0
      %1599 = vmatprep.subr.mxu0 0.0
      %1600 = vmatpush1.xpose.msra.mxu0 0.0
      %1601 = vmatprep.subr.mxu0 0.0
      %1602 = vmatpush1.xpose.msra.mxu0 0.0
      %1603 = vmatprep.subr.mxu0 0.0
      %1604 = vmatpush1.xpose.msra.mxu0 0.0
      %1605 = vmatprep.subr.mxu0 0.0
      %1606 = vmatpush1.xpose.msra.mxu0 0.0
      %1607 = vmatprep.subr.mxu0 0.0
      %1608 = vmatpush1.xpose.msra.mxu0 0.0
      %1609 = vmatprep.subr.mxu0 0.0
      %1610 = vmatpush1.xpose.msra.mxu0 0.0
      %1611 = vmatprep.subr.mxu0 0.0
      %1612 = vmatpush1.xpose.msra.mxu0 0.0
      %1613 = vmatprep.subr.mxu0 0.0
      %1614 = vmatpush1.xpose.msra.mxu0 0.0
      %1615 = vmatprep.mubr.f32.mxu0 0.0
      %1616 = vmatmul.mubr.f32.gmra.mrb[0].mxu0 %v1547
      %v1617 = vpop.f32.mrb[0].mxu0
      %v1618 = vadd.f32 0.0, %v1617
      %v1619 = vpop.f32.mrb[0].mxu0
      %1620 = vdwg.mxu0
      %vm1621 = vcmask 64512
      %v1622 = vsel %vm1621, %v463, -inf
      %1623 = vmax.xlane.f32.xlu0 %v1622
      %v1624 = vpop.xlane.xlu0 %1623
      %v1625 = vsel %vm1621, %v540, -inf
      %1626 = vmax.xlane.f32.xlu0 %v1625
      %v1627 = vpop.xlane.xlu0 %1626
      %v1628 = vsel %vm1621, %v617, -inf
      %1629 = vmax.xlane.f32.xlu0 %v1628
      %v1630 = vpop.xlane.xlu0 %1629
      %v1631 = vsel %vm1621, %v694, -inf
      %1632 = vmax.xlane.f32.xlu0 %v1631
      %v1633 = vpop.xlane.xlu0 %1632
      %v1634 = vsel %vm1621, %v771, -inf
      %1635 = vmax.xlane.f32.xlu0 %v1634
      %v1636 = vpop.xlane.xlu0 %1635
      %v1637 = vsel %vm1621, %v848, -inf
      %1638 = vmax.xlane.f32.xlu0 %v1637
      %v1639 = vpop.xlane.xlu0 %1638
      %v1640 = vsel %vm1621, %v925, -inf
      %1641 = vmax.xlane.f32.xlu0 %v1640
      %v1642 = vpop.xlane.xlu0 %1641
      %v1643 = vsel %vm1621, %v1002, -inf
      %1644 = vmax.xlane.f32.xlu0 %v1643
      %v1645 = vpop.xlane.xlu0 %1644
      %v1646 = vsel %vm1621, %v1079, -inf
      %1647 = vmax.xlane.f32.xlu0 %v1646
      %v1648 = vpop.xlane.xlu0 %1647
      %v1649 = vsel %vm1621, %v1156, -inf
      %1650 = vmax.xlane.f32.xlu0 %v1649
      %v1651 = vpop.xlane.xlu0 %1650
      %v1652 = vsel %vm1621, %v1233, -inf
      %1653 = vmax.xlane.f32.xlu0 %v1652
      %v1654 = vpop.xlane.xlu0 %1653
      %v1655 = vsel %vm1621, %v1310, -inf
      %1656 = vmax.xlane.f32.xlu0 %v1655
      %v1657 = vpop.xlane.xlu0 %1656
      %v1658 = vsel %vm1621, %v1387, -inf
      %1659 = vmax.xlane.f32.xlu0 %v1658
      %v1660 = vpop.xlane.xlu0 %1659
      %v1661 = vsel %vm1621, %v1464, -inf
      %1662 = vmax.xlane.f32.xlu0 %v1661
      %v1663 = vpop.xlane.xlu0 %1662
      %v1664 = vsel %vm1621, %v1541, -inf
      %1665 = vmax.xlane.f32.xlu0 %v1664
      %v1666 = vpop.xlane.xlu0 %1665
      %v1667 = vsel %vm1621, %v1618, -inf
      %1668 = vmax.xlane.f32.xlu0 %v1667
      %v1669 = vpop.xlane.xlu0 %1668
      %v1670 = vsub.f32 %v463, %v1624
      %v1671 = vsub.f32 %v540, %v1627
      %v1672 = vsub.f32 %v617, %v1630
      %v1673 = vsub.f32 %v694, %v1633
      %v1674 = vsub.f32 %v771, %v1636
      %v1675 = vsub.f32 %v848, %v1639
      %v1676 = vsub.f32 %v925, %v1642
      %v1677 = vsub.f32 %v1002, %v1645
      %v1678 = vsub.f32 %v1079, %v1648
      %v1679 = vsub.f32 %v1156, %v1651
      %v1680 = vsub.f32 %v1233, %v1654
      %v1681 = vsub.f32 %v1310, %v1657
      %v1682 = vsub.f32 %v1387, %v1660
      %v1683 = vsub.f32 %v1464, %v1663
      %v1684 = vsub.f32 %v1541, %v1666
      %v1685 = vsub.f32 %v1618, %v1669
      %v1686 = vmul.f32 %v1670, 1.442695
      %v1687 = vpow.pop %v1686
      %v1688 = vmul.f32 %v1671, 1.442695
      %v1689 = vpow.pop %v1688
      %v1690 = vmul.f32 %v1672, 1.442695
      %v1691 = vpow.pop %v1690
      %v1692 = vmul.f32 %v1673, 1.442695
      %v1693 = vpow.pop %v1692
      %v1694 = vmul.f32 %v1674, 1.442695
      %v1695 = vpow.pop %v1694
      %v1696 = vmul.f32 %v1675, 1.442695
      %v1697 = vpow.pop %v1696
      %v1698 = vmul.f32 %v1676, 1.442695
      %v1699 = vpow.pop %v1698
      %v1700 = vmul.f32 %v1677, 1.442695
      %v1701 = vpow.pop %v1700
      %v1702 = vmul.f32 %v1678, 1.442695
      %v1703 = vpow.pop %v1702
      %v1704 = vmul.f32 %v1679, 1.442695
      %v1705 = vpow.pop %v1704
      %v1706 = vmul.f32 %v1680, 1.442695
      %v1707 = vpow.pop %v1706
      %v1708 = vmul.f32 %v1681, 1.442695
      %v1709 = vpow.pop %v1708
      %v1710 = vmul.f32 %v1682, 1.442695
      %v1711 = vpow.pop %v1710
      %v1712 = vmul.f32 %v1683, 1.442695
      %v1713 = vpow.pop %v1712
      %v1714 = vmul.f32 %v1684, 1.442695
      %v1715 = vpow.pop %v1714
      %v1716 = vmul.f32 %v1685, 1.442695
      %v1717 = vpow.pop %v1716
      %v1718 = vsel %vm1621, %v1687, 0.0
      %1719 = vadd.xlane.f32.xlu0 %v1718
      %v1720 = vpop.xlane.xlu0 %1719
      %v1721 = vsel %vm1621, %v1689, 0.0
      %1722 = vadd.xlane.f32.xlu0 %v1721
      %v1723 = vpop.xlane.xlu0 %1722
      %v1724 = vsel %vm1621, %v1691, 0.0
      %1725 = vadd.xlane.f32.xlu0 %v1724
      %v1726 = vpop.xlane.xlu0 %1725
      %v1727 = vsel %vm1621, %v1693, 0.0
      %1728 = vadd.xlane.f32.xlu0 %v1727
      %v1729 = vpop.xlane.xlu0 %1728
      %v1730 = vsel %vm1621, %v1695, 0.0
      %1731 = vadd.xlane.f32.xlu0 %v1730
      %v1732 = vpop.xlane.xlu0 %1731
      %v1733 = vsel %vm1621, %v1697, 0.0
      %1734 = vadd.xlane.f32.xlu0 %v1733
      %v1735 = vpop.xlane.xlu0 %1734
      %v1736 = vsel %vm1621, %v1699, 0.0
      %1737 = vadd.xlane.f32.xlu0 %v1736
      %v1738 = vpop.xlane.xlu0 %1737
      %v1739 = vsel %vm1621, %v1701, 0.0
      %1740 = vadd.xlane.f32.xlu0 %v1739
      %v1741 = vpop.xlane.xlu0 %1740
      %v1742 = vsel %vm1621, %v1703, 0.0
      %1743 = vadd.xlane.f32.xlu0 %v1742
      %v1744 = vpop.xlane.xlu0 %1743
      %v1745 = vsel %vm1621, %v1705, 0.0
      %1746 = vadd.xlane.f32.xlu0 %v1745
      %v1747 = vpop.xlane.xlu0 %1746
      %v1748 = vsel %vm1621, %v1707, 0.0
      %1749 = vadd.xlane.f32.xlu0 %v1748
      %v1750 = vpop.xlane.xlu0 %1749
      %v1751 = vsel %vm1621, %v1709, 0.0
      %1752 = vadd.xlane.f32.xlu0 %v1751
      %v1753 = vpop.xlane.xlu0 %1752
      %v1754 = vsel %vm1621, %v1711, 0.0
      %1755 = vadd.xlane.f32.xlu0 %v1754
      %v1756 = vpop.xlane.xlu0 %1755
      %v1757 = vsel %vm1621, %v1713, 0.0
      %1758 = vadd.xlane.f32.xlu0 %v1757
      %v1759 = vpop.xlane.xlu0 %1758
      %v1760 = vsel %vm1621, %v1715, 0.0
      %1761 = vadd.xlane.f32.xlu0 %v1760
      %v1762 = vpop.xlane.xlu0 %1761
      %v1763 = vsel %vm1621, %v1717, 0.0
      %1764 = vadd.xlane.f32.xlu0 %v1763
      %v1765 = vpop.xlane.xlu0 %1764
      %v1766 = vrcp.pop %v1720
      %v1767 = vmul.f32 %v1687, %v1766
      %v1768 = vrcp.pop %v1723
      %v1769 = vmul.f32 %v1689, %v1768
      %v1770 = vrcp.pop %v1726
      %v1771 = vmul.f32 %v1691, %v1770
      %v1772 = vrcp.pop %v1729
      %v1773 = vmul.f32 %v1693, %v1772
      %v1774 = vrcp.pop %v1732
      %v1775 = vmul.f32 %v1695, %v1774
      %v1776 = vrcp.pop %v1735
      %v1777 = vmul.f32 %v1697, %v1776
      %v1778 = vrcp.pop %v1738
      %v1779 = vmul.f32 %v1699, %v1778
      %v1780 = vrcp.pop %v1741
      %v1781 = vmul.f32 %v1701, %v1780
      %v1782 = vrcp.pop %v1744
      %v1783 = vmul.f32 %v1703, %v1782
      %v1784 = vrcp.pop %v1747
      %v1785 = vmul.f32 %v1705, %v1784
      %v1786 = vrcp.pop %v1750
      %v1787 = vmul.f32 %v1707, %v1786
      %v1788 = vrcp.pop %v1753
      %v1789 = vmul.f32 %v1709, %v1788
      %v1790 = vrcp.pop %v1756
      %v1791 = vmul.f32 %v1711, %v1790
      %v1792 = vrcp.pop %v1759
      %v1793 = vmul.f32 %v1713, %v1792
      %v1794 = vrcp.pop %v1762
      %v1795 = vmul.f32 %v1715, %v1794
      %v1796 = vrcp.pop %v1765
      %v1797 = vmul.f32 %v1717, %v1796
      %1798 = vrot.lane.b32.xlu0 %v372, 124
      %v1799 = vpop.permute.xlu0 %1798
      %1800 = vrot.lane.b32.xlu0 %v372, 116
      %v1801 = vpop.permute.xlu0 %1800
      %v1802 = vsel %vm391, %v1799, 0
      %v1804 = vsel %vm391, %v1801, 0
      %1806 = vmatprep.subr.mxu0 0.0
      %1807 = vmatpush1.xpose.msra.mxu0 %v1804
      %1808 = vmatprep.subr.mxu0 0.0
      %1809 = vmatpush1.xpose.msra.mxu0 0.0
      %1810 = vmatprep.subr.mxu0 0.0
      %1811 = vmatpush1.xpose.msra.mxu0 0.0
      %1812 = vmatprep.subr.mxu0 0.0
      %1813 = vmatpush1.xpose.msra.mxu0 0.0
      %1814 = vmatprep.subr.mxu0 0.0
      %1815 = vmatpush1.xpose.msra.mxu0 0.0
      %1816 = vmatprep.subr.mxu0 0.0
      %1817 = vmatpush1.xpose.msra.mxu0 0.0
      %1818 = vmatprep.subr.mxu0 0.0
      %1819 = vmatpush1.xpose.msra.mxu0 0.0
      %1820 = vmatprep.subr.mxu0 0.0
      %1821 = vmatpush1.xpose.msra.mxu0 0.0
      %1822 = vmatprep.subr.mxu0 0.0
      %1823 = vmatpush1.xpose.msra.mxu0 0.0
      %1824 = vmatprep.subr.mxu0 0.0
      %1825 = vmatpush1.xpose.msra.mxu0 0.0
      %1826 = vmatprep.subr.mxu0 0.0
      %1827 = vmatpush1.xpose.msra.mxu0 0.0
      %1828 = vmatprep.subr.mxu0 0.0
      %1829 = vmatpush1.xpose.msra.mxu0 0.0
      %1830 = vmatprep.subr.mxu0 0.0
      %1831 = vmatpush1.xpose.msra.mxu0 0.0
      %1832 = vmatprep.subr.mxu0 0.0
      %1833 = vmatpush1.xpose.msra.mxu0 0.0
      %1834 = vmatprep.subr.mxu0 0.0
      %1835 = vmatpush1.xpose.msra.mxu0 0.0
      %1836 = vmatprep.subr.mxu0 0.0
      %1837 = vmatpush1.xpose.msra.mxu0 0.0
      %1838 = vmatprep.subr.mxu0 0.0
      %1839 = vmatpush1.xpose.msra.mxu0 0.0
      %1840 = vmatprep.subr.mxu0 0.0
      %1841 = vmatpush1.xpose.msra.mxu0 0.0
      %1842 = vmatprep.subr.mxu0 0.0
      %1843 = vmatpush1.xpose.msra.mxu0 0.0
      %1844 = vmatprep.subr.mxu0 0.0
      %1845 = vmatpush1.xpose.msra.mxu0 0.0
      %1846 = vmatprep.subr.mxu0 0.0
      %1847 = vmatpush1.xpose.msra.mxu0 0.0
      %1848 = vmatprep.subr.mxu0 0.0
      %1849 = vmatpush1.xpose.msra.mxu0 0.0
      %1850 = vmatprep.subr.mxu0 0.0
      %1851 = vmatpush1.xpose.msra.mxu0 0.0
      %1852 = vmatprep.subr.mxu0 0.0
      %1853 = vmatpush1.xpose.msra.mxu0 0.0
      %1854 = vmatprep.subr.mxu0 0.0
      %1855 = vmatpush1.xpose.msra.mxu0 0.0
      %1856 = vmatprep.subr.mxu0 0.0
      %1857 = vmatpush1.xpose.msra.mxu0 0.0
      %1858 = vmatprep.subr.mxu0 0.0
      %1859 = vmatpush1.xpose.msra.mxu0 0.0
      %1860 = vmatprep.subr.mxu0 0.0
      %1861 = vmatpush1.xpose.msra.mxu0 0.0
      %1862 = vmatprep.subr.mxu0 0.0
      %1863 = vmatpush1.xpose.msra.mxu0 0.0
      %1864 = vmatprep.subr.mxu0 0.0
      %1865 = vmatpush1.xpose.msra.mxu0 0.0
      %1866 = vmatprep.subr.mxu0 0.0
      %1867 = vmatpush1.xpose.msra.mxu0 0.0
      %1868 = vmatprep.subr.mxu0 0.0
      %1869 = vmatpush1.xpose.msra.mxu0 0.0
      %1870 = vmatprep.mubr.f32.mxu0 0.0
      %1871 = vmatmul.mubr.f32.gmra.mrb[0].mxu0 %v1802
      %v1872 = vpop.f32.mrb[0].mxu0
      %v1873 = vadd.f32 0.0, %v1872
      %v1874 = vpop.f32.mrb[0].mxu0
      %1875 = vdwg.mxu0
      %1876 = vrot.lane.b32.xlu0 %v373, 124
      %v1877 = vpop.permute.xlu0 %1876
      %1878 = vrot.lane.b32.xlu0 %v373, 116
      %v1879 = vpop.permute.xlu0 %1878
      %v1880 = vsel %vm391, %v1877, 0
      %v1882 = vsel %vm391, %v1879, 0
      %1884 = vmatprep.subr.mxu0 0.0
      %1885 = vmatpush1.xpose.msra.mxu0 %v1882
      %1886 = vmatprep.subr.mxu0 0.0
      %1887 = vmatpush1.xpose.msra.mxu0 0.0
      %1888 = vmatprep.subr.mxu0 0.0
      %1889 = vmatpush1.xpose.msra.mxu0 0.0
      %1890 = vmatprep.subr.mxu0 0.0
      %1891 = vmatpush1.xpose.msra.mxu0 0.0
      %1892 = vmatprep.subr.mxu0 0.0
      %1893 = vmatpush1.xpose.msra.mxu0 0.0
      %1894 = vmatprep.subr.mxu0 0.0
      %1895 = vmatpush1.xpose.msra.mxu0 0.0
      %1896 = vmatprep.subr.mxu0 0.0
      %1897 = vmatpush1.xpose.msra.mxu0 0.0
      %1898 = vmatprep.subr.mxu0 0.0
      %1899 = vmatpush1.xpose.msra.mxu0 0.0
      %1900 = vmatprep.subr.mxu0 0.0
      %1901 = vmatpush1.xpose.msra.mxu0 0.0
      %1902 = vmatprep.subr.mxu0 0.0
      %1903 = vmatpush1.xpose.msra.mxu0 0.0
      %1904 = vmatprep.subr.mxu0 0.0
      %1905 = vmatpush1.xpose.msra.mxu0 0.0
      %1906 = vmatprep.subr.mxu0 0.0
      %1907 = vmatpush1.xpose.msra.mxu0 0.0
      %1908 = vmatprep.subr.mxu0 0.0
      %1909 = vmatpush1.xpose.msra.mxu0 0.0
      %1910 = vmatprep.subr.mxu0 0.0
      %1911 = vmatpush1.xpose.msra.mxu0 0.0
      %1912 = vmatprep.subr.mxu0 0.0
      %1913 = vmatpush1.xpose.msra.mxu0 0.0
      %1914 = vmatprep.subr.mxu0 0.0
      %1915 = vmatpush1.xpose.msra.mxu0 0.0
      %1916 = vmatprep.subr.mxu0 0.0
      %1917 = vmatpush1.xpose.msra.mxu0 0.0
      %1918 = vmatprep.subr.mxu0 0.0
      %1919 = vmatpush1.xpose.msra.mxu0 0.0
      %1920 = vmatprep.subr.mxu0 0.0
      %1921 = vmatpush1.xpose.msra.mxu0 0.0
      %1922 = vmatprep.subr.mxu0 0.0
      %1923 = vmatpush1.xpose.msra.mxu0 0.0
      %1924 = vmatprep.subr.mxu0 0.0
      %1925 = vmatpush1.xpose.msra.mxu0 0.0
      %1926 = vmatprep.subr.mxu0 0.0
      %1927 = vmatpush1.xpose.msra.mxu0 0.0
      %1928 = vmatprep.subr.mxu0 0.0
      %1929 = vmatpush1.xpose.msra.mxu0 0.0
      %1930 = vmatprep.subr.mxu0 0.0
      %1931 = vmatpush1.xpose.msra.mxu0 0.0
      %1932 = vmatprep.subr.mxu0 0.0
      %1933 = vmatpush1.xpose.msra.mxu0 0.0
      %1934 = vmatprep.subr.mxu0 0.0
      %1935 = vmatpush1.xpose.msra.mxu0 0.0
      %1936 = vmatprep.subr.mxu0 0.0
      %1937 = vmatpush1.xpose.msra.mxu0 0.0
      %1938 = vmatprep.subr.mxu0 0.0
      %1939 = vmatpush1.xpose.msra.mxu0 0.0
      %1940 = vmatprep.subr.mxu0 0.0
      %1941 = vmatpush1.xpose.msra.mxu0 0.0
      %1942 = vmatprep.subr.mxu0 0.0
      %1943 = vmatpush1.xpose.msra.mxu0 0.0
      %1944 = vmatprep.subr.mxu0 0.0
      %1945 = vmatpush1.xpose.msra.mxu0 0.0
      %1946 = vmatprep.subr.mxu0 0.0
      %1947 = vmatpush1.xpose.msra.mxu0 0.0
      %1948 = vmatprep.mubr.f32.mxu0 0.0
      %1949 = vmatmul.mubr.f32.gmra.mrb[0].mxu0 %v1880
      %v1950 = vpop.f32.mrb[0].mxu0
      %v1951 = vadd.f32 0.0, %v1950
      %v1952 = vpop.f32.mrb[0].mxu0
      %1953 = vdwg.mxu0
      %1954 = vrot.lane.b32.xlu0 %v374, 124
      %v1955 = vpop.permute.xlu0 %1954
      %1956 = vrot.lane.b32.xlu0 %v374, 116
      %v1957 = vpop.permute.xlu0 %1956
      %v1958 = vsel %vm391, %v1955, 0
      %v1960 = vsel %vm391, %v1957, 0
      %1962 = vmatprep.subr.mxu0 0.0
      %1963 = vmatpush1.xpose.msra.mxu0 %v1960
      %1964 = vmatprep.subr.mxu0 0.0
      %1965 = vmatpush1.xpose.msra.mxu0 0.0
      %1966 = vmatprep.subr.mxu0 0.0
      %1967 = vmatpush1.xpose.msra.mxu0 0.0
      %1968 = vmatprep.subr.mxu0 0.0
      %1969 = vmatpush1.xpose.msra.mxu0 0.0
      %1970 = vmatprep.subr.mxu0 0.0
      %1971 = vmatpush1.xpose.msra.mxu0 0.0
      %1972 = vmatprep.subr.mxu0 0.0
      %1973 = vmatpush1.xpose.msra.mxu0 0.0
      %1974 = vmatprep.subr.mxu0 0.0
      %1975 = vmatpush1.xpose.msra.mxu0 0.0
      %1976 = vmatprep.subr.mxu0 0.0
      %1977 = vmatpush1.xpose.msra.mxu0 0.0
      %1978 = vmatprep.subr.mxu0 0.0
      %1979 = vmatpush1.xpose.msra.mxu0 0.0
      %1980 = vmatprep.subr.mxu0 0.0
      %1981 = vmatpush1.xpose.msra.mxu0 0.0
      %1982 = vmatprep.subr.mxu0 0.0
      %1983 = vmatpush1.xpose.msra.mxu0 0.0
      %1984 = vmatprep.subr.mxu0 0.0
      %1985 = vmatpush1.xpose.msra.mxu0 0.0
      %1986 = vmatprep.subr.mxu0 0.0
      %1987 = vmatpush1.xpose.msra.mxu0 0.0
      %1988 = vmatprep.subr.mxu0 0.0
      %1989 = vmatpush1.xpose.msra.mxu0 0.0
      %1990 = vmatprep.subr.mxu0 0.0
      %1991 = vmatpush1.xpose.msra.mxu0 0.0
      %1992 = vmatprep.subr.mxu0 0.0
      %1993 = vmatpush1.xpose.msra.mxu0 0.0
      %1994 = vmatprep.subr.mxu0 0.0
      %1995 = vmatpush1.xpose.msra.mxu0 0.0
      %1996 = vmatprep.subr.mxu0 0.0
      %1997 = vmatpush1.xpose.msra.mxu0 0.0
      %1998 = vmatprep.subr.mxu0 0.0
      %1999 = vmatpush1.xpose.msra.mxu0 0.0
      %2000 = vmatprep.subr.mxu0 0.0
      %2001 = vmatpush1.xpose.msra.mxu0 0.0
      %2002 = vmatprep.subr.mxu0 0.0
      %2003 = vmatpush1.xpose.msra.mxu0 0.0
      %2004 = vmatprep.subr.mxu0 0.0
      %2005 = vmatpush1.xpose.msra.mxu0 0.0
      %2006 = vmatprep.subr.mxu0 0.0
      %2007 = vmatpush1.xpose.msra.mxu0 0.0
      %2008 = vmatprep.subr.mxu0 0.0
      %2009 = vmatpush1.xpose.msra.mxu0 0.0
      %2010 = vmatprep.subr.mxu0 0.0
      %2011 = vmatpush1.xpose.msra.mxu0 0.0
      %2012 = vmatprep.subr.mxu0 0.0
      %2013 = vmatpush1.xpose.msra.mxu0 0.0
      %2014 = vmatprep.subr.mxu0 0.0
      %2015 = vmatpush1.xpose.msra.mxu0 0.0
      %2016 = vmatprep.subr.mxu0 0.0
      %2017 = vmatpush1.xpose.msra.mxu0 0.0
      %2018 = vmatprep.subr.mxu0 0.0
      %2019 = vmatpush1.xpose.msra.mxu0 0.0
      %2020 = vmatprep.subr.mxu0 0.0
      %2021 = vmatpush1.xpose.msra.mxu0 0.0
      %2022 = vmatprep.subr.mxu0 0.0
      %2023 = vmatpush1.xpose.msra.mxu0 0.0
      %2024 = vmatprep.subr.mxu0 0.0
      %2025 = vmatpush1.xpose.msra.mxu0 0.0
      %2026 = vmatprep.mubr.f32.mxu0 0.0
      %2027 = vmatmul.mubr.f32.gmra.mrb[0].mxu0 %v1958
      %v2028 = vpop.f32.mrb[0].mxu0
      %v2029 = vadd.f32 0.0, %v2028
      %v2030 = vpop.f32.mrb[0].mxu0
      %2031 = vdwg.mxu0
      %2032 = vrot.lane.b32.xlu0 %v375, 124
      %v2033 = vpop.permute.xlu0 %2032
      %2034 = vrot.lane.b32.xlu0 %v375, 116
      %v2035 = vpop.permute.xlu0 %2034
      %v2036 = vsel %vm391, %v2033, 0
      %v2038 = vsel %vm391, %v2035, 0
      %2040 = vmatprep.subr.mxu0 0.0
      %2041 = vmatpush1.xpose.msra.mxu0 %v2038
      %2042 = vmatprep.subr.mxu0 0.0
      %2043 = vmatpush1.xpose.msra.mxu0 0.0
      %2044 = vmatprep.subr.mxu0 0.0
      %2045 = vmatpush1.xpose.msra.mxu0 0.0
      %2046 = vmatprep.subr.mxu0 0.0
      %2047 = vmatpush1.xpose.msra.mxu0 0.0
      %2048 = vmatprep.subr.mxu0 0.0
      %2049 = vmatpush1.xpose.msra.mxu0 0.0
      %2050 = vmatprep.subr.mxu0 0.0
      %2051 = vmatpush1.xpose.msra.mxu0 0.0
      %2052 = vmatprep.subr.mxu0 0.0
      %2053 = vmatpush1.xpose.msra.mxu0 0.0
      %2054 = vmatprep.subr.mxu0 0.0
      %2055 = vmatpush1.xpose.msra.mxu0 0.0
      %2056 = vmatprep.subr.mxu0 0.0
      %2057 = vmatpush1.xpose.msra.mxu0 0.0
      %2058 = vmatprep.subr.mxu0 0.0
      %2059 = vmatpush1.xpose.msra.mxu0 0.0
      %2060 = vmatprep.subr.mxu0 0.0
      %2061 = vmatpush1.xpose.msra.mxu0 0.0
      %2062 = vmatprep.subr.mxu0 0.0
      %2063 = vmatpush1.xpose.msra.mxu0 0.0
      %2064 = vmatprep.subr.mxu0 0.0
      %2065 = vmatpush1.xpose.msra.mxu0 0.0
      %2066 = vmatprep.subr.mxu0 0.0
      %2067 = vmatpush1.xpose.msra.mxu0 0.0
      %2068 = vmatprep.subr.mxu0 0.0
      %2069 = vmatpush1.xpose.msra.mxu0 0.0
      %2070 = vmatprep.subr.mxu0 0.0
      %2071 = vmatpush1.xpose.msra.mxu0 0.0
      %2072 = vmatprep.subr.mxu0 0.0
      %2073 = vmatpush1.xpose.msra.mxu0 0.0
      %2074 = vmatprep.subr.mxu0 0.0
      %2075 = vmatpush1.xpose.msra.mxu0 0.0
      %2076 = vmatprep.subr.mxu0 0.0
      %2077 = vmatpush1.xpose.msra.mxu0 0.0
      %2078 = vmatprep.subr.mxu0 0.0
      %2079 = vmatpush1.xpose.msra.mxu0 0.0
      %2080 = vmatprep.subr.mxu0 0.0
      %2081 = vmatpush1.xpose.msra.mxu0 0.0
      %2082 = vmatprep.subr.mxu0 0.0
      %2083 = vmatpush1.xpose.msra.mxu0 0.0
      %2084 = vmatprep.subr.mxu0 0.0
      %2085 = vmatpush1.xpose.msra.mxu0 0.0
      %2086 = vmatprep.subr.mxu0 0.0
      %2087 = vmatpush1.xpose.msra.mxu0 0.0
      %2088 = vmatprep.subr.mxu0 0.0
      %2089 = vmatpush1.xpose.msra.mxu0 0.0
      %2090 = vmatprep.subr.mxu0 0.0
      %2091 = vmatpush1.xpose.msra.mxu0 0.0
      %2092 = vmatprep.subr.mxu0 0.0
      %2093 = vmatpush1.xpose.msra.mxu0 0.0
      %2094 = vmatprep.subr.mxu0 0.0
      %2095 = vmatpush1.xpose.msra.mxu0 0.0
      %2096 = vmatprep.subr.mxu0 0.0
      %2097 = vmatpush1.xpose.msra.mxu0 0.0
      %2098 = vmatprep.subr.mxu0 0.0
      %2099 = vmatpush1.xpose.msra.mxu0 0.0
      %2100 = vmatprep.subr.mxu0 0.0
      %2101 = vmatpush1.xpose.msra.mxu0 0.0
      %2102 = vmatprep.subr.mxu0 0.0
      %2103 = vmatpush1.xpose.msra.mxu0 0.0
      %2104 = vmatprep.mubr.f32.mxu0 0.0
      %2105 = vmatmul.mubr.f32.gmra.mrb[0].mxu0 %v2036
      %v2106 = vpop.f32.mrb[0].mxu0
      %v2107 = vadd.f32 0.0, %v2106
      %v2108 = vpop.f32.mrb[0].mxu0
      %2109 = vdwg.mxu0
      %2110 = vrot.lane.b32.xlu0 %v376, 124
      %v2111 = vpop.permute.xlu0 %2110
      %2112 = vrot.lane.b32.xlu0 %v376, 116
      %v2113 = vpop.permute.xlu0 %2112
      %v2114 = vsel %vm391, %v2111, 0
      %v2116 = vsel %vm391, %v2113, 0
      %2118 = vmatprep.subr.mxu0 0.0
      %2119 = vmatpush1.xpose.msra.mxu0 %v2116
      %2120 = vmatprep.subr.mxu0 0.0
      %2121 = vmatpush1.xpose.msra.mxu0 0.0
      %2122 = vmatprep.subr.mxu0 0.0
      %2123 = vmatpush1.xpose.msra.mxu0 0.0
      %2124 = vmatprep.subr.mxu0 0.0
      %2125 = vmatpush1.xpose.msra.mxu0 0.0
      %2126 = vmatprep.subr.mxu0 0.0
      %2127 = vmatpush1.xpose.msra.mxu0 0.0
      %2128 = vmatprep.subr.mxu0 0.0
      %2129 = vmatpush1.xpose.msra.mxu0 0.0
      %2130 = vmatprep.subr.mxu0 0.0
      %2131 = vmatpush1.xpose.msra.mxu0 0.0
      %2132 = vmatprep.subr.mxu0 0.0
      %2133 = vmatpush1.xpose.msra.mxu0 0.0
      %2134 = vmatprep.subr.mxu0 0.0
      %2135 = vmatpush1.xpose.msra.mxu0 0.0
      %2136 = vmatprep.subr.mxu0 0.0
      %2137 = vmatpush1.xpose.msra.mxu0 0.0
      %2138 = vmatprep.subr.mxu0 0.0
      %2139 = vmatpush1.xpose.msra.mxu0 0.0
      %2140 = vmatprep.subr.mxu0 0.0
      %2141 = vmatpush1.xpose.msra.mxu0 0.0
      %2142 = vmatprep.subr.mxu0 0.0
      %2143 = vmatpush1.xpose.msra.mxu0 0.0
      %2144 = vmatprep.subr.mxu0 0.0
      %2145 = vmatpush1.xpose.msra.mxu0 0.0
      %2146 = vmatprep.subr.mxu0 0.0
      %2147 = vmatpush1.xpose.msra.mxu0 0.0
      %2148 = vmatprep.subr.mxu0 0.0
      %2149 = vmatpush1.xpose.msra.mxu0 0.0
      %2150 = vmatprep.subr.mxu0 0.0
      %2151 = vmatpush1.xpose.msra.mxu0 0.0
      %2152 = vmatprep.subr.mxu0 0.0
      %2153 = vmatpush1.xpose.msra.mxu0 0.0
      %2154 = vmatprep.subr.mxu0 0.0
      %2155 = vmatpush1.xpose.msra.mxu0 0.0
      %2156 = vmatprep.subr.mxu0 0.0
      %2157 = vmatpush1.xpose.msra.mxu0 0.0
      %2158 = vmatprep.subr.mxu0 0.0
      %2159 = vmatpush1.xpose.msra.mxu0 0.0
      %2160 = vmatprep.subr.mxu0 0.0
      %2161 = vmatpush1.xpose.msra.mxu0 0.0
      %2162 = vmatprep.subr.mxu0 0.0
      %2163 = vmatpush1.xpose.msra.mxu0 0.0
      %2164 = vmatprep.subr.mxu0 0.0
      %2165 = vmatpush1.xpose.msra.mxu0 0.0
      %2166 = vmatprep.subr.mxu0 0.0
      %2167 = vmatpush1.xpose.msra.mxu0 0.0
      %2168 = vmatprep.subr.mxu0 0.0
      %2169 = vmatpush1.xpose.msra.mxu0 0.0
      %2170 = vmatprep.subr.mxu0 0.0
      %2171 = vmatpush1.xpose.msra.mxu0 0.0
      %2172 = vmatprep.subr.mxu0 0.0
      %2173 = vmatpush1.xpose.msra.mxu0 0.0
      %2174 = vmatprep.subr.mxu0 0.0
      %2175 = vmatpush1.xpose.msra.mxu0 0.0
      %2176 = vmatprep.subr.mxu0 0.0
      %2177 = vmatpush1.xpose.msra.mxu0 0.0
      %2178 = vmatprep.subr.mxu0 0.0
      %2179 = vmatpush1.xpose.msra.mxu0 0.0
      %2180 = vmatprep.subr.mxu0 0.0
      %2181 = vmatpush1.xpose.msra.mxu0 0.0
      %2182 = vmatprep.mubr.f32.mxu0 0.0
      %2183 = vmatmul.mubr.f32.gmra.mrb[0].mxu0 %v2114
      %v2184 = vpop.f32.mrb[0].mxu0
      %v2185 = vadd.f32 0.0, %v2184
      %v2186 = vpop.f32.mrb[0].mxu0
      %2187 = vdwg.mxu0
      %2188 = vrot.lane.b32.xlu0 %v377, 124
      %v2189 = vpop.permute.xlu0 %2188
      %2190 = vrot.lane.b32.xlu0 %v377, 116
      %v2191 = vpop.permute.xlu0 %2190
      %v2192 = vsel %vm391, %v2189, 0
      %v2194 = vsel %vm391, %v2191, 0
      %2196 = vmatprep.subr.mxu0 0.0
      %2197 = vmatpush1.xpose.msra.mxu0 %v2194
      %2198 = vmatprep.subr.mxu0 0.0
      %2199 = vmatpush1.xpose.msra.mxu0 0.0
      %2200 = vmatprep.subr.mxu0 0.0
      %2201 = vmatpush1.xpose.msra.mxu0 0.0
      %2202 = vmatprep.subr.mxu0 0.0
      %2203 = vmatpush1.xpose.msra.mxu0 0.0
      %2204 = vmatprep.subr.mxu0 0.0
      %2205 = vmatpush1.xpose.msra.mxu0 0.0
      %2206 = vmatprep.subr.mxu0 0.0
      %2207 = vmatpush1.xpose.msra.mxu0 0.0
      %2208 = vmatprep.subr.mxu0 0.0
      %2209 = vmatpush1.xpose.msra.mxu0 0.0
      %2210 = vmatprep.subr.mxu0 0.0
      %2211 = vmatpush1.xpose.msra.mxu0 0.0
      %2212 = vmatprep.subr.mxu0 0.0
      %2213 = vmatpush1.xpose.msra.mxu0 0.0
      %2214 = vmatprep.subr.mxu0 0.0
      %2215 = vmatpush1.xpose.msra.mxu0 0.0
      %2216 = vmatprep.subr.mxu0 0.0
      %2217 = vmatpush1.xpose.msra.mxu0 0.0
      %2218 = vmatprep.subr.mxu0 0.0
      %2219 = vmatpush1.xpose.msra.mxu0 0.0
      %2220 = vmatprep.subr.mxu0 0.0
      %2221 = vmatpush1.xpose.msra.mxu0 0.0
      %2222 = vmatprep.subr.mxu0 0.0
      %2223 = vmatpush1.xpose.msra.mxu0 0.0
      %2224 = vmatprep.subr.mxu0 0.0
      %2225 = vmatpush1.xpose.msra.mxu0 0.0
      %2226 = vmatprep.subr.mxu0 0.0
      %2227 = vmatpush1.xpose.msra.mxu0 0.0
      %2228 = vmatprep.subr.mxu0 0.0
      %2229 = vmatpush1.xpose.msra.mxu0 0.0
      %2230 = vmatprep.subr.mxu0 0.0
      %2231 = vmatpush1.xpose.msra.mxu0 0.0
      %2232 = vmatprep.subr.mxu0 0.0
      %2233 = vmatpush1.xpose.msra.mxu0 0.0
      %2234 = vmatprep.subr.mxu0 0.0
      %2235 = vmatpush1.xpose.msra.mxu0 0.0
      %2236 = vmatprep.subr.mxu0 0.0
      %2237 = vmatpush1.xpose.msra.mxu0 0.0
      %2238 = vmatprep.subr.mxu0 0.0
      %2239 = vmatpush1.xpose.msra.mxu0 0.0
      %2240 = vmatprep.subr.mxu0 0.0
      %2241 = vmatpush1.xpose.msra.mxu0 0.0
      %2242 = vmatprep.subr.mxu0 0.0
      %2243 = vmatpush1.xpose.msra.mxu0 0.0
      %2244 = vmatprep.subr.mxu0 0.0
      %2245 = vmatpush1.xpose.msra.mxu0 0.0
      %2246 = vmatprep.subr.mxu0 0.0
      %2247 = vmatpush1.xpose.msra.mxu0 0.0
      %2248 = vmatprep.subr.mxu0 0.0
      %2249 = vmatpush1.xpose.msra.mxu0 0.0
      %2250 = vmatprep.subr.mxu0 0.0
      %2251 = vmatpush1.xpose.msra.mxu0 0.0
      %2252 = vmatprep.subr.mxu0 0.0
      %2253 = vmatpush1.xpose.msra.mxu0 0.0
      %2254 = vmatprep.subr.mxu0 0.0
      %2255 = vmatpush1.xpose.msra.mxu0 0.0
      %2256 = vmatprep.subr.mxu0 0.0
      %2257 = vmatpush1.xpose.msra.mxu0 0.0
      %2258 = vmatprep.subr.mxu0 0.0
      %2259 = vmatpush1.xpose.msra.mxu0 0.0
      %2260 = vmatprep.mubr.f32.mxu0 0.0
      %2261 = vmatmul.mubr.f32.gmra.mrb[0].mxu0 %v2192
      %v2262 = vpop.f32.mrb[0].mxu0
      %v2263 = vadd.f32 0.0, %v2262
      %v2264 = vpop.f32.mrb[0].mxu0
      %2265 = vdwg.mxu0
      %2266 = vrot.lane.b32.xlu0 %v378, 124
      %v2267 = vpop.permute.xlu0 %2266
      %2268 = vrot.lane.b32.xlu0 %v378, 116
      %v2269 = vpop.permute.xlu0 %2268
      %v2270 = vsel %vm391, %v2267, 0
      %v2272 = vsel %vm391, %v2269, 0
      %2274 = vmatprep.subr.mxu0 0.0
      %2275 = vmatpush1.xpose.msra.mxu0 %v2272
      %2276 = vmatprep.subr.mxu0 0.0
      %2277 = vmatpush1.xpose.msra.mxu0 0.0
      %2278 = vmatprep.subr.mxu0 0.0
      %2279 = vmatpush1.xpose.msra.mxu0 0.0
      %2280 = vmatprep.subr.mxu0 0.0
      %2281 = vmatpush1.xpose.msra.mxu0 0.0
      %2282 = vmatprep.subr.mxu0 0.0
      %2283 = vmatpush1.xpose.msra.mxu0 0.0
      %2284 = vmatprep.subr.mxu0 0.0
      %2285 = vmatpush1.xpose.msra.mxu0 0.0
      %2286 = vmatprep.subr.mxu0 0.0
      %2287 = vmatpush1.xpose.msra.mxu0 0.0
      %2288 = vmatprep.subr.mxu0 0.0
      %2289 = vmatpush1.xpose.msra.mxu0 0.0
      %2290 = vmatprep.subr.mxu0 0.0
      %2291 = vmatpush1.xpose.msra.mxu0 0.0
      %2292 = vmatprep.subr.mxu0 0.0
      %2293 = vmatpush1.xpose.msra.mxu0 0.0
      %2294 = vmatprep.subr.mxu0 0.0
      %2295 = vmatpush1.xpose.msra.mxu0 0.0
      %2296 = vmatprep.subr.mxu0 0.0
      %2297 = vmatpush1.xpose.msra.mxu0 0.0
      %2298 = vmatprep.subr.mxu0 0.0
      %2299 = vmatpush1.xpose.msra.mxu0 0.0
      %2300 = vmatprep.subr.mxu0 0.0
      %2301 = vmatpush1.xpose.msra.mxu0 0.0
      %2302 = vmatprep.subr.mxu0 0.0
      %2303 = vmatpush1.xpose.msra.mxu0 0.0
      %2304 = vmatprep.subr.mxu0 0.0
      %2305 = vmatpush1.xpose.msra.mxu0 0.0
      %2306 = vmatprep.subr.mxu0 0.0
      %2307 = vmatpush1.xpose.msra.mxu0 0.0
      %2308 = vmatprep.subr.mxu0 0.0
      %2309 = vmatpush1.xpose.msra.mxu0 0.0
      %2310 = vmatprep.subr.mxu0 0.0
      %2311 = vmatpush1.xpose.msra.mxu0 0.0
      %2312 = vmatprep.subr.mxu0 0.0
      %2313 = vmatpush1.xpose.msra.mxu0 0.0
      %2314 = vmatprep.subr.mxu0 0.0
      %2315 = vmatpush1.xpose.msra.mxu0 0.0
      %2316 = vmatprep.subr.mxu0 0.0
      %2317 = vmatpush1.xpose.msra.mxu0 0.0
      %2318 = vmatprep.subr.mxu0 0.0
      %2319 = vmatpush1.xpose.msra.mxu0 0.0
      %2320 = vmatprep.subr.mxu0 0.0
      %2321 = vmatpush1.xpose.msra.mxu0 0.0
      %2322 = vmatprep.subr.mxu0 0.0
      %2323 = vmatpush1.xpose.msra.mxu0 0.0
      %2324 = vmatprep.subr.mxu0 0.0
      %2325 = vmatpush1.xpose.msra.mxu0 0.0
      %2326 = vmatprep.subr.mxu0 0.0
      %2327 = vmatpush1.xpose.msra.mxu0 0.0
      %2328 = vmatprep.subr.mxu0 0.0
      %2329 = vmatpush1.xpose.msra.mxu0 0.0
      %2330 = vmatprep.subr.mxu0 0.0
      %2331 = vmatpush1.xpose.msra.mxu0 0.0
      %2332 = vmatprep.subr.mxu0 0.0
      %2333 = vmatpush1.xpose.msra.mxu0 0.0
      %2334 = vmatprep.subr.mxu0 0.0
      %2335 = vmatpush1.xpose.msra.mxu0 0.0
      %2336 = vmatprep.subr.mxu0 0.0
      %2337 = vmatpush1.xpose.msra.mxu0 0.0
      %2338 = vmatprep.mubr.f32.mxu0 0.0
      %2339 = vmatmul.mubr.f32.gmra.mrb[0].mxu0 %v2270
      %v2340 = vpop.f32.mrb[0].mxu0
      %v2341 = vadd.f32 0.0, %v2340
      %v2342 = vpop.f32.mrb[0].mxu0
      %2343 = vdwg.mxu0
      %2344 = vrot.lane.b32.xlu0 %v379, 124
      %v2345 = vpop.permute.xlu0 %2344
      %2346 = vrot.lane.b32.xlu0 %v379, 116
      %v2347 = vpop.permute.xlu0 %2346
      %v2348 = vsel %vm391, %v2345, 0
      %v2350 = vsel %vm391, %v2347, 0
      %2352 = vmatprep.subr.mxu0 0.0
      %2353 = vmatpush1.xpose.msra.mxu0 %v2350
      %2354 = vmatprep.subr.mxu0 0.0
      %2355 = vmatpush1.xpose.msra.mxu0 0.0
      %2356 = vmatprep.subr.mxu0 0.0
      %2357 = vmatpush1.xpose.msra.mxu0 0.0
      %2358 = vmatprep.subr.mxu0 0.0
      %2359 = vmatpush1.xpose.msra.mxu0 0.0
      %2360 = vmatprep.subr.mxu0 0.0
      %2361 = vmatpush1.xpose.msra.mxu0 0.0
      %2362 = vmatprep.subr.mxu0 0.0
      %2363 = vmatpush1.xpose.msra.mxu0 0.0
      %2364 = vmatprep.subr.mxu0 0.0
      %2365 = vmatpush1.xpose.msra.mxu0 0.0
      %2366 = vmatprep.subr.mxu0 0.0
      %2367 = vmatpush1.xpose.msra.mxu0 0.0
      %2368 = vmatprep.subr.mxu0 0.0
      %2369 = vmatpush1.xpose.msra.mxu0 0.0
      %2370 = vmatprep.subr.mxu0 0.0
      %2371 = vmatpush1.xpose.msra.mxu0 0.0
      %2372 = vmatprep.subr.mxu0 0.0
      %2373 = vmatpush1.xpose.msra.mxu0 0.0
      %2374 = vmatprep.subr.mxu0 0.0
      %2375 = vmatpush1.xpose.msra.mxu0 0.0
      %2376 = vmatprep.subr.mxu0 0.0
      %2377 = vmatpush1.xpose.msra.mxu0 0.0
      %2378 = vmatprep.subr.mxu0 0.0
      %2379 = vmatpush1.xpose.msra.mxu0 0.0
      %2380 = vmatprep.subr.mxu0 0.0
      %2381 = vmatpush1.xpose.msra.mxu0 0.0
      %2382 = vmatprep.subr.mxu0 0.0
      %2383 = vmatpush1.xpose.msra.mxu0 0.0
      %2384 = vmatprep.subr.mxu0 0.0
      %2385 = vmatpush1.xpose.msra.mxu0 0.0
      %2386 = vmatprep.subr.mxu0 0.0
      %2387 = vmatpush1.xpose.msra.mxu0 0.0
      %2388 = vmatprep.subr.mxu0 0.0
      %2389 = vmatpush1.xpose.msra.mxu0 0.0
      %2390 = vmatprep.subr.mxu0 0.0
      %2391 = vmatpush1.xpose.msra.mxu0 0.0
      %2392 = vmatprep.subr.mxu0 0.0
      %2393 = vmatpush1.xpose.msra.mxu0 0.0
      %2394 = vmatprep.subr.mxu0 0.0
      %2395 = vmatpush1.xpose.msra.mxu0 0.0
      %2396 = vmatprep.subr.mxu0 0.0
      %2397 = vmatpush1.xpose.msra.mxu0 0.0
      %2398 = vmatprep.subr.mxu0 0.0
      %2399 = vmatpush1.xpose.msra.mxu0 0.0
      %2400 = vmatprep.subr.mxu0 0.0
      %2401 = vmatpush1.xpose.msra.mxu0 0.0
      %2402 = vmatprep.subr.mxu0 0.0
      %2403 = vmatpush1.xpose.msra.mxu0 0.0
      %2404 = vmatprep.subr.mxu0 0.0
      %2405 = vmatpush1.xpose.msra.mxu0 0.0
      %2406 = vmatprep.subr.mxu0 0.0
      %2407 = vmatpush1.xpose.msra.mxu0 0.0
      %2408 = vmatprep.subr.mxu0 0.0
      %2409 = vmatpush1.xpose.msra.mxu0 0.0
      %2410 = vmatprep.subr.mxu0 0.0
      %2411 = vmatpush1.xpose.msra.mxu0 0.0
      %2412 = vmatprep.subr.mxu0 0.0
      %2413 = vmatpush1.xpose.msra.mxu0 0.0
      %2414 = vmatprep.subr.mxu0 0.0
      %2415 = vmatpush1.xpose.msra.mxu0 0.0
      %2416 = vmatprep.mubr.f32.mxu0 0.0
      %2417 = vmatmul.mubr.f32.gmra.mrb[0].mxu0 %v2348
      %v2418 = vpop.f32.mrb[0].mxu0
      %v2419 = vadd.f32 0.0, %v2418
      %v2420 = vpop.f32.mrb[0].mxu0
      %2421 = vdwg.mxu0
      %2422 = vrot.lane.b32.xlu0 %v380, 124
      %v2423 = vpop.permute.xlu0 %2422
      %2424 = vrot.lane.b32.xlu0 %v380, 116
      %v2425 = vpop.permute.xlu0 %2424
      %v2426 = vsel %vm391, %v2423, 0
      %v2428 = vsel %vm391, %v2425, 0
      %2430 = vmatprep.subr.mxu0 0.0
      %2431 = vmatpush1.xpose.msra.mxu0 %v2428
      %2432 = vmatprep.subr.mxu0 0.0
      %2433 = vmatpush1.xpose.msra.mxu0 0.0
      %2434 = vmatprep.subr.mxu0 0.0
      %2435 = vmatpush1.xpose.msra.mxu0 0.0
      %2436 = vmatprep.subr.mxu0 0.0
      %2437 = vmatpush1.xpose.msra.mxu0 0.0
      %2438 = vmatprep.subr.mxu0 0.0
      %2439 = vmatpush1.xpose.msra.mxu0 0.0
      %2440 = vmatprep.subr.mxu0 0.0
      %2441 = vmatpush1.xpose.msra.mxu0 0.0
      %2442 = vmatprep.subr.mxu0 0.0
      %2443 = vmatpush1.xpose.msra.mxu0 0.0
      %2444 = vmatprep.subr.mxu0 0.0
      %2445 = vmatpush1.xpose.msra.mxu0 0.0
      %2446 = vmatprep.subr.mxu0 0.0
      %2447 = vmatpush1.xpose.msra.mxu0 0.0
      %2448 = vmatprep.subr.mxu0 0.0
      %2449 = vmatpush1.xpose.msra.mxu0 0.0
      %2450 = vmatprep.subr.mxu0 0.0
      %2451 = vmatpush1.xpose.msra.mxu0 0.0
      %2452 = vmatprep.subr.mxu0 0.0
      %2453 = vmatpush1.xpose.msra.mxu0 0.0
      %2454 = vmatprep.subr.mxu0 0.0
      %2455 = vmatpush1.xpose.msra.mxu0 0.0
      %2456 = vmatprep.subr.mxu0 0.0
      %2457 = vmatpush1.xpose.msra.mxu0 0.0
      %2458 = vmatprep.subr.mxu0 0.0
      %2459 = vmatpush1.xpose.msra.mxu0 0.0
      %2460 = vmatprep.subr.mxu0 0.0
      %2461 = vmatpush1.xpose.msra.mxu0 0.0
      %2462 = vmatprep.subr.mxu0 0.0
      %2463 = vmatpush1.xpose.msra.mxu0 0.0
      %2464 = vmatprep.subr.mxu0 0.0
      %2465 = vmatpush1.xpose.msra.mxu0 0.0
      %2466 = vmatprep.subr.mxu0 0.0
      %2467 = vmatpush1.xpose.msra.mxu0 0.0
      %2468 = vmatprep.subr.mxu0 0.0
      %2469 = vmatpush1.xpose.msra.mxu0 0.0
      %2470 = vmatprep.subr.mxu0 0.0
      %2471 = vmatpush1.xpose.msra.mxu0 0.0
      %2472 = vmatprep.subr.mxu0 0.0
      %2473 = vmatpush1.xpose.msra.mxu0 0.0
      %2474 = vmatprep.subr.mxu0 0.0
      %2475 = vmatpush1.xpose.msra.mxu0 0.0
      %2476 = vmatprep.subr.mxu0 0.0
      %2477 = vmatpush1.xpose.msra.mxu0 0.0
      %2478 = vmatprep.subr.mxu0 0.0
      %2479 = vmatpush1.xpose.msra.mxu0 0.0
      %2480 = vmatprep.subr.mxu0 0.0
      %2481 = vmatpush1.xpose.msra.mxu0 0.0
      %2482 = vmatprep.subr.mxu0 0.0
      %2483 = vmatpush1.xpose.msra.mxu0 0.0
      %2484 = vmatprep.subr.mxu0 0.0
      %2485 = vmatpush1.xpose.msra.mxu0 0.0
      %2486 = vmatprep.subr.mxu0 0.0
      %2487 = vmatpush1.xpose.msra.mxu0 0.0
      %2488 = vmatprep.subr.mxu0 0.0
      %2489 = vmatpush1.xpose.msra.mxu0 0.0
      %2490 = vmatprep.subr.mxu0 0.0
      %2491 = vmatpush1.xpose.msra.mxu0 0.0
      %2492 = vmatprep.subr.mxu0 0.0
      %2493 = vmatpush1.xpose.msra.mxu0 0.0
      %2494 = vmatprep.mubr.f32.mxu0 0.0
      %2495 = vmatmul.mubr.f32.gmra.mrb[0].mxu0 %v2426
      %v2496 = vpop.f32.mrb[0].mxu0
      %v2497 = vadd.f32 0.0, %v2496
      %v2498 = vpop.f32.mrb[0].mxu0
      %2499 = vdwg.mxu0
      %2500 = vrot.lane.b32.xlu0 %v381, 124
      %v2501 = vpop.permute.xlu0 %2500
      %2502 = vrot.lane.b32.xlu0 %v381, 116
      %v2503 = vpop.permute.xlu0 %2502
      %v2504 = vsel %vm391, %v2501, 0
      %v2506 = vsel %vm391, %v2503, 0
      %2508 = vmatprep.subr.mxu0 0.0
      %2509 = vmatpush1.xpose.msra.mxu0 %v2506
      %2510 = vmatprep.subr.mxu0 0.0
      %2511 = vmatpush1.xpose.msra.mxu0 0.0
      %2512 = vmatprep.subr.mxu0 0.0
      %2513 = vmatpush1.xpose.msra.mxu0 0.0
      %2514 = vmatprep.subr.mxu0 0.0
      %2515 = vmatpush1.xpose.msra.mxu0 0.0
      %2516 = vmatprep.subr.mxu0 0.0
      %2517 = vmatpush1.xpose.msra.mxu0 0.0
      %2518 = vmatprep.subr.mxu0 0.0
      %2519 = vmatpush1.xpose.msra.mxu0 0.0
      %2520 = vmatprep.subr.mxu0 0.0
      %2521 = vmatpush1.xpose.msra.mxu0 0.0
      %2522 = vmatprep.subr.mxu0 0.0
      %2523 = vmatpush1.xpose.msra.mxu0 0.0
      %2524 = vmatprep.subr.mxu0 0.0
      %2525 = vmatpush1.xpose.msra.mxu0 0.0
      %2526 = vmatprep.subr.mxu0 0.0
      %2527 = vmatpush1.xpose.msra.mxu0 0.0
      %2528 = vmatprep.subr.mxu0 0.0
      %2529 = vmatpush1.xpose.msra.mxu0 0.0
      %2530 = vmatprep.subr.mxu0 0.0
      %2531 = vmatpush1.xpose.msra.mxu0 0.0
      %2532 = vmatprep.subr.mxu0 0.0
      %2533 = vmatpush1.xpose.msra.mxu0 0.0
      %2534 = vmatprep.subr.mxu0 0.0
      %2535 = vmatpush1.xpose.msra.mxu0 0.0
      %2536 = vmatprep.subr.mxu0 0.0
      %2537 = vmatpush1.xpose.msra.mxu0 0.0
      %2538 = vmatprep.subr.mxu0 0.0
      %2539 = vmatpush1.xpose.msra.mxu0 0.0
      %2540 = vmatprep.subr.mxu0 0.0
      %2541 = vmatpush1.xpose.msra.mxu0 0.0
      %2542 = vmatprep.subr.mxu0 0.0
      %2543 = vmatpush1.xpose.msra.mxu0 0.0
      %2544 = vmatprep.subr.mxu0 0.0
      %2545 = vmatpush1.xpose.msra.mxu0 0.0
      %2546 = vmatprep.subr.mxu0 0.0
      %2547 = vmatpush1.xpose.msra.mxu0 0.0
      %2548 = vmatprep.subr.mxu0 0.0
      %2549 = vmatpush1.xpose.msra.mxu0 0.0
      %2550 = vmatprep.subr.mxu0 0.0
      %2551 = vmatpush1.xpose.msra.mxu0 0.0
      %2552 = vmatprep.subr.mxu0 0.0
      %2553 = vmatpush1.xpose.msra.mxu0 0.0
      %2554 = vmatprep.subr.mxu0 0.0
      %2555 = vmatpush1.xpose.msra.mxu0 0.0
      %2556 = vmatprep.subr.mxu0 0.0
      %2557 = vmatpush1.xpose.msra.mxu0 0.0
      %2558 = vmatprep.subr.mxu0 0.0
      %2559 = vmatpush1.xpose.msra.mxu0 0.0
      %2560 = vmatprep.subr.mxu0 0.0
      %2561 = vmatpush1.xpose.msra.mxu0 0.0
      %2562 = vmatprep.subr.mxu0 0.0
      %2563 = vmatpush1.xpose.msra.mxu0 0.0
      %2564 = vmatprep.subr.mxu0 0.0
      %2565 = vmatpush1.xpose.msra.mxu0 0.0
      %2566 = vmatprep.subr.mxu0 0.0
      %2567 = vmatpush1.xpose.msra.mxu0 0.0
      %2568 = vmatprep.subr.mxu0 0.0
      %2569 = vmatpush1.xpose.msra.mxu0 0.0
      %2570 = vmatprep.subr.mxu0 0.0
      %2571 = vmatpush1.xpose.msra.mxu0 0.0
      %2572 = vmatprep.mubr.f32.mxu0 0.0
      %2573 = vmatmul.mubr.f32.gmra.mrb[0].mxu0 %v2504
      %v2574 = vpop.f32.mrb[0].mxu0
      %v2575 = vadd.f32 0.0, %v2574
      %v2576 = vpop.f32.mrb[0].mxu0
      %2577 = vdwg.mxu0
      %2578 = vrot.lane.b32.xlu0 %v382, 124
      %v2579 = vpop.permute.xlu0 %2578
      %2580 = vrot.lane.b32.xlu0 %v382, 116
      %v2581 = vpop.permute.xlu0 %2580
      %v2582 = vsel %vm391, %v2579, 0
      %v2584 = vsel %vm391, %v2581, 0
      %2586 = vmatprep.subr.mxu0 0.0
      %2587 = vmatpush1.xpose.msra.mxu0 %v2584
      %2588 = vmatprep.subr.mxu0 0.0
      %2589 = vmatpush1.xpose.msra.mxu0 0.0
      %2590 = vmatprep.subr.mxu0 0.0
      %2591 = vmatpush1.xpose.msra.mxu0 0.0
      %2592 = vmatprep.subr.mxu0 0.0
      %2593 = vmatpush1.xpose.msra.mxu0 0.0
      %2594 = vmatprep.subr.mxu0 0.0
      %2595 = vmatpush1.xpose.msra.mxu0 0.0
      %2596 = vmatprep.subr.mxu0 0.0
      %2597 = vmatpush1.xpose.msra.mxu0 0.0
      %2598 = vmatprep.subr.mxu0 0.0
      %2599 = vmatpush1.xpose.msra.mxu0 0.0
      %2600 = vmatprep.subr.mxu0 0.0
      %2601 = vmatpush1.xpose.msra.mxu0 0.0
      %2602 = vmatprep.subr.mxu0 0.0
      %2603 = vmatpush1.xpose.msra.mxu0 0.0
      %2604 = vmatprep.subr.mxu0 0.0
      %2605 = vmatpush1.xpose.msra.mxu0 0.0
      %2606 = vmatprep.subr.mxu0 0.0
      %2607 = vmatpush1.xpose.msra.mxu0 0.0
      %2608 = vmatprep.subr.mxu0 0.0
      %2609 = vmatpush1.xpose.msra.mxu0 0.0
      %2610 = vmatprep.subr.mxu0 0.0
      %2611 = vmatpush1.xpose.msra.mxu0 0.0
      %2612 = vmatprep.subr.mxu0 0.0
      %2613 = vmatpush1.xpose.msra.mxu0 0.0
      %2614 = vmatprep.subr.mxu0 0.0
      %2615 = vmatpush1.xpose.msra.mxu0 0.0
      %2616 = vmatprep.subr.mxu0 0.0
      %2617 = vmatpush1.xpose.msra.mxu0 0.0
      %2618 = vmatprep.subr.mxu0 0.0
      %2619 = vmatpush1.xpose.msra.mxu0 0.0
      %2620 = vmatprep.subr.mxu0 0.0
      %2621 = vmatpush1.xpose.msra.mxu0 0.0
      %2622 = vmatprep.subr.mxu0 0.0
      %2623 = vmatpush1.xpose.msra.mxu0 0.0
      %2624 = vmatprep.subr.mxu0 0.0
      %2625 = vmatpush1.xpose.msra.mxu0 0.0
      %2626 = vmatprep.subr.mxu0 0.0
      %2627 = vmatpush1.xpose.msra.mxu0 0.0
      %2628 = vmatprep.subr.mxu0 0.0
      %2629 = vmatpush1.xpose.msra.mxu0 0.0
      %2630 = vmatprep.subr.mxu0 0.0
      %2631 = vmatpush1.xpose.msra.mxu0 0.0
      %2632 = vmatprep.subr.mxu0 0.0
      %2633 = vmatpush1.xpose.msra.mxu0 0.0
      %2634 = vmatprep.subr.mxu0 0.0
      %2635 = vmatpush1.xpose.msra.mxu0 0.0
      %2636 = vmatprep.subr.mxu0 0.0
      %2637 = vmatpush1.xpose.msra.mxu0 0.0
      %2638 = vmatprep.subr.mxu0 0.0
      %2639 = vmatpush1.xpose.msra.mxu0 0.0
      %2640 = vmatprep.subr.mxu0 0.0
      %2641 = vmatpush1.xpose.msra.mxu0 0.0
      %2642 = vmatprep.subr.mxu0 0.0
      %2643 = vmatpush1.xpose.msra.mxu0 0.0
      %2644 = vmatprep.subr.mxu0 0.0
      %2645 = vmatpush1.xpose.msra.mxu0 0.0
      %2646 = vmatprep.subr.mxu0 0.0
      %2647 = vmatpush1.xpose.msra.mxu0 0.0
      %2648 = vmatprep.subr.mxu0 0.0
      %2649 = vmatpush1.xpose.msra.mxu0 0.0
      %2650 = vmatprep.mubr.f32.mxu0 0.0
      %2651 = vmatmul.mubr.f32.gmra.mrb[0].mxu0 %v2582
      %v2652 = vpop.f32.mrb[0].mxu0
      %v2653 = vadd.f32 0.0, %v2652
      %v2654 = vpop.f32.mrb[0].mxu0
      %2655 = vdwg.mxu0
      %2656 = vrot.lane.b32.xlu0 %v383, 124
      %v2657 = vpop.permute.xlu0 %2656
      %2658 = vrot.lane.b32.xlu0 %v383, 116
      %v2659 = vpop.permute.xlu0 %2658
      %v2660 = vsel %vm391, %v2657, 0
      %v2662 = vsel %vm391, %v2659, 0
      %2664 = vmatprep.subr.mxu0 0.0
      %2665 = vmatpush1.xpose.msra.mxu0 %v2662
      %2666 = vmatprep.subr.mxu0 0.0
      %2667 = vmatpush1.xpose.msra.mxu0 0.0
      %2668 = vmatprep.subr.mxu0 0.0
      %2669 = vmatpush1.xpose.msra.mxu0 0.0
      %2670 = vmatprep.subr.mxu0 0.0
      %2671 = vmatpush1.xpose.msra.mxu0 0.0
      %2672 = vmatprep.subr.mxu0 0.0
      %2673 = vmatpush1.xpose.msra.mxu0 0.0
      %2674 = vmatprep.subr.mxu0 0.0
      %2675 = vmatpush1.xpose.msra.mxu0 0.0
      %2676 = vmatprep.subr.mxu0 0.0
      %2677 = vmatpush1.xpose.msra.mxu0 0.0
      %2678 = vmatprep.subr.mxu0 0.0
      %2679 = vmatpush1.xpose.msra.mxu0 0.0
      %2680 = vmatprep.subr.mxu0 0.0
      %2681 = vmatpush1.xpose.msra.mxu0 0.0
      %2682 = vmatprep.subr.mxu0 0.0
      %2683 = vmatpush1.xpose.msra.mxu0 0.0
      %2684 = vmatprep.subr.mxu0 0.0
      %2685 = vmatpush1.xpose.msra.mxu0 0.0
      %2686 = vmatprep.subr.mxu0 0.0
      %2687 = vmatpush1.xpose.msra.mxu0 0.0
      %2688 = vmatprep.subr.mxu0 0.0
      %2689 = vmatpush1.xpose.msra.mxu0 0.0
      %2690 = vmatprep.subr.mxu0 0.0
      %2691 = vmatpush1.xpose.msra.mxu0 0.0
      %2692 = vmatprep.subr.mxu0 0.0
      %2693 = vmatpush1.xpose.msra.mxu0 0.0
      %2694 = vmatprep.subr.mxu0 0.0
      %2695 = vmatpush1.xpose.msra.mxu0 0.0
      %2696 = vmatprep.subr.mxu0 0.0
      %2697 = vmatpush1.xpose.msra.mxu0 0.0
      %2698 = vmatprep.subr.mxu0 0.0
      %2699 = vmatpush1.xpose.msra.mxu0 0.0
      %2700 = vmatprep.subr.mxu0 0.0
      %2701 = vmatpush1.xpose.msra.mxu0 0.0
      %2702 = vmatprep.subr.mxu0 0.0
      %2703 = vmatpush1.xpose.msra.mxu0 0.0
      %2704 = vmatprep.subr.mxu0 0.0
      %2705 = vmatpush1.xpose.msra.mxu0 0.0
      %2706 = vmatprep.subr.mxu0 0.0
      %2707 = vmatpush1.xpose.msra.mxu0 0.0
      %2708 = vmatprep.subr.mxu0 0.0
      %2709 = vmatpush1.xpose.msra.mxu0 0.0
      %2710 = vmatprep.subr.mxu0 0.0
      %2711 = vmatpush1.xpose.msra.mxu0 0.0
      %2712 = vmatprep.subr.mxu0 0.0
      %2713 = vmatpush1.xpose.msra.mxu0 0.0
      %2714 = vmatprep.subr.mxu0 0.0
      %2715 = vmatpush1.xpose.msra.mxu0 0.0
      %2716 = vmatprep.subr.mxu0 0.0
      %2717 = vmatpush1.xpose.msra.mxu0 0.0
      %2718 = vmatprep.subr.mxu0 0.0
      %2719 = vmatpush1.xpose.msra.mxu0 0.0
      %2720 = vmatprep.subr.mxu0 0.0
      %2721 = vmatpush1.xpose.msra.mxu0 0.0
      %2722 = vmatprep.subr.mxu0 0.0
      %2723 = vmatpush1.xpose.msra.mxu0 0.0
      %2724 = vmatprep.subr.mxu0 0.0
      %2725 = vmatpush1.xpose.msra.mxu0 0.0
      %2726 = vmatprep.subr.mxu0 0.0
      %2727 = vmatpush1.xpose.msra.mxu0 0.0
      %2728 = vmatprep.mubr.f32.mxu0 0.0
      %2729 = vmatmul.mubr.f32.gmra.mrb[0].mxu0 %v2660
      %v2730 = vpop.f32.mrb[0].mxu0
      %v2731 = vadd.f32 0.0, %v2730
      %v2732 = vpop.f32.mrb[0].mxu0
      %2733 = vdwg.mxu0
      %2734 = vrot.lane.b32.xlu0 %v384, 124
      %v2735 = vpop.permute.xlu0 %2734
      %2736 = vrot.lane.b32.xlu0 %v384, 116
      %v2737 = vpop.permute.xlu0 %2736
      %v2738 = vsel %vm391, %v2735, 0
      %v2740 = vsel %vm391, %v2737, 0
      %2742 = vmatprep.subr.mxu0 0.0
      %2743 = vmatpush1.xpose.msra.mxu0 %v2740
      %2744 = vmatprep.subr.mxu0 0.0
      %2745 = vmatpush1.xpose.msra.mxu0 0.0
      %2746 = vmatprep.subr.mxu0 0.0
      %2747 = vmatpush1.xpose.msra.mxu0 0.0
      %2748 = vmatprep.subr.mxu0 0.0
      %2749 = vmatpush1.xpose.msra.mxu0 0.0
      %2750 = vmatprep.subr.mxu0 0.0
      %2751 = vmatpush1.xpose.msra.mxu0 0.0
      %2752 = vmatprep.subr.mxu0 0.0
      %2753 = vmatpush1.xpose.msra.mxu0 0.0
      %2754 = vmatprep.subr.mxu0 0.0
      %2755 = vmatpush1.xpose.msra.mxu0 0.0
      %2756 = vmatprep.subr.mxu0 0.0
      %2757 = vmatpush1.xpose.msra.mxu0 0.0
      %2758 = vmatprep.subr.mxu0 0.0
      %2759 = vmatpush1.xpose.msra.mxu0 0.0
      %2760 = vmatprep.subr.mxu0 0.0
      %2761 = vmatpush1.xpose.msra.mxu0 0.0
      %2762 = vmatprep.subr.mxu0 0.0
      %2763 = vmatpush1.xpose.msra.mxu0 0.0
      %2764 = vmatprep.subr.mxu0 0.0
      %2765 = vmatpush1.xpose.msra.mxu0 0.0
      %2766 = vmatprep.subr.mxu0 0.0
      %2767 = vmatpush1.xpose.msra.mxu0 0.0
      %2768 = vmatprep.subr.mxu0 0.0
      %2769 = vmatpush1.xpose.msra.mxu0 0.0
      %2770 = vmatprep.subr.mxu0 0.0
      %2771 = vmatpush1.xpose.msra.mxu0 0.0
      %2772 = vmatprep.subr.mxu0 0.0
      %2773 = vmatpush1.xpose.msra.mxu0 0.0
      %2774 = vmatprep.subr.mxu0 0.0
      %2775 = vmatpush1.xpose.msra.mxu0 0.0
      %2776 = vmatprep.subr.mxu0 0.0
      %2777 = vmatpush1.xpose.msra.mxu0 0.0
      %2778 = vmatprep.subr.mxu0 0.0
      %2779 = vmatpush1.xpose.msra.mxu0 0.0
      %2780 = vmatprep.subr.mxu0 0.0
      %2781 = vmatpush1.xpose.msra.mxu0 0.0
      %2782 = vmatprep.subr.mxu0 0.0
      %2783 = vmatpush1.xpose.msra.mxu0 0.0
      %2784 = vmatprep.subr.mxu0 0.0
      %2785 = vmatpush1.xpose.msra.mxu0 0.0
      %2786 = vmatprep.subr.mxu0 0.0
      %2787 = vmatpush1.xpose.msra.mxu0 0.0
      %2788 = vmatprep.subr.mxu0 0.0
      %2789 = vmatpush1.xpose.msra.mxu0 0.0
      %2790 = vmatprep.subr.mxu0 0.0
      %2791 = vmatpush1.xpose.msra.mxu0 0.0
      %2792 = vmatprep.subr.mxu0 0.0
      %2793 = vmatpush1.xpose.msra.mxu0 0.0
      %2794 = vmatprep.subr.mxu0 0.0
      %2795 = vmatpush1.xpose.msra.mxu0 0.0
      %2796 = vmatprep.subr.mxu0 0.0
      %2797 = vmatpush1.xpose.msra.mxu0 0.0
      %2798 = vmatprep.subr.mxu0 0.0
      %2799 = vmatpush1.xpose.msra.mxu0 0.0
      %2800 = vmatprep.subr.mxu0 0.0
      %2801 = vmatpush1.xpose.msra.mxu0 0.0
      %2802 = vmatprep.subr.mxu0 0.0
      %2803 = vmatpush1.xpose.msra.mxu0 0.0
      %2804 = vmatprep.subr.mxu0 0.0
      %2805 = vmatpush1.xpose.msra.mxu0 0.0
      %2806 = vmatprep.mubr.f32.mxu0 0.0
      %2807 = vmatmul.mubr.f32.gmra.mrb[0].mxu0 %v2738
      %v2808 = vpop.f32.mrb[0].mxu0
      %v2809 = vadd.f32 0.0, %v2808
      %v2810 = vpop.f32.mrb[0].mxu0
      %2811 = vdwg.mxu0
      %2812 = vrot.lane.b32.xlu0 %v385, 124
      %v2813 = vpop.permute.xlu0 %2812
      %2814 = vrot.lane.b32.xlu0 %v385, 116
      %v2815 = vpop.permute.xlu0 %2814
      %v2816 = vsel %vm391, %v2813, 0
      %v2818 = vsel %vm391, %v2815, 0
      %2820 = vmatprep.subr.mxu0 0.0
      %2821 = vmatpush1.xpose.msra.mxu0 %v2818
      %2822 = vmatprep.subr.mxu0 0.0
      %2823 = vmatpush1.xpose.msra.mxu0 0.0
      %2824 = vmatprep.subr.mxu0 0.0
      %2825 = vmatpush1.xpose.msra.mxu0 0.0
      %2826 = vmatprep.subr.mxu0 0.0
      %2827 = vmatpush1.xpose.msra.mxu0 0.0
      %2828 = vmatprep.subr.mxu0 0.0
      %2829 = vmatpush1.xpose.msra.mxu0 0.0
      %2830 = vmatprep.subr.mxu0 0.0
      %2831 = vmatpush1.xpose.msra.mxu0 0.0
      %2832 = vmatprep.subr.mxu0 0.0
      %2833 = vmatpush1.xpose.msra.mxu0 0.0
      %2834 = vmatprep.subr.mxu0 0.0
      %2835 = vmatpush1.xpose.msra.mxu0 0.0
      %2836 = vmatprep.subr.mxu0 0.0
      %2837 = vmatpush1.xpose.msra.mxu0 0.0
      %2838 = vmatprep.subr.mxu0 0.0
      %2839 = vmatpush1.xpose.msra.mxu0 0.0
      %2840 = vmatprep.subr.mxu0 0.0
      %2841 = vmatpush1.xpose.msra.mxu0 0.0
      %2842 = vmatprep.subr.mxu0 0.0
      %2843 = vmatpush1.xpose.msra.mxu0 0.0
      %2844 = vmatprep.subr.mxu0 0.0
      %2845 = vmatpush1.xpose.msra.mxu0 0.0
      %2846 = vmatprep.subr.mxu0 0.0
      %2847 = vmatpush1.xpose.msra.mxu0 0.0
      %2848 = vmatprep.subr.mxu0 0.0
      %2849 = vmatpush1.xpose.msra.mxu0 0.0
      %2850 = vmatprep.subr.mxu0 0.0
      %2851 = vmatpush1.xpose.msra.mxu0 0.0
      %2852 = vmatprep.subr.mxu0 0.0
      %2853 = vmatpush1.xpose.msra.mxu0 0.0
      %2854 = vmatprep.subr.mxu0 0.0
      %2855 = vmatpush1.xpose.msra.mxu0 0.0
      %2856 = vmatprep.subr.mxu0 0.0
      %2857 = vmatpush1.xpose.msra.mxu0 0.0
      %2858 = vmatprep.subr.mxu0 0.0
      %2859 = vmatpush1.xpose.msra.mxu0 0.0
      %2860 = vmatprep.subr.mxu0 0.0
      %2861 = vmatpush1.xpose.msra.mxu0 0.0
      %2862 = vmatprep.subr.mxu0 0.0
      %2863 = vmatpush1.xpose.msra.mxu0 0.0
      %2864 = vmatprep.subr.mxu0 0.0
      %2865 = vmatpush1.xpose.msra.mxu0 0.0
      %2866 = vmatprep.subr.mxu0 0.0
      %2867 = vmatpush1.xpose.msra.mxu0 0.0
      %2868 = vmatprep.subr.mxu0 0.0
      %2869 = vmatpush1.xpose.msra.mxu0 0.0
      %2870 = vmatprep.subr.mxu0 0.0
      %2871 = vmatpush1.xpose.msra.mxu0 0.0
      %2872 = vmatprep.subr.mxu0 0.0
      %2873 = vmatpush1.xpose.msra.mxu0 0.0
      %2874 = vmatprep.subr.mxu0 0.0
      %2875 = vmatpush1.xpose.msra.mxu0 0.0
      %2876 = vmatprep.subr.mxu0 0.0
      %2877 = vmatpush1.xpose.msra.mxu0 0.0
      %2878 = vmatprep.subr.mxu0 0.0
      %2879 = vmatpush1.xpose.msra.mxu0 0.0
      %2880 = vmatprep.subr.mxu0 0.0
      %2881 = vmatpush1.xpose.msra.mxu0 0.0
      %2882 = vmatprep.subr.mxu0 0.0
      %2883 = vmatpush1.xpose.msra.mxu0 0.0
      %2884 = vmatprep.mubr.f32.mxu0 0.0
      %2885 = vmatmul.mubr.f32.gmra.mrb[0].mxu0 %v2816
      %v2886 = vpop.f32.mrb[0].mxu0
      %v2887 = vadd.f32 0.0, %v2886
      %v2888 = vpop.f32.mrb[0].mxu0
      %2889 = vdwg.mxu0
      %2890 = vrot.lane.b32.xlu0 %v386, 124
      %v2891 = vpop.permute.xlu0 %2890
      %2892 = vrot.lane.b32.xlu0 %v386, 116
      %v2893 = vpop.permute.xlu0 %2892
      %v2894 = vsel %vm391, %v2891, 0
      %v2896 = vsel %vm391, %v2893, 0
      %2898 = vmatprep.subr.mxu0 0.0
      %2899 = vmatpush1.xpose.msra.mxu0 %v2896
      %2900 = vmatprep.subr.mxu0 0.0
      %2901 = vmatpush1.xpose.msra.mxu0 0.0
      %2902 = vmatprep.subr.mxu0 0.0
      %2903 = vmatpush1.xpose.msra.mxu0 0.0
      %2904 = vmatprep.subr.mxu0 0.0
      %2905 = vmatpush1.xpose.msra.mxu0 0.0
      %2906 = vmatprep.subr.mxu0 0.0
      %2907 = vmatpush1.xpose.msra.mxu0 0.0
      %2908 = vmatprep.subr.mxu0 0.0
      %2909 = vmatpush1.xpose.msra.mxu0 0.0
      %2910 = vmatprep.subr.mxu0 0.0
      %2911 = vmatpush1.xpose.msra.mxu0 0.0
      %2912 = vmatprep.subr.mxu0 0.0
      %2913 = vmatpush1.xpose.msra.mxu0 0.0
      %2914 = vmatprep.subr.mxu0 0.0
      %2915 = vmatpush1.xpose.msra.mxu0 0.0
      %2916 = vmatprep.subr.mxu0 0.0
      %2917 = vmatpush1.xpose.msra.mxu0 0.0
      %2918 = vmatprep.subr.mxu0 0.0
      %2919 = vmatpush1.xpose.msra.mxu0 0.0
      %2920 = vmatprep.subr.mxu0 0.0
      %2921 = vmatpush1.xpose.msra.mxu0 0.0
      %2922 = vmatprep.subr.mxu0 0.0
      %2923 = vmatpush1.xpose.msra.mxu0 0.0
      %2924 = vmatprep.subr.mxu0 0.0
      %2925 = vmatpush1.xpose.msra.mxu0 0.0
      %2926 = vmatprep.subr.mxu0 0.0
      %2927 = vmatpush1.xpose.msra.mxu0 0.0
      %2928 = vmatprep.subr.mxu0 0.0
      %2929 = vmatpush1.xpose.msra.mxu0 0.0
      %2930 = vmatprep.subr.mxu0 0.0
      %2931 = vmatpush1.xpose.msra.mxu0 0.0
      %2932 = vmatprep.subr.mxu0 0.0
      %2933 = vmatpush1.xpose.msra.mxu0 0.0
      %2934 = vmatprep.subr.mxu0 0.0
      %2935 = vmatpush1.xpose.msra.mxu0 0.0
      %2936 = vmatprep.subr.mxu0 0.0
      %2937 = vmatpush1.xpose.msra.mxu0 0.0
      %2938 = vmatprep.subr.mxu0 0.0
      %2939 = vmatpush1.xpose.msra.mxu0 0.0
      %2940 = vmatprep.subr.mxu0 0.0
      %2941 = vmatpush1.xpose.msra.mxu0 0.0
      %2942 = vmatprep.subr.mxu0 0.0
      %2943 = vmatpush1.xpose.msra.mxu0 0.0
      %2944 = vmatprep.subr.mxu0 0.0
      %2945 = vmatpush1.xpose.msra.mxu0 0.0
      %2946 = vmatprep.subr.mxu0 0.0
      %2947 = vmatpush1.xpose.msra.mxu0 0.0
      %2948 = vmatprep.subr.mxu0 0.0
      %2949 = vmatpush1.xpose.msra.mxu0 0.0
      %2950 = vmatprep.subr.mxu0 0.0
      %2951 = vmatpush1.xpose.msra.mxu0 0.0
      %2952 = vmatprep.subr.mxu0 0.0
      %2953 = vmatpush1.xpose.msra.mxu0 0.0
      %2954 = vmatprep.subr.mxu0 0.0
      %2955 = vmatpush1.xpose.msra.mxu0 0.0
      %2956 = vmatprep.subr.mxu0 0.0
      %2957 = vmatpush1.xpose.msra.mxu0 0.0
      %2958 = vmatprep.subr.mxu0 0.0
      %2959 = vmatpush1.xpose.msra.mxu0 0.0
      %2960 = vmatprep.subr.mxu0 0.0
      %2961 = vmatpush1.xpose.msra.mxu0 0.0
      %2962 = vmatprep.mubr.f32.mxu0 0.0
      %2963 = vmatmul.mubr.f32.gmra.mrb[0].mxu0 %v2894
      %v2964 = vpop.f32.mrb[0].mxu0
      %v2965 = vadd.f32 0.0, %v2964
      %v2966 = vpop.f32.mrb[0].mxu0
      %2967 = vdwg.mxu0
      %2968 = vrot.lane.b32.xlu0 %v387, 124
      %v2969 = vpop.permute.xlu0 %2968
      %2970 = vrot.lane.b32.xlu0 %v387, 116
      %v2971 = vpop.permute.xlu0 %2970
      %v2972 = vsel %vm391, %v2969, 0
      %v2974 = vsel %vm391, %v2971, 0
      %2976 = vmatprep.subr.mxu0 0.0
      %2977 = vmatpush1.xpose.msra.mxu0 %v2974
      %2978 = vmatprep.subr.mxu0 0.0
      %2979 = vmatpush1.xpose.msra.mxu0 0.0
      %2980 = vmatprep.subr.mxu0 0.0
      %2981 = vmatpush1.xpose.msra.mxu0 0.0
      %2982 = vmatprep.subr.mxu0 0.0
      %2983 = vmatpush1.xpose.msra.mxu0 0.0
      %2984 = vmatprep.subr.mxu0 0.0
      %2985 = vmatpush1.xpose.msra.mxu0 0.0
      %2986 = vmatprep.subr.mxu0 0.0
      %2987 = vmatpush1.xpose.msra.mxu0 0.0
      %2988 = vmatprep.subr.mxu0 0.0
      %2989 = vmatpush1.xpose.msra.mxu0 0.0
      %2990 = vmatprep.subr.mxu0 0.0
      %2991 = vmatpush1.xpose.msra.mxu0 0.0
      %2992 = vmatprep.subr.mxu0 0.0
      %2993 = vmatpush1.xpose.msra.mxu0 0.0
      %2994 = vmatprep.subr.mxu0 0.0
      %2995 = vmatpush1.xpose.msra.mxu0 0.0
      %2996 = vmatprep.subr.mxu0 0.0
      %2997 = vmatpush1.xpose.msra.mxu0 0.0
      %2998 = vmatprep.subr.mxu0 0.0
      %2999 = vmatpush1.xpose.msra.mxu0 0.0
      %3000 = vmatprep.subr.mxu0 0.0
      %3001 = vmatpush1.xpose.msra.mxu0 0.0
      %3002 = vmatprep.subr.mxu0 0.0
      %3003 = vmatpush1.xpose.msra.mxu0 0.0
      %3004 = vmatprep.subr.mxu0 0.0
      %3005 = vmatpush1.xpose.msra.mxu0 0.0
      %3006 = vmatprep.subr.mxu0 0.0
      %3007 = vmatpush1.xpose.msra.mxu0 0.0
      %3008 = vmatprep.subr.mxu0 0.0
      %3009 = vmatpush1.xpose.msra.mxu0 0.0
      %3010 = vmatprep.subr.mxu0 0.0
      %3011 = vmatpush1.xpose.msra.mxu0 0.0
      %3012 = vmatprep.subr.mxu0 0.0
      %3013 = vmatpush1.xpose.msra.mxu0 0.0
      %3014 = vmatprep.subr.mxu0 0.0
      %3015 = vmatpush1.xpose.msra.mxu0 0.0
      %3016 = vmatprep.subr.mxu0 0.0
      %3017 = vmatpush1.xpose.msra.mxu0 0.0
      %3018 = vmatprep.subr.mxu0 0.0
      %3019 = vmatpush1.xpose.msra.mxu0 0.0
      %3020 = vmatprep.subr.mxu0 0.0
      %3021 = vmatpush1.xpose.msra.mxu0 0.0
      %3022 = vmatprep.subr.mxu0 0.0
      %3023 = vmatpush1.xpose.msra.mxu0 0.0
      %3024 = vmatprep.subr.mxu0 0.0
      %3025 = vmatpush1.xpose.msra.mxu0 0.0
      %3026 = vmatprep.subr.mxu0 0.0
      %3027 = vmatpush1.xpose.msra.mxu0 0.0
      %3028 = vmatprep.subr.mxu0 0.0
      %3029 = vmatpush1.xpose.msra.mxu0 0.0
      %3030 = vmatprep.subr.mxu0 0.0
      %3031 = vmatpush1.xpose.msra.mxu0 0.0
      %3032 = vmatprep.subr.mxu0 0.0
      %3033 = vmatpush1.xpose.msra.mxu0 0.0
      %3034 = vmatprep.subr.mxu0 0.0
      %3035 = vmatpush1.xpose.msra.mxu0 0.0
      %3036 = vmatprep.subr.mxu0 0.0
      %3037 = vmatpush1.xpose.msra.mxu0 0.0
      %3038 = vmatprep.subr.mxu0 0.0
      %3039 = vmatpush1.xpose.msra.mxu0 0.0
      %3040 = vmatprep.mubr.f32.mxu0 0.0
      %3041 = vmatmul.mubr.f32.gmra.mrb[0].mxu0 %v2972
      %v3042 = vpop.f32.mrb[0].mxu0
      %v3043 = vadd.f32 0.0, %v3042
      %v3044 = vpop.f32.mrb[0].mxu0
      %3045 = vdwg.mxu0
      %v3046 = vsel %vm1621, %v1873, -inf
      %3047 = vmax.xlane.f32.xlu0 %v3046
      %v3048 = vpop.xlane.xlu0 %3047
      %v3049 = vsel %vm1621, %v1951, -inf
      %3050 = vmax.xlane.f32.xlu0 %v3049
      %v3051 = vpop.xlane.xlu0 %3050
      %v3052 = vsel %vm1621, %v2029, -inf
      %3053 = vmax.xlane.f32.xlu0 %v3052
      %v3054 = vpop.xlane.xlu0 %3053
      %v3055 = vsel %vm1621, %v2107, -inf
      %3056 = vmax.xlane.f32.xlu0 %v3055
      %v3057 = vpop.xlane.xlu0 %3056
      %v3058 = vsel %vm1621, %v2185, -inf
      %3059 = vmax.xlane.f32.xlu0 %v3058
      %v3060 = vpop.xlane.xlu0 %3059
      %v3061 = vsel %vm1621, %v2263, -inf
      %3062 = vmax.xlane.f32.xlu0 %v3061
      %v3063 = vpop.xlane.xlu0 %3062
      %v3064 = vsel %vm1621, %v2341, -inf
      %3065 = vmax.xlane.f32.xlu0 %v3064
      %v3066 = vpop.xlane.xlu0 %3065
      %v3067 = vsel %vm1621, %v2419, -inf
      %3068 = vmax.xlane.f32.xlu0 %v3067
      %v3069 = vpop.xlane.xlu0 %3068
      %v3070 = vsel %vm1621, %v2497, -inf
      %3071 = vmax.xlane.f32.xlu0 %v3070
      %v3072 = vpop.xlane.xlu0 %3071
      %v3073 = vsel %vm1621, %v2575, -inf
      %3074 = vmax.xlane.f32.xlu0 %v3073
      %v3075 = vpop.xlane.xlu0 %3074
      %v3076 = vsel %vm1621, %v2653, -inf
      %3077 = vmax.xlane.f32.xlu0 %v3076
      %v3078 = vpop.xlane.xlu0 %3077
      %v3079 = vsel %vm1621, %v2731, -inf
      %3080 = vmax.xlane.f32.xlu0 %v3079
      %v3081 = vpop.xlane.xlu0 %3080
      %v3082 = vsel %vm1621, %v2809, -inf
      %3083 = vmax.xlane.f32.xlu0 %v3082
      %v3084 = vpop.xlane.xlu0 %3083
      %v3085 = vsel %vm1621, %v2887, -inf
      %3086 = vmax.xlane.f32.xlu0 %v3085
      %v3087 = vpop.xlane.xlu0 %3086
      %v3088 = vsel %vm1621, %v2965, -inf
      %3089 = vmax.xlane.f32.xlu0 %v3088
      %v3090 = vpop.xlane.xlu0 %3089
      %v3091 = vsel %vm1621, %v3043, -inf
      %3092 = vmax.xlane.f32.xlu0 %v3091
      %v3093 = vpop.xlane.xlu0 %3092
      %v3094 = vsub.f32 %v1873, %v3048
      %v3095 = vsub.f32 %v1951, %v3051
      %v3096 = vsub.f32 %v2029, %v3054
      %v3097 = vsub.f32 %v2107, %v3057
      %v3098 = vsub.f32 %v2185, %v3060
      %v3099 = vsub.f32 %v2263, %v3063
      %v3100 = vsub.f32 %v2341, %v3066
      %v3101 = vsub.f32 %v2419, %v3069
      %v3102 = vsub.f32 %v2497, %v3072
      %v3103 = vsub.f32 %v2575, %v3075
      %v3104 = vsub.f32 %v2653, %v3078
      %v3105 = vsub.f32 %v2731, %v3081
      %v3106 = vsub.f32 %v2809, %v3084
      %v3107 = vsub.f32 %v2887, %v3087
      %v3108 = vsub.f32 %v2965, %v3090
      %v3109 = vsub.f32 %v3043, %v3093
      %v3110 = vmul.f32 %v3094, 1.442695
      %v3111 = vpow.pop %v3110
      %v3112 = vmul.f32 %v3095, 1.442695
      %v3113 = vpow.pop %v3112
      %v3114 = vmul.f32 %v3096, 1.442695
      %v3115 = vpow.pop %v3114
      %v3116 = vmul.f32 %v3097, 1.442695
      %v3117 = vpow.pop %v3116
      %v3118 = vmul.f32 %v3098, 1.442695
      %v3119 = vpow.pop %v3118
      %v3120 = vmul.f32 %v3099, 1.442695
      %v3121 = vpow.pop %v3120
      %v3122 = vmul.f32 %v3100, 1.442695
      %v3123 = vpow.pop %v3122
      %v3124 = vmul.f32 %v3101, 1.442695
      %v3125 = vpow.pop %v3124
      %v3126 = vmul.f32 %v3102, 1.442695
      %v3127 = vpow.pop %v3126
      %v3128 = vmul.f32 %v3103, 1.442695
      %v3129 = vpow.pop %v3128
      %v3130 = vmul.f32 %v3104, 1.442695
      %v3131 = vpow.pop %v3130
      %v3132 = vmul.f32 %v3105, 1.442695
      %v3133 = vpow.pop %v3132
      %v3134 = vmul.f32 %v3106, 1.442695
      %v3135 = vpow.pop %v3134
      %v3136 = vmul.f32 %v3107, 1.442695
      %v3137 = vpow.pop %v3136
      %v3138 = vmul.f32 %v3108, 1.442695
      %v3139 = vpow.pop %v3138
      %v3140 = vmul.f32 %v3109, 1.442695
      %v3141 = vpow.pop %v3140
      %v3142 = vsel %vm1621, %v3111, 0.0
      %3143 = vadd.xlane.f32.xlu0 %v3142
      %v3144 = vpop.xlane.xlu0 %3143
      %v3145 = vsel %vm1621, %v3113, 0.0
      %3146 = vadd.xlane.f32.xlu0 %v3145
      %v3147 = vpop.xlane.xlu0 %3146
      %v3148 = vsel %vm1621, %v3115, 0.0
      %3149 = vadd.xlane.f32.xlu0 %v3148
      %v3150 = vpop.xlane.xlu0 %3149
      %v3151 = vsel %vm1621, %v3117, 0.0
      %3152 = vadd.xlane.f32.xlu0 %v3151
      %v3153 = vpop.xlane.xlu0 %3152
      %v3154 = vsel %vm1621, %v3119, 0.0
      %3155 = vadd.xlane.f32.xlu0 %v3154
      %v3156 = vpop.xlane.xlu0 %3155
      %v3157 = vsel %vm1621, %v3121, 0.0
      %3158 = vadd.xlane.f32.xlu0 %v3157
      %v3159 = vpop.xlane.xlu0 %3158
      %v3160 = vsel %vm1621, %v3123, 0.0
      %3161 = vadd.xlane.f32.xlu0 %v3160
      %v3162 = vpop.xlane.xlu0 %3161
      %v3163 = vsel %vm1621, %v3125, 0.0
      %3164 = vadd.xlane.f32.xlu0 %v3163
      %v3165 = vpop.xlane.xlu0 %3164
      %v3166 = vsel %vm1621, %v3127, 0.0
      %3167 = vadd.xlane.f32.xlu0 %v3166
      %v3168 = vpop.xlane.xlu0 %3167
      %v3169 = vsel %vm1621, %v3129, 0.0
      %3170 = vadd.xlane.f32.xlu0 %v3169
      %v3171 = vpop.xlane.xlu0 %3170
      %v3172 = vsel %vm1621, %v3131, 0.0
      %3173 = vadd.xlane.f32.xlu0 %v3172
      %v3174 = vpop.xlane.xlu0 %3173
      %v3175 = vsel %vm1621, %v3133, 0.0
      %3176 = vadd.xlane.f32.xlu0 %v3175
      %v3177 = vpop.xlane.xlu0 %3176
      %v3178 = vsel %vm1621, %v3135, 0.0
      %3179 = vadd.xlane.f32.xlu0 %v3178
      %v3180 = vpop.xlane.xlu0 %3179
      %v3181 = vsel %vm1621, %v3137, 0.0
      %3182 = vadd.xlane.f32.xlu0 %v3181
      %v3183 = vpop.xlane.xlu0 %3182
      %v3184 = vsel %vm1621, %v3139, 0.0
      %3185 = vadd.xlane.f32.xlu0 %v3184
      %v3186 = vpop.xlane.xlu0 %3185
      %v3187 = vsel %vm1621, %v3141, 0.0
      %3188 = vadd.xlane.f32.xlu0 %v3187
      %v3189 = vpop.xlane.xlu0 %3188
      %v3190 = vrcp.pop %v3144
      %v3191 = vmul.f32 %v3111, %v3190
      %v3192 = vrcp.pop %v3147
      %v3193 = vmul.f32 %v3113, %v3192
      %v3194 = vrcp.pop %v3150
      %v3195 = vmul.f32 %v3115, %v3194
      %v3196 = vrcp.pop %v3153
      %v3197 = vmul.f32 %v3117, %v3196
      %v3198 = vrcp.pop %v3156
      %v3199 = vmul.f32 %v3119, %v3198
      %v3200 = vrcp.pop %v3159
      %v3201 = vmul.f32 %v3121, %v3200
      %v3202 = vrcp.pop %v3162
      %v3203 = vmul.f32 %v3123, %v3202
      %v3204 = vrcp.pop %v3165
      %v3205 = vmul.f32 %v3125, %v3204
      %v3206 = vrcp.pop %v3168
      %v3207 = vmul.f32 %v3127, %v3206
      %v3208 = vrcp.pop %v3171
      %v3209 = vmul.f32 %v3129, %v3208
      %v3210 = vrcp.pop %v3174
      %v3211 = vmul.f32 %v3131, %v3210
      %v3212 = vrcp.pop %v3177
      %v3213 = vmul.f32 %v3133, %v3212
      %v3214 = vrcp.pop %v3180
      %v3215 = vmul.f32 %v3135, %v3214
      %v3216 = vrcp.pop %v3183
      %v3217 = vmul.f32 %v3137, %v3216
      %v3218 = vrcp.pop %v3186
      %v3219 = vmul.f32 %v3139, %v3218
      %v3220 = vrcp.pop %v3189
      %v3221 = vmul.f32 %v3141, %v3220
      %3222 = vrot.lane.b32.xlu0 %v372, 104
      %v3223 = vpop.permute.xlu0 %3222
      %v3226 = vsel %vm1621, %v3191, 0
      %3228 = vmatprep.subr.mxu0 0.0
      %3229 = vmatpush1.msra.mxu0 %v3223
      %3230 = vmatprep.subr.mxu0 0.0
      %3231 = vmatpush1.msra.mxu0 0.0
      %3232 = vmatprep.subr.mxu0 0.0
      %3233 = vmatpush1.msra.mxu0 0.0
      %3234 = vmatprep.subr.mxu0 0.0
      %3235 = vmatpush1.msra.mxu0 0.0
      %3236 = vmatprep.subr.mxu0 0.0
      %3237 = vmatpush1.msra.mxu0 0.0
      %3238 = vmatprep.subr.mxu0 0.0
      %3239 = vmatpush1.msra.mxu0 0.0
      %3240 = vmatprep.subr.mxu0 0.0
      %3241 = vmatpush1.msra.mxu0 0.0
      %3242 = vmatprep.subr.mxu0 0.0
      %3243 = vmatpush1.msra.mxu0 0.0
      %3244 = vmatprep.subr.mxu0 0.0
      %3245 = vmatpush1.msra.mxu0 0.0
      %3246 = vmatprep.subr.mxu0 0.0
      %3247 = vmatpush1.msra.mxu0 0.0
      %3248 = vmatprep.subr.mxu0 0.0
      %3249 = vmatpush1.msra.mxu0 0.0
      %3250 = vmatprep.subr.mxu0 0.0
      %3251 = vmatpush1.msra.mxu0 0.0
      %3252 = vmatprep.subr.mxu0 0.0
      %3253 = vmatpush1.msra.mxu0 0.0
      %3254 = vmatprep.subr.mxu0 0.0
      %3255 = vmatpush1.msra.mxu0 0.0
      %3256 = vmatprep.subr.mxu0 0.0
      %3257 = vmatpush1.msra.mxu0 0.0
      %3258 = vmatprep.subr.mxu0 0.0
      %3259 = vmatpush1.msra.mxu0 0.0
      %3260 = vmatprep.subr.mxu0 0.0
      %3261 = vmatpush1.msra.mxu0 0.0
      %3262 = vmatprep.subr.mxu0 0.0
      %3263 = vmatpush1.msra.mxu0 0.0
      %3264 = vmatprep.subr.mxu0 0.0
      %3265 = vmatpush1.msra.mxu0 0.0
      %3266 = vmatprep.subr.mxu0 0.0
      %3267 = vmatpush1.msra.mxu0 0.0
      %3268 = vmatprep.subr.mxu0 0.0
      %3269 = vmatpush1.msra.mxu0 0.0
      %3270 = vmatprep.subr.mxu0 0.0
      %3271 = vmatpush1.msra.mxu0 0.0
      %3272 = vmatprep.subr.mxu0 0.0
      %3273 = vmatpush1.msra.mxu0 0.0
      %3274 = vmatprep.subr.mxu0 0.0
      %3275 = vmatpush1.msra.mxu0 0.0
      %3276 = vmatprep.subr.mxu0 0.0
      %3277 = vmatpush1.msra.mxu0 0.0
      %3278 = vmatprep.subr.mxu0 0.0
      %3279 = vmatpush1.msra.mxu0 0.0
      %3280 = vmatprep.subr.mxu0 0.0
      %3281 = vmatpush1.msra.mxu0 0.0
      %3282 = vmatprep.subr.mxu0 0.0
      %3283 = vmatpush1.msra.mxu0 0.0
      %3284 = vmatprep.subr.mxu0 0.0
      %3285 = vmatpush1.msra.mxu0 0.0
      %3286 = vmatprep.subr.mxu0 0.0
      %3287 = vmatpush1.msra.mxu0 0.0
      %3288 = vmatprep.subr.mxu0 0.0
      %3289 = vmatpush1.msra.mxu0 0.0
      %3290 = vmatprep.subr.mxu0 0.0
      %3291 = vmatpush1.msra.mxu0 0.0
      %3292 = vmatprep.mubr.f32.mxu0 0.0
      %3293 = vmatmul.mubr.f32.gmra.mrb[0].mxu0 %v3226
      %v3294 = vpop.f32.mrb[0].mxu0
      %v3295 = vadd.f32 0.0, %v3294
      %v3296 = vpop.f32.mrb[0].mxu0
      %3297 = vdwg.mxu0
      %3298 = vrot.lane.b32.xlu0 %v373, 104
      %v3299 = vpop.permute.xlu0 %3298
      %v3302 = vsel %vm1621, %v3193, 0
      %3304 = vmatprep.subr.mxu0 0.0
      %3305 = vmatpush1.msra.mxu0 %v3299
      %3306 = vmatprep.subr.mxu0 0.0
      %3307 = vmatpush1.msra.mxu0 0.0
      %3308 = vmatprep.subr.mxu0 0.0
      %3309 = vmatpush1.msra.mxu0 0.0
      %3310 = vmatprep.subr.mxu0 0.0
      %3311 = vmatpush1.msra.mxu0 0.0
      %3312 = vmatprep.subr.mxu0 0.0
      %3313 = vmatpush1.msra.mxu0 0.0
      %3314 = vmatprep.subr.mxu0 0.0
      %3315 = vmatpush1.msra.mxu0 0.0
      %3316 = vmatprep.subr.mxu0 0.0
      %3317 = vmatpush1.msra.mxu0 0.0
      %3318 = vmatprep.subr.mxu0 0.0
      %3319 = vmatpush1.msra.mxu0 0.0
      %3320 = vmatprep.subr.mxu0 0.0
      %3321 = vmatpush1.msra.mxu0 0.0
      %3322 = vmatprep.subr.mxu0 0.0
      %3323 = vmatpush1.msra.mxu0 0.0
      %3324 = vmatprep.subr.mxu0 0.0
      %3325 = vmatpush1.msra.mxu0 0.0
      %3326 = vmatprep.subr.mxu0 0.0
      %3327 = vmatpush1.msra.mxu0 0.0
      %3328 = vmatprep.subr.mxu0 0.0
      %3329 = vmatpush1.msra.mxu0 0.0
      %3330 = vmatprep.subr.mxu0 0.0
      %3331 = vmatpush1.msra.mxu0 0.0
      %3332 = vmatprep.subr.mxu0 0.0
      %3333 = vmatpush1.msra.mxu0 0.0
      %3334 = vmatprep.subr.mxu0 0.0
      %3335 = vmatpush1.msra.mxu0 0.0
      %3336 = vmatprep.subr.mxu0 0.0
      %3337 = vmatpush1.msra.mxu0 0.0
      %3338 = vmatprep.subr.mxu0 0.0
      %3339 = vmatpush1.msra.mxu0 0.0
      %3340 = vmatprep.subr.mxu0 0.0
      %3341 = vmatpush1.msra.mxu0 0.0
      %3342 = vmatprep.subr.mxu0 0.0
      %3343 = vmatpush1.msra.mxu0 0.0
      %3344 = vmatprep.subr.mxu0 0.0
      %3345 = vmatpush1.msra.mxu0 0.0
      %3346 = vmatprep.subr.mxu0 0.0
      %3347 = vmatpush1.msra.mxu0 0.0
      %3348 = vmatprep.subr.mxu0 0.0
      %3349 = vmatpush1.msra.mxu0 0.0
      %3350 = vmatprep.subr.mxu0 0.0
      %3351 = vmatpush1.msra.mxu0 0.0
      %3352 = vmatprep.subr.mxu0 0.0
      %3353 = vmatpush1.msra.mxu0 0.0
      %3354 = vmatprep.subr.mxu0 0.0
      %3355 = vmatpush1.msra.mxu0 0.0
      %3356 = vmatprep.subr.mxu0 0.0
      %3357 = vmatpush1.msra.mxu0 0.0
      %3358 = vmatprep.subr.mxu0 0.0
      %3359 = vmatpush1.msra.mxu0 0.0
      %3360 = vmatprep.subr.mxu0 0.0
      %3361 = vmatpush1.msra.mxu0 0.0
      %3362 = vmatprep.subr.mxu0 0.0
      %3363 = vmatpush1.msra.mxu0 0.0
      %3364 = vmatprep.subr.mxu0 0.0
      %3365 = vmatpush1.msra.mxu0 0.0
      %3366 = vmatprep.subr.mxu0 0.0
      %3367 = vmatpush1.msra.mxu0 0.0
      %3368 = vmatprep.mubr.f32.mxu0 0.0
      %3369 = vmatmul.mubr.f32.gmra.mrb[0].mxu0 %v3302
      %v3370 = vpop.f32.mrb[0].mxu0
      %v3371 = vadd.f32 0.0, %v3370
      %v3372 = vpop.f32.mrb[0].mxu0
      %3373 = vdwg.mxu0
      %3374 = vrot.lane.b32.xlu0 %v374, 104
      %v3375 = vpop.permute.xlu0 %3374
      %v3378 = vsel %vm1621, %v3195, 0
      %3380 = vmatprep.subr.mxu0 0.0
      %3381 = vmatpush1.msra.mxu0 %v3375
      %3382 = vmatprep.subr.mxu0 0.0
      %3383 = vmatpush1.msra.mxu0 0.0
      %3384 = vmatprep.subr.mxu0 0.0
      %3385 = vmatpush1.msra.mxu0 0.0
      %3386 = vmatprep.subr.mxu0 0.0
      %3387 = vmatpush1.msra.mxu0 0.0
      %3388 = vmatprep.subr.mxu0 0.0
      %3389 = vmatpush1.msra.mxu0 0.0
      %3390 = vmatprep.subr.mxu0 0.0
      %3391 = vmatpush1.msra.mxu0 0.0
      %3392 = vmatprep.subr.mxu0 0.0
      %3393 = vmatpush1.msra.mxu0 0.0
      %3394 = vmatprep.subr.mxu0 0.0
      %3395 = vmatpush1.msra.mxu0 0.0
      %3396 = vmatprep.subr.mxu0 0.0
      %3397 = vmatpush1.msra.mxu0 0.0
      %3398 = vmatprep.subr.mxu0 0.0
      %3399 = vmatpush1.msra.mxu0 0.0
      %3400 = vmatprep.subr.mxu0 0.0
      %3401 = vmatpush1.msra.mxu0 0.0
      %3402 = vmatprep.subr.mxu0 0.0
      %3403 = vmatpush1.msra.mxu0 0.0
      %3404 = vmatprep.subr.mxu0 0.0
      %3405 = vmatpush1.msra.mxu0 0.0
      %3406 = vmatprep.subr.mxu0 0.0
      %3407 = vmatpush1.msra.mxu0 0.0
      %3408 = vmatprep.subr.mxu0 0.0
      %3409 = vmatpush1.msra.mxu0 0.0
      %3410 = vmatprep.subr.mxu0 0.0
      %3411 = vmatpush1.msra.mxu0 0.0
      %3412 = vmatprep.subr.mxu0 0.0
      %3413 = vmatpush1.msra.mxu0 0.0
      %3414 = vmatprep.subr.mxu0 0.0
      %3415 = vmatpush1.msra.mxu0 0.0
      %3416 = vmatprep.subr.mxu0 0.0
      %3417 = vmatpush1.msra.mxu0 0.0
      %3418 = vmatprep.subr.mxu0 0.0
      %3419 = vmatpush1.msra.mxu0 0.0
      %3420 = vmatprep.subr.mxu0 0.0
      %3421 = vmatpush1.msra.mxu0 0.0
      %3422 = vmatprep.subr.mxu0 0.0
      %3423 = vmatpush1.msra.mxu0 0.0
      %3424 = vmatprep.subr.mxu0 0.0
      %3425 = vmatpush1.msra.mxu0 0.0
      %3426 = vmatprep.subr.mxu0 0.0
      %3427 = vmatpush1.msra.mxu0 0.0
      %3428 = vmatprep.subr.mxu0 0.0
      %3429 = vmatpush1.msra.mxu0 0.0
      %3430 = vmatprep.subr.mxu0 0.0
      %3431 = vmatpush1.msra.mxu0 0.0
      %3432 = vmatprep.subr.mxu0 0.0
      %3433 = vmatpush1.msra.mxu0 0.0
      %3434 = vmatprep.subr.mxu0 0.0
      %3435 = vmatpush1.msra.mxu0 0.0
      %3436 = vmatprep.subr.mxu0 0.0
      %3437 = vmatpush1.msra.mxu0 0.0
      %3438 = vmatprep.subr.mxu0 0.0
      %3439 = vmatpush1.msra.mxu0 0.0
      %3440 = vmatprep.subr.mxu0 0.0
      %3441 = vmatpush1.msra.mxu0 0.0
      %3442 = vmatprep.subr.mxu0 0.0
      %3443 = vmatpush1.msra.mxu0 0.0
      %3444 = vmatprep.mubr.f32.mxu0 0.0
      %3445 = vmatmul.mubr.f32.gmra.mrb[0].mxu0 %v3378
      %v3446 = vpop.f32.mrb[0].mxu0
      %v3447 = vadd.f32 0.0, %v3446
      %v3448 = vpop.f32.mrb[0].mxu0
      %3449 = vdwg.mxu0
      %3450 = vrot.lane.b32.xlu0 %v375, 104
      %v3451 = vpop.permute.xlu0 %3450
      %v3454 = vsel %vm1621, %v3197, 0
      %3456 = vmatprep.subr.mxu0 0.0
      %3457 = vmatpush1.msra.mxu0 %v3451
      %3458 = vmatprep.subr.mxu0 0.0
      %3459 = vmatpush1.msra.mxu0 0.0
      %3460 = vmatprep.subr.mxu0 0.0
      %3461 = vmatpush1.msra.mxu0 0.0
      %3462 = vmatprep.subr.mxu0 0.0
      %3463 = vmatpush1.msra.mxu0 0.0
      %3464 = vmatprep.subr.mxu0 0.0
      %3465 = vmatpush1.msra.mxu0 0.0
      %3466 = vmatprep.subr.mxu0 0.0
      %3467 = vmatpush1.msra.mxu0 0.0
      %3468 = vmatprep.subr.mxu0 0.0
      %3469 = vmatpush1.msra.mxu0 0.0
      %3470 = vmatprep.subr.mxu0 0.0
      %3471 = vmatpush1.msra.mxu0 0.0
      %3472 = vmatprep.subr.mxu0 0.0
      %3473 = vmatpush1.msra.mxu0 0.0
      %3474 = vmatprep.subr.mxu0 0.0
      %3475 = vmatpush1.msra.mxu0 0.0
      %3476 = vmatprep.subr.mxu0 0.0
      %3477 = vmatpush1.msra.mxu0 0.0
      %3478 = vmatprep.subr.mxu0 0.0
      %3479 = vmatpush1.msra.mxu0 0.0
      %3480 = vmatprep.subr.mxu0 0.0
      %3481 = vmatpush1.msra.mxu0 0.0
      %3482 = vmatprep.subr.mxu0 0.0
      %3483 = vmatpush1.msra.mxu0 0.0
      %3484 = vmatprep.subr.mxu0 0.0
      %3485 = vmatpush1.msra.mxu0 0.0
      %3486 = vmatprep.subr.mxu0 0.0
      %3487 = vmatpush1.msra.mxu0 0.0
      %3488 = vmatprep.subr.mxu0 0.0
      %3489 = vmatpush1.msra.mxu0 0.0
      %3490 = vmatprep.subr.mxu0 0.0
      %3491 = vmatpush1.msra.mxu0 0.0
      %3492 = vmatprep.subr.mxu0 0.0
      %3493 = vmatpush1.msra.mxu0 0.0
      %3494 = vmatprep.subr.mxu0 0.0
      %3495 = vmatpush1.msra.mxu0 0.0
      %3496 = vmatprep.subr.mxu0 0.0
      %3497 = vmatpush1.msra.mxu0 0.0
      %3498 = vmatprep.subr.mxu0 0.0
      %3499 = vmatpush1.msra.mxu0 0.0
      %3500 = vmatprep.subr.mxu0 0.0
      %3501 = vmatpush1.msra.mxu0 0.0
      %3502 = vmatprep.subr.mxu0 0.0
      %3503 = vmatpush1.msra.mxu0 0.0
      %3504 = vmatprep.subr.mxu0 0.0
      %3505 = vmatpush1.msra.mxu0 0.0
      %3506 = vmatprep.subr.mxu0 0.0
      %3507 = vmatpush1.msra.mxu0 0.0
      %3508 = vmatprep.subr.mxu0 0.0
      %3509 = vmatpush1.msra.mxu0 0.0
      %3510 = vmatprep.subr.mxu0 0.0
      %3511 = vmatpush1.msra.mxu0 0.0
      %3512 = vmatprep.subr.mxu0 0.0
      %3513 = vmatpush1.msra.mxu0 0.0
      %3514 = vmatprep.subr.mxu0 0.0
      %3515 = vmatpush1.msra.mxu0 0.0
      %3516 = vmatprep.subr.mxu0 0.0
      %3517 = vmatpush1.msra.mxu0 0.0
      %3518 = vmatprep.subr.mxu0 0.0
      %3519 = vmatpush1.msra.mxu0 0.0
      %3520 = vmatprep.mubr.f32.mxu0 0.0
      %3521 = vmatmul.mubr.f32.gmra.mrb[0].mxu0 %v3454
      %v3522 = vpop.f32.mrb[0].mxu0
      %v3523 = vadd.f32 0.0, %v3522
      %v3524 = vpop.f32.mrb[0].mxu0
      %3525 = vdwg.mxu0
      %3526 = vrot.lane.b32.xlu0 %v376, 104
      %v3527 = vpop.permute.xlu0 %3526
      %v3530 = vsel %vm1621, %v3199, 0
      %3532 = vmatprep.subr.mxu0 0.0
      %3533 = vmatpush1.msra.mxu0 %v3527
      %3534 = vmatprep.subr.mxu0 0.0
      %3535 = vmatpush1.msra.mxu0 0.0
      %3536 = vmatprep.subr.mxu0 0.0
      %3537 = vmatpush1.msra.mxu0 0.0
      %3538 = vmatprep.subr.mxu0 0.0
      %3539 = vmatpush1.msra.mxu0 0.0
      %3540 = vmatprep.subr.mxu0 0.0
      %3541 = vmatpush1.msra.mxu0 0.0
      %3542 = vmatprep.subr.mxu0 0.0
      %3543 = vmatpush1.msra.mxu0 0.0
      %3544 = vmatprep.subr.mxu0 0.0
      %3545 = vmatpush1.msra.mxu0 0.0
      %3546 = vmatprep.subr.mxu0 0.0
      %3547 = vmatpush1.msra.mxu0 0.0
      %3548 = vmatprep.subr.mxu0 0.0
      %3549 = vmatpush1.msra.mxu0 0.0
      %3550 = vmatprep.subr.mxu0 0.0
      %3551 = vmatpush1.msra.mxu0 0.0
      %3552 = vmatprep.subr.mxu0 0.0
      %3553 = vmatpush1.msra.mxu0 0.0
      %3554 = vmatprep.subr.mxu0 0.0
      %3555 = vmatpush1.msra.mxu0 0.0
      %3556 = vmatprep.subr.mxu0 0.0
      %3557 = vmatpush1.msra.mxu0 0.0
      %3558 = vmatprep.subr.mxu0 0.0
      %3559 = vmatpush1.msra.mxu0 0.0
      %3560 = vmatprep.subr.mxu0 0.0
      %3561 = vmatpush1.msra.mxu0 0.0
      %3562 = vmatprep.subr.mxu0 0.0
      %3563 = vmatpush1.msra.mxu0 0.0
      %3564 = vmatprep.subr.mxu0 0.0
      %3565 = vmatpush1.msra.mxu0 0.0
      %3566 = vmatprep.subr.mxu0 0.0
      %3567 = vmatpush1.msra.mxu0 0.0
      %3568 = vmatprep.subr.mxu0 0.0
      %3569 = vmatpush1.msra.mxu0 0.0
      %3570 = vmatprep.subr.mxu0 0.0
      %3571 = vmatpush1.msra.mxu0 0.0
      %3572 = vmatprep.subr.mxu0 0.0
      %3573 = vmatpush1.msra.mxu0 0.0
      %3574 = vmatprep.subr.mxu0 0.0
      %3575 = vmatpush1.msra.mxu0 0.0
      %3576 = vmatprep.subr.mxu0 0.0
      %3577 = vmatpush1.msra.mxu0 0.0
      %3578 = vmatprep.subr.mxu0 0.0
      %3579 = vmatpush1.msra.mxu0 0.0
      %3580 = vmatprep.subr.mxu0 0.0
      %3581 = vmatpush1.msra.mxu0 0.0
      %3582 = vmatprep.subr.mxu0 0.0
      %3583 = vmatpush1.msra.mxu0 0.0
      %3584 = vmatprep.subr.mxu0 0.0
      %3585 = vmatpush1.msra.mxu0 0.0
      %3586 = vmatprep.subr.mxu0 0.0
      %3587 = vmatpush1.msra.mxu0 0.0
      %3588 = vmatprep.subr.mxu0 0.0
      %3589 = vmatpush1.msra.mxu0 0.0
      %3590 = vmatprep.subr.mxu0 0.0
      %3591 = vmatpush1.msra.mxu0 0.0
      %3592 = vmatprep.subr.mxu0 0.0
      %3593 = vmatpush1.msra.mxu0 0.0
      %3594 = vmatprep.subr.mxu0 0.0
      %3595 = vmatpush1.msra.mxu0 0.0
      %3596 = vmatprep.mubr.f32.mxu0 0.0
      %3597 = vmatmul.mubr.f32.gmra.mrb[0].mxu0 %v3530
      %v3598 = vpop.f32.mrb[0].mxu0
      %v3599 = vadd.f32 0.0, %v3598
      %v3600 = vpop.f32.mrb[0].mxu0
      %3601 = vdwg.mxu0
      %3602 = vrot.lane.b32.xlu0 %v377, 104
      %v3603 = vpop.permute.xlu0 %3602
      %v3606 = vsel %vm1621, %v3201, 0
      %3608 = vmatprep.subr.mxu0 0.0
      %3609 = vmatpush1.msra.mxu0 %v3603
      %3610 = vmatprep.subr.mxu0 0.0
      %3611 = vmatpush1.msra.mxu0 0.0
      %3612 = vmatprep.subr.mxu0 0.0
      %3613 = vmatpush1.msra.mxu0 0.0
      %3614 = vmatprep.subr.mxu0 0.0
      %3615 = vmatpush1.msra.mxu0 0.0
      %3616 = vmatprep.subr.mxu0 0.0
      %3617 = vmatpush1.msra.mxu0 0.0
      %3618 = vmatprep.subr.mxu0 0.0
      %3619 = vmatpush1.msra.mxu0 0.0
      %3620 = vmatprep.subr.mxu0 0.0
      %3621 = vmatpush1.msra.mxu0 0.0
      %3622 = vmatprep.subr.mxu0 0.0
      %3623 = vmatpush1.msra.mxu0 0.0
      %3624 = vmatprep.subr.mxu0 0.0
      %3625 = vmatpush1.msra.mxu0 0.0
      %3626 = vmatprep.subr.mxu0 0.0
      %3627 = vmatpush1.msra.mxu0 0.0
      %3628 = vmatprep.subr.mxu0 0.0
      %3629 = vmatpush1.msra.mxu0 0.0
      %3630 = vmatprep.subr.mxu0 0.0
      %3631 = vmatpush1.msra.mxu0 0.0
      %3632 = vmatprep.subr.mxu0 0.0
      %3633 = vmatpush1.msra.mxu0 0.0
      %3634 = vmatprep.subr.mxu0 0.0
      %3635 = vmatpush1.msra.mxu0 0.0
      %3636 = vmatprep.subr.mxu0 0.0
      %3637 = vmatpush1.msra.mxu0 0.0
      %3638 = vmatprep.subr.mxu0 0.0
      %3639 = vmatpush1.msra.mxu0 0.0
      %3640 = vmatprep.subr.mxu0 0.0
      %3641 = vmatpush1.msra.mxu0 0.0
      %3642 = vmatprep.subr.mxu0 0.0
      %3643 = vmatpush1.msra.mxu0 0.0
      %3644 = vmatprep.subr.mxu0 0.0
      %3645 = vmatpush1.msra.mxu0 0.0
      %3646 = vmatprep.subr.mxu0 0.0
      %3647 = vmatpush1.msra.mxu0 0.0
      %3648 = vmatprep.subr.mxu0 0.0
      %3649 = vmatpush1.msra.mxu0 0.0
      %3650 = vmatprep.subr.mxu0 0.0
      %3651 = vmatpush1.msra.mxu0 0.0
      %3652 = vmatprep.subr.mxu0 0.0
      %3653 = vmatpush1.msra.mxu0 0.0
      %3654 = vmatprep.subr.mxu0 0.0
      %3655 = vmatpush1.msra.mxu0 0.0
      %3656 = vmatprep.subr.mxu0 0.0
      %3657 = vmatpush1.msra.mxu0 0.0
      %3658 = vmatprep.subr.mxu0 0.0
      %3659 = vmatpush1.msra.mxu0 0.0
      %3660 = vmatprep.subr.mxu0 0.0
      %3661 = vmatpush1.msra.mxu0 0.0
      %3662 = vmatprep.subr.mxu0 0.0
      %3663 = vmatpush1.msra.mxu0 0.0
      %3664 = vmatprep.subr.mxu0 0.0
      %3665 = vmatpush1.msra.mxu0 0.0
      %3666 = vmatprep.subr.mxu0 0.0
      %3667 = vmatpush1.msra.mxu0 0.0
      %3668 = vmatprep.subr.mxu0 0.0
      %3669 = vmatpush1.msra.mxu0 0.0
      %3670 = vmatprep.subr.mxu0 0.0
      %3671 = vmatpush1.msra.mxu0 0.0
      %3672 = vmatprep.mubr.f32.mxu0 0.0
      %3673 = vmatmul.mubr.f32.gmra.mrb[0].mxu0 %v3606
      %v3674 = vpop.f32.mrb[0].mxu0
      %v3675 = vadd.f32 0.0, %v3674
      %v3676 = vpop.f32.mrb[0].mxu0
      %3677 = vdwg.mxu0
      %3678 = vrot.lane.b32.xlu0 %v378, 104
      %v3679 = vpop.permute.xlu0 %3678
      %v3682 = vsel %vm1621, %v3203, 0
      %3684 = vmatprep.subr.mxu0 0.0
      %3685 = vmatpush1.msra.mxu0 %v3679
      %3686 = vmatprep.subr.mxu0 0.0
      %3687 = vmatpush1.msra.mxu0 0.0
      %3688 = vmatprep.subr.mxu0 0.0
      %3689 = vmatpush1.msra.mxu0 0.0
      %3690 = vmatprep.subr.mxu0 0.0
      %3691 = vmatpush1.msra.mxu0 0.0
      %3692 = vmatprep.subr.mxu0 0.0
      %3693 = vmatpush1.msra.mxu0 0.0
      %3694 = vmatprep.subr.mxu0 0.0
      %3695 = vmatpush1.msra.mxu0 0.0
      %3696 = vmatprep.subr.mxu0 0.0
      %3697 = vmatpush1.msra.mxu0 0.0
      %3698 = vmatprep.subr.mxu0 0.0
      %3699 = vmatpush1.msra.mxu0 0.0
      %3700 = vmatprep.subr.mxu0 0.0
      %3701 = vmatpush1.msra.mxu0 0.0
      %3702 = vmatprep.subr.mxu0 0.0
      %3703 = vmatpush1.msra.mxu0 0.0
      %3704 = vmatprep.subr.mxu0 0.0
      %3705 = vmatpush1.msra.mxu0 0.0
      %3706 = vmatprep.subr.mxu0 0.0
      %3707 = vmatpush1.msra.mxu0 0.0
      %3708 = vmatprep.subr.mxu0 0.0
      %3709 = vmatpush1.msra.mxu0 0.0
      %3710 = vmatprep.subr.mxu0 0.0
      %3711 = vmatpush1.msra.mxu0 0.0
      %3712 = vmatprep.subr.mxu0 0.0
      %3713 = vmatpush1.msra.mxu0 0.0
      %3714 = vmatprep.subr.mxu0 0.0
      %3715 = vmatpush1.msra.mxu0 0.0
      %3716 = vmatprep.subr.mxu0 0.0
      %3717 = vmatpush1.msra.mxu0 0.0
      %3718 = vmatprep.subr.mxu0 0.0
      %3719 = vmatpush1.msra.mxu0 0.0
      %3720 = vmatprep.subr.mxu0 0.0
      %3721 = vmatpush1.msra.mxu0 0.0
      %3722 = vmatprep.subr.mxu0 0.0
      %3723 = vmatpush1.msra.mxu0 0.0
      %3724 = vmatprep.subr.mxu0 0.0
      %3725 = vmatpush1.msra.mxu0 0.0
      %3726 = vmatprep.subr.mxu0 0.0
      %3727 = vmatpush1.msra.mxu0 0.0
      %3728 = vmatprep.subr.mxu0 0.0
      %3729 = vmatpush1.msra.mxu0 0.0
      %3730 = vmatprep.subr.mxu0 0.0
      %3731 = vmatpush1.msra.mxu0 0.0
      %3732 = vmatprep.subr.mxu0 0.0
      %3733 = vmatpush1.msra.mxu0 0.0
      %3734 = vmatprep.subr.mxu0 0.0
      %3735 = vmatpush1.msra.mxu0 0.0
      %3736 = vmatprep.subr.mxu0 0.0
      %3737 = vmatpush1.msra.mxu0 0.0
      %3738 = vmatprep.subr.mxu0 0.0
      %3739 = vmatpush1.msra.mxu0 0.0
      %3740 = vmatprep.subr.mxu0 0.0
      %3741 = vmatpush1.msra.mxu0 0.0
      %3742 = vmatprep.subr.mxu0 0.0
      %3743 = vmatpush1.msra.mxu0 0.0
      %3744 = vmatprep.subr.mxu0 0.0
      %3745 = vmatpush1.msra.mxu0 0.0
      %3746 = vmatprep.subr.mxu0 0.0
      %3747 = vmatpush1.msra.mxu0 0.0
      %3748 = vmatprep.mubr.f32.mxu0 0.0
      %3749 = vmatmul.mubr.f32.gmra.mrb[0].mxu0 %v3682
      %v3750 = vpop.f32.mrb[0].mxu0
      %v3751 = vadd.f32 0.0, %v3750
      %v3752 = vpop.f32.mrb[0].mxu0
      %3753 = vdwg.mxu0
      %3754 = vrot.lane.b32.xlu0 %v379, 104
      %v3755 = vpop.permute.xlu0 %3754
      %v3758 = vsel %vm1621, %v3205, 0
      %3760 = vmatprep.subr.mxu0 0.0
      %3761 = vmatpush1.msra.mxu0 %v3755
      %3762 = vmatprep.subr.mxu0 0.0
      %3763 = vmatpush1.msra.mxu0 0.0
      %3764 = vmatprep.subr.mxu0 0.0
      %3765 = vmatpush1.msra.mxu0 0.0
      %3766 = vmatprep.subr.mxu0 0.0
      %3767 = vmatpush1.msra.mxu0 0.0
      %3768 = vmatprep.subr.mxu0 0.0
      %3769 = vmatpush1.msra.mxu0 0.0
      %3770 = vmatprep.subr.mxu0 0.0
      %3771 = vmatpush1.msra.mxu0 0.0
      %3772 = vmatprep.subr.mxu0 0.0
      %3773 = vmatpush1.msra.mxu0 0.0
      %3774 = vmatprep.subr.mxu0 0.0
      %3775 = vmatpush1.msra.mxu0 0.0
      %3776 = vmatprep.subr.mxu0 0.0
      %3777 = vmatpush1.msra.mxu0 0.0
      %3778 = vmatprep.subr.mxu0 0.0
      %3779 = vmatpush1.msra.mxu0 0.0
      %3780 = vmatprep.subr.mxu0 0.0
      %3781 = vmatpush1.msra.mxu0 0.0
      %3782 = vmatprep.subr.mxu0 0.0
      %3783 = vmatpush1.msra.mxu0 0.0
      %3784 = vmatprep.subr.mxu0 0.0
      %3785 = vmatpush1.msra.mxu0 0.0
      %3786 = vmatprep.subr.mxu0 0.0
      %3787 = vmatpush1.msra.mxu0 0.0
      %3788 = vmatprep.subr.mxu0 0.0
      %3789 = vmatpush1.msra.mxu0 0.0
      %3790 = vmatprep.subr.mxu0 0.0
      %3791 = vmatpush1.msra.mxu0 0.0
      %3792 = vmatprep.subr.mxu0 0.0
      %3793 = vmatpush1.msra.mxu0 0.0
      %3794 = vmatprep.subr.mxu0 0.0
      %3795 = vmatpush1.msra.mxu0 0.0
      %3796 = vmatprep.subr.mxu0 0.0
      %3797 = vmatpush1.msra.mxu0 0.0
      %3798 = vmatprep.subr.mxu0 0.0
      %3799 = vmatpush1.msra.mxu0 0.0
      %3800 = vmatprep.subr.mxu0 0.0
      %3801 = vmatpush1.msra.mxu0 0.0
      %3802 = vmatprep.subr.mxu0 0.0
      %3803 = vmatpush1.msra.mxu0 0.0
      %3804 = vmatprep.subr.mxu0 0.0
      %3805 = vmatpush1.msra.mxu0 0.0
      %3806 = vmatprep.subr.mxu0 0.0
      %3807 = vmatpush1.msra.mxu0 0.0
      %3808 = vmatprep.subr.mxu0 0.0
      %3809 = vmatpush1.msra.mxu0 0.0
      %3810 = vmatprep.subr.mxu0 0.0
      %3811 = vmatpush1.msra.mxu0 0.0
      %3812 = vmatprep.subr.mxu0 0.0
      %3813 = vmatpush1.msra.mxu0 0.0
      %3814 = vmatprep.subr.mxu0 0.0
      %3815 = vmatpush1.msra.mxu0 0.0
      %3816 = vmatprep.subr.mxu0 0.0
      %3817 = vmatpush1.msra.mxu0 0.0
      %3818 = vmatprep.subr.mxu0 0.0
      %3819 = vmatpush1.msra.mxu0 0.0
      %3820 = vmatprep.subr.mxu0 0.0
      %3821 = vmatpush1.msra.mxu0 0.0
      %3822 = vmatprep.subr.mxu0 0.0
      %3823 = vmatpush1.msra.mxu0 0.0
      %3824 = vmatprep.mubr.f32.mxu0 0.0
      %3825 = vmatmul.mubr.f32.gmra.mrb[0].mxu0 %v3758
      %v3826 = vpop.f32.mrb[0].mxu0
      %v3827 = vadd.f32 0.0, %v3826
      %v3828 = vpop.f32.mrb[0].mxu0
      %3829 = vdwg.mxu0
      %3830 = vrot.lane.b32.xlu0 %v380, 104
      %v3831 = vpop.permute.xlu0 %3830
      %v3834 = vsel %vm1621, %v3207, 0
      %3836 = vmatprep.subr.mxu0 0.0
      %3837 = vmatpush1.msra.mxu0 %v3831
      %3838 = vmatprep.subr.mxu0 0.0
      %3839 = vmatpush1.msra.mxu0 0.0
      %3840 = vmatprep.subr.mxu0 0.0
      %3841 = vmatpush1.msra.mxu0 0.0
      %3842 = vmatprep.subr.mxu0 0.0
      %3843 = vmatpush1.msra.mxu0 0.0
      %3844 = vmatprep.subr.mxu0 0.0
      %3845 = vmatpush1.msra.mxu0 0.0
      %3846 = vmatprep.subr.mxu0 0.0
      %3847 = vmatpush1.msra.mxu0 0.0
      %3848 = vmatprep.subr.mxu0 0.0
      %3849 = vmatpush1.msra.mxu0 0.0
      %3850 = vmatprep.subr.mxu0 0.0
      %3851 = vmatpush1.msra.mxu0 0.0
      %3852 = vmatprep.subr.mxu0 0.0
      %3853 = vmatpush1.msra.mxu0 0.0
      %3854 = vmatprep.subr.mxu0 0.0
      %3855 = vmatpush1.msra.mxu0 0.0
      %3856 = vmatprep.subr.mxu0 0.0
      %3857 = vmatpush1.msra.mxu0 0.0
      %3858 = vmatprep.subr.mxu0 0.0
      %3859 = vmatpush1.msra.mxu0 0.0
      %3860 = vmatprep.subr.mxu0 0.0
      %3861 = vmatpush1.msra.mxu0 0.0
      %3862 = vmatprep.subr.mxu0 0.0
      %3863 = vmatpush1.msra.mxu0 0.0
      %3864 = vmatprep.subr.mxu0 0.0
      %3865 = vmatpush1.msra.mxu0 0.0
      %3866 = vmatprep.subr.mxu0 0.0
      %3867 = vmatpush1.msra.mxu0 0.0
      %3868 = vmatprep.subr.mxu0 0.0
      %3869 = vmatpush1.msra.mxu0 0.0
      %3870 = vmatprep.subr.mxu0 0.0
      %3871 = vmatpush1.msra.mxu0 0.0
      %3872 = vmatprep.subr.mxu0 0.0
      %3873 = vmatpush1.msra.mxu0 0.0
      %3874 = vmatprep.subr.mxu0 0.0
      %3875 = vmatpush1.msra.mxu0 0.0
      %3876 = vmatprep.subr.mxu0 0.0
      %3877 = vmatpush1.msra.mxu0 0.0
      %3878 = vmatprep.subr.mxu0 0.0
      %3879 = vmatpush1.msra.mxu0 0.0
      %3880 = vmatprep.subr.mxu0 0.0
      %3881 = vmatpush1.msra.mxu0 0.0
      %3882 = vmatprep.subr.mxu0 0.0
      %3883 = vmatpush1.msra.mxu0 0.0
      %3884 = vmatprep.subr.mxu0 0.0
      %3885 = vmatpush1.msra.mxu0 0.0
      %3886 = vmatprep.subr.mxu0 0.0
      %3887 = vmatpush1.msra.mxu0 0.0
      %3888 = vmatprep.subr.mxu0 0.0
      %3889 = vmatpush1.msra.mxu0 0.0
      %3890 = vmatprep.subr.mxu0 0.0
      %3891 = vmatpush1.msra.mxu0 0.0
      %3892 = vmatprep.subr.mxu0 0.0
      %3893 = vmatpush1.msra.mxu0 0.0
      %3894 = vmatprep.subr.mxu0 0.0
      %3895 = vmatpush1.msra.mxu0 0.0
      %3896 = vmatprep.subr.mxu0 0.0
      %3897 = vmatpush1.msra.mxu0 0.0
      %3898 = vmatprep.subr.mxu0 0.0
      %3899 = vmatpush1.msra.mxu0 0.0
      %3900 = vmatprep.mubr.f32.mxu0 0.0
      %3901 = vmatmul.mubr.f32.gmra.mrb[0].mxu0 %v3834
      %v3902 = vpop.f32.mrb[0].mxu0
      %v3903 = vadd.f32 0.0, %v3902
      %v3904 = vpop.f32.mrb[0].mxu0
      %3905 = vdwg.mxu0
      %3906 = vrot.lane.b32.xlu0 %v381, 104
      %v3907 = vpop.permute.xlu0 %3906
      %v3910 = vsel %vm1621, %v3209, 0
      %3912 = vmatprep.subr.mxu0 0.0
      %3913 = vmatpush1.msra.mxu0 %v3907
      %3914 = vmatprep.subr.mxu0 0.0
      %3915 = vmatpush1.msra.mxu0 0.0
      %3916 = vmatprep.subr.mxu0 0.0
      %3917 = vmatpush1.msra.mxu0 0.0
      %3918 = vmatprep.subr.mxu0 0.0
      %3919 = vmatpush1.msra.mxu0 0.0
      %3920 = vmatprep.subr.mxu0 0.0
      %3921 = vmatpush1.msra.mxu0 0.0
      %3922 = vmatprep.subr.mxu0 0.0
      %3923 = vmatpush1.msra.mxu0 0.0
      %3924 = vmatprep.subr.mxu0 0.0
      %3925 = vmatpush1.msra.mxu0 0.0
      %3926 = vmatprep.subr.mxu0 0.0
      %3927 = vmatpush1.msra.mxu0 0.0
      %3928 = vmatprep.subr.mxu0 0.0
      %3929 = vmatpush1.msra.mxu0 0.0
      %3930 = vmatprep.subr.mxu0 0.0
      %3931 = vmatpush1.msra.mxu0 0.0
      %3932 = vmatprep.subr.mxu0 0.0
      %3933 = vmatpush1.msra.mxu0 0.0
      %3934 = vmatprep.subr.mxu0 0.0
      %3935 = vmatpush1.msra.mxu0 0.0
      %3936 = vmatprep.subr.mxu0 0.0
      %3937 = vmatpush1.msra.mxu0 0.0
      %3938 = vmatprep.subr.mxu0 0.0
      %3939 = vmatpush1.msra.mxu0 0.0
      %3940 = vmatprep.subr.mxu0 0.0
      %3941 = vmatpush1.msra.mxu0 0.0
      %3942 = vmatprep.subr.mxu0 0.0
      %3943 = vmatpush1.msra.mxu0 0.0
      %3944 = vmatprep.subr.mxu0 0.0
      %3945 = vmatpush1.msra.mxu0 0.0
      %3946 = vmatprep.subr.mxu0 0.0
      %3947 = vmatpush1.msra.mxu0 0.0
      %3948 = vmatprep.subr.mxu0 0.0
      %3949 = vmatpush1.msra.mxu0 0.0
      %3950 = vmatprep.subr.mxu0 0.0
      %3951 = vmatpush1.msra.mxu0 0.0
      %3952 = vmatprep.subr.mxu0 0.0
      %3953 = vmatpush1.msra.mxu0 0.0
      %3954 = vmatprep.subr.mxu0 0.0
      %3955 = vmatpush1.msra.mxu0 0.0
      %3956 = vmatprep.subr.mxu0 0.0
      %3957 = vmatpush1.msra.mxu0 0.0
      %3958 = vmatprep.subr.mxu0 0.0
      %3959 = vmatpush1.msra.mxu0 0.0
      %3960 = vmatprep.subr.mxu0 0.0
      %3961 = vmatpush1.msra.mxu0 0.0
      %3962 = vmatprep.subr.mxu0 0.0
      %3963 = vmatpush1.msra.mxu0 0.0
      %3964 = vmatprep.subr.mxu0 0.0
      %3965 = vmatpush1.msra.mxu0 0.0
      %3966 = vmatprep.subr.mxu0 0.0
      %3967 = vmatpush1.msra.mxu0 0.0
      %3968 = vmatprep.subr.mxu0 0.0
      %3969 = vmatpush1.msra.mxu0 0.0
      %3970 = vmatprep.subr.mxu0 0.0
      %3971 = vmatpush1.msra.mxu0 0.0
      %3972 = vmatprep.subr.mxu0 0.0
      %3973 = vmatpush1.msra.mxu0 0.0
      %3974 = vmatprep.subr.mxu0 0.0
      %3975 = vmatpush1.msra.mxu0 0.0
      %3976 = vmatprep.mubr.f32.mxu0 0.0
      %3977 = vmatmul.mubr.f32.gmra.mrb[0].mxu0 %v3910
      %v3978 = vpop.f32.mrb[0].mxu0
      %v3979 = vadd.f32 0.0, %v3978
      %v3980 = vpop.f32.mrb[0].mxu0
      %3981 = vdwg.mxu0
      %3982 = vrot.lane.b32.xlu0 %v382, 104
      %v3983 = vpop.permute.xlu0 %3982
      %v3986 = vsel %vm1621, %v3211, 0
      %3988 = vmatprep.subr.mxu0 0.0
      %3989 = vmatpush1.msra.mxu0 %v3983
      %3990 = vmatprep.subr.mxu0 0.0
      %3991 = vmatpush1.msra.mxu0 0.0
      %3992 = vmatprep.subr.mxu0 0.0
      %3993 = vmatpush1.msra.mxu0 0.0
      %3994 = vmatprep.subr.mxu0 0.0
      %3995 = vmatpush1.msra.mxu0 0.0
      %3996 = vmatprep.subr.mxu0 0.0
      %3997 = vmatpush1.msra.mxu0 0.0
      %3998 = vmatprep.subr.mxu0 0.0
      %3999 = vmatpush1.msra.mxu0 0.0
      %4000 = vmatprep.subr.mxu0 0.0
      %4001 = vmatpush1.msra.mxu0 0.0
      %4002 = vmatprep.subr.mxu0 0.0
      %4003 = vmatpush1.msra.mxu0 0.0
      %4004 = vmatprep.subr.mxu0 0.0
      %4005 = vmatpush1.msra.mxu0 0.0
      %4006 = vmatprep.subr.mxu0 0.0
      %4007 = vmatpush1.msra.mxu0 0.0
      %4008 = vmatprep.subr.mxu0 0.0
      %4009 = vmatpush1.msra.mxu0 0.0
      %4010 = vmatprep.subr.mxu0 0.0
      %4011 = vmatpush1.msra.mxu0 0.0
      %4012 = vmatprep.subr.mxu0 0.0
      %4013 = vmatpush1.msra.mxu0 0.0
      %4014 = vmatprep.subr.mxu0 0.0
      %4015 = vmatpush1.msra.mxu0 0.0
      %4016 = vmatprep.subr.mxu0 0.0
      %4017 = vmatpush1.msra.mxu0 0.0
      %4018 = vmatprep.subr.mxu0 0.0
      %4019 = vmatpush1.msra.mxu0 0.0
      %4020 = vmatprep.subr.mxu0 0.0
      %4021 = vmatpush1.msra.mxu0 0.0
      %4022 = vmatprep.subr.mxu0 0.0
      %4023 = vmatpush1.msra.mxu0 0.0
      %4024 = vmatprep.subr.mxu0 0.0
      %4025 = vmatpush1.msra.mxu0 0.0
      %4026 = vmatprep.subr.mxu0 0.0
      %4027 = vmatpush1.msra.mxu0 0.0
      %4028 = vmatprep.subr.mxu0 0.0
      %4029 = vmatpush1.msra.mxu0 0.0
      %4030 = vmatprep.subr.mxu0 0.0
      %4031 = vmatpush1.msra.mxu0 0.0
      %4032 = vmatprep.subr.mxu0 0.0
      %4033 = vmatpush1.msra.mxu0 0.0
      %4034 = vmatprep.subr.mxu0 0.0
      %4035 = vmatpush1.msra.mxu0 0.0
      %4036 = vmatprep.subr.mxu0 0.0
      %4037 = vmatpush1.msra.mxu0 0.0
      %4038 = vmatprep.subr.mxu0 0.0
      %4039 = vmatpush1.msra.mxu0 0.0
      %4040 = vmatprep.subr.mxu0 0.0
      %4041 = vmatpush1.msra.mxu0 0.0
      %4042 = vmatprep.subr.mxu0 0.0
      %4043 = vmatpush1.msra.mxu0 0.0
      %4044 = vmatprep.subr.mxu0 0.0
      %4045 = vmatpush1.msra.mxu0 0.0
      %4046 = vmatprep.subr.mxu0 0.0
      %4047 = vmatpush1.msra.mxu0 0.0
      %4048 = vmatprep.subr.mxu0 0.0
      %4049 = vmatpush1.msra.mxu0 0.0
      %4050 = vmatprep.subr.mxu0 0.0
      %4051 = vmatpush1.msra.mxu0 0.0
      %4052 = vmatprep.mubr.f32.mxu0 0.0
      %4053 = vmatmul.mubr.f32.gmra.mrb[0].mxu0 %v3986
      %v4054 = vpop.f32.mrb[0].mxu0
      %v4055 = vadd.f32 0.0, %v4054
      %v4056 = vpop.f32.mrb[0].mxu0
      %4057 = vdwg.mxu0
      %4058 = vrot.lane.b32.xlu0 %v383, 104
      %v4059 = vpop.permute.xlu0 %4058
      %v4062 = vsel %vm1621, %v3213, 0
      %4064 = vmatprep.subr.mxu0 0.0
      %4065 = vmatpush1.msra.mxu0 %v4059
      %4066 = vmatprep.subr.mxu0 0.0
      %4067 = vmatpush1.msra.mxu0 0.0
      %4068 = vmatprep.subr.mxu0 0.0
      %4069 = vmatpush1.msra.mxu0 0.0
      %4070 = vmatprep.subr.mxu0 0.0
      %4071 = vmatpush1.msra.mxu0 0.0
      %4072 = vmatprep.subr.mxu0 0.0
      %4073 = vmatpush1.msra.mxu0 0.0
      %4074 = vmatprep.subr.mxu0 0.0
      %4075 = vmatpush1.msra.mxu0 0.0
      %4076 = vmatprep.subr.mxu0 0.0
      %4077 = vmatpush1.msra.mxu0 0.0
      %4078 = vmatprep.subr.mxu0 0.0
      %4079 = vmatpush1.msra.mxu0 0.0
      %4080 = vmatprep.subr.mxu0 0.0
      %4081 = vmatpush1.msra.mxu0 0.0
      %4082 = vmatprep.subr.mxu0 0.0
      %4083 = vmatpush1.msra.mxu0 0.0
      %4084 = vmatprep.subr.mxu0 0.0
      %4085 = vmatpush1.msra.mxu0 0.0
      %4086 = vmatprep.subr.mxu0 0.0
      %4087 = vmatpush1.msra.mxu0 0.0
      %4088 = vmatprep.subr.mxu0 0.0
      %4089 = vmatpush1.msra.mxu0 0.0
      %4090 = vmatprep.subr.mxu0 0.0
      %4091 = vmatpush1.msra.mxu0 0.0
      %4092 = vmatprep.subr.mxu0 0.0
      %4093 = vmatpush1.msra.mxu0 0.0
      %4094 = vmatprep.subr.mxu0 0.0
      %4095 = vmatpush1.msra.mxu0 0.0
      %4096 = vmatprep.subr.mxu0 0.0
      %4097 = vmatpush1.msra.mxu0 0.0
      %4098 = vmatprep.subr.mxu0 0.0
      %4099 = vmatpush1.msra.mxu0 0.0
      %4100 = vmatprep.subr.mxu0 0.0
      %4101 = vmatpush1.msra.mxu0 0.0
      %4102 = vmatprep.subr.mxu0 0.0
      %4103 = vmatpush1.msra.mxu0 0.0
      %4104 = vmatprep.subr.mxu0 0.0
      %4105 = vmatpush1.msra.mxu0 0.0
      %4106 = vmatprep.subr.mxu0 0.0
      %4107 = vmatpush1.msra.mxu0 0.0
      %4108 = vmatprep.subr.mxu0 0.0
      %4109 = vmatpush1.msra.mxu0 0.0
      %4110 = vmatprep.subr.mxu0 0.0
      %4111 = vmatpush1.msra.mxu0 0.0
      %4112 = vmatprep.subr.mxu0 0.0
      %4113 = vmatpush1.msra.mxu0 0.0
      %4114 = vmatprep.subr.mxu0 0.0
      %4115 = vmatpush1.msra.mxu0 0.0
      %4116 = vmatprep.subr.mxu0 0.0
      %4117 = vmatpush1.msra.mxu0 0.0
      %4118 = vmatprep.subr.mxu0 0.0
      %4119 = vmatpush1.msra.mxu0 0.0
      %4120 = vmatprep.subr.mxu0 0.0
      %4121 = vmatpush1.msra.mxu0 0.0
      %4122 = vmatprep.subr.mxu0 0.0
      %4123 = vmatpush1.msra.mxu0 0.0
      %4124 = vmatprep.subr.mxu0 0.0
      %4125 = vmatpush1.msra.mxu0 0.0
      %4126 = vmatprep.subr.mxu0 0.0
      %4127 = vmatpush1.msra.mxu0 0.0
      %4128 = vmatprep.mubr.f32.mxu0 0.0
      %4129 = vmatmul.mubr.f32.gmra.mrb[0].mxu0 %v4062
      %v4130 = vpop.f32.mrb[0].mxu0
      %v4131 = vadd.f32 0.0, %v4130
      %v4132 = vpop.f32.mrb[0].mxu0
      %4133 = vdwg.mxu0
      %4134 = vrot.lane.b32.xlu0 %v384, 104
      %v4135 = vpop.permute.xlu0 %4134
      %v4138 = vsel %vm1621, %v3215, 0
      %4140 = vmatprep.subr.mxu0 0.0
      %4141 = vmatpush1.msra.mxu0 %v4135
      %4142 = vmatprep.subr.mxu0 0.0
      %4143 = vmatpush1.msra.mxu0 0.0
      %4144 = vmatprep.subr.mxu0 0.0
      %4145 = vmatpush1.msra.mxu0 0.0
      %4146 = vmatprep.subr.mxu0 0.0
      %4147 = vmatpush1.msra.mxu0 0.0
      %4148 = vmatprep.subr.mxu0 0.0
      %4149 = vmatpush1.msra.mxu0 0.0
      %4150 = vmatprep.subr.mxu0 0.0
      %4151 = vmatpush1.msra.mxu0 0.0
      %4152 = vmatprep.subr.mxu0 0.0
      %4153 = vmatpush1.msra.mxu0 0.0
      %4154 = vmatprep.subr.mxu0 0.0
      %4155 = vmatpush1.msra.mxu0 0.0
      %4156 = vmatprep.subr.mxu0 0.0
      %4157 = vmatpush1.msra.mxu0 0.0
      %4158 = vmatprep.subr.mxu0 0.0
      %4159 = vmatpush1.msra.mxu0 0.0
      %4160 = vmatprep.subr.mxu0 0.0
      %4161 = vmatpush1.msra.mxu0 0.0
      %4162 = vmatprep.subr.mxu0 0.0
      %4163 = vmatpush1.msra.mxu0 0.0
      %4164 = vmatprep.subr.mxu0 0.0
      %4165 = vmatpush1.msra.mxu0 0.0
      %4166 = vmatprep.subr.mxu0 0.0
      %4167 = vmatpush1.msra.mxu0 0.0
      %4168 = vmatprep.subr.mxu0 0.0
      %4169 = vmatpush1.msra.mxu0 0.0
      %4170 = vmatprep.subr.mxu0 0.0
      %4171 = vmatpush1.msra.mxu0 0.0
      %4172 = vmatprep.subr.mxu0 0.0
      %4173 = vmatpush1.msra.mxu0 0.0
      %4174 = vmatprep.subr.mxu0 0.0
      %4175 = vmatpush1.msra.mxu0 0.0
      %4176 = vmatprep.subr.mxu0 0.0
      %4177 = vmatpush1.msra.mxu0 0.0
      %4178 = vmatprep.subr.mxu0 0.0
      %4179 = vmatpush1.msra.mxu0 0.0
      %4180 = vmatprep.subr.mxu0 0.0
      %4181 = vmatpush1.msra.mxu0 0.0
      %4182 = vmatprep.subr.mxu0 0.0
      %4183 = vmatpush1.msra.mxu0 0.0
      %4184 = vmatprep.subr.mxu0 0.0
      %4185 = vmatpush1.msra.mxu0 0.0
      %4186 = vmatprep.subr.mxu0 0.0
      %4187 = vmatpush1.msra.mxu0 0.0
      %4188 = vmatprep.subr.mxu0 0.0
      %4189 = vmatpush1.msra.mxu0 0.0
      %4190 = vmatprep.subr.mxu0 0.0
      %4191 = vmatpush1.msra.mxu0 0.0
      %4192 = vmatprep.subr.mxu0 0.0
      %4193 = vmatpush1.msra.mxu0 0.0
      %4194 = vmatprep.subr.mxu0 0.0
      %4195 = vmatpush1.msra.mxu0 0.0
      %4196 = vmatprep.subr.mxu0 0.0
      %4197 = vmatpush1.msra.mxu0 0.0
      %4198 = vmatprep.subr.mxu0 0.0
      %4199 = vmatpush1.msra.mxu0 0.0
      %4200 = vmatprep.subr.mxu0 0.0
      %4201 = vmatpush1.msra.mxu0 0.0
      %4202 = vmatprep.subr.mxu0 0.0
      %4203 = vmatpush1.msra.mxu0 0.0
      %4204 = vmatprep.mubr.f32.mxu0 0.0
      %4205 = vmatmul.mubr.f32.gmra.mrb[0].mxu0 %v4138
      %v4206 = vpop.f32.mrb[0].mxu0
      %v4207 = vadd.f32 0.0, %v4206
      %v4208 = vpop.f32.mrb[0].mxu0
      %4209 = vdwg.mxu0
      %4210 = vrot.lane.b32.xlu0 %v385, 104
      %v4211 = vpop.permute.xlu0 %4210
      %v4214 = vsel %vm1621, %v3217, 0
      %4216 = vmatprep.subr.mxu0 0.0
      %4217 = vmatpush1.msra.mxu0 %v4211
      %4218 = vmatprep.subr.mxu0 0.0
      %4219 = vmatpush1.msra.mxu0 0.0
      %4220 = vmatprep.subr.mxu0 0.0
      %4221 = vmatpush1.msra.mxu0 0.0
      %4222 = vmatprep.subr.mxu0 0.0
      %4223 = vmatpush1.msra.mxu0 0.0
      %4224 = vmatprep.subr.mxu0 0.0
      %4225 = vmatpush1.msra.mxu0 0.0
      %4226 = vmatprep.subr.mxu0 0.0
      %4227 = vmatpush1.msra.mxu0 0.0
      %4228 = vmatprep.subr.mxu0 0.0
      %4229 = vmatpush1.msra.mxu0 0.0
      %4230 = vmatprep.subr.mxu0 0.0
      %4231 = vmatpush1.msra.mxu0 0.0
      %4232 = vmatprep.subr.mxu0 0.0
      %4233 = vmatpush1.msra.mxu0 0.0
      %4234 = vmatprep.subr.mxu0 0.0
      %4235 = vmatpush1.msra.mxu0 0.0
      %4236 = vmatprep.subr.mxu0 0.0
      %4237 = vmatpush1.msra.mxu0 0.0
      %4238 = vmatprep.subr.mxu0 0.0
      %4239 = vmatpush1.msra.mxu0 0.0
      %4240 = vmatprep.subr.mxu0 0.0
      %4241 = vmatpush1.msra.mxu0 0.0
      %4242 = vmatprep.subr.mxu0 0.0
      %4243 = vmatpush1.msra.mxu0 0.0
      %4244 = vmatprep.subr.mxu0 0.0
      %4245 = vmatpush1.msra.mxu0 0.0
      %4246 = vmatprep.subr.mxu0 0.0
      %4247 = vmatpush1.msra.mxu0 0.0
      %4248 = vmatprep.subr.mxu0 0.0
      %4249 = vmatpush1.msra.mxu0 0.0
      %4250 = vmatprep.subr.mxu0 0.0
      %4251 = vmatpush1.msra.mxu0 0.0
      %4252 = vmatprep.subr.mxu0 0.0
      %4253 = vmatpush1.msra.mxu0 0.0
      %4254 = vmatprep.subr.mxu0 0.0
      %4255 = vmatpush1.msra.mxu0 0.0
      %4256 = vmatprep.subr.mxu0 0.0
      %4257 = vmatpush1.msra.mxu0 0.0
      %4258 = vmatprep.subr.mxu0 0.0
      %4259 = vmatpush1.msra.mxu0 0.0
      %4260 = vmatprep.subr.mxu0 0.0
      %4261 = vmatpush1.msra.mxu0 0.0
      %4262 = vmatprep.subr.mxu0 0.0
      %4263 = vmatpush1.msra.mxu0 0.0
      %4264 = vmatprep.subr.mxu0 0.0
      %4265 = vmatpush1.msra.mxu0 0.0
      %4266 = vmatprep.subr.mxu0 0.0
      %4267 = vmatpush1.msra.mxu0 0.0
      %4268 = vmatprep.subr.mxu0 0.0
      %4269 = vmatpush1.msra.mxu0 0.0
      %4270 = vmatprep.subr.mxu0 0.0
      %4271 = vmatpush1.msra.mxu0 0.0
      %4272 = vmatprep.subr.mxu0 0.0
      %4273 = vmatpush1.msra.mxu0 0.0
      %4274 = vmatprep.subr.mxu0 0.0
      %4275 = vmatpush1.msra.mxu0 0.0
      %4276 = vmatprep.subr.mxu0 0.0
      %4277 = vmatpush1.msra.mxu0 0.0
      %4278 = vmatprep.subr.mxu0 0.0
      %4279 = vmatpush1.msra.mxu0 0.0
      %4280 = vmatprep.mubr.f32.mxu0 0.0
      %4281 = vmatmul.mubr.f32.gmra.mrb[0].mxu0 %v4214
      %v4282 = vpop.f32.mrb[0].mxu0
      %v4283 = vadd.f32 0.0, %v4282
      %v4284 = vpop.f32.mrb[0].mxu0
      %4285 = vdwg.mxu0
      %4286 = vrot.lane.b32.xlu0 %v386, 104
      %v4287 = vpop.permute.xlu0 %4286
      %v4290 = vsel %vm1621, %v3219, 0
      %4292 = vmatprep.subr.mxu0 0.0
      %4293 = vmatpush1.msra.mxu0 %v4287
      %4294 = vmatprep.subr.mxu0 0.0
      %4295 = vmatpush1.msra.mxu0 0.0
      %4296 = vmatprep.subr.mxu0 0.0
      %4297 = vmatpush1.msra.mxu0 0.0
      %4298 = vmatprep.subr.mxu0 0.0
      %4299 = vmatpush1.msra.mxu0 0.0
      %4300 = vmatprep.subr.mxu0 0.0
      %4301 = vmatpush1.msra.mxu0 0.0
      %4302 = vmatprep.subr.mxu0 0.0
      %4303 = vmatpush1.msra.mxu0 0.0
      %4304 = vmatprep.subr.mxu0 0.0
      %4305 = vmatpush1.msra.mxu0 0.0
      %4306 = vmatprep.subr.mxu0 0.0
      %4307 = vmatpush1.msra.mxu0 0.0
      %4308 = vmatprep.subr.mxu0 0.0
      %4309 = vmatpush1.msra.mxu0 0.0
      %4310 = vmatprep.subr.mxu0 0.0
      %4311 = vmatpush1.msra.mxu0 0.0
      %4312 = vmatprep.subr.mxu0 0.0
      %4313 = vmatpush1.msra.mxu0 0.0
      %4314 = vmatprep.subr.mxu0 0.0
      %4315 = vmatpush1.msra.mxu0 0.0
      %4316 = vmatprep.subr.mxu0 0.0
      %4317 = vmatpush1.msra.mxu0 0.0
      %4318 = vmatprep.subr.mxu0 0.0
      %4319 = vmatpush1.msra.mxu0 0.0
      %4320 = vmatprep.subr.mxu0 0.0
      %4321 = vmatpush1.msra.mxu0 0.0
      %4322 = vmatprep.subr.mxu0 0.0
      %4323 = vmatpush1.msra.mxu0 0.0
      %4324 = vmatprep.subr.mxu0 0.0
      %4325 = vmatpush1.msra.mxu0 0.0
      %4326 = vmatprep.subr.mxu0 0.0
      %4327 = vmatpush1.msra.mxu0 0.0
      %4328 = vmatprep.subr.mxu0 0.0
      %4329 = vmatpush1.msra.mxu0 0.0
      %4330 = vmatprep.subr.mxu0 0.0
      %4331 = vmatpush1.msra.mxu0 0.0
      %4332 = vmatprep.subr.mxu0 0.0
      %4333 = vmatpush1.msra.mxu0 0.0
      %4334 = vmatprep.subr.mxu0 0.0
      %4335 = vmatpush1.msra.mxu0 0.0
      %4336 = vmatprep.subr.mxu0 0.0
      %4337 = vmatpush1.msra.mxu0 0.0
      %4338 = vmatprep.subr.mxu0 0.0
      %4339 = vmatpush1.msra.mxu0 0.0
      %4340 = vmatprep.subr.mxu0 0.0
      %4341 = vmatpush1.msra.mxu0 0.0
      %4342 = vmatprep.subr.mxu0 0.0
      %4343 = vmatpush1.msra.mxu0 0.0
      %4344 = vmatprep.subr.mxu0 0.0
      %4345 = vmatpush1.msra.mxu0 0.0
      %4346 = vmatprep.subr.mxu0 0.0
      %4347 = vmatpush1.msra.mxu0 0.0
      %4348 = vmatprep.subr.mxu0 0.0
      %4349 = vmatpush1.msra.mxu0 0.0
      %4350 = vmatprep.subr.mxu0 0.0
      %4351 = vmatpush1.msra.mxu0 0.0
      %4352 = vmatprep.subr.mxu0 0.0
      %4353 = vmatpush1.msra.mxu0 0.0
      %4354 = vmatprep.subr.mxu0 0.0
      %4355 = vmatpush1.msra.mxu0 0.0
      %4356 = vmatprep.mubr.f32.mxu0 0.0
      %4357 = vmatmul.mubr.f32.gmra.mrb[0].mxu0 %v4290
      %v4358 = vpop.f32.mrb[0].mxu0
      %v4359 = vadd.f32 0.0, %v4358
      %v4360 = vpop.f32.mrb[0].mxu0
      %4361 = vdwg.mxu0
      %4362 = vrot.lane.b32.xlu0 %v387, 104
      %v4363 = vpop.permute.xlu0 %4362
      %v4366 = vsel %vm1621, %v3221, 0
      %4368 = vmatprep.subr.mxu0 0.0
      %4369 = vmatpush1.msra.mxu0 %v4363
      %4370 = vmatprep.subr.mxu0 0.0
      %4371 = vmatpush1.msra.mxu0 0.0
      %4372 = vmatprep.subr.mxu0 0.0
      %4373 = vmatpush1.msra.mxu0 0.0
      %4374 = vmatprep.subr.mxu0 0.0
      %4375 = vmatpush1.msra.mxu0 0.0
      %4376 = vmatprep.subr.mxu0 0.0
      %4377 = vmatpush1.msra.mxu0 0.0
      %4378 = vmatprep.subr.mxu0 0.0
      %4379 = vmatpush1.msra.mxu0 0.0
      %4380 = vmatprep.subr.mxu0 0.0
      %4381 = vmatpush1.msra.mxu0 0.0
      %4382 = vmatprep.subr.mxu0 0.0
      %4383 = vmatpush1.msra.mxu0 0.0
      %4384 = vmatprep.subr.mxu0 0.0
      %4385 = vmatpush1.msra.mxu0 0.0
      %4386 = vmatprep.subr.mxu0 0.0
      %4387 = vmatpush1.msra.mxu0 0.0
      %4388 = vmatprep.subr.mxu0 0.0
      %4389 = vmatpush1.msra.mxu0 0.0
      %4390 = vmatprep.subr.mxu0 0.0
      %4391 = vmatpush1.msra.mxu0 0.0
      %4392 = vmatprep.subr.mxu0 0.0
      %4393 = vmatpush1.msra.mxu0 0.0
      %4394 = vmatprep.subr.mxu0 0.0
      %4395 = vmatpush1.msra.mxu0 0.0
      %4396 = vmatprep.subr.mxu0 0.0
      %4397 = vmatpush1.msra.mxu0 0.0
      %4398 = vmatprep.subr.mxu0 0.0
      %4399 = vmatpush1.msra.mxu0 0.0
      %4400 = vmatprep.subr.mxu0 0.0
      %4401 = vmatpush1.msra.mxu0 0.0
      %4402 = vmatprep.subr.mxu0 0.0
      %4403 = vmatpush1.msra.mxu0 0.0
      %4404 = vmatprep.subr.mxu0 0.0
      %4405 = vmatpush1.msra.mxu0 0.0
      %4406 = vmatprep.subr.mxu0 0.0
      %4407 = vmatpush1.msra.mxu0 0.0
      %4408 = vmatprep.subr.mxu0 0.0
      %4409 = vmatpush1.msra.mxu0 0.0
      %4410 = vmatprep.subr.mxu0 0.0
      %4411 = vmatpush1.msra.mxu0 0.0
      %4412 = vmatprep.subr.mxu0 0.0
      %4413 = vmatpush1.msra.mxu0 0.0
      %4414 = vmatprep.subr.mxu0 0.0
      %4415 = vmatpush1.msra.mxu0 0.0
      %4416 = vmatprep.subr.mxu0 0.0
      %4417 = vmatpush1.msra.mxu0 0.0
      %4418 = vmatprep.subr.mxu0 0.0
      %4419 = vmatpush1.msra.mxu0 0.0
      %4420 = vmatprep.subr.mxu0 0.0
      %4421 = vmatpush1.msra.mxu0 0.0
      %4422 = vmatprep.subr.mxu0 0.0
      %4423 = vmatpush1.msra.mxu0 0.0
      %4424 = vmatprep.subr.mxu0 0.0
      %4425 = vmatpush1.msra.mxu0 0.0
      %4426 = vmatprep.subr.mxu0 0.0
      %4427 = vmatpush1.msra.mxu0 0.0
      %4428 = vmatprep.subr.mxu0 0.0
      %4429 = vmatpush1.msra.mxu0 0.0
      %4430 = vmatprep.subr.mxu0 0.0
      %4431 = vmatpush1.msra.mxu0 0.0
      %4432 = vmatprep.mubr.f32.mxu0 0.0
      %4433 = vmatmul.mubr.f32.gmra.mrb[0].mxu0 %v4366
      %v4434 = vpop.f32.mrb[0].mxu0
      %v4435 = vadd.f32 0.0, %v4434
      %v4436 = vpop.f32.mrb[0].mxu0
      %4437 = vdwg.mxu0
      %4438 = vrot.lane.b32.xlu0 %v372, 112
      %v4439 = vpop.permute.xlu0 %4438
      %v4442 = vsel %vm1621, %v1767, 0
      %4444 = vmatprep.subr.mxu0 0.0
      %4445 = vmatpush1.msra.mxu0 %v4439
      %4446 = vmatprep.subr.mxu0 0.0
      %4447 = vmatpush1.msra.mxu0 0.0
      %4448 = vmatprep.subr.mxu0 0.0
      %4449 = vmatpush1.msra.mxu0 0.0
      %4450 = vmatprep.subr.mxu0 0.0
      %4451 = vmatpush1.msra.mxu0 0.0
      %4452 = vmatprep.subr.mxu0 0.0
      %4453 = vmatpush1.msra.mxu0 0.0
      %4454 = vmatprep.subr.mxu0 0.0
      %4455 = vmatpush1.msra.mxu0 0.0
      %4456 = vmatprep.subr.mxu0 0.0
      %4457 = vmatpush1.msra.mxu0 0.0
      %4458 = vmatprep.subr.mxu0 0.0
      %4459 = vmatpush1.msra.mxu0 0.0
      %4460 = vmatprep.subr.mxu0 0.0
      %4461 = vmatpush1.msra.mxu0 0.0
      %4462 = vmatprep.subr.mxu0 0.0
      %4463 = vmatpush1.msra.mxu0 0.0
      %4464 = vmatprep.subr.mxu0 0.0
      %4465 = vmatpush1.msra.mxu0 0.0
      %4466 = vmatprep.subr.mxu0 0.0
      %4467 = vmatpush1.msra.mxu0 0.0
      %4468 = vmatprep.subr.mxu0 0.0
      %4469 = vmatpush1.msra.mxu0 0.0
      %4470 = vmatprep.subr.mxu0 0.0
      %4471 = vmatpush1.msra.mxu0 0.0
      %4472 = vmatprep.subr.mxu0 0.0
      %4473 = vmatpush1.msra.mxu0 0.0
      %4474 = vmatprep.subr.mxu0 0.0
      %4475 = vmatpush1.msra.mxu0 0.0
      %4476 = vmatprep.subr.mxu0 0.0
      %4477 = vmatpush1.msra.mxu0 0.0
      %4478 = vmatprep.subr.mxu0 0.0
      %4479 = vmatpush1.msra.mxu0 0.0
      %4480 = vmatprep.subr.mxu0 0.0
      %4481 = vmatpush1.msra.mxu0 0.0
      %4482 = vmatprep.subr.mxu0 0.0
      %4483 = vmatpush1.msra.mxu0 0.0
      %4484 = vmatprep.subr.mxu0 0.0
      %4485 = vmatpush1.msra.mxu0 0.0
      %4486 = vmatprep.subr.mxu0 0.0
      %4487 = vmatpush1.msra.mxu0 0.0
      %4488 = vmatprep.subr.mxu0 0.0
      %4489 = vmatpush1.msra.mxu0 0.0
      %4490 = vmatprep.subr.mxu0 0.0
      %4491 = vmatpush1.msra.mxu0 0.0
      %4492 = vmatprep.subr.mxu0 0.0
      %4493 = vmatpush1.msra.mxu0 0.0
      %4494 = vmatprep.subr.mxu0 0.0
      %4495 = vmatpush1.msra.mxu0 0.0
      %4496 = vmatprep.subr.mxu0 0.0
      %4497 = vmatpush1.msra.mxu0 0.0
      %4498 = vmatprep.subr.mxu0 0.0
      %4499 = vmatpush1.msra.mxu0 0.0
      %4500 = vmatprep.subr.mxu0 0.0
      %4501 = vmatpush1.msra.mxu0 0.0
      %4502 = vmatprep.subr.mxu0 0.0
      %4503 = vmatpush1.msra.mxu0 0.0
      %4504 = vmatprep.subr.mxu0 0.0
      %4505 = vmatpush1.msra.mxu0 0.0
      %4506 = vmatprep.subr.mxu0 0.0
      %4507 = vmatpush1.msra.mxu0 0.0
      %4508 = vmatprep.mubr.f32.mxu0 0.0
      %4509 = vmatmul.mubr.f32.gmra.mrb[0].mxu0 %v4442
      %v4510 = vpop.f32.mrb[0].mxu0
      %v4511 = vadd.f32 %v3295, %v4510
      %v4512 = vpop.f32.mrb[0].mxu0
      %4513 = vdwg.mxu0
      %4514 = vrot.lane.b32.xlu0 %v373, 112
      %v4515 = vpop.permute.xlu0 %4514
      %v4518 = vsel %vm1621, %v1769, 0
      %4520 = vmatprep.subr.mxu0 0.0
      %4521 = vmatpush1.msra.mxu0 %v4515
      %4522 = vmatprep.subr.mxu0 0.0
      %4523 = vmatpush1.msra.mxu0 0.0
      %4524 = vmatprep.subr.mxu0 0.0
      %4525 = vmatpush1.msra.mxu0 0.0
      %4526 = vmatprep.subr.mxu0 0.0
      %4527 = vmatpush1.msra.mxu0 0.0
      %4528 = vmatprep.subr.mxu0 0.0
      %4529 = vmatpush1.msra.mxu0 0.0
      %4530 = vmatprep.subr.mxu0 0.0
      %4531 = vmatpush1.msra.mxu0 0.0
      %4532 = vmatprep.subr.mxu0 0.0
      %4533 = vmatpush1.msra.mxu0 0.0
      %4534 = vmatprep.subr.mxu0 0.0
      %4535 = vmatpush1.msra.mxu0 0.0
      %4536 = vmatprep.subr.mxu0 0.0
      %4537 = vmatpush1.msra.mxu0 0.0
      %4538 = vmatprep.subr.mxu0 0.0
      %4539 = vmatpush1.msra.mxu0 0.0
      %4540 = vmatprep.subr.mxu0 0.0
      %4541 = vmatpush1.msra.mxu0 0.0
      %4542 = vmatprep.subr.mxu0 0.0
      %4543 = vmatpush1.msra.mxu0 0.0
      %4544 = vmatprep.subr.mxu0 0.0
      %4545 = vmatpush1.msra.mxu0 0.0
      %4546 = vmatprep.subr.mxu0 0.0
      %4547 = vmatpush1.msra.mxu0 0.0
      %4548 = vmatprep.subr.mxu0 0.0
      %4549 = vmatpush1.msra.mxu0 0.0
      %4550 = vmatprep.subr.mxu0 0.0
      %4551 = vmatpush1.msra.mxu0 0.0
      %4552 = vmatprep.subr.mxu0 0.0
      %4553 = vmatpush1.msra.mxu0 0.0
      %4554 = vmatprep.subr.mxu0 0.0
      %4555 = vmatpush1.msra.mxu0 0.0
      %4556 = vmatprep.subr.mxu0 0.0
      %4557 = vmatpush1.msra.mxu0 0.0
      %4558 = vmatprep.subr.mxu0 0.0
      %4559 = vmatpush1.msra.mxu0 0.0
      %4560 = vmatprep.subr.mxu0 0.0
      %4561 = vmatpush1.msra.mxu0 0.0
      %4562 = vmatprep.subr.mxu0 0.0
      %4563 = vmatpush1.msra.mxu0 0.0
      %4564 = vmatprep.subr.mxu0 0.0
      %4565 = vmatpush1.msra.mxu0 0.0
      %4566 = vmatprep.subr.mxu0 0.0
      %4567 = vmatpush1.msra.mxu0 0.0
      %4568 = vmatprep.subr.mxu0 0.0
      %4569 = vmatpush1.msra.mxu0 0.0
      %4570 = vmatprep.subr.mxu0 0.0
      %4571 = vmatpush1.msra.mxu0 0.0
      %4572 = vmatprep.subr.mxu0 0.0
      %4573 = vmatpush1.msra.mxu0 0.0
      %4574 = vmatprep.subr.mxu0 0.0
      %4575 = vmatpush1.msra.mxu0 0.0
      %4576 = vmatprep.subr.mxu0 0.0
      %4577 = vmatpush1.msra.mxu0 0.0
      %4578 = vmatprep.subr.mxu0 0.0
      %4579 = vmatpush1.msra.mxu0 0.0
      %4580 = vmatprep.subr.mxu0 0.0
      %4581 = vmatpush1.msra.mxu0 0.0
      %4582 = vmatprep.subr.mxu0 0.0
      %4583 = vmatpush1.msra.mxu0 0.0
      %4584 = vmatprep.mubr.f32.mxu0 0.0
      %4585 = vmatmul.mubr.f32.gmra.mrb[0].mxu0 %v4518
      %v4586 = vpop.f32.mrb[0].mxu0
      %v4587 = vadd.f32 %v3371, %v4586
      %v4588 = vpop.f32.mrb[0].mxu0
      %4589 = vdwg.mxu0
      %4590 = vrot.lane.b32.xlu0 %v374, 112
      %v4591 = vpop.permute.xlu0 %4590
      %v4594 = vsel %vm1621, %v1771, 0
      %4596 = vmatprep.subr.mxu0 0.0
      %4597 = vmatpush1.msra.mxu0 %v4591
      %4598 = vmatprep.subr.mxu0 0.0
      %4599 = vmatpush1.msra.mxu0 0.0
      %4600 = vmatprep.subr.mxu0 0.0
      %4601 = vmatpush1.msra.mxu0 0.0
      %4602 = vmatprep.subr.mxu0 0.0
      %4603 = vmatpush1.msra.mxu0 0.0
      %4604 = vmatprep.subr.mxu0 0.0
      %4605 = vmatpush1.msra.mxu0 0.0
      %4606 = vmatprep.subr.mxu0 0.0
      %4607 = vmatpush1.msra.mxu0 0.0
      %4608 = vmatprep.subr.mxu0 0.0
      %4609 = vmatpush1.msra.mxu0 0.0
      %4610 = vmatprep.subr.mxu0 0.0
      %4611 = vmatpush1.msra.mxu0 0.0
      %4612 = vmatprep.subr.mxu0 0.0
      %4613 = vmatpush1.msra.mxu0 0.0
      %4614 = vmatprep.subr.mxu0 0.0
      %4615 = vmatpush1.msra.mxu0 0.0
      %4616 = vmatprep.subr.mxu0 0.0
      %4617 = vmatpush1.msra.mxu0 0.0
      %4618 = vmatprep.subr.mxu0 0.0
      %4619 = vmatpush1.msra.mxu0 0.0
      %4620 = vmatprep.subr.mxu0 0.0
      %4621 = vmatpush1.msra.mxu0 0.0
      %4622 = vmatprep.subr.mxu0 0.0
      %4623 = vmatpush1.msra.mxu0 0.0
      %4624 = vmatprep.subr.mxu0 0.0
      %4625 = vmatpush1.msra.mxu0 0.0
      %4626 = vmatprep.subr.mxu0 0.0
      %4627 = vmatpush1.msra.mxu0 0.0
      %4628 = vmatprep.subr.mxu0 0.0
      %4629 = vmatpush1.msra.mxu0 0.0
      %4630 = vmatprep.subr.mxu0 0.0
      %4631 = vmatpush1.msra.mxu0 0.0
      %4632 = vmatprep.subr.mxu0 0.0
      %4633 = vmatpush1.msra.mxu0 0.0
      %4634 = vmatprep.subr.mxu0 0.0
      %4635 = vmatpush1.msra.mxu0 0.0
      %4636 = vmatprep.subr.mxu0 0.0
      %4637 = vmatpush1.msra.mxu0 0.0
      %4638 = vmatprep.subr.mxu0 0.0
      %4639 = vmatpush1.msra.mxu0 0.0
      %4640 = vmatprep.subr.mxu0 0.0
      %4641 = vmatpush1.msra.mxu0 0.0
      %4642 = vmatprep.subr.mxu0 0.0
      %4643 = vmatpush1.msra.mxu0 0.0
      %4644 = vmatprep.subr.mxu0 0.0
      %4645 = vmatpush1.msra.mxu0 0.0
      %4646 = vmatprep.subr.mxu0 0.0
      %4647 = vmatpush1.msra.mxu0 0.0
      %4648 = vmatprep.subr.mxu0 0.0
      %4649 = vmatpush1.msra.mxu0 0.0
      %4650 = vmatprep.subr.mxu0 0.0
      %4651 = vmatpush1.msra.mxu0 0.0
      %4652 = vmatprep.subr.mxu0 0.0
      %4653 = vmatpush1.msra.mxu0 0.0
      %4654 = vmatprep.subr.mxu0 0.0
      %4655 = vmatpush1.msra.mxu0 0.0
      %4656 = vmatprep.subr.mxu0 0.0
      %4657 = vmatpush1.msra.mxu0 0.0
      %4658 = vmatprep.subr.mxu0 0.0
      %4659 = vmatpush1.msra.mxu0 0.0
      %4660 = vmatprep.mubr.f32.mxu0 0.0
      %4661 = vmatmul.mubr.f32.gmra.mrb[0].mxu0 %v4594
      %v4662 = vpop.f32.mrb[0].mxu0
      %v4663 = vadd.f32 %v3447, %v4662
      %v4664 = vpop.f32.mrb[0].mxu0
      %4665 = vdwg.mxu0
      %4666 = vrot.lane.b32.xlu0 %v375, 112
      %v4667 = vpop.permute.xlu0 %4666
      %v4670 = vsel %vm1621, %v1773, 0
      %4672 = vmatprep.subr.mxu0 0.0
      %4673 = vmatpush1.msra.mxu0 %v4667
      %4674 = vmatprep.subr.mxu0 0.0
      %4675 = vmatpush1.msra.mxu0 0.0
      %4676 = vmatprep.subr.mxu0 0.0
      %4677 = vmatpush1.msra.mxu0 0.0
      %4678 = vmatprep.subr.mxu0 0.0
      %4679 = vmatpush1.msra.mxu0 0.0
      %4680 = vmatprep.subr.mxu0 0.0
      %4681 = vmatpush1.msra.mxu0 0.0
      %4682 = vmatprep.subr.mxu0 0.0
      %4683 = vmatpush1.msra.mxu0 0.0
      %4684 = vmatprep.subr.mxu0 0.0
      %4685 = vmatpush1.msra.mxu0 0.0
      %4686 = vmatprep.subr.mxu0 0.0
      %4687 = vmatpush1.msra.mxu0 0.0
      %4688 = vmatprep.subr.mxu0 0.0
      %4689 = vmatpush1.msra.mxu0 0.0
      %4690 = vmatprep.subr.mxu0 0.0
      %4691 = vmatpush1.msra.mxu0 0.0
      %4692 = vmatprep.subr.mxu0 0.0
      %4693 = vmatpush1.msra.mxu0 0.0
      %4694 = vmatprep.subr.mxu0 0.0
      %4695 = vmatpush1.msra.mxu0 0.0
      %4696 = vmatprep.subr.mxu0 0.0
      %4697 = vmatpush1.msra.mxu0 0.0
      %4698 = vmatprep.subr.mxu0 0.0
      %4699 = vmatpush1.msra.mxu0 0.0
      %4700 = vmatprep.subr.mxu0 0.0
      %4701 = vmatpush1.msra.mxu0 0.0
      %4702 = vmatprep.subr.mxu0 0.0
      %4703 = vmatpush1.msra.mxu0 0.0
      %4704 = vmatprep.subr.mxu0 0.0
      %4705 = vmatpush1.msra.mxu0 0.0
      %4706 = vmatprep.subr.mxu0 0.0
      %4707 = vmatpush1.msra.mxu0 0.0
      %4708 = vmatprep.subr.mxu0 0.0
      %4709 = vmatpush1.msra.mxu0 0.0
      %4710 = vmatprep.subr.mxu0 0.0
      %4711 = vmatpush1.msra.mxu0 0.0
      %4712 = vmatprep.subr.mxu0 0.0
      %4713 = vmatpush1.msra.mxu0 0.0
      %4714 = vmatprep.subr.mxu0 0.0
      %4715 = vmatpush1.msra.mxu0 0.0
      %4716 = vmatprep.subr.mxu0 0.0
      %4717 = vmatpush1.msra.mxu0 0.0
      %4718 = vmatprep.subr.mxu0 0.0
      %4719 = vmatpush1.msra.mxu0 0.0
      %4720 = vmatprep.subr.mxu0 0.0
      %4721 = vmatpush1.msra.mxu0 0.0
      %4722 = vmatprep.subr.mxu0 0.0
      %4723 = vmatpush1.msra.mxu0 0.0
      %4724 = vmatprep.subr.mxu0 0.0
      %4725 = vmatpush1.msra.mxu0 0.0
      %4726 = vmatprep.subr.mxu0 0.0
      %4727 = vmatpush1.msra.mxu0 0.0
      %4728 = vmatprep.subr.mxu0 0.0
      %4729 = vmatpush1.msra.mxu0 0.0
      %4730 = vmatprep.subr.mxu0 0.0
      %4731 = vmatpush1.msra.mxu0 0.0
      %4732 = vmatprep.subr.mxu0 0.0
      %4733 = vmatpush1.msra.mxu0 0.0
      %4734 = vmatprep.subr.mxu0 0.0
      %4735 = vmatpush1.msra.mxu0 0.0
      %4736 = vmatprep.mubr.f32.mxu0 0.0
      %4737 = vmatmul.mubr.f32.gmra.mrb[0].mxu0 %v4670
      %v4738 = vpop.f32.mrb[0].mxu0
      %v4739 = vadd.f32 %v3523, %v4738
      %v4740 = vpop.f32.mrb[0].mxu0
      %4741 = vdwg.mxu0
      %4742 = vrot.lane.b32.xlu0 %v376, 112
      %v4743 = vpop.permute.xlu0 %4742
      %v4746 = vsel %vm1621, %v1775, 0
      %4748 = vmatprep.subr.mxu0 0.0
      %4749 = vmatpush1.msra.mxu0 %v4743
      %4750 = vmatprep.subr.mxu0 0.0
      %4751 = vmatpush1.msra.mxu0 0.0
      %4752 = vmatprep.subr.mxu0 0.0
      %4753 = vmatpush1.msra.mxu0 0.0
      %4754 = vmatprep.subr.mxu0 0.0
      %4755 = vmatpush1.msra.mxu0 0.0
      %4756 = vmatprep.subr.mxu0 0.0
      %4757 = vmatpush1.msra.mxu0 0.0
      %4758 = vmatprep.subr.mxu0 0.0
      %4759 = vmatpush1.msra.mxu0 0.0
      %4760 = vmatprep.subr.mxu0 0.0
      %4761 = vmatpush1.msra.mxu0 0.0
      %4762 = vmatprep.subr.mxu0 0.0
      %4763 = vmatpush1.msra.mxu0 0.0
      %4764 = vmatprep.subr.mxu0 0.0
      %4765 = vmatpush1.msra.mxu0 0.0
      %4766 = vmatprep.subr.mxu0 0.0
      %4767 = vmatpush1.msra.mxu0 0.0
      %4768 = vmatprep.subr.mxu0 0.0
      %4769 = vmatpush1.msra.mxu0 0.0
      %4770 = vmatprep.subr.mxu0 0.0
      %4771 = vmatpush1.msra.mxu0 0.0
      %4772 = vmatprep.subr.mxu0 0.0
      %4773 = vmatpush1.msra.mxu0 0.0
      %4774 = vmatprep.subr.mxu0 0.0
      %4775 = vmatpush1.msra.mxu0 0.0
      %4776 = vmatprep.subr.mxu0 0.0
      %4777 = vmatpush1.msra.mxu0 0.0
      %4778 = vmatprep.subr.mxu0 0.0
      %4779 = vmatpush1.msra.mxu0 0.0
      %4780 = vmatprep.subr.mxu0 0.0
      %4781 = vmatpush1.msra.mxu0 0.0
      %4782 = vmatprep.subr.mxu0 0.0
      %4783 = vmatpush1.msra.mxu0 0.0
      %4784 = vmatprep.subr.mxu0 0.0
      %4785 = vmatpush1.msra.mxu0 0.0
      %4786 = vmatprep.subr.mxu0 0.0
      %4787 = vmatpush1.msra.mxu0 0.0
      %4788 = vmatprep.subr.mxu0 0.0
      %4789 = vmatpush1.msra.mxu0 0.0
      %4790 = vmatprep.subr.mxu0 0.0
      %4791 = vmatpush1.msra.mxu0 0.0
      %4792 = vmatprep.subr.mxu0 0.0
      %4793 = vmatpush1.msra.mxu0 0.0
      %4794 = vmatprep.subr.mxu0 0.0
      %4795 = vmatpush1.msra.mxu0 0.0
      %4796 = vmatprep.subr.mxu0 0.0
      %4797 = vmatpush1.msra.mxu0 0.0
      %4798 = vmatprep.subr.mxu0 0.0
      %4799 = vmatpush1.msra.mxu0 0.0
      %4800 = vmatprep.subr.mxu0 0.0
      %4801 = vmatpush1.msra.mxu0 0.0
      %4802 = vmatprep.subr.mxu0 0.0
      %4803 = vmatpush1.msra.mxu0 0.0
      %4804 = vmatprep.subr.mxu0 0.0
      %4805 = vmatpush1.msra.mxu0 0.0
      %4806 = vmatprep.subr.mxu0 0.0
      %4807 = vmatpush1.msra.mxu0 0.0
      %4808 = vmatprep.subr.mxu0 0.0
      %4809 = vmatpush1.msra.mxu0 0.0
      %4810 = vmatprep.subr.mxu0 0.0
      %4811 = vmatpush1.msra.mxu0 0.0
      %4812 = vmatprep.mubr.f32.mxu0 0.0
      %4813 = vmatmul.mubr.f32.gmra.mrb[0].mxu0 %v4746
      %v4814 = vpop.f32.mrb[0].mxu0
      %v4815 = vadd.f32 %v3599, %v4814
      %v4816 = vpop.f32.mrb[0].mxu0
      %4817 = vdwg.mxu0
      %4818 = vrot.lane.b32.xlu0 %v377, 112
      %v4819 = vpop.permute.xlu0 %4818
      %v4822 = vsel %vm1621, %v1777, 0
      %4824 = vmatprep.subr.mxu0 0.0
      %4825 = vmatpush1.msra.mxu0 %v4819
      %4826 = vmatprep.subr.mxu0 0.0
      %4827 = vmatpush1.msra.mxu0 0.0
      %4828 = vmatprep.subr.mxu0 0.0
      %4829 = vmatpush1.msra.mxu0 0.0
      %4830 = vmatprep.subr.mxu0 0.0
      %4831 = vmatpush1.msra.mxu0 0.0
      %4832 = vmatprep.subr.mxu0 0.0
      %4833 = vmatpush1.msra.mxu0 0.0
      %4834 = vmatprep.subr.mxu0 0.0
      %4835 = vmatpush1.msra.mxu0 0.0
      %4836 = vmatprep.subr.mxu0 0.0
      %4837 = vmatpush1.msra.mxu0 0.0
      %4838 = vmatprep.subr.mxu0 0.0
      %4839 = vmatpush1.msra.mxu0 0.0
      %4840 = vmatprep.subr.mxu0 0.0
      %4841 = vmatpush1.msra.mxu0 0.0
      %4842 = vmatprep.subr.mxu0 0.0
      %4843 = vmatpush1.msra.mxu0 0.0
      %4844 = vmatprep.subr.mxu0 0.0
      %4845 = vmatpush1.msra.mxu0 0.0
      %4846 = vmatprep.subr.mxu0 0.0
      %4847 = vmatpush1.msra.mxu0 0.0
      %4848 = vmatprep.subr.mxu0 0.0
      %4849 = vmatpush1.msra.mxu0 0.0
      %4850 = vmatprep.subr.mxu0 0.0
      %4851 = vmatpush1.msra.mxu0 0.0
      %4852 = vmatprep.subr.mxu0 0.0
      %4853 = vmatpush1.msra.mxu0 0.0
      %4854 = vmatprep.subr.mxu0 0.0
      %4855 = vmatpush1.msra.mxu0 0.0
      %4856 = vmatprep.subr.mxu0 0.0
      %4857 = vmatpush1.msra.mxu0 0.0
      %4858 = vmatprep.subr.mxu0 0.0
      %4859 = vmatpush1.msra.mxu0 0.0
      %4860 = vmatprep.subr.mxu0 0.0
      %4861 = vmatpush1.msra.mxu0 0.0
      %4862 = vmatprep.subr.mxu0 0.0
      %4863 = vmatpush1.msra.mxu0 0.0
      %4864 = vmatprep.subr.mxu0 0.0
      %4865 = vmatpush1.msra.mxu0 0.0
      %4866 = vmatprep.subr.mxu0 0.0
      %4867 = vmatpush1.msra.mxu0 0.0
      %4868 = vmatprep.subr.mxu0 0.0
      %4869 = vmatpush1.msra.mxu0 0.0
      %4870 = vmatprep.subr.mxu0 0.0
      %4871 = vmatpush1.msra.mxu0 0.0
      %4872 = vmatprep.subr.mxu0 0.0
      %4873 = vmatpush1.msra.mxu0 0.0
      %4874 = vmatprep.subr.mxu0 0.0
      %4875 = vmatpush1.msra.mxu0 0.0
      %4876 = vmatprep.subr.mxu0 0.0
      %4877 = vmatpush1.msra.mxu0 0.0
      %4878 = vmatprep.subr.mxu0 0.0
      %4879 = vmatpush1.msra.mxu0 0.0
      %4880 = vmatprep.subr.mxu0 0.0
      %4881 = vmatpush1.msra.mxu0 0.0
      %4882 = vmatprep.subr.mxu0 0.0
      %4883 = vmatpush1.msra.mxu0 0.0
      %4884 = vmatprep.subr.mxu0 0.0
      %4885 = vmatpush1.msra.mxu0 0.0
      %4886 = vmatprep.subr.mxu0 0.0
      %4887 = vmatpush1.msra.mxu0 0.0
      %4888 = vmatprep.mubr.f32.mxu0 0.0
      %4889 = vmatmul.mubr.f32.gmra.mrb[0].mxu0 %v4822
      %v4890 = vpop.f32.mrb[0].mxu0
      %v4891 = vadd.f32 %v3675, %v4890
      %v4892 = vpop.f32.mrb[0].mxu0
      %4893 = vdwg.mxu0
      %4894 = vrot.lane.b32.xlu0 %v378, 112
      %v4895 = vpop.permute.xlu0 %4894
      %v4898 = vsel %vm1621, %v1779, 0
      %4900 = vmatprep.subr.mxu0 0.0
      %4901 = vmatpush1.msra.mxu0 %v4895
      %4902 = vmatprep.subr.mxu0 0.0
      %4903 = vmatpush1.msra.mxu0 0.0
      %4904 = vmatprep.subr.mxu0 0.0
      %4905 = vmatpush1.msra.mxu0 0.0
      %4906 = vmatprep.subr.mxu0 0.0
      %4907 = vmatpush1.msra.mxu0 0.0
      %4908 = vmatprep.subr.mxu0 0.0
      %4909 = vmatpush1.msra.mxu0 0.0
      %4910 = vmatprep.subr.mxu0 0.0
      %4911 = vmatpush1.msra.mxu0 0.0
      %4912 = vmatprep.subr.mxu0 0.0
      %4913 = vmatpush1.msra.mxu0 0.0
      %4914 = vmatprep.subr.mxu0 0.0
      %4915 = vmatpush1.msra.mxu0 0.0
      %4916 = vmatprep.subr.mxu0 0.0
      %4917 = vmatpush1.msra.mxu0 0.0
      %4918 = vmatprep.subr.mxu0 0.0
      %4919 = vmatpush1.msra.mxu0 0.0
      %4920 = vmatprep.subr.mxu0 0.0
      %4921 = vmatpush1.msra.mxu0 0.0
      %4922 = vmatprep.subr.mxu0 0.0
      %4923 = vmatpush1.msra.mxu0 0.0
      %4924 = vmatprep.subr.mxu0 0.0
      %4925 = vmatpush1.msra.mxu0 0.0
      %4926 = vmatprep.subr.mxu0 0.0
      %4927 = vmatpush1.msra.mxu0 0.0
      %4928 = vmatprep.subr.mxu0 0.0
      %4929 = vmatpush1.msra.mxu0 0.0
      %4930 = vmatprep.subr.mxu0 0.0
      %4931 = vmatpush1.msra.mxu0 0.0
      %4932 = vmatprep.subr.mxu0 0.0
      %4933 = vmatpush1.msra.mxu0 0.0
      %4934 = vmatprep.subr.mxu0 0.0
      %4935 = vmatpush1.msra.mxu0 0.0
      %4936 = vmatprep.subr.mxu0 0.0
      %4937 = vmatpush1.msra.mxu0 0.0
      %4938 = vmatprep.subr.mxu0 0.0
      %4939 = vmatpush1.msra.mxu0 0.0
      %4940 = vmatprep.subr.mxu0 0.0
      %4941 = vmatpush1.msra.mxu0 0.0
      %4942 = vmatprep.subr.mxu0 0.0
      %4943 = vmatpush1.msra.mxu0 0.0
      %4944 = vmatprep.subr.mxu0 0.0
      %4945 = vmatpush1.msra.mxu0 0.0
      %4946 = vmatprep.subr.mxu0 0.0
      %4947 = vmatpush1.msra.mxu0 0.0
      %4948 = vmatprep.subr.mxu0 0.0
      %4949 = vmatpush1.msra.mxu0 0.0
      %4950 = vmatprep.subr.mxu0 0.0
      %4951 = vmatpush1.msra.mxu0 0.0
      %4952 = vmatprep.subr.mxu0 0.0
      %4953 = vmatpush1.msra.mxu0 0.0
      %4954 = vmatprep.subr.mxu0 0.0
      %4955 = vmatpush1.msra.mxu0 0.0
      %4956 = vmatprep.subr.mxu0 0.0
      %4957 = vmatpush1.msra.mxu0 0.0
      %4958 = vmatprep.subr.mxu0 0.0
      %4959 = vmatpush1.msra.mxu0 0.0
      %4960 = vmatprep.subr.mxu0 0.0
      %4961 = vmatpush1.msra.mxu0 0.0
      %4962 = vmatprep.subr.mxu0 0.0
      %4963 = vmatpush1.msra.mxu0 0.0
      %4964 = vmatprep.mubr.f32.mxu0 0.0
      %4965 = vmatmul.mubr.f32.gmra.mrb[0].mxu0 %v4898
      %v4966 = vpop.f32.mrb[0].mxu0
      %v4967 = vadd.f32 %v3751, %v4966
      %v4968 = vpop.f32.mrb[0].mxu0
      %4969 = vdwg.mxu0
      %4970 = vrot.lane.b32.xlu0 %v379, 112
      %v4971 = vpop.permute.xlu0 %4970
      %v4974 = vsel %vm1621, %v1781, 0
      %4976 = vmatprep.subr.mxu0 0.0
      %4977 = vmatpush1.msra.mxu0 %v4971
      %4978 = vmatprep.subr.mxu0 0.0
      %4979 = vmatpush1.msra.mxu0 0.0
      %4980 = vmatprep.subr.mxu0 0.0
      %4981 = vmatpush1.msra.mxu0 0.0
      %4982 = vmatprep.subr.mxu0 0.0
      %4983 = vmatpush1.msra.mxu0 0.0
      %4984 = vmatprep.subr.mxu0 0.0
      %4985 = vmatpush1.msra.mxu0 0.0
      %4986 = vmatprep.subr.mxu0 0.0
      %4987 = vmatpush1.msra.mxu0 0.0
      %4988 = vmatprep.subr.mxu0 0.0
      %4989 = vmatpush1.msra.mxu0 0.0
      %4990 = vmatprep.subr.mxu0 0.0
      %4991 = vmatpush1.msra.mxu0 0.0
      %4992 = vmatprep.subr.mxu0 0.0
      %4993 = vmatpush1.msra.mxu0 0.0
      %4994 = vmatprep.subr.mxu0 0.0
      %4995 = vmatpush1.msra.mxu0 0.0
      %4996 = vmatprep.subr.mxu0 0.0
      %4997 = vmatpush1.msra.mxu0 0.0
      %4998 = vmatprep.subr.mxu0 0.0
      %4999 = vmatpush1.msra.mxu0 0.0
      %5000 = vmatprep.subr.mxu0 0.0
      %5001 = vmatpush1.msra.mxu0 0.0
      %5002 = vmatprep.subr.mxu0 0.0
      %5003 = vmatpush1.msra.mxu0 0.0
      %5004 = vmatprep.subr.mxu0 0.0
      %5005 = vmatpush1.msra.mxu0 0.0
      %5006 = vmatprep.subr.mxu0 0.0
      %5007 = vmatpush1.msra.mxu0 0.0
      %5008 = vmatprep.subr.mxu0 0.0
      %5009 = vmatpush1.msra.mxu0 0.0
      %5010 = vmatprep.subr.mxu0 0.0
      %5011 = vmatpush1.msra.mxu0 0.0
      %5012 = vmatprep.subr.mxu0 0.0
      %5013 = vmatpush1.msra.mxu0 0.0
      %5014 = vmatprep.subr.mxu0 0.0
      %5015 = vmatpush1.msra.mxu0 0.0
      %5016 = vmatprep.subr.mxu0 0.0
      %5017 = vmatpush1.msra.mxu0 0.0
      %5018 = vmatprep.subr.mxu0 0.0
      %5019 = vmatpush1.msra.mxu0 0.0
      %5020 = vmatprep.subr.mxu0 0.0
      %5021 = vmatpush1.msra.mxu0 0.0
      %5022 = vmatprep.subr.mxu0 0.0
      %5023 = vmatpush1.msra.mxu0 0.0
      %5024 = vmatprep.subr.mxu0 0.0
      %5025 = vmatpush1.msra.mxu0 0.0
      %5026 = vmatprep.subr.mxu0 0.0
      %5027 = vmatpush1.msra.mxu0 0.0
      %5028 = vmatprep.subr.mxu0 0.0
      %5029 = vmatpush1.msra.mxu0 0.0
      %5030 = vmatprep.subr.mxu0 0.0
      %5031 = vmatpush1.msra.mxu0 0.0
      %5032 = vmatprep.subr.mxu0 0.0
      %5033 = vmatpush1.msra.mxu0 0.0
      %5034 = vmatprep.subr.mxu0 0.0
      %5035 = vmatpush1.msra.mxu0 0.0
      %5036 = vmatprep.subr.mxu0 0.0
      %5037 = vmatpush1.msra.mxu0 0.0
      %5038 = vmatprep.subr.mxu0 0.0
      %5039 = vmatpush1.msra.mxu0 0.0
      %5040 = vmatprep.mubr.f32.mxu0 0.0
      %5041 = vmatmul.mubr.f32.gmra.mrb[0].mxu0 %v4974
      %v5042 = vpop.f32.mrb[0].mxu0
      %v5043 = vadd.f32 %v3827, %v5042
      %v5044 = vpop.f32.mrb[0].mxu0
      %5045 = vdwg.mxu0
      %5046 = vrot.lane.b32.xlu0 %v380, 112
      %v5047 = vpop.permute.xlu0 %5046
      %v5050 = vsel %vm1621, %v1783, 0
      %5052 = vmatprep.subr.mxu0 0.0
      %5053 = vmatpush1.msra.mxu0 %v5047
      %5054 = vmatprep.subr.mxu0 0.0
      %5055 = vmatpush1.msra.mxu0 0.0
      %5056 = vmatprep.subr.mxu0 0.0
      %5057 = vmatpush1.msra.mxu0 0.0
      %5058 = vmatprep.subr.mxu0 0.0
      %5059 = vmatpush1.msra.mxu0 0.0
      %5060 = vmatprep.subr.mxu0 0.0
      %5061 = vmatpush1.msra.mxu0 0.0
      %5062 = vmatprep.subr.mxu0 0.0
      %5063 = vmatpush1.msra.mxu0 0.0
      %5064 = vmatprep.subr.mxu0 0.0
      %5065 = vmatpush1.msra.mxu0 0.0
      %5066 = vmatprep.subr.mxu0 0.0
      %5067 = vmatpush1.msra.mxu0 0.0
      %5068 = vmatprep.subr.mxu0 0.0
      %5069 = vmatpush1.msra.mxu0 0.0
      %5070 = vmatprep.subr.mxu0 0.0
      %5071 = vmatpush1.msra.mxu0 0.0
      %5072 = vmatprep.subr.mxu0 0.0
      %5073 = vmatpush1.msra.mxu0 0.0
      %5074 = vmatprep.subr.mxu0 0.0
      %5075 = vmatpush1.msra.mxu0 0.0
      %5076 = vmatprep.subr.mxu0 0.0
      %5077 = vmatpush1.msra.mxu0 0.0
      %5078 = vmatprep.subr.mxu0 0.0
      %5079 = vmatpush1.msra.mxu0 0.0
      %5080 = vmatprep.subr.mxu0 0.0
      %5081 = vmatpush1.msra.mxu0 0.0
      %5082 = vmatprep.subr.mxu0 0.0
      %5083 = vmatpush1.msra.mxu0 0.0
      %5084 = vmatprep.subr.mxu0 0.0
      %5085 = vmatpush1.msra.mxu0 0.0
      %5086 = vmatprep.subr.mxu0 0.0
      %5087 = vmatpush1.msra.mxu0 0.0
      %5088 = vmatprep.subr.mxu0 0.0
      %5089 = vmatpush1.msra.mxu0 0.0
      %5090 = vmatprep.subr.mxu0 0.0
      %5091 = vmatpush1.msra.mxu0 0.0
      %5092 = vmatprep.subr.mxu0 0.0
      %5093 = vmatpush1.msra.mxu0 0.0
      %5094 = vmatprep.subr.mxu0 0.0
      %5095 = vmatpush1.msra.mxu0 0.0
      %5096 = vmatprep.subr.mxu0 0.0
      %5097 = vmatpush1.msra.mxu0 0.0
      %5098 = vmatprep.subr.mxu0 0.0
      %5099 = vmatpush1.msra.mxu0 0.0
      %5100 = vmatprep.subr.mxu0 0.0
      %5101 = vmatpush1.msra.mxu0 0.0
      %5102 = vmatprep.subr.mxu0 0.0
      %5103 = vmatpush1.msra.mxu0 0.0
      %5104 = vmatprep.subr.mxu0 0.0
      %5105 = vmatpush1.msra.mxu0 0.0
      %5106 = vmatprep.subr.mxu0 0.0
      %5107 = vmatpush1.msra.mxu0 0.0
      %5108 = vmatprep.subr.mxu0 0.0
      %5109 = vmatpush1.msra.mxu0 0.0
      %5110 = vmatprep.subr.mxu0 0.0
      %5111 = vmatpush1.msra.mxu0 0.0
      %5112 = vmatprep.subr.mxu0 0.0
      %5113 = vmatpush1.msra.mxu0 0.0
      %5114 = vmatprep.subr.mxu0 0.0
      %5115 = vmatpush1.msra.mxu0 0.0
      %5116 = vmatprep.mubr.f32.mxu0 0.0
      %5117 = vmatmul.mubr.f32.gmra.mrb[0].mxu0 %v5050
      %v5118 = vpop.f32.mrb[0].mxu0
      %v5119 = vadd.f32 %v3903, %v5118
      %v5120 = vpop.f32.mrb[0].mxu0
      %5121 = vdwg.mxu0
      %5122 = vrot.lane.b32.xlu0 %v381, 112
      %v5123 = vpop.permute.xlu0 %5122
      %v5126 = vsel %vm1621, %v1785, 0
      %5128 = vmatprep.subr.mxu0 0.0
      %5129 = vmatpush1.msra.mxu0 %v5123
      %5130 = vmatprep.subr.mxu0 0.0
      %5131 = vmatpush1.msra.mxu0 0.0
      %5132 = vmatprep.subr.mxu0 0.0
      %5133 = vmatpush1.msra.mxu0 0.0
      %5134 = vmatprep.subr.mxu0 0.0
      %5135 = vmatpush1.msra.mxu0 0.0
      %5136 = vmatprep.subr.mxu0 0.0
      %5137 = vmatpush1.msra.mxu0 0.0
      %5138 = vmatprep.subr.mxu0 0.0
      %5139 = vmatpush1.msra.mxu0 0.0
      %5140 = vmatprep.subr.mxu0 0.0
      %5141 = vmatpush1.msra.mxu0 0.0
      %5142 = vmatprep.subr.mxu0 0.0
      %5143 = vmatpush1.msra.mxu0 0.0
      %5144 = vmatprep.subr.mxu0 0.0
      %5145 = vmatpush1.msra.mxu0 0.0
      %5146 = vmatprep.subr.mxu0 0.0
      %5147 = vmatpush1.msra.mxu0 0.0
      %5148 = vmatprep.subr.mxu0 0.0
      %5149 = vmatpush1.msra.mxu0 0.0
      %5150 = vmatprep.subr.mxu0 0.0
      %5151 = vmatpush1.msra.mxu0 0.0
      %5152 = vmatprep.subr.mxu0 0.0
      %5153 = vmatpush1.msra.mxu0 0.0
      %5154 = vmatprep.subr.mxu0 0.0
      %5155 = vmatpush1.msra.mxu0 0.0
      %5156 = vmatprep.subr.mxu0 0.0
      %5157 = vmatpush1.msra.mxu0 0.0
      %5158 = vmatprep.subr.mxu0 0.0
      %5159 = vmatpush1.msra.mxu0 0.0
      %5160 = vmatprep.subr.mxu0 0.0
      %5161 = vmatpush1.msra.mxu0 0.0
      %5162 = vmatprep.subr.mxu0 0.0
      %5163 = vmatpush1.msra.mxu0 0.0
      %5164 = vmatprep.subr.mxu0 0.0
      %5165 = vmatpush1.msra.mxu0 0.0
      %5166 = vmatprep.subr.mxu0 0.0
      %5167 = vmatpush1.msra.mxu0 0.0
      %5168 = vmatprep.subr.mxu0 0.0
      %5169 = vmatpush1.msra.mxu0 0.0
      %5170 = vmatprep.subr.mxu0 0.0
      %5171 = vmatpush1.msra.mxu0 0.0
      %5172 = vmatprep.subr.mxu0 0.0
      %5173 = vmatpush1.msra.mxu0 0.0
      %5174 = vmatprep.subr.mxu0 0.0
      %5175 = vmatpush1.msra.mxu0 0.0
      %5176 = vmatprep.subr.mxu0 0.0
      %5177 = vmatpush1.msra.mxu0 0.0
      %5178 = vmatprep.subr.mxu0 0.0
      %5179 = vmatpush1.msra.mxu0 0.0
      %5180 = vmatprep.subr.mxu0 0.0
      %5181 = vmatpush1.msra.mxu0 0.0
      %5182 = vmatprep.subr.mxu0 0.0
      %5183 = vmatpush1.msra.mxu0 0.0
      %5184 = vmatprep.subr.mxu0 0.0
      %5185 = vmatpush1.msra.mxu0 0.0
      %5186 = vmatprep.subr.mxu0 0.0
      %5187 = vmatpush1.msra.mxu0 0.0
      %5188 = vmatprep.subr.mxu0 0.0
      %5189 = vmatpush1.msra.mxu0 0.0
      %5190 = vmatprep.subr.mxu0 0.0
      %5191 = vmatpush1.msra.mxu0 0.0
      %5192 = vmatprep.mubr.f32.mxu0 0.0
      %5193 = vmatmul.mubr.f32.gmra.mrb[0].mxu0 %v5126
      %v5194 = vpop.f32.mrb[0].mxu0
      %v5195 = vadd.f32 %v3979, %v5194
      %v5196 = vpop.f32.mrb[0].mxu0
      %5197 = vdwg.mxu0
      %5198 = vrot.lane.b32.xlu0 %v382, 112
      %v5199 = vpop.permute.xlu0 %5198
      %v5202 = vsel %vm1621, %v1787, 0
      %5204 = vmatprep.subr.mxu0 0.0
      %5205 = vmatpush1.msra.mxu0 %v5199
      %5206 = vmatprep.subr.mxu0 0.0
      %5207 = vmatpush1.msra.mxu0 0.0
      %5208 = vmatprep.subr.mxu0 0.0
      %5209 = vmatpush1.msra.mxu0 0.0
      %5210 = vmatprep.subr.mxu0 0.0
      %5211 = vmatpush1.msra.mxu0 0.0
      %5212 = vmatprep.subr.mxu0 0.0
      %5213 = vmatpush1.msra.mxu0 0.0
      %5214 = vmatprep.subr.mxu0 0.0
      %5215 = vmatpush1.msra.mxu0 0.0
      %5216 = vmatprep.subr.mxu0 0.0
      %5217 = vmatpush1.msra.mxu0 0.0
      %5218 = vmatprep.subr.mxu0 0.0
      %5219 = vmatpush1.msra.mxu0 0.0
      %5220 = vmatprep.subr.mxu0 0.0
      %5221 = vmatpush1.msra.mxu0 0.0
      %5222 = vmatprep.subr.mxu0 0.0
      %5223 = vmatpush1.msra.mxu0 0.0
      %5224 = vmatprep.subr.mxu0 0.0
      %5225 = vmatpush1.msra.mxu0 0.0
      %5226 = vmatprep.subr.mxu0 0.0
      %5227 = vmatpush1.msra.mxu0 0.0
      %5228 = vmatprep.subr.mxu0 0.0
      %5229 = vmatpush1.msra.mxu0 0.0
      %5230 = vmatprep.subr.mxu0 0.0
      %5231 = vmatpush1.msra.mxu0 0.0
      %5232 = vmatprep.subr.mxu0 0.0
      %5233 = vmatpush1.msra.mxu0 0.0
      %5234 = vmatprep.subr.mxu0 0.0
      %5235 = vmatpush1.msra.mxu0 0.0
      %5236 = vmatprep.subr.mxu0 0.0
      %5237 = vmatpush1.msra.mxu0 0.0
      %5238 = vmatprep.subr.mxu0 0.0
      %5239 = vmatpush1.msra.mxu0 0.0
      %5240 = vmatprep.subr.mxu0 0.0
      %5241 = vmatpush1.msra.mxu0 0.0
      %5242 = vmatprep.subr.mxu0 0.0
      %5243 = vmatpush1.msra.mxu0 0.0
      %5244 = vmatprep.subr.mxu0 0.0
      %5245 = vmatpush1.msra.mxu0 0.0
      %5246 = vmatprep.subr.mxu0 0.0
      %5247 = vmatpush1.msra.mxu0 0.0
      %5248 = vmatprep.subr.mxu0 0.0
      %5249 = vmatpush1.msra.mxu0 0.0
      %5250 = vmatprep.subr.mxu0 0.0
      %5251 = vmatpush1.msra.mxu0 0.0
      %5252 = vmatprep.subr.mxu0 0.0
      %5253 = vmatpush1.msra.mxu0 0.0
      %5254 = vmatprep.subr.mxu0 0.0
      %5255 = vmatpush1.msra.mxu0 0.0
      %5256 = vmatprep.subr.mxu0 0.0
      %5257 = vmatpush1.msra.mxu0 0.0
      %5258 = vmatprep.subr.mxu0 0.0
      %5259 = vmatpush1.msra.mxu0 0.0
      %5260 = vmatprep.subr.mxu0 0.0
      %5261 = vmatpush1.msra.mxu0 0.0
      %5262 = vmatprep.subr.mxu0 0.0
      %5263 = vmatpush1.msra.mxu0 0.0
      %5264 = vmatprep.subr.mxu0 0.0
      %5265 = vmatpush1.msra.mxu0 0.0
      %5266 = vmatprep.subr.mxu0 0.0
      %5267 = vmatpush1.msra.mxu0 0.0
      %5268 = vmatprep.mubr.f32.mxu0 0.0
      %5269 = vmatmul.mubr.f32.gmra.mrb[0].mxu0 %v5202
      %v5270 = vpop.f32.mrb[0].mxu0
      %v5271 = vadd.f32 %v4055, %v5270
      %v5272 = vpop.f32.mrb[0].mxu0
      %5273 = vdwg.mxu0
      %5274 = vrot.lane.b32.xlu0 %v383, 112
      %v5275 = vpop.permute.xlu0 %5274
      %v5278 = vsel %vm1621, %v1789, 0
      %5280 = vmatprep.subr.mxu0 0.0
      %5281 = vmatpush1.msra.mxu0 %v5275
      %5282 = vmatprep.subr.mxu0 0.0
      %5283 = vmatpush1.msra.mxu0 0.0
      %5284 = vmatprep.subr.mxu0 0.0
      %5285 = vmatpush1.msra.mxu0 0.0
      %5286 = vmatprep.subr.mxu0 0.0
      %5287 = vmatpush1.msra.mxu0 0.0
      %5288 = vmatprep.subr.mxu0 0.0
      %5289 = vmatpush1.msra.mxu0 0.0
      %5290 = vmatprep.subr.mxu0 0.0
      %5291 = vmatpush1.msra.mxu0 0.0
      %5292 = vmatprep.subr.mxu0 0.0
      %5293 = vmatpush1.msra.mxu0 0.0
      %5294 = vmatprep.subr.mxu0 0.0
      %5295 = vmatpush1.msra.mxu0 0.0
      %5296 = vmatprep.subr.mxu0 0.0
      %5297 = vmatpush1.msra.mxu0 0.0
      %5298 = vmatprep.subr.mxu0 0.0
      %5299 = vmatpush1.msra.mxu0 0.0
      %5300 = vmatprep.subr.mxu0 0.0
      %5301 = vmatpush1.msra.mxu0 0.0
      %5302 = vmatprep.subr.mxu0 0.0
      %5303 = vmatpush1.msra.mxu0 0.0
      %5304 = vmatprep.subr.mxu0 0.0
      %5305 = vmatpush1.msra.mxu0 0.0
      %5306 = vmatprep.subr.mxu0 0.0
      %5307 = vmatpush1.msra.mxu0 0.0
      %5308 = vmatprep.subr.mxu0 0.0
      %5309 = vmatpush1.msra.mxu0 0.0
      %5310 = vmatprep.subr.mxu0 0.0
      %5311 = vmatpush1.msra.mxu0 0.0
      %5312 = vmatprep.subr.mxu0 0.0
      %5313 = vmatpush1.msra.mxu0 0.0
      %5314 = vmatprep.subr.mxu0 0.0
      %5315 = vmatpush1.msra.mxu0 0.0
      %5316 = vmatprep.subr.mxu0 0.0
      %5317 = vmatpush1.msra.mxu0 0.0
      %5318 = vmatprep.subr.mxu0 0.0
      %5319 = vmatpush1.msra.mxu0 0.0
      %5320 = vmatprep.subr.mxu0 0.0
      %5321 = vmatpush1.msra.mxu0 0.0
      %5322 = vmatprep.subr.mxu0 0.0
      %5323 = vmatpush1.msra.mxu0 0.0
      %5324 = vmatprep.subr.mxu0 0.0
      %5325 = vmatpush1.msra.mxu0 0.0
      %5326 = vmatprep.subr.mxu0 0.0
      %5327 = vmatpush1.msra.mxu0 0.0
      %5328 = vmatprep.subr.mxu0 0.0
      %5329 = vmatpush1.msra.mxu0 0.0
      %5330 = vmatprep.subr.mxu0 0.0
      %5331 = vmatpush1.msra.mxu0 0.0
      %5332 = vmatprep.subr.mxu0 0.0
      %5333 = vmatpush1.msra.mxu0 0.0
      %5334 = vmatprep.subr.mxu0 0.0
      %5335 = vmatpush1.msra.mxu0 0.0
      %5336 = vmatprep.subr.mxu0 0.0
      %5337 = vmatpush1.msra.mxu0 0.0
      %5338 = vmatprep.subr.mxu0 0.0
      %5339 = vmatpush1.msra.mxu0 0.0
      %5340 = vmatprep.subr.mxu0 0.0
      %5341 = vmatpush1.msra.mxu0 0.0
      %5342 = vmatprep.subr.mxu0 0.0
      %5343 = vmatpush1.msra.mxu0 0.0
      %5344 = vmatprep.mubr.f32.mxu0 0.0
      %5345 = vmatmul.mubr.f32.gmra.mrb[0].mxu0 %v5278
      %v5346 = vpop.f32.mrb[0].mxu0
      %v5347 = vadd.f32 %v4131, %v5346
      %v5348 = vpop.f32.mrb[0].mxu0
      %5349 = vdwg.mxu0
      %5350 = vrot.lane.b32.xlu0 %v384, 112
      %v5351 = vpop.permute.xlu0 %5350
      %v5354 = vsel %vm1621, %v1791, 0
      %5356 = vmatprep.subr.mxu0 0.0
      %5357 = vmatpush1.msra.mxu0 %v5351
      %5358 = vmatprep.subr.mxu0 0.0
      %5359 = vmatpush1.msra.mxu0 0.0
      %5360 = vmatprep.subr.mxu0 0.0
      %5361 = vmatpush1.msra.mxu0 0.0
      %5362 = vmatprep.subr.mxu0 0.0
      %5363 = vmatpush1.msra.mxu0 0.0
      %5364 = vmatprep.subr.mxu0 0.0
      %5365 = vmatpush1.msra.mxu0 0.0
      %5366 = vmatprep.subr.mxu0 0.0
      %5367 = vmatpush1.msra.mxu0 0.0
      %5368 = vmatprep.subr.mxu0 0.0
      %5369 = vmatpush1.msra.mxu0 0.0
      %5370 = vmatprep.subr.mxu0 0.0
      %5371 = vmatpush1.msra.mxu0 0.0
      %5372 = vmatprep.subr.mxu0 0.0
      %5373 = vmatpush1.msra.mxu0 0.0
      %5374 = vmatprep.subr.mxu0 0.0
      %5375 = vmatpush1.msra.mxu0 0.0
      %5376 = vmatprep.subr.mxu0 0.0
      %5377 = vmatpush1.msra.mxu0 0.0
      %5378 = vmatprep.subr.mxu0 0.0
      %5379 = vmatpush1.msra.mxu0 0.0
      %5380 = vmatprep.subr.mxu0 0.0
      %5381 = vmatpush1.msra.mxu0 0.0
      %5382 = vmatprep.subr.mxu0 0.0
      %5383 = vmatpush1.msra.mxu0 0.0
      %5384 = vmatprep.subr.mxu0 0.0
      %5385 = vmatpush1.msra.mxu0 0.0
      %5386 = vmatprep.subr.mxu0 0.0
      %5387 = vmatpush1.msra.mxu0 0.0
      %5388 = vmatprep.subr.mxu0 0.0
      %5389 = vmatpush1.msra.mxu0 0.0
      %5390 = vmatprep.subr.mxu0 0.0
      %5391 = vmatpush1.msra.mxu0 0.0
      %5392 = vmatprep.subr.mxu0 0.0
      %5393 = vmatpush1.msra.mxu0 0.0
      %5394 = vmatprep.subr.mxu0 0.0
      %5395 = vmatpush1.msra.mxu0 0.0
      %5396 = vmatprep.subr.mxu0 0.0
      %5397 = vmatpush1.msra.mxu0 0.0
      %5398 = vmatprep.subr.mxu0 0.0
      %5399 = vmatpush1.msra.mxu0 0.0
      %5400 = vmatprep.subr.mxu0 0.0
      %5401 = vmatpush1.msra.mxu0 0.0
      %5402 = vmatprep.subr.mxu0 0.0
      %5403 = vmatpush1.msra.mxu0 0.0
      %5404 = vmatprep.subr.mxu0 0.0
      %5405 = vmatpush1.msra.mxu0 0.0
      %5406 = vmatprep.subr.mxu0 0.0
      %5407 = vmatpush1.msra.mxu0 0.0
      %5408 = vmatprep.subr.mxu0 0.0
      %5409 = vmatpush1.msra.mxu0 0.0
      %5410 = vmatprep.subr.mxu0 0.0
      %5411 = vmatpush1.msra.mxu0 0.0
      %5412 = vmatprep.subr.mxu0 0.0
      %5413 = vmatpush1.msra.mxu0 0.0
      %5414 = vmatprep.subr.mxu0 0.0
      %5415 = vmatpush1.msra.mxu0 0.0
      %5416 = vmatprep.subr.mxu0 0.0
      %5417 = vmatpush1.msra.mxu0 0.0
      %5418 = vmatprep.subr.mxu0 0.0
      %5419 = vmatpush1.msra.mxu0 0.0
      %5420 = vmatprep.mubr.f32.mxu0 0.0
      %5421 = vmatmul.mubr.f32.gmra.mrb[0].mxu0 %v5354
      %v5422 = vpop.f32.mrb[0].mxu0
      %v5423 = vadd.f32 %v4207, %v5422
      %v5424 = vpop.f32.mrb[0].mxu0
      %5425 = vdwg.mxu0
      %5426 = vrot.lane.b32.xlu0 %v385, 112
      %v5427 = vpop.permute.xlu0 %5426
      %v5430 = vsel %vm1621, %v1793, 0
      %5432 = vmatprep.subr.mxu0 0.0
      %5433 = vmatpush1.msra.mxu0 %v5427
      %5434 = vmatprep.subr.mxu0 0.0
      %5435 = vmatpush1.msra.mxu0 0.0
      %5436 = vmatprep.subr.mxu0 0.0
      %5437 = vmatpush1.msra.mxu0 0.0
      %5438 = vmatprep.subr.mxu0 0.0
      %5439 = vmatpush1.msra.mxu0 0.0
      %5440 = vmatprep.subr.mxu0 0.0
      %5441 = vmatpush1.msra.mxu0 0.0
      %5442 = vmatprep.subr.mxu0 0.0
      %5443 = vmatpush1.msra.mxu0 0.0
      %5444 = vmatprep.subr.mxu0 0.0
      %5445 = vmatpush1.msra.mxu0 0.0
      %5446 = vmatprep.subr.mxu0 0.0
      %5447 = vmatpush1.msra.mxu0 0.0
      %5448 = vmatprep.subr.mxu0 0.0
      %5449 = vmatpush1.msra.mxu0 0.0
      %5450 = vmatprep.subr.mxu0 0.0
      %5451 = vmatpush1.msra.mxu0 0.0
      %5452 = vmatprep.subr.mxu0 0.0
      %5453 = vmatpush1.msra.mxu0 0.0
      %5454 = vmatprep.subr.mxu0 0.0
      %5455 = vmatpush1.msra.mxu0 0.0
      %5456 = vmatprep.subr.mxu0 0.0
      %5457 = vmatpush1.msra.mxu0 0.0
      %5458 = vmatprep.subr.mxu0 0.0
      %5459 = vmatpush1.msra.mxu0 0.0
      %5460 = vmatprep.subr.mxu0 0.0
      %5461 = vmatpush1.msra.mxu0 0.0
      %5462 = vmatprep.subr.mxu0 0.0
      %5463 = vmatpush1.msra.mxu0 0.0
      %5464 = vmatprep.subr.mxu0 0.0
      %5465 = vmatpush1.msra.mxu0 0.0
      %5466 = vmatprep.subr.mxu0 0.0
      %5467 = vmatpush1.msra.mxu0 0.0
      %5468 = vmatprep.subr.mxu0 0.0
      %5469 = vmatpush1.msra.mxu0 0.0
      %5470 = vmatprep.subr.mxu0 0.0
      %5471 = vmatpush1.msra.mxu0 0.0
      %5472 = vmatprep.subr.mxu0 0.0
      %5473 = vmatpush1.msra.mxu0 0.0
      %5474 = vmatprep.subr.mxu0 0.0
      %5475 = vmatpush1.msra.mxu0 0.0
      %5476 = vmatprep.subr.mxu0 0.0
      %5477 = vmatpush1.msra.mxu0 0.0
      %5478 = vmatprep.subr.mxu0 0.0
      %5479 = vmatpush1.msra.mxu0 0.0
      %5480 = vmatprep.subr.mxu0 0.0
      %5481 = vmatpush1.msra.mxu0 0.0
      %5482 = vmatprep.subr.mxu0 0.0
      %5483 = vmatpush1.msra.mxu0 0.0
      %5484 = vmatprep.subr.mxu0 0.0
      %5485 = vmatpush1.msra.mxu0 0.0
      %5486 = vmatprep.subr.mxu0 0.0
      %5487 = vmatpush1.msra.mxu0 0.0
      %5488 = vmatprep.subr.mxu0 0.0
      %5489 = vmatpush1.msra.mxu0 0.0
      %5490 = vmatprep.subr.mxu0 0.0
      %5491 = vmatpush1.msra.mxu0 0.0
      %5492 = vmatprep.subr.mxu0 0.0
      %5493 = vmatpush1.msra.mxu0 0.0
      %5494 = vmatprep.subr.mxu0 0.0
      %5495 = vmatpush1.msra.mxu0 0.0
      %5496 = vmatprep.mubr.f32.mxu0 0.0
      %5497 = vmatmul.mubr.f32.gmra.mrb[0].mxu0 %v5430
      %v5498 = vpop.f32.mrb[0].mxu0
      %v5499 = vadd.f32 %v4283, %v5498
      %v5500 = vpop.f32.mrb[0].mxu0
      %5501 = vdwg.mxu0
      %5502 = vrot.lane.b32.xlu0 %v386, 112
      %v5503 = vpop.permute.xlu0 %5502
      %v5506 = vsel %vm1621, %v1795, 0
      %5508 = vmatprep.subr.mxu0 0.0
      %5509 = vmatpush1.msra.mxu0 %v5503
      %5510 = vmatprep.subr.mxu0 0.0
      %5511 = vmatpush1.msra.mxu0 0.0
      %5512 = vmatprep.subr.mxu0 0.0
      %5513 = vmatpush1.msra.mxu0 0.0
      %5514 = vmatprep.subr.mxu0 0.0
      %5515 = vmatpush1.msra.mxu0 0.0
      %5516 = vmatprep.subr.mxu0 0.0
      %5517 = vmatpush1.msra.mxu0 0.0
      %5518 = vmatprep.subr.mxu0 0.0
      %5519 = vmatpush1.msra.mxu0 0.0
      %5520 = vmatprep.subr.mxu0 0.0
      %5521 = vmatpush1.msra.mxu0 0.0
      %5522 = vmatprep.subr.mxu0 0.0
      %5523 = vmatpush1.msra.mxu0 0.0
      %5524 = vmatprep.subr.mxu0 0.0
      %5525 = vmatpush1.msra.mxu0 0.0
      %5526 = vmatprep.subr.mxu0 0.0
      %5527 = vmatpush1.msra.mxu0 0.0
      %5528 = vmatprep.subr.mxu0 0.0
      %5529 = vmatpush1.msra.mxu0 0.0
      %5530 = vmatprep.subr.mxu0 0.0
      %5531 = vmatpush1.msra.mxu0 0.0
      %5532 = vmatprep.subr.mxu0 0.0
      %5533 = vmatpush1.msra.mxu0 0.0
      %5534 = vmatprep.subr.mxu0 0.0
      %5535 = vmatpush1.msra.mxu0 0.0
      %5536 = vmatprep.subr.mxu0 0.0
      %5537 = vmatpush1.msra.mxu0 0.0
      %5538 = vmatprep.subr.mxu0 0.0
      %5539 = vmatpush1.msra.mxu0 0.0
      %5540 = vmatprep.subr.mxu0 0.0
      %5541 = vmatpush1.msra.mxu0 0.0
      %5542 = vmatprep.subr.mxu0 0.0
      %5543 = vmatpush1.msra.mxu0 0.0
      %5544 = vmatprep.subr.mxu0 0.0
      %5545 = vmatpush1.msra.mxu0 0.0
      %5546 = vmatprep.subr.mxu0 0.0
      %5547 = vmatpush1.msra.mxu0 0.0
      %5548 = vmatprep.subr.mxu0 0.0
      %5549 = vmatpush1.msra.mxu0 0.0
      %5550 = vmatprep.subr.mxu0 0.0
      %5551 = vmatpush1.msra.mxu0 0.0
      %5552 = vmatprep.subr.mxu0 0.0
      %5553 = vmatpush1.msra.mxu0 0.0
      %5554 = vmatprep.subr.mxu0 0.0
      %5555 = vmatpush1.msra.mxu0 0.0
      %5556 = vmatprep.subr.mxu0 0.0
      %5557 = vmatpush1.msra.mxu0 0.0
      %5558 = vmatprep.subr.mxu0 0.0
      %5559 = vmatpush1.msra.mxu0 0.0
      %5560 = vmatprep.subr.mxu0 0.0
      %5561 = vmatpush1.msra.mxu0 0.0
      %5562 = vmatprep.subr.mxu0 0.0
      %5563 = vmatpush1.msra.mxu0 0.0
      %5564 = vmatprep.subr.mxu0 0.0
      %5565 = vmatpush1.msra.mxu0 0.0
      %5566 = vmatprep.subr.mxu0 0.0
      %5567 = vmatpush1.msra.mxu0 0.0
      %5568 = vmatprep.subr.mxu0 0.0
      %5569 = vmatpush1.msra.mxu0 0.0
      %5570 = vmatprep.subr.mxu0 0.0
      %5571 = vmatpush1.msra.mxu0 0.0
      %5572 = vmatprep.mubr.f32.mxu0 0.0
      %5573 = vmatmul.mubr.f32.gmra.mrb[0].mxu0 %v5506
      %v5574 = vpop.f32.mrb[0].mxu0
      %v5575 = vadd.f32 %v4359, %v5574
      %v5576 = vpop.f32.mrb[0].mxu0
      %5577 = vdwg.mxu0
      %5578 = vrot.lane.b32.xlu0 %v387, 112
      %v5579 = vpop.permute.xlu0 %5578
      %v5582 = vsel %vm1621, %v1797, 0
      %5584 = vmatprep.subr.mxu0 0.0
      %5585 = vmatpush1.msra.mxu0 %v5579
      %5586 = vmatprep.subr.mxu0 0.0
      %5587 = vmatpush1.msra.mxu0 0.0
      %5588 = vmatprep.subr.mxu0 0.0
      %5589 = vmatpush1.msra.mxu0 0.0
      %5590 = vmatprep.subr.mxu0 0.0
      %5591 = vmatpush1.msra.mxu0 0.0
      %5592 = vmatprep.subr.mxu0 0.0
      %5593 = vmatpush1.msra.mxu0 0.0
      %5594 = vmatprep.subr.mxu0 0.0
      %5595 = vmatpush1.msra.mxu0 0.0
      %5596 = vmatprep.subr.mxu0 0.0
      %5597 = vmatpush1.msra.mxu0 0.0
      %5598 = vmatprep.subr.mxu0 0.0
      %5599 = vmatpush1.msra.mxu0 0.0
      %5600 = vmatprep.subr.mxu0 0.0
      %5601 = vmatpush1.msra.mxu0 0.0
      %5602 = vmatprep.subr.mxu0 0.0
      %5603 = vmatpush1.msra.mxu0 0.0
      %5604 = vmatprep.subr.mxu0 0.0
      %5605 = vmatpush1.msra.mxu0 0.0
      %5606 = vmatprep.subr.mxu0 0.0
      %5607 = vmatpush1.msra.mxu0 0.0
      %5608 = vmatprep.subr.mxu0 0.0
      %5609 = vmatpush1.msra.mxu0 0.0
      %5610 = vmatprep.subr.mxu0 0.0
      %5611 = vmatpush1.msra.mxu0 0.0
      %5612 = vmatprep.subr.mxu0 0.0
      %5613 = vmatpush1.msra.mxu0 0.0
      %5614 = vmatprep.subr.mxu0 0.0
      %5615 = vmatpush1.msra.mxu0 0.0
      %5616 = vmatprep.subr.mxu0 0.0
      %5617 = vmatpush1.msra.mxu0 0.0
      %5618 = vmatprep.subr.mxu0 0.0
      %5619 = vmatpush1.msra.mxu0 0.0
      %5620 = vmatprep.subr.mxu0 0.0
      %5621 = vmatpush1.msra.mxu0 0.0
      %5622 = vmatprep.subr.mxu0 0.0
      %5623 = vmatpush1.msra.mxu0 0.0
      %5624 = vmatprep.subr.mxu0 0.0
      %5625 = vmatpush1.msra.mxu0 0.0
      %5626 = vmatprep.subr.mxu0 0.0
      %5627 = vmatpush1.msra.mxu0 0.0
      %5628 = vmatprep.subr.mxu0 0.0
      %5629 = vmatpush1.msra.mxu0 0.0
      %5630 = vmatprep.subr.mxu0 0.0
      %5631 = vmatpush1.msra.mxu0 0.0
      %5632 = vmatprep.subr.mxu0 0.0
      %5633 = vmatpush1.msra.mxu0 0.0
      %5634 = vmatprep.subr.mxu0 0.0
      %5635 = vmatpush1.msra.mxu0 0.0
      %5636 = vmatprep.subr.mxu0 0.0
      %5637 = vmatpush1.msra.mxu0 0.0
      %5638 = vmatprep.subr.mxu0 0.0
      %5639 = vmatpush1.msra.mxu0 0.0
      %5640 = vmatprep.subr.mxu0 0.0
      %5641 = vmatpush1.msra.mxu0 0.0
      %5642 = vmatprep.subr.mxu0 0.0
      %5643 = vmatpush1.msra.mxu0 0.0
      %5644 = vmatprep.subr.mxu0 0.0
      %5645 = vmatpush1.msra.mxu0 0.0
      %5646 = vmatprep.subr.mxu0 0.0
      %5647 = vmatpush1.msra.mxu0 0.0
      %5648 = vmatprep.mubr.f32.mxu0 0.0
      %5649 = vmatmul.mubr.f32.gmra.mrb[0].mxu0 %v5582
      %v5650 = vpop.f32.mrb[0].mxu0
      %v5651 = vadd.f32 %v4435, %v5650
      %v5652 = vpop.f32.mrb[0].mxu0
      %5653 = vdwg.mxu0
      %v5654 = vlaneseq
      %v5655 = vshrl.u32 %v5654, 7
      %v5656 = vsub.s32 0, %v5655
      %v5657 = vrot.slane %v205, %v5656
      %v5658 = vadd.f32 %v4511, %v5657
      %v5659 = vadd.f32 %v4587, %v5657
      %v5660 = vadd.f32 %v4663, %v5657
      %v5661 = vadd.f32 %v4739, %v5657
      %v5662 = vadd.f32 %v4815, %v5657
      %v5663 = vadd.f32 %v4891, %v5657
      %v5664 = vadd.f32 %v4967, %v5657
      %v5665 = vadd.f32 %v5043, %v5657
      %v5666 = vadd.f32 %v5119, %v5657
      %v5667 = vadd.f32 %v5195, %v5657
      %v5668 = vadd.f32 %v5271, %v5657
      %v5669 = vadd.f32 %v5347, %v5657
      %v5670 = vadd.f32 %v5423, %v5657
      %v5671 = vadd.f32 %v5499, %v5657
      %v5672 = vadd.f32 %v5575, %v5657
      %v5673 = vadd.f32 %v5651, %v5657
      %v5674 = vadd.f32 %v5658, %v332
      %v5675 = vadd.f32 %v5659, %v333
      %v5676 = vadd.f32 %v5660, %v334
      %v5677 = vadd.f32 %v5661, %v335
      %v5678 = vadd.f32 %v5662, %v336
      %v5679 = vadd.f32 %v5663, %v337
      %v5680 = vadd.f32 %v5664, %v338
      %v5681 = vadd.f32 %v5665, %v339
      %v5682 = vadd.f32 %v5666, %v340
      %v5683 = vadd.f32 %v5667, %v341
      %v5684 = vadd.f32 %v5668, %v342
      %v5685 = vadd.f32 %v5669, %v343
      %v5686 = vadd.f32 %v5670, %v344
      %v5687 = vadd.f32 %v5671, %v345
      %v5688 = vadd.f32 %v5672, %v346
      %v5689 = vadd.f32 %v5673, %v347
      %v5690 = vsel %vm1621, %v5674, 0.0
      %5691 = vadd.xlane.f32.xlu0 %v5690
      %v5692 = vpop.xlane.xlu0 %5691
      %v5693 = vsel %vm1621, %v5675, 0.0
      %5694 = vadd.xlane.f32.xlu0 %v5693
      %v5695 = vpop.xlane.xlu0 %5694
      %v5696 = vsel %vm1621, %v5676, 0.0
      %5697 = vadd.xlane.f32.xlu0 %v5696
      %v5698 = vpop.xlane.xlu0 %5697
      %v5699 = vsel %vm1621, %v5677, 0.0
      %5700 = vadd.xlane.f32.xlu0 %v5699
      %v5701 = vpop.xlane.xlu0 %5700
      %v5702 = vsel %vm1621, %v5678, 0.0
      %5703 = vadd.xlane.f32.xlu0 %v5702
      %v5704 = vpop.xlane.xlu0 %5703
      %v5705 = vsel %vm1621, %v5679, 0.0
      %5706 = vadd.xlane.f32.xlu0 %v5705
      %v5707 = vpop.xlane.xlu0 %5706
      %v5708 = vsel %vm1621, %v5680, 0.0
      %5709 = vadd.xlane.f32.xlu0 %v5708
      %v5710 = vpop.xlane.xlu0 %5709
      %v5711 = vsel %vm1621, %v5681, 0.0
      %5712 = vadd.xlane.f32.xlu0 %v5711
      %v5713 = vpop.xlane.xlu0 %5712
      %v5714 = vsel %vm1621, %v5682, 0.0
      %5715 = vadd.xlane.f32.xlu0 %v5714
      %v5716 = vpop.xlane.xlu0 %5715
      %v5717 = vsel %vm1621, %v5683, 0.0
      %5718 = vadd.xlane.f32.xlu0 %v5717
      %v5719 = vpop.xlane.xlu0 %5718
      %v5720 = vsel %vm1621, %v5684, 0.0
      %5721 = vadd.xlane.f32.xlu0 %v5720
      %v5722 = vpop.xlane.xlu0 %5721
      %v5723 = vsel %vm1621, %v5685, 0.0
      %5724 = vadd.xlane.f32.xlu0 %v5723
      %v5725 = vpop.xlane.xlu0 %5724
      %v5726 = vsel %vm1621, %v5686, 0.0
      %5727 = vadd.xlane.f32.xlu0 %v5726
      %v5728 = vpop.xlane.xlu0 %5727
      %v5729 = vsel %vm1621, %v5687, 0.0
      %5730 = vadd.xlane.f32.xlu0 %v5729
      %v5731 = vpop.xlane.xlu0 %5730
      %v5732 = vsel %vm1621, %v5688, 0.0
      %5733 = vadd.xlane.f32.xlu0 %v5732
      %v5734 = vpop.xlane.xlu0 %5733
      %v5735 = vsel %vm1621, %v5689, 0.0
      %5736 = vadd.xlane.f32.xlu0 %v5735
      %v5737 = vpop.xlane.xlu0 %5736
      %v5738 = vrcp.pop 8.0
      %v5739 = vmul.f32 %v5692, %v5738
      %v5740 = vmul.f32 %v5695, %v5738
      %v5741 = vmul.f32 %v5698, %v5738
      %v5742 = vmul.f32 %v5701, %v5738
      %v5743 = vmul.f32 %v5704, %v5738
      %v5744 = vmul.f32 %v5707, %v5738
      %v5745 = vmul.f32 %v5710, %v5738
      %v5746 = vmul.f32 %v5713, %v5738
      %v5747 = vmul.f32 %v5716, %v5738
      %v5748 = vmul.f32 %v5719, %v5738
      %v5749 = vmul.f32 %v5722, %v5738
      %v5750 = vmul.f32 %v5725, %v5738
      %v5751 = vmul.f32 %v5728, %v5738
      %v5752 = vmul.f32 %v5731, %v5738
      %v5753 = vmul.f32 %v5734, %v5738
      %v5754 = vmul.f32 %v5737, %v5738
      %v5755 = vsub.f32 %v5674, %v5739
      %v5756 = vsub.f32 %v5675, %v5740
      %v5757 = vsub.f32 %v5676, %v5741
      %v5758 = vsub.f32 %v5677, %v5742
      %v5759 = vsub.f32 %v5678, %v5743
      %v5760 = vsub.f32 %v5679, %v5744
      %v5761 = vsub.f32 %v5680, %v5745
      %v5762 = vsub.f32 %v5681, %v5746
      %v5763 = vsub.f32 %v5682, %v5747
      %v5764 = vsub.f32 %v5683, %v5748
      %v5765 = vsub.f32 %v5684, %v5749
      %v5766 = vsub.f32 %v5685, %v5750
      %v5767 = vsub.f32 %v5686, %v5751
      %v5768 = vsub.f32 %v5687, %v5752
      %v5769 = vsub.f32 %v5688, %v5753
      %v5770 = vsub.f32 %v5689, %v5754
      %v5771 = vmul.f32 %v5755, %v5755
      %v5772 = vmul.f32 %v5756, %v5756
      %v5773 = vmul.f32 %v5757, %v5757
      %v5774 = vmul.f32 %v5758, %v5758
      %v5775 = vmul.f32 %v5759, %v5759
      %v5776 = vmul.f32 %v5760, %v5760
      %v5777 = vmul.f32 %v5761, %v5761
      %v5778 = vmul.f32 %v5762, %v5762
      %v5779 = vmul.f32 %v5763, %v5763
      %v5780 = vmul.f32 %v5764, %v5764
      %v5781 = vmul.f32 %v5765, %v5765
      %v5782 = vmul.f32 %v5766, %v5766
      %v5783 = vmul.f32 %v5767, %v5767
      %v5784 = vmul.f32 %v5768, %v5768
      %v5785 = vmul.f32 %v5769, %v5769
      %v5786 = vmul.f32 %v5770, %v5770
      %v5787 = vsel %vm1621, %v5771, 0.0
      %5788 = vadd.xlane.f32.xlu0 %v5787
      %v5789 = vpop.xlane.xlu0 %5788
      %v5790 = vsel %vm1621, %v5772, 0.0
      %5791 = vadd.xlane.f32.xlu0 %v5790
      %v5792 = vpop.xlane.xlu0 %5791
      %v5793 = vsel %vm1621, %v5773, 0.0
      %5794 = vadd.xlane.f32.xlu0 %v5793
      %v5795 = vpop.xlane.xlu0 %5794
      %v5796 = vsel %vm1621, %v5774, 0.0
      %5797 = vadd.xlane.f32.xlu0 %v5796
      %v5798 = vpop.xlane.xlu0 %5797
      %v5799 = vsel %vm1621, %v5775, 0.0
      %5800 = vadd.xlane.f32.xlu0 %v5799
      %v5801 = vpop.xlane.xlu0 %5800
      %v5802 = vsel %vm1621, %v5776, 0.0
      %5803 = vadd.xlane.f32.xlu0 %v5802
      %v5804 = vpop.xlane.xlu0 %5803
      %v5805 = vsel %vm1621, %v5777, 0.0
      %5806 = vadd.xlane.f32.xlu0 %v5805
      %v5807 = vpop.xlane.xlu0 %5806
      %v5808 = vsel %vm1621, %v5778, 0.0
      %5809 = vadd.xlane.f32.xlu0 %v5808
      %v5810 = vpop.xlane.xlu0 %5809
      %v5811 = vsel %vm1621, %v5779, 0.0
      %5812 = vadd.xlane.f32.xlu0 %v5811
      %v5813 = vpop.xlane.xlu0 %5812
      %v5814 = vsel %vm1621, %v5780, 0.0
      %5815 = vadd.xlane.f32.xlu0 %v5814
      %v5816 = vpop.xlane.xlu0 %5815
      %v5817 = vsel %vm1621, %v5781, 0.0
      %5818 = vadd.xlane.f32.xlu0 %v5817
      %v5819 = vpop.xlane.xlu0 %5818
      %v5820 = vsel %vm1621, %v5782, 0.0
      %5821 = vadd.xlane.f32.xlu0 %v5820
      %v5822 = vpop.xlane.xlu0 %5821
      %v5823 = vsel %vm1621, %v5783, 0.0
      %5824 = vadd.xlane.f32.xlu0 %v5823
      %v5825 = vpop.xlane.xlu0 %5824
      %v5826 = vsel %vm1621, %v5784, 0.0
      %5827 = vadd.xlane.f32.xlu0 %v5826
      %v5828 = vpop.xlane.xlu0 %5827
      %v5829 = vsel %vm1621, %v5785, 0.0
      %5830 = vadd.xlane.f32.xlu0 %v5829
      %v5831 = vpop.xlane.xlu0 %5830
      %v5832 = vsel %vm1621, %v5786, 0.0
      %5833 = vadd.xlane.f32.xlu0 %v5832
      %v5834 = vpop.xlane.xlu0 %5833
      %v5835 = vmul.f32 %v5789, %v5738
      %v5836 = vmul.f32 %v5792, %v5738
      %v5837 = vmul.f32 %v5795, %v5738
      %v5838 = vmul.f32 %v5798, %v5738
      %v5839 = vmul.f32 %v5801, %v5738
      %v5840 = vmul.f32 %v5804, %v5738
      %v5841 = vmul.f32 %v5807, %v5738
      %v5842 = vmul.f32 %v5810, %v5738
      %v5843 = vmul.f32 %v5813, %v5738
      %v5844 = vmul.f32 %v5816, %v5738
      %v5845 = vmul.f32 %v5819, %v5738
      %v5846 = vmul.f32 %v5822, %v5738
      %v5847 = vmul.f32 %v5825, %v5738
      %v5848 = vmul.f32 %v5828, %v5738
      %v5849 = vmul.f32 %v5831, %v5738
      %v5850 = vmul.f32 %v5834, %v5738
      %v5851 = vadd.f32 %v5835, 1e-12
      %v5852 = vadd.f32 %v5836, 1e-12
      %v5853 = vadd.f32 %v5837, 1e-12
      %v5854 = vadd.f32 %v5838, 1e-12
      %v5855 = vadd.f32 %v5839, 1e-12
      %v5856 = vadd.f32 %v5840, 1e-12
      %v5857 = vadd.f32 %v5841, 1e-12
      %v5858 = vadd.f32 %v5842, 1e-12
      %v5859 = vadd.f32 %v5843, 1e-12
      %v5860 = vadd.f32 %v5844, 1e-12
      %v5861 = vadd.f32 %v5845, 1e-12
      %v5862 = vadd.f32 %v5846, 1e-12
      %v5863 = vadd.f32 %v5847, 1e-12
      %v5864 = vadd.f32 %v5848, 1e-12
      %v5865 = vadd.f32 %v5849, 1e-12
      %v5866 = vadd.f32 %v5850, 1e-12
      %v5867 = vrsqrt.pop %v5851
      %v5868 = vrsqrt.pop %v5852
      %v5869 = vrsqrt.pop %v5853
      %v5870 = vrsqrt.pop %v5854
      %v5871 = vrsqrt.pop %v5855
      %v5872 = vrsqrt.pop %v5856
      %v5873 = vrsqrt.pop %v5857
      %v5874 = vrsqrt.pop %v5858
      %v5875 = vrsqrt.pop %v5859
      %v5876 = vrsqrt.pop %v5860
      %v5877 = vrsqrt.pop %v5861
      %v5878 = vrsqrt.pop %v5862
      %v5879 = vrsqrt.pop %v5863
      %v5880 = vrsqrt.pop %v5864
      %v5881 = vrsqrt.pop %v5865
      %v5882 = vrsqrt.pop %v5866
      %v5883 = vmul.f32 %v5755, %v5867
      %v5884 = vmul.f32 %v5756, %v5868
      %v5885 = vmul.f32 %v5757, %v5869
      %v5886 = vmul.f32 %v5758, %v5870
      %v5887 = vmul.f32 %v5759, %v5871
      %v5888 = vmul.f32 %v5760, %v5872
      %v5889 = vmul.f32 %v5761, %v5873
      %v5890 = vmul.f32 %v5762, %v5874
      %v5891 = vmul.f32 %v5763, %v5875
      %v5892 = vmul.f32 %v5764, %v5876
      %v5893 = vmul.f32 %v5765, %v5877
      %v5894 = vmul.f32 %v5766, %v5878
      %v5895 = vmul.f32 %v5767, %v5879
      %v5896 = vmul.f32 %v5768, %v5880
      %v5897 = vmul.f32 %v5769, %v5881
      %v5898 = vmul.f32 %v5770, %v5882
      %v5899 = vlaneseq
      %v5900 = vshrl.u32 %v5899, 7
      %v5901 = vsub.s32 0, %v5900
      %v5902 = vrot.slane %v206, %v5901
      %v5903 = vmul.f32 %v5883, %v5902
      %v5904 = vmul.f32 %v5884, %v5902
      %v5905 = vmul.f32 %v5885, %v5902
      %v5906 = vmul.f32 %v5886, %v5902
      %v5907 = vmul.f32 %v5887, %v5902
      %v5908 = vmul.f32 %v5888, %v5902
      %v5909 = vmul.f32 %v5889, %v5902
      %v5910 = vmul.f32 %v5890, %v5902
      %v5911 = vmul.f32 %v5891, %v5902
      %v5912 = vmul.f32 %v5892, %v5902
      %v5913 = vmul.f32 %v5893, %v5902
      %v5914 = vmul.f32 %v5894, %v5902
      %v5915 = vmul.f32 %v5895, %v5902
      %v5916 = vmul.f32 %v5896, %v5902
      %v5917 = vmul.f32 %v5897, %v5902
      %v5918 = vmul.f32 %v5898, %v5902
      %v5919 = vlaneseq
      %v5920 = vshrl.u32 %v5919, 7
      %v5921 = vsub.s32 0, %v5920
      %v5922 = vrot.slane %v207, %v5921
      %v5923 = vadd.f32 %v5903, %v5922
      %v5924 = vadd.f32 %v5904, %v5922
      %v5925 = vadd.f32 %v5905, %v5922
      %v5926 = vadd.f32 %v5906, %v5922
      %v5927 = vadd.f32 %v5907, %v5922
      %v5928 = vadd.f32 %v5908, %v5922
      %v5929 = vadd.f32 %v5909, %v5922
      %v5930 = vadd.f32 %v5910, %v5922
      %v5931 = vadd.f32 %v5911, %v5922
      %v5932 = vadd.f32 %v5912, %v5922
      %v5933 = vadd.f32 %v5913, %v5922
      %v5934 = vadd.f32 %v5914, %v5922
      %v5935 = vadd.f32 %v5915, %v5922
      %v5936 = vadd.f32 %v5916, %v5922
      %v5937 = vadd.f32 %v5917, %v5922
      %v5938 = vadd.f32 %v5918, %v5922
      %v5939 = vld [vmem:[%s1] sm:$0xff]
      %v5940 = vlaneseq
      %v5941 = vshrl.u32 %v5940, 7
      %v5942 = vsub.s32 0, %v5941
      %v5943 = vrot.slane %v208, %v5942
      %v5945 = vsel %vm1621, %v5923, 0
      %v5948 = vsel %vm1621, %v5924, 0
      %v5951 = vsel %vm1621, %v5925, 0
      %v5954 = vsel %vm1621, %v5926, 0
      %v5957 = vsel %vm1621, %v5927, 0
      %v5960 = vsel %vm1621, %v5928, 0
      %v5963 = vsel %vm1621, %v5929, 0
      %v5966 = vsel %vm1621, %v5930, 0
      %v5969 = vsel %vm1621, %v5931, 0
      %v5972 = vsel %vm1621, %v5932, 0
      %v5975 = vsel %vm1621, %v5933, 0
      %v5978 = vsel %vm1621, %v5934, 0
      %v5981 = vsel %vm1621, %v5935, 0
      %v5984 = vsel %vm1621, %v5936, 0
      %v5987 = vsel %vm1621, %v5937, 0
      %v5990 = vsel %vm1621, %v5938, 0
      %5992 = vmatprep.subr.mxu0 0.0
      %5993 = vmatpush1.msra.mxu0 %v5939
      %5994 = vmatprep.subr.mxu0 0.0
      %5995 = vmatpush1.msra.mxu0 0.0
      %5996 = vmatprep.subr.mxu0 0.0
      %5997 = vmatpush1.msra.mxu0 0.0
      %5998 = vmatprep.subr.mxu0 0.0
      %5999 = vmatpush1.msra.mxu0 0.0
      %6000 = vmatprep.subr.mxu0 0.0
      %6001 = vmatpush1.msra.mxu0 0.0
      %6002 = vmatprep.subr.mxu0 0.0
      %6003 = vmatpush1.msra.mxu0 0.0
      %6004 = vmatprep.subr.mxu0 0.0
      %6005 = vmatpush1.msra.mxu0 0.0
      %6006 = vmatprep.subr.mxu0 0.0
      %6007 = vmatpush1.msra.mxu0 0.0
      %6008 = vmatprep.subr.mxu0 0.0
      %6009 = vmatpush1.msra.mxu0 0.0
      %6010 = vmatprep.subr.mxu0 0.0
      %6011 = vmatpush1.msra.mxu0 0.0
      %6012 = vmatprep.subr.mxu0 0.0
      %6013 = vmatpush1.msra.mxu0 0.0
      %6014 = vmatprep.subr.mxu0 0.0
      %6015 = vmatpush1.msra.mxu0 0.0
      %6016 = vmatprep.subr.mxu0 0.0
      %6017 = vmatpush1.msra.mxu0 0.0
      %6018 = vmatprep.subr.mxu0 0.0
      %6019 = vmatpush1.msra.mxu0 0.0
      %6020 = vmatprep.subr.mxu0 0.0
      %6021 = vmatpush1.msra.mxu0 0.0
      %6022 = vmatprep.subr.mxu0 0.0
      %6023 = vmatpush1.msra.mxu0 0.0
      %6024 = vmatprep.subr.mxu0 0.0
      %6025 = vmatpush1.msra.mxu0 0.0
      %6026 = vmatprep.subr.mxu0 0.0
      %6027 = vmatpush1.msra.mxu0 0.0
      %6028 = vmatprep.subr.mxu0 0.0
      %6029 = vmatpush1.msra.mxu0 0.0
      %6030 = vmatprep.subr.mxu0 0.0
      %6031 = vmatpush1.msra.mxu0 0.0
      %6032 = vmatprep.subr.mxu0 0.0
      %6033 = vmatpush1.msra.mxu0 0.0
      %6034 = vmatprep.subr.mxu0 0.0
      %6035 = vmatpush1.msra.mxu0 0.0
      %6036 = vmatprep.subr.mxu0 0.0
      %6037 = vmatpush1.msra.mxu0 0.0
      %6038 = vmatprep.subr.mxu0 0.0
      %6039 = vmatpush1.msra.mxu0 0.0
      %6040 = vmatprep.subr.mxu0 0.0
      %6041 = vmatpush1.msra.mxu0 0.0
      %6042 = vmatprep.subr.mxu0 0.0
      %6043 = vmatpush1.msra.mxu0 0.0
      %6044 = vmatprep.subr.mxu0 0.0
      %6045 = vmatpush1.msra.mxu0 0.0
      %6046 = vmatprep.subr.mxu0 0.0
      %6047 = vmatpush1.msra.mxu0 0.0
      %6048 = vmatprep.subr.mxu0 0.0
      %6049 = vmatpush1.msra.mxu0 0.0
      %6050 = vmatprep.subr.mxu0 0.0
      %6051 = vmatpush1.msra.mxu0 0.0
      %6052 = vmatprep.subr.mxu0 0.0
      %6053 = vmatpush1.msra.mxu0 0.0
      %6054 = vmatprep.subr.mxu0 0.0
      %6055 = vmatpush1.msra.mxu0 0.0
      %6056 = vmatprep.mubr.f32.mxu0 0.0
      %6057 = vmatmul.mubr.f32.gmra.mrb[0].mxu0 %v5945
      %v6058 = vpop.f32.mrb[0].mxu0
      %v6059 = vadd.f32 %v5943, %v6058
      %v6060 = vpop.f32.mrb[0].mxu0
      %6061 = vmatprep.mubr.f32.mxu0 0.0
      %6062 = vmatmul.mubr.f32.gmra.mrb[0].mxu0 %v5948
      %v6063 = vpop.f32.mrb[0].mxu0
      %v6064 = vadd.f32 %v5943, %v6063
      %v6065 = vpop.f32.mrb[0].mxu0
      %6066 = vmatprep.mubr.f32.mxu0 0.0
      %6067 = vmatmul.mubr.f32.gmra.mrb[0].mxu0 %v5951
      %v6068 = vpop.f32.mrb[0].mxu0
      %v6069 = vadd.f32 %v5943, %v6068
      %v6070 = vpop.f32.mrb[0].mxu0
      %6071 = vmatprep.mubr.f32.mxu0 0.0
      %6072 = vmatmul.mubr.f32.gmra.mrb[0].mxu0 %v5954
      %v6073 = vpop.f32.mrb[0].mxu0
      %v6074 = vadd.f32 %v5943, %v6073
      %v6075 = vpop.f32.mrb[0].mxu0
      %6076 = vmatprep.mubr.f32.mxu0 0.0
      %6077 = vmatmul.mubr.f32.gmra.mrb[0].mxu0 %v5957
      %v6078 = vpop.f32.mrb[0].mxu0
      %v6079 = vadd.f32 %v5943, %v6078
      %v6080 = vpop.f32.mrb[0].mxu0
      %6081 = vmatprep.mubr.f32.mxu0 0.0
      %6082 = vmatmul.mubr.f32.gmra.mrb[0].mxu0 %v5960
      %v6083 = vpop.f32.mrb[0].mxu0
      %v6084 = vadd.f32 %v5943, %v6083
      %v6085 = vpop.f32.mrb[0].mxu0
      %6086 = vmatprep.mubr.f32.mxu0 0.0
      %6087 = vmatmul.mubr.f32.gmra.mrb[0].mxu0 %v5963
      %v6088 = vpop.f32.mrb[0].mxu0
      %v6089 = vadd.f32 %v5943, %v6088
      %v6090 = vpop.f32.mrb[0].mxu0
      %6091 = vmatprep.mubr.f32.mxu0 0.0
      %6092 = vmatmul.mubr.f32.gmra.mrb[0].mxu0 %v5966
      %v6093 = vpop.f32.mrb[0].mxu0
      %v6094 = vadd.f32 %v5943, %v6093
      %v6095 = vpop.f32.mrb[0].mxu0
      %6096 = vmatprep.mubr.f32.mxu0 0.0
      %6097 = vmatmul.mubr.f32.gmra.mrb[0].mxu0 %v5969
      %v6098 = vpop.f32.mrb[0].mxu0
      %v6099 = vadd.f32 %v5943, %v6098
      %v6100 = vpop.f32.mrb[0].mxu0
      %6101 = vmatprep.mubr.f32.mxu0 0.0
      %6102 = vmatmul.mubr.f32.gmra.mrb[0].mxu0 %v5972
      %v6103 = vpop.f32.mrb[0].mxu0
      %v6104 = vadd.f32 %v5943, %v6103
      %v6105 = vpop.f32.mrb[0].mxu0
      %6106 = vmatprep.mubr.f32.mxu0 0.0
      %6107 = vmatmul.mubr.f32.gmra.mrb[0].mxu0 %v5975
      %v6108 = vpop.f32.mrb[0].mxu0
      %v6109 = vadd.f32 %v5943, %v6108
      %v6110 = vpop.f32.mrb[0].mxu0
      %6111 = vmatprep.mubr.f32.mxu0 0.0
      %6112 = vmatmul.mubr.f32.gmra.mrb[0].mxu0 %v5978
      %v6113 = vpop.f32.mrb[0].mxu0
      %v6114 = vadd.f32 %v5943, %v6113
      %v6115 = vpop.f32.mrb[0].mxu0
      %6116 = vmatprep.mubr.f32.mxu0 0.0
      %6117 = vmatmul.mubr.f32.gmra.mrb[0].mxu0 %v5981
      %v6118 = vpop.f32.mrb[0].mxu0
      %v6119 = vadd.f32 %v5943, %v6118
      %v6120 = vpop.f32.mrb[0].mxu0
      %6121 = vmatprep.mubr.f32.mxu0 0.0
      %6122 = vmatmul.mubr.f32.gmra.mrb[0].mxu0 %v5984
      %v6123 = vpop.f32.mrb[0].mxu0
      %v6124 = vadd.f32 %v5943, %v6123
      %v6125 = vpop.f32.mrb[0].mxu0
      %6126 = vmatprep.mubr.f32.mxu0 0.0
      %6127 = vmatmul.mubr.f32.gmra.mrb[0].mxu0 %v5987
      %v6128 = vpop.f32.mrb[0].mxu0
      %v6129 = vadd.f32 %v5943, %v6128
      %v6130 = vpop.f32.mrb[0].mxu0
      %6131 = vmatprep.mubr.f32.mxu0 0.0
      %6132 = vmatmul.mubr.f32.gmra.mrb[0].mxu0 %v5990
      %v6133 = vpop.f32.mrb[0].mxu0
      %v6134 = vadd.f32 %v5943, %v6133
      %v6135 = vpop.f32.mrb[0].mxu0
      %6136 = vdwg.mxu0
      %v6137 = vmax.f32 %v6059, 0.0
      %v6138 = vmax.f32 %v6064, 0.0
      %v6139 = vmax.f32 %v6069, 0.0
      %v6140 = vmax.f32 %v6074, 0.0
      %v6141 = vmax.f32 %v6079, 0.0
      %v6142 = vmax.f32 %v6084, 0.0
      %v6143 = vmax.f32 %v6089, 0.0
      %v6144 = vmax.f32 %v6094, 0.0
      %v6145 = vmax.f32 %v6099, 0.0
      %v6146 = vmax.f32 %v6104, 0.0
      %v6147 = vmax.f32 %v6109, 0.0
      %v6148 = vmax.f32 %v6114, 0.0
      %v6149 = vmax.f32 %v6119, 0.0
      %v6150 = vmax.f32 %v6124, 0.0
      %v6151 = vmax.f32 %v6129, 0.0
      %v6152 = vmax.f32 %v6134, 0.0
      %v6153 = vld [vmem:[%s2] sm:$0xff]
      %v6154 = vld [vmem:[%s2 + $0x8] sm:$0xff]
      %v6155 = vld [vmem:[%s2 + $0x10] sm:$0xff]
      %v6156 = vld [vmem:[%s2 + $0x18] sm:$0xff]
      %v6157 = vlaneseq
      %v6158 = vshrl.u32 %v6157, 7
      %v6159 = vsub.s32 0, %v6158
      %v6160 = vrot.slane %v209, %v6159
      %vm6161 = vcmask 261120
      %v6163 = vsel %vm6161, %v6137, 0
      %v6166 = vsel %vm6161, %v6138, 0
      %v6169 = vsel %vm6161, %v6139, 0
      %v6172 = vsel %vm6161, %v6140, 0
      %v6175 = vsel %vm6161, %v6141, 0
      %v6178 = vsel %vm6161, %v6142, 0
      %v6181 = vsel %vm6161, %v6143, 0
      %v6184 = vsel %vm6161, %v6144, 0
      %v6187 = vsel %vm6161, %v6145, 0
      %v6190 = vsel %vm6161, %v6146, 0
      %v6193 = vsel %vm6161, %v6147, 0
      %v6196 = vsel %vm6161, %v6148, 0
      %v6199 = vsel %vm6161, %v6149, 0
      %v6202 = vsel %vm6161, %v6150, 0
      %v6205 = vsel %vm6161, %v6151, 0
      %v6208 = vsel %vm6161, %v6152, 0
      %6210 = vmatprep.subr.mxu0 0.0
      %6211 = vmatpush1.msra.mxu0 %v6153
      %6212 = vmatprep.subr.mxu0 0.0
      %6213 = vmatpush1.msra.mxu0 %v6154
      %6214 = vmatprep.subr.mxu0 0.0
      %6215 = vmatpush1.msra.mxu0 %v6155
      %6216 = vmatprep.subr.mxu0 0.0
      %6217 = vmatpush1.msra.mxu0 %v6156
      %6218 = vmatprep.subr.mxu0 0.0
      %6219 = vmatpush1.msra.mxu0 0.0
      %6220 = vmatprep.subr.mxu0 0.0
      %6221 = vmatpush1.msra.mxu0 0.0
      %6222 = vmatprep.subr.mxu0 0.0
      %6223 = vmatpush1.msra.mxu0 0.0
      %6224 = vmatprep.subr.mxu0 0.0
      %6225 = vmatpush1.msra.mxu0 0.0
      %6226 = vmatprep.subr.mxu0 0.0
      %6227 = vmatpush1.msra.mxu0 0.0
      %6228 = vmatprep.subr.mxu0 0.0
      %6229 = vmatpush1.msra.mxu0 0.0
      %6230 = vmatprep.subr.mxu0 0.0
      %6231 = vmatpush1.msra.mxu0 0.0
      %6232 = vmatprep.subr.mxu0 0.0
      %6233 = vmatpush1.msra.mxu0 0.0
      %6234 = vmatprep.subr.mxu0 0.0
      %6235 = vmatpush1.msra.mxu0 0.0
      %6236 = vmatprep.subr.mxu0 0.0
      %6237 = vmatpush1.msra.mxu0 0.0
      %6238 = vmatprep.subr.mxu0 0.0
      %6239 = vmatpush1.msra.mxu0 0.0
      %6240 = vmatprep.subr.mxu0 0.0
      %6241 = vmatpush1.msra.mxu0 0.0
      %6242 = vmatprep.subr.mxu0 0.0
      %6243 = vmatpush1.msra.mxu0 0.0
      %6244 = vmatprep.subr.mxu0 0.0
      %6245 = vmatpush1.msra.mxu0 0.0
      %6246 = vmatprep.subr.mxu0 0.0
      %6247 = vmatpush1.msra.mxu0 0.0
      %6248 = vmatprep.subr.mxu0 0.0
      %6249 = vmatpush1.msra.mxu0 0.0
      %6250 = vmatprep.subr.mxu0 0.0
      %6251 = vmatpush1.msra.mxu0 0.0
      %6252 = vmatprep.subr.mxu0 0.0
      %6253 = vmatpush1.msra.mxu0 0.0
      %6254 = vmatprep.subr.mxu0 0.0
      %6255 = vmatpush1.msra.mxu0 0.0
      %6256 = vmatprep.subr.mxu0 0.0
      %6257 = vmatpush1.msra.mxu0 0.0
      %6258 = vmatprep.subr.mxu0 0.0
      %6259 = vmatpush1.msra.mxu0 0.0
      %6260 = vmatprep.subr.mxu0 0.0
      %6261 = vmatpush1.msra.mxu0 0.0
      %6262 = vmatprep.subr.mxu0 0.0
      %6263 = vmatpush1.msra.mxu0 0.0
      %6264 = vmatprep.subr.mxu0 0.0
      %6265 = vmatpush1.msra.mxu0 0.0
      %6266 = vmatprep.subr.mxu0 0.0
      %6267 = vmatpush1.msra.mxu0 0.0
      %6268 = vmatprep.subr.mxu0 0.0
      %6269 = vmatpush1.msra.mxu0 0.0
      %6270 = vmatprep.subr.mxu0 0.0
      %6271 = vmatpush1.msra.mxu0 0.0
      %6272 = vmatprep.subr.mxu0 0.0
      %6273 = vmatpush1.msra.mxu0 0.0
      %6274 = vmatprep.mubr.f32.mxu0 0.0
      %6275 = vmatmul.mubr.f32.gmra.mrb[0].mxu0 %v6163
      %v6276 = vpop.f32.mrb[0].mxu0
      %v6277 = vadd.f32 %v6160, %v6276
      %v6278 = vpop.f32.mrb[0].mxu0
      %6279 = vmatprep.mubr.f32.mxu0 0.0
      %6280 = vmatmul.mubr.f32.gmra.mrb[0].mxu0 %v6166
      %v6281 = vpop.f32.mrb[0].mxu0
      %v6282 = vadd.f32 %v6160, %v6281
      %v6283 = vpop.f32.mrb[0].mxu0
      %6284 = vmatprep.mubr.f32.mxu0 0.0
      %6285 = vmatmul.mubr.f32.gmra.mrb[0].mxu0 %v6169
      %v6286 = vpop.f32.mrb[0].mxu0
      %v6287 = vadd.f32 %v6160, %v6286
      %v6288 = vpop.f32.mrb[0].mxu0
      %6289 = vmatprep.mubr.f32.mxu0 0.0
      %6290 = vmatmul.mubr.f32.gmra.mrb[0].mxu0 %v6172
      %v6291 = vpop.f32.mrb[0].mxu0
      %v6292 = vadd.f32 %v6160, %v6291
      %v6293 = vpop.f32.mrb[0].mxu0
      %6294 = vmatprep.mubr.f32.mxu0 0.0
      %6295 = vmatmul.mubr.f32.gmra.mrb[0].mxu0 %v6175
      %v6296 = vpop.f32.mrb[0].mxu0
      %v6297 = vadd.f32 %v6160, %v6296
      %v6298 = vpop.f32.mrb[0].mxu0
      %6299 = vmatprep.mubr.f32.mxu0 0.0
      %6300 = vmatmul.mubr.f32.gmra.mrb[0].mxu0 %v6178
      %v6301 = vpop.f32.mrb[0].mxu0
      %v6302 = vadd.f32 %v6160, %v6301
      %v6303 = vpop.f32.mrb[0].mxu0
      %6304 = vmatprep.mubr.f32.mxu0 0.0
      %6305 = vmatmul.mubr.f32.gmra.mrb[0].mxu0 %v6181
      %v6306 = vpop.f32.mrb[0].mxu0
      %v6307 = vadd.f32 %v6160, %v6306
      %v6308 = vpop.f32.mrb[0].mxu0
      %6309 = vmatprep.mubr.f32.mxu0 0.0
      %6310 = vmatmul.mubr.f32.gmra.mrb[0].mxu0 %v6184
      %v6311 = vpop.f32.mrb[0].mxu0
      %v6312 = vadd.f32 %v6160, %v6311
      %v6313 = vpop.f32.mrb[0].mxu0
      %6314 = vmatprep.mubr.f32.mxu0 0.0
      %6315 = vmatmul.mubr.f32.gmra.mrb[0].mxu0 %v6187
      %v6316 = vpop.f32.mrb[0].mxu0
      %v6317 = vadd.f32 %v6160, %v6316
      %v6318 = vpop.f32.mrb[0].mxu0
      %6319 = vmatprep.mubr.f32.mxu0 0.0
      %6320 = vmatmul.mubr.f32.gmra.mrb[0].mxu0 %v6190
      %v6321 = vpop.f32.mrb[0].mxu0
      %v6322 = vadd.f32 %v6160, %v6321
      %v6323 = vpop.f32.mrb[0].mxu0
      %6324 = vmatprep.mubr.f32.mxu0 0.0
      %6325 = vmatmul.mubr.f32.gmra.mrb[0].mxu0 %v6193
      %v6326 = vpop.f32.mrb[0].mxu0
      %v6327 = vadd.f32 %v6160, %v6326
      %v6328 = vpop.f32.mrb[0].mxu0
      %6329 = vmatprep.mubr.f32.mxu0 0.0
      %6330 = vmatmul.mubr.f32.gmra.mrb[0].mxu0 %v6196
      %v6331 = vpop.f32.mrb[0].mxu0
      %v6332 = vadd.f32 %v6160, %v6331
      %v6333 = vpop.f32.mrb[0].mxu0
      %6334 = vmatprep.mubr.f32.mxu0 0.0
      %6335 = vmatmul.mubr.f32.gmra.mrb[0].mxu0 %v6199
      %v6336 = vpop.f32.mrb[0].mxu0
      %v6337 = vadd.f32 %v6160, %v6336
      %v6338 = vpop.f32.mrb[0].mxu0
      %6339 = vmatprep.mubr.f32.mxu0 0.0
      %6340 = vmatmul.mubr.f32.gmra.mrb[0].mxu0 %v6202
      %v6341 = vpop.f32.mrb[0].mxu0
      %v6342 = vadd.f32 %v6160, %v6341
      %v6343 = vpop.f32.mrb[0].mxu0
      %6344 = vmatprep.mubr.f32.mxu0 0.0
      %6345 = vmatmul.mubr.f32.gmra.mrb[0].mxu0 %v6205
      %v6346 = vpop.f32.mrb[0].mxu0
      %v6347 = vadd.f32 %v6160, %v6346
      %v6348 = vpop.f32.mrb[0].mxu0
      %6349 = vmatprep.mubr.f32.mxu0 0.0
      %6350 = vmatmul.mubr.f32.gmra.mrb[0].mxu0 %v6208
      %v6351 = vpop.f32.mrb[0].mxu0
      %v6352 = vadd.f32 %v6160, %v6351
      %v6353 = vpop.f32.mrb[0].mxu0
      %6354 = vdwg.mxu0
      %v6355 = vadd.f32 %v6277, %v5923
      %v6356 = vadd.f32 %v6282, %v5924
      %v6357 = vadd.f32 %v6287, %v5925
      %v6358 = vadd.f32 %v6292, %v5926
      %v6359 = vadd.f32 %v6297, %v5927
      %v6360 = vadd.f32 %v6302, %v5928
      %v6361 = vadd.f32 %v6307, %v5929
      %v6362 = vadd.f32 %v6312, %v5930
      %v6363 = vadd.f32 %v6317, %v5931
      %v6364 = vadd.f32 %v6322, %v5932
      %v6365 = vadd.f32 %v6327, %v5933
      %v6366 = vadd.f32 %v6332, %v5934
      %v6367 = vadd.f32 %v6337, %v5935
      %v6368 = vadd.f32 %v6342, %v5936
      %v6369 = vadd.f32 %v6347, %v5937
      %v6370 = vadd.f32 %v6352, %v5938
      %v6371 = vsel %vm1621, %v6355, 0.0
      %6372 = vadd.xlane.f32.xlu0 %v6371
      %v6373 = vpop.xlane.xlu0 %6372
      %v6374 = vsel %vm1621, %v6356, 0.0
      %6375 = vadd.xlane.f32.xlu0 %v6374
      %v6376 = vpop.xlane.xlu0 %6375
      %v6377 = vsel %vm1621, %v6357, 0.0
      %6378 = vadd.xlane.f32.xlu0 %v6377
      %v6379 = vpop.xlane.xlu0 %6378
      %v6380 = vsel %vm1621, %v6358, 0.0
      %6381 = vadd.xlane.f32.xlu0 %v6380
      %v6382 = vpop.xlane.xlu0 %6381
      %v6383 = vsel %vm1621, %v6359, 0.0
      %6384 = vadd.xlane.f32.xlu0 %v6383
      %v6385 = vpop.xlane.xlu0 %6384
      %v6386 = vsel %vm1621, %v6360, 0.0
      %6387 = vadd.xlane.f32.xlu0 %v6386
      %v6388 = vpop.xlane.xlu0 %6387
      %v6389 = vsel %vm1621, %v6361, 0.0
      %6390 = vadd.xlane.f32.xlu0 %v6389
      %v6391 = vpop.xlane.xlu0 %6390
      %v6392 = vsel %vm1621, %v6362, 0.0
      %6393 = vadd.xlane.f32.xlu0 %v6392
      %v6394 = vpop.xlane.xlu0 %6393
      %v6395 = vsel %vm1621, %v6363, 0.0
      %6396 = vadd.xlane.f32.xlu0 %v6395
      %v6397 = vpop.xlane.xlu0 %6396
      %v6398 = vsel %vm1621, %v6364, 0.0
      %6399 = vadd.xlane.f32.xlu0 %v6398
      %v6400 = vpop.xlane.xlu0 %6399
      %v6401 = vsel %vm1621, %v6365, 0.0
      %6402 = vadd.xlane.f32.xlu0 %v6401
      %v6403 = vpop.xlane.xlu0 %6402
      %v6404 = vsel %vm1621, %v6366, 0.0
      %6405 = vadd.xlane.f32.xlu0 %v6404
      %v6406 = vpop.xlane.xlu0 %6405
      %v6407 = vsel %vm1621, %v6367, 0.0
      %6408 = vadd.xlane.f32.xlu0 %v6407
      %v6409 = vpop.xlane.xlu0 %6408
      %v6410 = vsel %vm1621, %v6368, 0.0
      %6411 = vadd.xlane.f32.xlu0 %v6410
      %v6412 = vpop.xlane.xlu0 %6411
      %v6413 = vsel %vm1621, %v6369, 0.0
      %6414 = vadd.xlane.f32.xlu0 %v6413
      %v6415 = vpop.xlane.xlu0 %6414
      %v6416 = vsel %vm1621, %v6370, 0.0
      %6417 = vadd.xlane.f32.xlu0 %v6416
      %v6418 = vpop.xlane.xlu0 %6417
      %v6419 = vmul.f32 %v6373, %v5738
      %v6420 = vmul.f32 %v6376, %v5738
      %v6421 = vmul.f32 %v6379, %v5738
      %v6422 = vmul.f32 %v6382, %v5738
      %v6423 = vmul.f32 %v6385, %v5738
      %v6424 = vmul.f32 %v6388, %v5738
      %v6425 = vmul.f32 %v6391, %v5738
      %v6426 = vmul.f32 %v6394, %v5738
      %v6427 = vmul.f32 %v6397, %v5738
      %v6428 = vmul.f32 %v6400, %v5738
      %v6429 = vmul.f32 %v6403, %v5738
      %v6430 = vmul.f32 %v6406, %v5738
      %v6431 = vmul.f32 %v6409, %v5738
      %v6432 = vmul.f32 %v6412, %v5738
      %v6433 = vmul.f32 %v6415, %v5738
      %v6434 = vmul.f32 %v6418, %v5738
      %v6435 = vsub.f32 %v6355, %v6419
      %v6436 = vsub.f32 %v6356, %v6420
      %v6437 = vsub.f32 %v6357, %v6421
      %v6438 = vsub.f32 %v6358, %v6422
      %v6439 = vsub.f32 %v6359, %v6423
      %v6440 = vsub.f32 %v6360, %v6424
      %v6441 = vsub.f32 %v6361, %v6425
      %v6442 = vsub.f32 %v6362, %v6426
      %v6443 = vsub.f32 %v6363, %v6427
      %v6444 = vsub.f32 %v6364, %v6428
      %v6445 = vsub.f32 %v6365, %v6429
      %v6446 = vsub.f32 %v6366, %v6430
      %v6447 = vsub.f32 %v6367, %v6431
      %v6448 = vsub.f32 %v6368, %v6432
      %v6449 = vsub.f32 %v6369, %v6433
      %v6450 = vsub.f32 %v6370, %v6434
      %v6451 = vmul.f32 %v6435, %v6435
      %v6452 = vmul.f32 %v6436, %v6436
      %v6453 = vmul.f32 %v6437, %v6437
      %v6454 = vmul.f32 %v6438, %v6438
      %v6455 = vmul.f32 %v6439, %v6439
      %v6456 = vmul.f32 %v6440, %v6440
      %v6457 = vmul.f32 %v6441, %v6441
      %v6458 = vmul.f32 %v6442, %v6442
      %v6459 = vmul.f32 %v6443, %v6443
      %v6460 = vmul.f32 %v6444, %v6444
      %v6461 = vmul.f32 %v6445, %v6445
      %v6462 = vmul.f32 %v6446, %v6446
      %v6463 = vmul.f32 %v6447, %v6447
      %v6464 = vmul.f32 %v6448, %v6448
      %v6465 = vmul.f32 %v6449, %v6449
      %v6466 = vmul.f32 %v6450, %v6450
      %v6467 = vsel %vm1621, %v6451, 0.0
      %6468 = vadd.xlane.f32.xlu0 %v6467
      %v6469 = vpop.xlane.xlu0 %6468
      %v6470 = vsel %vm1621, %v6452, 0.0
      %6471 = vadd.xlane.f32.xlu0 %v6470
      %v6472 = vpop.xlane.xlu0 %6471
      %v6473 = vsel %vm1621, %v6453, 0.0
      %6474 = vadd.xlane.f32.xlu0 %v6473
      %v6475 = vpop.xlane.xlu0 %6474
      %v6476 = vsel %vm1621, %v6454, 0.0
      %6477 = vadd.xlane.f32.xlu0 %v6476
      %v6478 = vpop.xlane.xlu0 %6477
      %v6479 = vsel %vm1621, %v6455, 0.0
      %6480 = vadd.xlane.f32.xlu0 %v6479
      %v6481 = vpop.xlane.xlu0 %6480
      %v6482 = vsel %vm1621, %v6456, 0.0
      %6483 = vadd.xlane.f32.xlu0 %v6482
      %v6484 = vpop.xlane.xlu0 %6483
      %v6485 = vsel %vm1621, %v6457, 0.0
      %6486 = vadd.xlane.f32.xlu0 %v6485
      %v6487 = vpop.xlane.xlu0 %6486
      %v6488 = vsel %vm1621, %v6458, 0.0
      %6489 = vadd.xlane.f32.xlu0 %v6488
      %v6490 = vpop.xlane.xlu0 %6489
      %v6491 = vsel %vm1621, %v6459, 0.0
      %6492 = vadd.xlane.f32.xlu0 %v6491
      %v6493 = vpop.xlane.xlu0 %6492
      %v6494 = vsel %vm1621, %v6460, 0.0
      %6495 = vadd.xlane.f32.xlu0 %v6494
      %v6496 = vpop.xlane.xlu0 %6495
      %v6497 = vsel %vm1621, %v6461, 0.0
      %6498 = vadd.xlane.f32.xlu0 %v6497
      %v6499 = vpop.xlane.xlu0 %6498
      %v6500 = vsel %vm1621, %v6462, 0.0
      %6501 = vadd.xlane.f32.xlu0 %v6500
      %v6502 = vpop.xlane.xlu0 %6501
      %v6503 = vsel %vm1621, %v6463, 0.0
      %6504 = vadd.xlane.f32.xlu0 %v6503
      %v6505 = vpop.xlane.xlu0 %6504
      %v6506 = vsel %vm1621, %v6464, 0.0
      %6507 = vadd.xlane.f32.xlu0 %v6506
      %v6508 = vpop.xlane.xlu0 %6507
      %v6509 = vsel %vm1621, %v6465, 0.0
      %6510 = vadd.xlane.f32.xlu0 %v6509
      %v6511 = vpop.xlane.xlu0 %6510
      %v6512 = vsel %vm1621, %v6466, 0.0
      %6513 = vadd.xlane.f32.xlu0 %v6512
      %v6514 = vpop.xlane.xlu0 %6513
      %v6515 = vmul.f32 %v6469, %v5738
      %v6516 = vmul.f32 %v6472, %v5738
      %v6517 = vmul.f32 %v6475, %v5738
      %v6518 = vmul.f32 %v6478, %v5738
      %v6519 = vmul.f32 %v6481, %v5738
      %v6520 = vmul.f32 %v6484, %v5738
      %v6521 = vmul.f32 %v6487, %v5738
      %v6522 = vmul.f32 %v6490, %v5738
      %v6523 = vmul.f32 %v6493, %v5738
      %v6524 = vmul.f32 %v6496, %v5738
      %v6525 = vmul.f32 %v6499, %v5738
      %v6526 = vmul.f32 %v6502, %v5738
      %v6527 = vmul.f32 %v6505, %v5738
      %v6528 = vmul.f32 %v6508, %v5738
      %v6529 = vmul.f32 %v6511, %v5738
      %v6530 = vmul.f32 %v6514, %v5738
      %v6531 = vadd.f32 %v6515, 1e-12
      %v6532 = vadd.f32 %v6516, 1e-12
      %v6533 = vadd.f32 %v6517, 1e-12
      %v6534 = vadd.f32 %v6518, 1e-12
      %v6535 = vadd.f32 %v6519, 1e-12
      %v6536 = vadd.f32 %v6520, 1e-12
      %v6537 = vadd.f32 %v6521, 1e-12
      %v6538 = vadd.f32 %v6522, 1e-12
      %v6539 = vadd.f32 %v6523, 1e-12
      %v6540 = vadd.f32 %v6524, 1e-12
      %v6541 = vadd.f32 %v6525, 1e-12
      %v6542 = vadd.f32 %v6526, 1e-12
      %v6543 = vadd.f32 %v6527, 1e-12
      %v6544 = vadd.f32 %v6528, 1e-12
      %v6545 = vadd.f32 %v6529, 1e-12
      %v6546 = vadd.f32 %v6530, 1e-12
      %v6547 = vrsqrt.pop %v6531
      %v6548 = vrsqrt.pop %v6532
      %v6549 = vrsqrt.pop %v6533
      %v6550 = vrsqrt.pop %v6534
      %v6551 = vrsqrt.pop %v6535
      %v6552 = vrsqrt.pop %v6536
      %v6553 = vrsqrt.pop %v6537
      %v6554 = vrsqrt.pop %v6538
      %v6555 = vrsqrt.pop %v6539
      %v6556 = vrsqrt.pop %v6540
      %v6557 = vrsqrt.pop %v6541
      %v6558 = vrsqrt.pop %v6542
      %v6559 = vrsqrt.pop %v6543
      %v6560 = vrsqrt.pop %v6544
      %v6561 = vrsqrt.pop %v6545
      %v6562 = vrsqrt.pop %v6546
      %v6563 = vmul.f32 %v6435, %v6547
      %v6564 = vmul.f32 %v6436, %v6548
      %v6565 = vmul.f32 %v6437, %v6549
      %v6566 = vmul.f32 %v6438, %v6550
      %v6567 = vmul.f32 %v6439, %v6551
      %v6568 = vmul.f32 %v6440, %v6552
      %v6569 = vmul.f32 %v6441, %v6553
      %v6570 = vmul.f32 %v6442, %v6554
      %v6571 = vmul.f32 %v6443, %v6555
      %v6572 = vmul.f32 %v6444, %v6556
      %v6573 = vmul.f32 %v6445, %v6557
      %v6574 = vmul.f32 %v6446, %v6558
      %v6575 = vmul.f32 %v6447, %v6559
      %v6576 = vmul.f32 %v6448, %v6560
      %v6577 = vmul.f32 %v6449, %v6561
      %v6578 = vmul.f32 %v6450, %v6562
      %v6579 = vlaneseq
      %v6580 = vshrl.u32 %v6579, 7
      %v6581 = vsub.s32 0, %v6580
      %v6582 = vrot.slane %v210, %v6581
      %v6583 = vmul.f32 %v6563, %v6582
      %v6584 = vmul.f32 %v6564, %v6582
      %v6585 = vmul.f32 %v6565, %v6582
      %v6586 = vmul.f32 %v6566, %v6582
      %v6587 = vmul.f32 %v6567, %v6582
      %v6588 = vmul.f32 %v6568, %v6582
      %v6589 = vmul.f32 %v6569, %v6582
      %v6590 = vmul.f32 %v6570, %v6582
      %v6591 = vmul.f32 %v6571, %v6582
      %v6592 = vmul.f32 %v6572, %v6582
      %v6593 = vmul.f32 %v6573, %v6582
      %v6594 = vmul.f32 %v6574, %v6582
      %v6595 = vmul.f32 %v6575, %v6582
      %v6596 = vmul.f32 %v6576, %v6582
      %v6597 = vmul.f32 %v6577, %v6582
      %v6598 = vmul.f32 %v6578, %v6582
      %v6599 = vlaneseq
      %v6600 = vshrl.u32 %v6599, 7
      %v6601 = vsub.s32 0, %v6600
      %v6602 = vrot.slane %v211, %v6601
      %v6603 = vadd.f32 %v6583, %v6602
      %v6604 = vadd.f32 %v6584, %v6602
      %v6605 = vadd.f32 %v6585, %v6602
      %v6606 = vadd.f32 %v6586, %v6602
      %v6607 = vadd.f32 %v6587, %v6602
      %v6608 = vadd.f32 %v6588, %v6602
      %v6609 = vadd.f32 %v6589, %v6602
      %v6610 = vadd.f32 %v6590, %v6602
      %v6611 = vadd.f32 %v6591, %v6602
      %v6612 = vadd.f32 %v6592, %v6602
      %v6613 = vadd.f32 %v6593, %v6602
      %v6614 = vadd.f32 %v6594, %v6602
      %v6615 = vadd.f32 %v6595, %v6602
      %v6616 = vadd.f32 %v6596, %v6602
      %v6617 = vadd.f32 %v6597, %v6602
      %v6618 = vadd.f32 %v6598, %v6602
      %6619 = vst.msk [vmem:[%s199] sm:$0xff] %vm1621, %v6603
      %6620 = vst.msk [vmem:[%s199 + $0x8] sm:$0xff] %vm1621, %v6604
      %6621 = vst.msk [vmem:[%s199 + $0x10] sm:$0xff] %vm1621, %v6605
      %6622 = vst.msk [vmem:[%s199 + $0x18] sm:$0xff] %vm1621, %v6606
      %6623 = vst.msk [vmem:[%s199 + $0x20] sm:$0xff] %vm1621, %v6607
      %6624 = vst.msk [vmem:[%s199 + $0x28] sm:$0xff] %vm1621, %v6608
      %6625 = vst.msk [vmem:[%s199 + $0x30] sm:$0xff] %vm1621, %v6609
      %6626 = vst.msk [vmem:[%s199 + $0x38] sm:$0xff] %vm1621, %v6610
      %6627 = vst.msk [vmem:[%s199 + $0x40] sm:$0xff] %vm1621, %v6611
      %6628 = vst.msk [vmem:[%s199 + $0x48] sm:$0xff] %vm1621, %v6612
      %6629 = vst.msk [vmem:[%s199 + $0x50] sm:$0xff] %vm1621, %v6613
      %6630 = vst.msk [vmem:[%s199 + $0x58] sm:$0xff] %vm1621, %v6614
      %6631 = vst.msk [vmem:[%s199 + $0x60] sm:$0xff] %vm1621, %v6615
      %6632 = vst.msk [vmem:[%s199 + $0x68] sm:$0xff] %vm1621, %v6616
      %6633 = vst.msk [vmem:[%s199 + $0x70] sm:$0xff] %vm1621, %v6617
      %6634 = vst.msk [vmem:[%s199 + $0x78] sm:$0xff] %vm1621, %v6618
      %s6635 = smul.u32 16, %s15
      %p6636 = scmp.lt.s32.totalorder %s6635, 31
      %s6637 = scalar_select %p6636, %s6635, 31
      %s6638 = smul.addr %s6637, 8
      %s6639 = scalar_lea.vmem %s4, %s6638
      // Predicated region
      $region37: #{tpu_custom_call.1} parent=35 // pred_check
        %p6640 = pneg %p122
      $region38: #{tpu_custom_call.1} parent=35 // pred_check_branch
        %6642 = sbr.rel (%p6640) target = $region40
      $region39: #{tpu_custom_call.1} parent=35 // pred_region
        %s6643 = smul.u32 16, %s15
      $region40: #{tpu_custom_call.1} parent=35 // pred_fallthru
        _
    $region36: #{tpu_custom_call.1} parent=5 // pred_fallthru
      _
    %p6644 = scmp.le.s32.totalorder 2, %s10
    // Predicated region
    $region41: #{tpu_custom_call.1} parent=5 // pred_check
      %p6645 = pneg %p6644
    $region42: #{tpu_custom_call.1} parent=5 // pred_check_branch
      %6647 = sbr.rel (%p6645) target = $region44
    $region43: #{tpu_custom_call.1} parent=5 // pred_region
      %s6648 = ssub.s32 %s10, 2
      // Predicated region
      $region45: #{tpu_custom_call.1} parent=43 // pred_check
        %p6649 = pneg %p128
      $region46: #{tpu_custom_call.1} parent=43 // pred_check_branch
        %6651 = sbr.rel (%p6649) target = $region48
      $region47: #{tpu_custom_call.1} parent=43 // pred_region
        %s6652 = smul.u32 16, %s16
        %p6653 = scmp.lt.s32.totalorder %s6652, 31
        %s6654 = scalar_select %p6653, %s6652, 31
        %s6655 = smul.addr %s6654, 8
        %s6656 = scalar_lea.vmem %s4, %s6655
      $region48: #{tpu_custom_call.1} parent=43 // pred_fallthru
        _
    $region44: #{tpu_custom_call.1} parent=5 // pred_fallthru
      _
  $region6: #{tpu_custom_call.1} parent=0 // loop_footer
    %s14 = sadd.s32 1, %s10
  $region7: #{tpu_custom_call.1} parent=0 // loop_footer_branch
    %9 = sbr.rel target = $region3
  $region8: #{tpu_custom_call.1} parent=0 // loop_exit
    _

</llo_original>
